<compile_context>
chip_gen: v7x
topology: tpu7x:2x2x1
jax: 0.10.0
libtpu: 0.0.40
codegen_flags: <defaults>
</compile_context>

<pallas_src>
import functools

import jax
import jax.numpy as jnp
from jax.experimental import pallas as pl
from jax.experimental.pallas import tpu as pltpu


# ----------------------------------------------------------------------------
# Small helpers
# ----------------------------------------------------------------------------
_VMEM_LIMIT_CACHE = [None]


def _vmem_limit_bytes():
    """Generation-aware VMEM limit: min(capacity/2, 64 MiB)."""
    if _VMEM_LIMIT_CACHE[0] is None:
        try:
            cap = int(pltpu.get_tpu_info().vmem_capacity_bytes)
            _VMEM_LIMIT_CACHE[0] = int(min(cap // 2, 64 << 20))
        except Exception:
            _VMEM_LIMIT_CACHE[0] = 48 << 20  # safe on v5e/v6e (128MiB) and v7x (64MiB)
    return _VMEM_LIMIT_CACHE[0]


def _pick_th(hout, wout, target_rows=2048):
    """Output rows per grid step: must divide hout; for partial-image blocks
    the flat block height th*wout must be sublane aligned (multiple of 8)."""
    if hout * wout <= target_rows:
        return hout
    best = hout
    for d in range(1, hout + 1):
        if hout % d == 0 and d * wout <= target_rows and (d * wout) % 8 == 0:
            best = d
    return best


def _pick_tm(m, target_rows=4096):
    """Row tile for the elementwise BN-apply kernel (divides m, multiple of 8)."""
    if m <= target_rows:
        return m
    best = m
    for d in range(1, m + 1):
        if m % d == 0 and d <= target_rows and d % 8 == 0:
            best = d
    return best


# ----------------------------------------------------------------------------
# Pallas kernels
# ----------------------------------------------------------------------------
def _conv_taps_body(x_ref, w_ref, b_ref, o_ref, stats_ref, *, ksize, th, wout, act):
    # x_ref:     (1, Hin, Win, C)    bf16, full image, resident across row blocks
    # w_ref:     (ksize*ksize, C, N) bf16, grid-invariant
    # b_ref:     (1, N)              f32
    # o_ref:     (1, th*wout, N)     bf16/f32 flat output rows for this block
    # stats_ref: (1, 1, 2, N)        f32 per-block column {sum, sum of squares}
    m = pl.program_id(1)
    c_in = x_ref.shape[3]
    n_out = o_ref.shape[2]
    rows = th * wout
    row0 = m * th

    acc = jnp.zeros((rows, n_out), jnp.float32)
    for r in range(ksize):
        for c in range(ksize):
            xt = x_ref[0, pl.ds(row0 + r, th), pl.ds(c, wout), :]
            xt = xt.reshape(rows, c_in)
            acc = acc + jnp.dot(xt, w_ref[r * ksize + c],
                                preferred_element_type=jnp.float32)
    acc = acc + b_ref[...]

    if stats_ref is not None:
        # BN stats on the pre-activation, accumulated in f32 (BN layers use
        # act="none"); tiny per-block partials reduced in JAX afterwards.
        stats_ref[0, 0, 0, :] = jnp.sum(acc, axis=0)
        stats_ref[0, 0, 1, :] = jnp.sum(acc * acc, axis=0)

    if act == "relu":
        acc = jnp.maximum(acc, 0.0)
    elif act == "tanh":
        acc = jnp.tanh(acc)
    o_ref[...] = acc.reshape(1, rows, n_out).astype(o_ref.dtype)


def _conv_taps_kernel(x_ref, w_ref, b_ref, o_ref, *, ksize, th, wout, act):
    _conv_taps_body(x_ref, w_ref, b_ref, o_ref, None,
                    ksize=ksize, th=th, wout=wout, act=act)


def _conv_taps_stats_kernel(x_ref, w_ref, b_ref, o_ref, stats_ref, *,
                            ksize, th, wout, act):
    _conv_taps_body(x_ref, w_ref, b_ref, o_ref, stats_ref,
                    ksize=ksize, th=th, wout=wout, act=act)


def _scale_shift_relu_kernel(x_ref, sc_ref, sh_ref, o_ref):
    x = x_ref[...].astype(jnp.float32)
    o_ref[...] = jnp.maximum(x * sc_ref[...] + sh_ref[...], 0.0).astype(o_ref.dtype)


# ----------------------------------------------------------------------------
# Pallas wrappers
# ----------------------------------------------------------------------------
def conv_taps(x, w_taps, bias, *, ksize, act, out_dtype, emit_stats):
    """Stride-1 'valid' KxK conv on an NHWC image with in-kernel tap gather
    (no materialized im2col), fused bias + activation and optional fused
    BatchNorm statistics.

    x:       (B, Hin, Win, C)      already padded / space-to-depth'ed
    w_taps:  (ksize*ksize, C, N)   per-tap weight matrices
    bias:    (N,)
    Returns (out_flat, stats): out_flat (B, Hout*Wout, N); stats
    (B, row_blocks, 2, N) column {sum, sum of squares} or None.
    """
    B, Hin, Win, C = x.shape
    KK, Cw, N = w_taps.shape
    assert KK == ksize * ksize and Cw == C
    Hout, Wout = Hin - ksize + 1, Win - ksize + 1
    M = Hout * Wout
    th = _pick_th(Hout, Wout)
    nm = Hout // th

    x = x.astype(jnp.bfloat16)            # halves HBM->VMEM DMA bytes
    w_taps = w_taps.astype(jnp.bfloat16)
    b2 = bias.astype(jnp.float32).reshape(1, N)

    in_specs = [
        # Full padded image per batch element; constant along the row axis so
        # it is DMA'd once per image and stays resident in VMEM.
        pl.BlockSpec((1, Hin, Win, C), lambda b, m: (b, 0, 0, 0)),
        # Grid-invariant weights / bias, resident in VMEM.
        pl.BlockSpec((KK, C, N), lambda b, m: (0, 0, 0)),
        pl.BlockSpec((1, N), lambda b, m: (0, 0)),
    ]
    out_shape = [jax.ShapeDtypeStruct((B, M, N), out_dtype)]
    out_specs = [pl.BlockSpec((1, th * Wout, N), lambda b, m: (b, m, 0))]
    if emit_stats:
        kernel = functools.partial(_conv_taps_stats_kernel,
                                   ksize=ksize, th=th, wout=Wout, act=act)
        out_shape.append(jax.ShapeDtypeStruct((B, nm, 2, N), jnp.float32))
        out_specs.append(pl.BlockSpec((1, 1, 2, N), lambda b, m: (b, m, 0, 0)))
    else:
        kernel = functools.partial(_conv_taps_kernel,
                                   ksize=ksize, th=th, wout=Wout, act=act)

    res = pl.pallas_call(
        kernel,
        grid=(B, nm),
        in_specs=in_specs,
        out_specs=out_specs,
        out_shape=out_shape,
        compiler_params=pltpu.CompilerParams(
            dimension_semantics=("parallel", "arbitrary"),
            vmem_limit_bytes=_vmem_limit_bytes()),
    )(x, w_taps, b2)
    if emit_stats:
        return res[0], res[1]
    return res[0], None


def scale_shift_relu(x_flat, sc, sh, out_dtype=jnp.bfloat16):
    """max(x*sc + sh, 0) on flat (B, M, N) with per-column sc/sh (BN apply)."""
    B, M, N = x_flat.shape
    tm = _pick_tm(M)
    nm = M // tm
    return pl.pallas_call(
        _scale_shift_relu_kernel,
        grid=(B, nm),
        in_specs=[
            pl.BlockSpec((1, tm, N), lambda b, m: (b, m, 0)),
            pl.BlockSpec((1, 1, N), lambda b, m: (0, 0, 0)),
            pl.BlockSpec((1, 1, N), lambda b, m: (0, 0, 0)),
        ],
        out_specs=pl.BlockSpec((1, tm, N), lambda b, m: (b, m, 0)),
        out_shape=jax.ShapeDtypeStruct((B, M, N), out_dtype),
        compiler_params=pltpu.CompilerParams(
            dimension_semantics=("parallel", "arbitrary"),
            vmem_limit_bytes=_vmem_limit_bytes()),
    )(x_flat,
      sc.reshape(1, 1, N).astype(jnp.float32),
      sh.reshape(1, 1, N).astype(jnp.float32))


def _bn_scale_shift(stats, count, gamma, beta, groups=1, eps=1e-5):
    """Turn fused per-block column {sum, sumsq} into per-column scale/shift.
    Columns are group-major: column g*C + c holds channel c (sub-pixel group g)."""
    s = jnp.sum(stats.astype(jnp.float32), axis=(0, 1))      # (2, N)
    N = s.shape[1]
    C = N // groups
    total = jnp.float32(count * groups)
    mean = s[0].reshape(groups, C).sum(axis=0) / total
    ex2 = s[1].reshape(groups, C).sum(axis=0) / total
    var = jnp.maximum(ex2 - mean * mean, 0.0)     # biased var (PyTorch forward)
    scale = gamma.astype(jnp.float32) / jnp.sqrt(var + eps)
    shift = beta.astype(jnp.float32) - mean * scale
    return jnp.tile(scale, groups), jnp.tile(shift, groups)


# ----------------------------------------------------------------------------
# Weight / layout transforms (tiny, trace-time JAX)
# ----------------------------------------------------------------------------
def _conv_s2d_weight(w_oihw):
    """Conv2d(k=4,s=2,p=1) weight (Cout,Cin,4,4) -> per-tap (4, 4*Cin, Cout)
    for the equivalent 2x2 stride-1 valid conv on the space-to-depth input
    (tap order (a,b); channel order (p,q,ci))."""
    co, ci, kh, kw = w_oihw.shape
    assert kh == 4 and kw == 4
    w6 = w_oihw.reshape(co, ci, 2, 2, 2, 2)       # (co, ci, a, p, b, q)
    w6 = jnp.transpose(w6, (2, 4, 3, 5, 1, 0))    # (a, b, p, q, ci, co)
    return w6.reshape(4, 4 * ci, co)


def _convT_subpixel_weight(w_iohw):
    """ConvTranspose2d(k=4,s=2,p=1) weight (Cin,Cout,4,4) -> per-tap
    (9, Cin, 4*Cout) of the equivalent 3x3 stride-1 'same' conv; the N axis
    holds the 4 output sub-pixel phases, column layout (py*2+px)*Cout + co."""
    ci, co, kh, kw = w_iohw.shape
    assert kh == 4 and kw == 4
    wz = jnp.pad(w_iohw, ((0, 0), (0, 0), (0, 1), (0, 1)))    # zero tap at idx 4
    idx = jnp.array([[3, 1, 4], [4, 2, 0]], dtype=jnp.int32)  # (phase, window r)
    w_sub = wz[:, :, idx[:, :, None, None], idx[None, None, :, :]]  # (ci,co,py,r,px,c)
    w_sub = jnp.transpose(w_sub, (3, 5, 0, 2, 4, 1))                # (r,c,ci,py,px,co)
    return w_sub.reshape(9, ci, 4 * co)


def _pad_space_to_depth(x):
    """(B,H,W,C) -> pad 1 -> space-to-depth(2) -> (B,(H+2)/2,(W+2)/2,4C),
    channel order (p, q, c): turns a k=4,s=2,p=1 conv into a 2x2 valid conv."""
    B, H, W, C = x.shape
    assert H % 2 == 0 and W % 2 == 0
    xp = jnp.pad(x, ((0, 0), (1, 1), (1, 1), (0, 0)))
    xp = xp.reshape(B, (H + 2) // 2, 2, (W + 2) // 2, 2, C)
    xp = jnp.transpose(xp, (0, 1, 3, 2, 4, 5))
    return xp.reshape(B, (H + 2) // 2, (W + 2) // 2, 4 * C)


def _pad1(x):
    return jnp.pad(x, ((0, 0), (1, 1), (1, 1), (0, 0)))


def _depth_to_space(flat, B, H, W, C):
    """(B, H*W, 4*C) flat sub-pixel layout -> (B, 2H, 2W, C)."""
    y = flat.reshape(B, H, W, 2, 2, C)
    y = jnp.transpose(y, (0, 1, 3, 2, 4, 5))
    return y.reshape(B, 2 * H, 2 * W, C)


# ----------------------------------------------------------------------------
# Generator forward
# ----------------------------------------------------------------------------
def generator_forward(x_nchw, p):
    x = jnp.transpose(x_nchw, (0, 2, 3, 1))             # NHWC
    B, H, W, _ = x.shape
    assert H % 4 == 0 and W % 4 == 0

    # 1) Conv(3->64, 4, s2, p1) + ReLU; N zero-padded 64->128 (lane-dense stores)
    w1 = jnp.pad(_conv_s2d_weight(p["w1"]), ((0, 0), (0, 0), (0, 64)))
    b1 = jnp.pad(p["b1"], (0, 64))
    x1 = _pad_space_to_depth(x.astype(jnp.bfloat16))
    h1, _ = conv_taps(x1, w1, b1, ksize=2, act="relu",
                      out_dtype=jnp.bfloat16, emit_stats=False)
    H1, W1 = H // 2, W // 2
    h1 = h1.reshape(B, H1, W1, 128)[:, :, :, :64]       # drop padded channels

    # 2) Conv(64->128) -> BatchNorm(128) -> ReLU (stats fused in GEMM epilogue)
    w2 = _conv_s2d_weight(p["w2"])                      # (4, 256, 128)
    x2 = _pad_space_to_depth(h1)
    h2, st2 = conv_taps(x2, w2, p["b2"], ksize=2, act="none",
                        out_dtype=jnp.bfloat16, emit_stats=True)
    H2, W2 = H // 4, W // 4
    sc2, sh2 = _bn_scale_shift(st2, B * H2 * W2, p["g2"], p["be2"], groups=1)
    h2 = scale_shift_relu(h2, sc2, sh2)                 # (B, H2*W2, 128) bf16
    h2 = h2.reshape(B, H2, W2, 128)

    # 3) ConvTranspose(128->64) -> BatchNorm(64) -> ReLU (sub-pixel 3x3 conv;
    #    BN applied on the flat sub-pixel layout: exact per-channel op)
    w3 = _convT_subpixel_weight(p["w3"])                # (9, 128, 256)
    b3 = jnp.tile(p["b3"], 4)
    h3, st3 = conv_taps(_pad1(h2), w3, b3, ksize=3, act="none",
                        out_dtype=jnp.bfloat16, emit_stats=True)
    sc3, sh3 = _bn_scale_shift(st3, B * H2 * W2, p["g3"], p["be3"], groups=4)
    h3 = scale_shift_relu(h3, sc3, sh3)                 # (B, H2*W2, 256) bf16
    h3 = _depth_to_space(h3, B, H2, W2, 64)             # (B, H/2, W/2, 64)

    # 4) ConvTranspose(64->3) + Tanh; N=12 kept unpadded (min writeback bytes)
    w4 = _convT_subpixel_weight(p["w4"])                # (9, 64, 12)
    b4 = jnp.tile(p["b4"], 4)
    h4, _ = conv_taps(_pad1(h3), w4, b4, ksize=3, act="tanh",
                      out_dtype=jnp.float32, emit_stats=False)
    h4 = _depth_to_space(h4, B, H1, W1, 3)              # (B, H, W, 3)

    return jnp.transpose(h4, (0, 3, 1, 2))              # back to NCHW


def init_params(key, latent_dim=3):
    ks = jax.random.split(key, 8)
    f32 = jnp.float32
    return {
        # Conv2d weights: (Cout, Cin, kH, kW)
        "w1": jax.random.normal(ks[0], (64, latent_dim, 4, 4), f32) * 0.05,
        "b1": jax.random.normal(ks[1], (64,), f32) * 0.01,
        "w2": jax.random.normal(ks[2], (128, 64, 4, 4), f32) * 0.05,
        "b2": jax.random.normal(ks[3], (128,), f32) * 0.01,
        # ConvTranspose2d weights: (Cin, Cout, kH, kW)
        "w3": jax.random.normal(ks[4], (128, 64, 4, 4), f32) * 0.05,
        "b3": jax.random.normal(ks[5], (64,), f32) * 0.01,
        "w4": jax.random.normal(ks[6], (64, 3, 4, 4), f32) * 0.05,
        "b4": jax.random.normal(ks[7], (3,), f32) * 0.01,
        # BatchNorm affine params (PyTorch default init: gamma=1, beta=0)
        "g2": jnp.ones((128,), f32),
        "be2": jnp.zeros((128,), f32),
        "g3": jnp.ones((64,), f32),
        "be3": jnp.zeros((64,), f32),
    }


if __name__ == "__main__":
    key = jax.random.PRNGKey(0)
    k_x, k_p = jax.random.split(key)

    # latent_dim=3, small spatial size (NCHW like PyTorch)
    x = jax.random.normal(k_x, (2, 3, 16, 16), jnp.float32)
    params = init_params(k_p, latent_dim=3)

    fwd = jax.jit(generator_forward)
    out = jax.block_until_ready(fwd(x, params))

    assert out.shape == (2, 3, 16, 16), out.shape
    assert out.dtype == jnp.float32
    assert bool(jnp.all(jnp.isfinite(out)))
    assert bool(jnp.all(jnp.abs(out) <= 1.0))  # tanh range
    print("KERNEL_OK")
</pallas_src>

<mosaic_0001>
module attributes {stable_mosaic.version = 11 : i64} {
  func.func @_conv_taps_kernel(%arg0: i32, %arg1: i32, %arg2: memref<1x9x9x12xbf16, #tpu.memory_space<vmem>>, %arg3: memref<4x12x128xbf16, #tpu.memory_space<vmem>>, %arg4: memref<1x128xf32, #tpu.memory_space<vmem>>, %arg5: memref<1x64x128xbf16, #tpu.memory_space<vmem>>) attributes {dimension_semantics = [#tpu.dimension_semantics<parallel>, #tpu.dimension_semantics<arbitrary>], iteration_bounds = array<i64: 2, 1>, scalar_prefetch = 0 : i64, scratch_operands = 0 : i64, tpu.core_type = #tpu.core_type<tc>, window_params = [{transform_indices = @transform_0, window_bounds = array<i64: 1, 9, 9, 12>}, {pipeline_mode = #tpu.pipeline_mode<synchronous>, transform_indices = @transform_1, window_bounds = array<i64: 4, 12, 128>}, {pipeline_mode = #tpu.pipeline_mode<synchronous>, transform_indices = @transform_2, window_bounds = array<i64: 1, 128>}, {transform_indices = @transform_3, window_bounds = array<i64: 1, 64, 128>}]} {
    %c8_i32 = arith.constant 8 : i32
    %0 = arith.muli %arg1, %c8_i32 : i32
    %cst = arith.constant 0.000000e+00 : f32
    %1 = vector.broadcast %cst : f32 to vector<64x128xf32>
    %c0_i32 = arith.constant 0 : i32
    %2 = arith.addi %0, %c0_i32 : i32
    %c0 = arith.constant 0 : index
    %3 = arith.index_cast %2 : i32 to index
    %c0_0 = arith.constant 0 : index
    %c0_1 = arith.constant 0 : index
    %4 = vector.load %arg2[%c0, %3, %c0_0, %c0_1] : memref<1x9x9x12xbf16, #tpu.memory_space<vmem>>, vector<1x8x8x12xbf16>
    %5 = vector.shape_cast %4 : vector<1x8x8x12xbf16> to vector<8x8x12xbf16>
    %6 = vector.shape_cast %5 : vector<8x8x12xbf16> to vector<64x12xbf16>
    %c0_2 = arith.constant 0 : index
    %c0_3 = arith.constant 0 : index
    %c0_4 = arith.constant 0 : index
    %7 = vector.load %arg3[%c0_2, %c0_3, %c0_4] : memref<4x12x128xbf16, #tpu.memory_space<vmem>>, vector<1x12x128xbf16>
    %8 = vector.shape_cast %7 : vector<1x12x128xbf16> to vector<12x128xbf16>
    %cst_5 = arith.constant dense<0.000000e+00> : vector<64x128xf32>
    %9 = tpu.matmul %6, %8, %cst_5 {dimension_numbers = #tpu.dot_dimension_numbers<[1], [0], [0], [1], [0, 0, 1, 1], [], []>} : vector<64x12xbf16>, vector<12x128xbf16>, vector<64x128xf32> -> vector<64x128xf32>
    %10 = arith.addf %1, %9 : vector<64x128xf32>
    %c0_i32_6 = arith.constant 0 : i32
    %11 = arith.addi %0, %c0_i32_6 : i32
    %c0_7 = arith.constant 0 : index
    %12 = arith.index_cast %11 : i32 to index
    %c1 = arith.constant 1 : index
    %c0_8 = arith.constant 0 : index
    %13 = vector.load %arg2[%c0_7, %12, %c1, %c0_8] : memref<1x9x9x12xbf16, #tpu.memory_space<vmem>>, vector<1x8x8x12xbf16>
    %14 = vector.shape_cast %13 : vector<1x8x8x12xbf16> to vector<8x8x12xbf16>
    %15 = vector.shape_cast %14 : vector<8x8x12xbf16> to vector<64x12xbf16>
    %c1_9 = arith.constant 1 : index
    %c0_10 = arith.constant 0 : index
    %c0_11 = arith.constant 0 : index
    %16 = vector.load %arg3[%c1_9, %c0_10, %c0_11] : memref<4x12x128xbf16, #tpu.memory_space<vmem>>, vector<1x12x128xbf16>
    %17 = vector.shape_cast %16 : vector<1x12x128xbf16> to vector<12x128xbf16>
    %cst_12 = arith.constant dense<0.000000e+00> : vector<64x128xf32>
    %18 = tpu.matmul %15, %17, %cst_12 {dimension_numbers = #tpu.dot_dimension_numbers<[1], [0], [0], [1], [0, 0, 1, 1], [], []>} : vector<64x12xbf16>, vector<12x128xbf16>, vector<64x128xf32> -> vector<64x128xf32>
    %19 = arith.addf %10, %18 : vector<64x128xf32>
    %c1_i32 = arith.constant 1 : i32
    %20 = arith.addi %0, %c1_i32 : i32
    %c0_13 = arith.constant 0 : index
    %21 = arith.index_cast %20 : i32 to index
    %c0_14 = arith.constant 0 : index
    %c0_15 = arith.constant 0 : index
    %22 = vector.load %arg2[%c0_13, %21, %c0_14, %c0_15] : memref<1x9x9x12xbf16, #tpu.memory_space<vmem>>, vector<1x8x8x12xbf16>
    %23 = vector.shape_cast %22 : vector<1x8x8x12xbf16> to vector<8x8x12xbf16>
    %24 = vector.shape_cast %23 : vector<8x8x12xbf16> to vector<64x12xbf16>
    %c2 = arith.constant 2 : index
    %c0_16 = arith.constant 0 : index
    %c0_17 = arith.constant 0 : index
    %25 = vector.load %arg3[%c2, %c0_16, %c0_17] : memref<4x12x128xbf16, #tpu.memory_space<vmem>>, vector<1x12x128xbf16>
    %26 = vector.shape_cast %25 : vector<1x12x128xbf16> to vector<12x128xbf16>
    %cst_18 = arith.constant dense<0.000000e+00> : vector<64x128xf32>
    %27 = tpu.matmul %24, %26, %cst_18 {dimension_numbers = #tpu.dot_dimension_numbers<[1], [0], [0], [1], [0, 0, 1, 1], [], []>} : vector<64x12xbf16>, vector<12x128xbf16>, vector<64x128xf32> -> vector<64x128xf32>
    %28 = arith.addf %19, %27 : vector<64x128xf32>
    %c1_i32_19 = arith.constant 1 : i32
    %29 = arith.addi %0, %c1_i32_19 : i32
    %c0_20 = arith.constant 0 : index
    %30 = arith.index_cast %29 : i32 to index
    %c1_21 = arith.constant 1 : index
    %c0_22 = arith.constant 0 : index
    %31 = vector.load %arg2[%c0_20, %30, %c1_21, %c0_22] : memref<1x9x9x12xbf16, #tpu.memory_space<vmem>>, vector<1x8x8x12xbf16>
    %32 = vector.shape_cast %31 : vector<1x8x8x12xbf16> to vector<8x8x12xbf16>
    %33 = vector.shape_cast %32 : vector<8x8x12xbf16> to vector<64x12xbf16>
    %c3 = arith.constant 3 : index
    %c0_23 = arith.constant 0 : index
    %c0_24 = arith.constant 0 : index
    %34 = vector.load %arg3[%c3, %c0_23, %c0_24] : memref<4x12x128xbf16, #tpu.memory_space<vmem>>, vector<1x12x128xbf16>
    %35 = vector.shape_cast %34 : vector<1x12x128xbf16> to vector<12x128xbf16>
    %cst_25 = arith.constant dense<0.000000e+00> : vector<64x128xf32>
    %36 = tpu.matmul %33, %35, %cst_25 {dimension_numbers = #tpu.dot_dimension_numbers<[1], [0], [0], [1], [0, 0, 1, 1], [], []>} : vector<64x12xbf16>, vector<12x128xbf16>, vector<64x128xf32> -> vector<64x128xf32>
    %37 = arith.addf %28, %36 : vector<64x128xf32>
    %c0_26 = arith.constant 0 : index
    %c0_27 = arith.constant 0 : index
    %38 = vector.load %arg4[%c0_26, %c0_27] : memref<1x128xf32, #tpu.memory_space<vmem>>, vector<1x128xf32>
    %39 = vector.broadcast %38 : vector<1x128xf32> to vector<64x128xf32>
    %40 = arith.addf %37, %39 : vector<64x128xf32>
    %cst_28 = arith.constant 0.000000e+00 : f32
    %41 = vector.broadcast %cst_28 : f32 to vector<64x128xf32>
    %42 = arith.maximumf %40, %41 : vector<64x128xf32>
    %43 = vector.shape_cast %42 : vector<64x128xf32> to vector<1x64x128xf32>
    %44 = arith.truncf %43 : vector<1x64x128xf32> to vector<1x64x128xbf16>
    %c0_29 = arith.constant 0 : index
    %c0_30 = arith.constant 0 : index
    %c0_31 = arith.constant 0 : index
    %45 = vector.load %arg5[%c0_29, %c0_30, %c0_31] : memref<1x64x128xbf16, #tpu.memory_space<vmem>>, vector<1x64x128xbf16>
    tpu.vector_store %arg5[%c0_29, %c0_30, %c0_31], %44 {strides = array<i32>} : memref<1x64x128xbf16, #tpu.memory_space<vmem>>, vector<1x64x128xbf16>,
    return
  }
  func.func @transform_0(%arg0: i32, %arg1: i32) -> (i32, i32, i32, i32) {
    %c0_i32 = arith.constant 0 : i32
    %c0_i32_0 = arith.constant 0 : i32
    %c0_i32_1 = arith.constant 0 : i32
    %c0_i32_2 = arith.constant 0 : i32
    return %arg0, %c0_i32, %c0_i32_0, %c0_i32_1 : i32, i32, i32, i32
  }
  func.func @transform_1(%arg0: i32, %arg1: i32) -> (i32, i32, i32) {
    %c0_i32 = arith.constant 0 : i32
    %c0_i32_0 = arith.constant 0 : i32
    %c0_i32_1 = arith.constant 0 : i32
    %c0_i32_2 = arith.constant 0 : i32
    return %c0_i32, %c0_i32_0, %c0_i32_1 : i32, i32, i32
  }
  func.func @transform_2(%arg0: i32, %arg1: i32) -> (i32, i32) {
    %c0_i32 = arith.constant 0 : i32
    %c0_i32_0 = arith.constant 0 : i32
    %c0_i32_1 = arith.constant 0 : i32
    return %c0_i32, %c0_i32_0 : i32, i32
  }
  func.func @transform_3(%arg0: i32, %arg1: i32) -> (i32, i32, i32) {
    %c0_i32 = arith.constant 0 : i32
    %c0_i32_0 = arith.constant 0 : i32
    return %arg0, %arg1, %c0_i32 : i32, i32, i32
  }
}

module attributes {stable_mosaic.version = 11 : i64} {
  func.func @_scale_shift_relu_kernel(%arg0: i32, %arg1: i32, %arg2: memref<1x16x128xbf16, #tpu.memory_space<vmem>>, %arg3: memref<1x1x128xf32, #tpu.memory_space<vmem>>, %arg4: memref<1x1x128xf32, #tpu.memory_space<vmem>>, %arg5: memref<1x16x128xbf16, #tpu.memory_space<vmem>>) attributes {dimension_semantics = [#tpu.dimension_semantics<parallel>, #tpu.dimension_semantics<arbitrary>], iteration_bounds = array<i64: 2, 1>, scalar_prefetch = 0 : i64, scratch_operands = 0 : i64, tpu.core_type = #tpu.core_type<tc>, window_params = [{transform_indices = @transform_0, window_bounds = array<i64: 1, 16, 128>}, {pipeline_mode = #tpu.pipeline_mode<synchronous>, transform_indices = @transform_1, window_bounds = array<i64: 1, 1, 128>}, {pipeline_mode = #tpu.pipeline_mode<synchronous>, transform_indices = @transform_2, window_bounds = array<i64: 1, 1, 128>}, {transform_indices = @transform_3, window_bounds = array<i64: 1, 16, 128>}]} {
    %c0 = arith.constant 0 : index
    %c0_0 = arith.constant 0 : index
    %c0_1 = arith.constant 0 : index
    %0 = vector.load %arg2[%c0, %c0_0, %c0_1] : memref<1x16x128xbf16, #tpu.memory_space<vmem>>, vector<1x16x128xbf16>
    %1 = arith.extf %0 : vector<1x16x128xbf16> to vector<1x16x128xf32>
    %c0_2 = arith.constant 0 : index
    %c0_3 = arith.constant 0 : index
    %c0_4 = arith.constant 0 : index
    %2 = vector.load %arg3[%c0_2, %c0_3, %c0_4] : memref<1x1x128xf32, #tpu.memory_space<vmem>>, vector<1x1x128xf32>
    %3 = vector.broadcast %2 : vector<1x1x128xf32> to vector<1x16x128xf32>
    %4 = arith.mulf %1, %3 : vector<1x16x128xf32>
    %c0_5 = arith.constant 0 : index
    %c0_6 = arith.constant 0 : index
    %c0_7 = arith.constant 0 : index
    %5 = vector.load %arg4[%c0_5, %c0_6, %c0_7] : memref<1x1x128xf32, #tpu.memory_space<vmem>>, vector<1x1x128xf32>
    %6 = vector.broadcast %5 : vector<1x1x128xf32> to vector<1x16x128xf32>
    %7 = arith.addf %4, %6 : vector<1x16x128xf32>
    %cst = arith.constant 0.000000e+00 : f32
    %8 = vector.broadcast %cst : f32 to vector<1x16x128xf32>
    %9 = arith.maximumf %7, %8 : vector<1x16x128xf32>
    %10 = arith.truncf %9 : vector<1x16x128xf32> to vector<1x16x128xbf16>
    %c0_8 = arith.constant 0 : index
    %c0_9 = arith.constant 0 : index
    %c0_10 = arith.constant 0 : index
    %11 = vector.load %arg5[%c0_8, %c0_9, %c0_10] : memref<1x16x128xbf16, #tpu.memory_space<vmem>>, vector<1x16x128xbf16>
    tpu.vector_store %arg5[%c0_8, %c0_9, %c0_10], %10 {strides = array<i32>} : memref<1x16x128xbf16, #tpu.memory_space<vmem>>, vector<1x16x128xbf16>,
    return
  }
  func.func @transform_0(%arg0: i32, %arg1: i32) -> (i32, i32, i32) {
    %c0_i32 = arith.constant 0 : i32
    %c0_i32_0 = arith.constant 0 : i32
    return %arg0, %arg1, %c0_i32 : i32, i32, i32
  }
  func.func @transform_1(%arg0: i32, %arg1: i32) -> (i32, i32, i32) {
    %c0_i32 = arith.constant 0 : i32
    %c0_i32_0 = arith.constant 0 : i32
    %c0_i32_1 = arith.constant 0 : i32
    %c0_i32_2 = arith.constant 0 : i32
    return %c0_i32, %c0_i32_0, %c0_i32_1 : i32, i32, i32
  }
  func.func @transform_2(%arg0: i32, %arg1: i32) -> (i32, i32, i32) {
    %c0_i32 = arith.constant 0 : i32
    %c0_i32_0 = arith.constant 0 : i32
    %c0_i32_1 = arith.constant 0 : i32
    %c0_i32_2 = arith.constant 0 : i32
    return %c0_i32, %c0_i32_0, %c0_i32_1 : i32, i32, i32
  }
  func.func @transform_3(%arg0: i32, %arg1: i32) -> (i32, i32, i32) {
    %c0_i32 = arith.constant 0 : i32
    %c0_i32_0 = arith.constant 0 : i32
    return %arg0, %arg1, %c0_i32 : i32, i32, i32
  }
}

module attributes {stable_mosaic.version = 11 : i64} {
  func.func @_conv_taps_stats_kernel(%arg0: i32, %arg1: i32, %arg2: memref<1x5x5x256xbf16, #tpu.memory_space<vmem>>, %arg3: memref<4x256x128xbf16, #tpu.memory_space<vmem>>, %arg4: memref<1x128xf32, #tpu.memory_space<vmem>>, %arg5: memref<1x16x128xbf16, #tpu.memory_space<vmem>>, %arg6: memref<1x1x2x128xf32, #tpu.memory_space<vmem>>) attributes {dimension_semantics = [#tpu.dimension_semantics<parallel>, #tpu.dimension_semantics<arbitrary>], iteration_bounds = array<i64: 2, 1>, scalar_prefetch = 0 : i64, scratch_operands = 0 : i64, tpu.core_type = #tpu.core_type<tc>, window_params = [{transform_indices = @transform_0, window_bounds = array<i64: 1, 5, 5, 256>}, {pipeline_mode = #tpu.pipeline_mode<synchronous>, transform_indices = @transform_1, window_bounds = array<i64: 4, 256, 128>}, {pipeline_mode = #tpu.pipeline_mode<synchronous>, transform_indices = @transform_2, window_bounds = array<i64: 1, 128>}, {transform_indices = @transform_3, window_bounds = array<i64: 1, 16, 128>}, {transform_indices = @transform_4, window_bounds = array<i64: 1, 1, 2, 128>}]} {
    %c4_i32 = arith.constant 4 : i32
    %0 = arith.muli %arg1, %c4_i32 : i32
    %cst = arith.constant 0.000000e+00 : f32
    %1 = vector.broadcast %cst : f32 to vector<16x128xf32>
    %c0_i32 = arith.constant 0 : i32
    %2 = arith.addi %0, %c0_i32 : i32
    %c0 = arith.constant 0 : index
    %3 = arith.index_cast %2 : i32 to index
    %c0_0 = arith.constant 0 : index
    %c0_1 = arith.constant 0 : index
    %4 = vector.load %arg2[%c0, %3, %c0_0, %c0_1] : memref<1x5x5x256xbf16, #tpu.memory_space<vmem>>, vector<1x4x4x256xbf16>
    %5 = vector.shape_cast %4 : vector<1x4x4x256xbf16> to vector<4x4x256xbf16>
    %6 = vector.shape_cast %5 : vector<4x4x256xbf16> to vector<16x256xbf16>
    %c0_2 = arith.constant 0 : index
    %c0_3 = arith.constant 0 : index
    %c0_4 = arith.constant 0 : index
    %7 = vector.load %arg3[%c0_2, %c0_3, %c0_4] : memref<4x256x128xbf16, #tpu.memory_space<vmem>>, vector<1x256x128xbf16>
    %8 = vector.shape_cast %7 : vector<1x256x128xbf16> to vector<256x128xbf16>
    %cst_5 = arith.constant dense<0.000000e+00> : vector<16x128xf32>
    %9 = tpu.matmul %6, %8, %cst_5 {dimension_numbers = #tpu.dot_dimension_numbers<[1], [0], [0], [1], [0, 0, 1, 1], [], []>} : vector<16x256xbf16>, vector<256x128xbf16>, vector<16x128xf32> -> vector<16x128xf32>
    %10 = arith.addf %1, %9 : vector<16x128xf32>
    %c0_i32_6 = arith.constant 0 : i32
    %11 = arith.addi %0, %c0_i32_6 : i32
    %c0_7 = arith.constant 0 : index
    %12 = arith.index_cast %11 : i32 to index
    %c1 = arith.constant 1 : index
    %c0_8 = arith.constant 0 : index
    %13 = vector.load %arg2[%c0_7, %12, %c1, %c0_8] : memref<1x5x5x256xbf16, #tpu.memory_space<vmem>>, vector<1x4x4x256xbf16>
    %14 = vector.shape_cast %13 : vector<1x4x4x256xbf16> to vector<4x4x256xbf16>
    %15 = vector.shape_cast %14 : vector<4x4x256xbf16> to vector<16x256xbf16>
    %c1_9 = arith.constant 1 : index
    %c0_10 = arith.constant 0 : index
    %c0_11 = arith.constant 0 : index
    %16 = vector.load %arg3[%c1_9, %c0_10, %c0_11] : memref<4x256x128xbf16, #tpu.memory_space<vmem>>, vector<1x256x128xbf16>
    %17 = vector.shape_cast %16 : vector<1x256x128xbf16> to vector<256x128xbf16>
    %cst_12 = arith.constant dense<0.000000e+00> : vector<16x128xf32>
    %18 = tpu.matmul %15, %17, %cst_12 {dimension_numbers = #tpu.dot_dimension_numbers<[1], [0], [0], [1], [0, 0, 1, 1], [], []>} : vector<16x256xbf16>, vector<256x128xbf16>, vector<16x128xf32> -> vector<16x128xf32>
    %19 = arith.addf %10, %18 : vector<16x128xf32>
    %c1_i32 = arith.constant 1 : i32
    %20 = arith.addi %0, %c1_i32 : i32
    %c0_13 = arith.constant 0 : index
    %21 = arith.index_cast %20 : i32 to index
    %c0_14 = arith.constant 0 : index
    %c0_15 = arith.constant 0 : index
    %22 = vector.load %arg2[%c0_13, %21, %c0_14, %c0_15] : memref<1x5x5x256xbf16, #tpu.memory_space<vmem>>, vector<1x4x4x256xbf16>
    %23 = vector.shape_cast %22 : vector<1x4x4x256xbf16> to vector<4x4x256xbf16>
    %24 = vector.shape_cast %23 : vector<4x4x256xbf16> to vector<16x256xbf16>
    %c2 = arith.constant 2 : index
    %c0_16 = arith.constant 0 : index
    %c0_17 = arith.constant 0 : index
    %25 = vector.load %arg3[%c2, %c0_16, %c0_17] : memref<4x256x128xbf16, #tpu.memory_space<vmem>>, vector<1x256x128xbf16>
    %26 = vector.shape_cast %25 : vector<1x256x128xbf16> to vector<256x128xbf16>
    %cst_18 = arith.constant dense<0.000000e+00> : vector<16x128xf32>
    %27 = tpu.matmul %24, %26, %cst_18 {dimension_numbers = #tpu.dot_dimension_numbers<[1], [0], [0], [1], [0, 0, 1, 1], [], []>} : vector<16x256xbf16>, vector<256x128xbf16>, vector<16x128xf32> -> vector<16x128xf32>
    %28 = arith.addf %19, %27 : vector<16x128xf32>
    %c1_i32_19 = arith.constant 1 : i32
    %29 = arith.addi %0, %c1_i32_19 : i32
    %c0_20 = arith.constant 0 : index
    %30 = arith.index_cast %29 : i32 to index
    %c1_21 = arith.constant 1 : index
    %c0_22 = arith.constant 0 : index
    %31 = vector.load %arg2[%c0_20, %30, %c1_21, %c0_22] : memref<1x5x5x256xbf16, #tpu.memory_space<vmem>>, vector<1x4x4x256xbf16>
    %32 = vector.shape_cast %31 : vector<1x4x4x256xbf16> to vector<4x4x256xbf16>
    %33 = vector.shape_cast %32 : vector<4x4x256xbf16> to vector<16x256xbf16>
    %c3 = arith.constant 3 : index
    %c0_23 = arith.constant 0 : index
    %c0_24 = arith.constant 0 : index
    %34 = vector.load %arg3[%c3, %c0_23, %c0_24] : memref<4x256x128xbf16, #tpu.memory_space<vmem>>, vector<1x256x128xbf16>
    %35 = vector.shape_cast %34 : vector<1x256x128xbf16> to vector<256x128xbf16>
    %cst_25 = arith.constant dense<0.000000e+00> : vector<16x128xf32>
    %36 = tpu.matmul %33, %35, %cst_25 {dimension_numbers = #tpu.dot_dimension_numbers<[1], [0], [0], [1], [0, 0, 1, 1], [], []>} : vector<16x256xbf16>, vector<256x128xbf16>, vector<16x128xf32> -> vector<16x128xf32>
    %37 = arith.addf %28, %36 : vector<16x128xf32>
    %c0_26 = arith.constant 0 : index
    %c0_27 = arith.constant 0 : index
    %38 = vector.load %arg4[%c0_26, %c0_27] : memref<1x128xf32, #tpu.memory_space<vmem>>, vector<1x128xf32>
    %39 = vector.broadcast %38 : vector<1x128xf32> to vector<16x128xf32>
    %40 = arith.addf %37, %39 : vector<16x128xf32>
    %cst_28 = arith.constant dense<0.000000e+00> : vector<128xf32>
    %41 = vector.multi_reduction <add>, %40, %cst_28 [0] : vector<16x128xf32> to vector<128xf32>
    %c0_29 = arith.constant 0 : index
    %c0_30 = arith.constant 0 : index
    %c0_31 = arith.constant 0 : index
    %c0_32 = arith.constant 0 : index
    %42 = vector.load %arg6[%c0_29, %c0_30, %c0_31, %c0_32] : memref<1x1x2x128xf32, #tpu.memory_space<vmem>>, vector<1x1x1x128xf32>
    %43 = vector.shape_cast %42 : vector<1x1x1x128xf32> to vector<128xf32>
    %44 = vector.shape_cast %41 : vector<128xf32> to vector<1x1x1x128xf32>
    tpu.vector_store %arg6[%c0_29, %c0_30, %c0_31, %c0_32], %44 {strides = array<i32>} : memref<1x1x2x128xf32, #tpu.memory_space<vmem>>, vector<1x1x1x128xf32>,
    %45 = arith.mulf %40, %40 : vector<16x128xf32>
    %cst_33 = arith.constant dense<0.000000e+00> : vector<128xf32>
    %46 = vector.multi_reduction <add>, %45, %cst_33 [0] : vector<16x128xf32> to vector<128xf32>
    %c0_34 = arith.constant 0 : index
    %c0_35 = arith.constant 0 : index
    %c1_36 = arith.constant 1 : index
    %c0_37 = arith.constant 0 : index
    %47 = vector.load %arg6[%c0_34, %c0_35, %c1_36, %c0_37] : memref<1x1x2x128xf32, #tpu.memory_space<vmem>>, vector<1x1x1x128xf32>
    %48 = vector.shape_cast %47 : vector<1x1x1x128xf32> to vector<128xf32>
    %49 = vector.shape_cast %46 : vector<128xf32> to vector<1x1x1x128xf32>
    tpu.vector_store %arg6[%c0_34, %c0_35, %c1_36, %c0_37], %49 {strides = array<i32>} : memref<1x1x2x128xf32, #tpu.memory_space<vmem>>, vector<1x1x1x128xf32>,
    %50 = vector.shape_cast %40 : vector<16x128xf32> to vector<1x16x128xf32>
    %51 = arith.truncf %50 : vector<1x16x128xf32> to vector<1x16x128xbf16>
    %c0_38 = arith.constant 0 : index
    %c0_39 = arith.constant 0 : index
    %c0_40 = arith.constant 0 : index
    %52 = vector.load %arg5[%c0_38, %c0_39, %c0_40] : memref<1x16x128xbf16, #tpu.memory_space<vmem>>, vector<1x16x128xbf16>
    tpu.vector_store %arg5[%c0_38, %c0_39, %c0_40], %51 {strides = array<i32>} : memref<1x16x128xbf16, #tpu.memory_space<vmem>>, vector<1x16x128xbf16>,
    return
  }
  func.func @transform_0(%arg0: i32, %arg1: i32) -> (i32, i32, i32, i32) {
    %c0_i32 = arith.constant 0 : i32
    %c0_i32_0 = arith.constant 0 : i32
    %c0_i32_1 = arith.constant 0 : i32
    %c0_i32_2 = arith.constant 0 : i32
    return %arg0, %c0_i32, %c0_i32_0, %c0_i32_1 : i32, i32, i32, i32
  }
  func.func @transform_1(%arg0: i32, %arg1: i32) -> (i32, i32, i32) {
    %c0_i32 = arith.constant 0 : i32
    %c0_i32_0 = arith.constant 0 : i32
    %c0_i32_1 = arith.constant 0 : i32
    %c0_i32_2 = arith.constant 0 : i32
    return %c0_i32, %c0_i32_0, %c0_i32_1 : i32, i32, i32
  }
  func.func @transform_2(%arg0: i32, %arg1: i32) -> (i32, i32) {
    %c0_i32 = arith.constant 0 : i32
    %c0_i32_0 = arith.constant 0 : i32
    %c0_i32_1 = arith.constant 0 : i32
    return %c0_i32, %c0_i32_0 : i32, i32
  }
  func.func @transform_3(%arg0: i32, %arg1: i32) -> (i32, i32, i32) {
    %c0_i32 = arith.constant 0 : i32
    %c0_i32_0 = arith.constant 0 : i32
    return %arg0, %arg1, %c0_i32 : i32, i32, i32
  }
  func.func @transform_4(%arg0: i32, %arg1: i32) -> (i32, i32, i32, i32) {
    %c0_i32 = arith.constant 0 : i32
    %c0_i32_0 = arith.constant 0 : i32
    %c0_i32_1 = arith.constant 0 : i32
    return %arg0, %arg1, %c0_i32, %c0_i32_0 : i32, i32, i32, i32
  }
}

module attributes {stable_mosaic.version = 11 : i64} {
  func.func @_conv_taps_stats_kernel(%arg0: i32, %arg1: i32, %arg2: memref<1x6x6x128xbf16, #tpu.memory_space<vmem>>, %arg3: memref<9x128x256xbf16, #tpu.memory_space<vmem>>, %arg4: memref<1x256xf32, #tpu.memory_space<vmem>>, %arg5: memref<1x16x256xbf16, #tpu.memory_space<vmem>>, %arg6: memref<1x1x2x256xf32, #tpu.memory_space<vmem>>) attributes {dimension_semantics = [#tpu.dimension_semantics<parallel>, #tpu.dimension_semantics<arbitrary>], iteration_bounds = array<i64: 2, 1>, scalar_prefetch = 0 : i64, scratch_operands = 0 : i64, tpu.core_type = #tpu.core_type<tc>, window_params = [{transform_indices = @transform_0, window_bounds = array<i64: 1, 6, 6, 128>}, {pipeline_mode = #tpu.pipeline_mode<synchronous>, transform_indices = @transform_1, window_bounds = array<i64: 9, 128, 256>}, {pipeline_mode = #tpu.pipeline_mode<synchronous>, transform_indices = @transform_2, window_bounds = array<i64: 1, 256>}, {transform_indices = @transform_3, window_bounds = array<i64: 1, 16, 256>}, {transform_indices = @transform_4, window_bounds = array<i64: 1, 1, 2, 256>}]} {
    %c4_i32 = arith.constant 4 : i32
    %0 = arith.muli %arg1, %c4_i32 : i32
    %cst = arith.constant 0.000000e+00 : f32
    %1 = vector.broadcast %cst : f32 to vector<16x256xf32>
    %c0_i32 = arith.constant 0 : i32
    %2 = arith.addi %0, %c0_i32 : i32
    %c0 = arith.constant 0 : index
    %3 = arith.index_cast %2 : i32 to index
    %c0_0 = arith.constant 0 : index
    %c0_1 = arith.constant 0 : index
    %4 = vector.load %arg2[%c0, %3, %c0_0, %c0_1] : memref<1x6x6x128xbf16, #tpu.memory_space<vmem>>, vector<1x4x4x128xbf16>
    %5 = vector.shape_cast %4 : vector<1x4x4x128xbf16> to vector<4x4x128xbf16>
    %6 = vector.shape_cast %5 : vector<4x4x128xbf16> to vector<16x128xbf16>
    %c0_2 = arith.constant 0 : index
    %c0_3 = arith.constant 0 : index
    %c0_4 = arith.constant 0 : index
    %7 = vector.load %arg3[%c0_2, %c0_3, %c0_4] : memref<9x128x256xbf16, #tpu.memory_space<vmem>>, vector<1x128x256xbf16>
    %8 = vector.shape_cast %7 : vector<1x128x256xbf16> to vector<128x256xbf16>
    %cst_5 = arith.constant dense<0.000000e+00> : vector<16x256xf32>
    %9 = tpu.matmul %6, %8, %cst_5 {dimension_numbers = #tpu.dot_dimension_numbers<[1], [0], [0], [1], [0, 0, 1, 1], [], []>} : vector<16x128xbf16>, vector<128x256xbf16>, vector<16x256xf32> -> vector<16x256xf32>
    %10 = arith.addf %1, %9 : vector<16x256xf32>
    %c0_i32_6 = arith.constant 0 : i32
    %11 = arith.addi %0, %c0_i32_6 : i32
    %c0_7 = arith.constant 0 : index
    %12 = arith.index_cast %11 : i32 to index
    %c1 = arith.constant 1 : index
    %c0_8 = arith.constant 0 : index
    %13 = vector.load %arg2[%c0_7, %12, %c1, %c0_8] : memref<1x6x6x128xbf16, #tpu.memory_space<vmem>>, vector<1x4x4x128xbf16>
    %14 = vector.shape_cast %13 : vector<1x4x4x128xbf16> to vector<4x4x128xbf16>
    %15 = vector.shape_cast %14 : vector<4x4x128xbf16> to vector<16x128xbf16>
    %c1_9 = arith.constant 1 : index
    %c0_10 = arith.constant 0 : index
    %c0_11 = arith.constant 0 : index
    %16 = vector.load %arg3[%c1_9, %c0_10, %c0_11] : memref<9x128x256xbf16, #tpu.memory_space<vmem>>, vector<1x128x256xbf16>
    %17 = vector.shape_cast %16 : vector<1x128x256xbf16> to vector<128x256xbf16>
    %cst_12 = arith.constant dense<0.000000e+00> : vector<16x256xf32>
    %18 = tpu.matmul %15, %17, %cst_12 {dimension_numbers = #tpu.dot_dimension_numbers<[1], [0], [0], [1], [0, 0, 1, 1], [], []>} : vector<16x128xbf16>, vector<128x256xbf16>, vector<16x256xf32> -> vector<16x256xf32>
    %19 = arith.addf %10, %18 : vector<16x256xf32>
    %c0_i32_13 = arith.constant 0 : i32
    %20 = arith.addi %0, %c0_i32_13 : i32
    %c0_14 = arith.constant 0 : index
    %21 = arith.index_cast %20 : i32 to index
    %c2 = arith.constant 2 : index
    %c0_15 = arith.constant 0 : index
    %22 = vector.load %arg2[%c0_14, %21, %c2, %c0_15] : memref<1x6x6x128xbf16, #tpu.memory_space<vmem>>, vector<1x4x4x128xbf16>
    %23 = vector.shape_cast %22 : vector<1x4x4x128xbf16> to vector<4x4x128xbf16>
    %24 = vector.shape_cast %23 : vector<4x4x128xbf16> to vector<16x128xbf16>
    %c2_16 = arith.constant 2 : index
    %c0_17 = arith.constant 0 : index
    %c0_18 = arith.constant 0 : index
    %25 = vector.load %arg3[%c2_16, %c0_17, %c0_18] : memref<9x128x256xbf16, #tpu.memory_space<vmem>>, vector<1x128x256xbf16>
    %26 = vector.shape_cast %25 : vector<1x128x256xbf16> to vector<128x256xbf16>
    %cst_19 = arith.constant dense<0.000000e+00> : vector<16x256xf32>
    %27 = tpu.matmul %24, %26, %cst_19 {dimension_numbers = #tpu.dot_dimension_numbers<[1], [0], [0], [1], [0, 0, 1, 1], [], []>} : vector<16x128xbf16>, vector<128x256xbf16>, vector<16x256xf32> -> vector<16x256xf32>
    %28 = arith.addf %19, %27 : vector<16x256xf32>
    %c1_i32 = arith.constant 1 : i32
    %29 = arith.addi %0, %c1_i32 : i32
    %c0_20 = arith.constant 0 : index
    %30 = arith.index_cast %29 : i32 to index
    %c0_21 = arith.constant 0 : index
    %c0_22 = arith.constant 0 : index
    %31 = vector.load %arg2[%c0_20, %30, %c0_21, %c0_22] : memref<1x6x6x128xbf16, #tpu.memory_space<vmem>>, vector<1x4x4x128xbf16>
    %32 = vector.shape_cast %31 : vector<1x4x4x128xbf16> to vector<4x4x128xbf16>
    %33 = vector.shape_cast %32 : vector<4x4x128xbf16> to vector<16x128xbf16>
    %c3 = arith.constant 3 : index
    %c0_23 = arith.constant 0 : index
    %c0_24 = arith.constant 0 : index
    %34 = vector.load %arg3[%c3, %c0_23, %c0_24] : memref<9x128x256xbf16, #tpu.memory_space<vmem>>, vector<1x128x256xbf16>
    %35 = vector.shape_cast %34 : vector<1x128x256xbf16> to vector<128x256xbf16>
    %cst_25 = arith.constant dense<0.000000e+00> : vector<16x256xf32>
    %36 = tpu.matmul %33, %35, %cst_25 {dimension_numbers = #tpu.dot_dimension_numbers<[1], [0], [0], [1], [0, 0, 1, 1], [], []>} : vector<16x128xbf16>, vector<128x256xbf16>, vector<16x256xf32> -> vector<16x256xf32>
    %37 = arith.addf %28, %36 : vector<16x256xf32>
    %c1_i32_26 = arith.constant 1 : i32
    %38 = arith.addi %0, %c1_i32_26 : i32
    %c0_27 = arith.constant 0 : index
    %39 = arith.index_cast %38 : i32 to index
    %c1_28 = arith.constant 1 : index
    %c0_29 = arith.constant 0 : index
    %40 = vector.load %arg2[%c0_27, %39, %c1_28, %c0_29] : memref<1x6x6x128xbf16, #tpu.memory_space<vmem>>, vector<1x4x4x128xbf16>
    %41 = vector.shape_cast %40 : vector<1x4x4x128xbf16> to vector<4x4x128xbf16>
    %42 = vector.shape_cast %41 : vector<4x4x128xbf16> to vector<16x128xbf16>
    %c4 = arith.constant 4 : index
    %c0_30 = arith.constant 0 : index
    %c0_31 = arith.constant 0 : index
    %43 = vector.load %arg3[%c4, %c0_30, %c0_31] : memref<9x128x256xbf16, #tpu.memory_space<vmem>>, vector<1x128x256xbf16>
    %44 = vector.shape_cast %43 : vector<1x128x256xbf16> to vector<128x256xbf16>
    %cst_32 = arith.constant dense<0.000000e+00> : vector<16x256xf32>
    %45 = tpu.matmul %42, %44, %cst_32 {dimension_numbers = #tpu.dot_dimension_numbers<[1], [0], [0], [1], [0, 0, 1, 1], [], []>} : vector<16x128xbf16>, vector<128x256xbf16>, vector<16x256xf32> -> vector<16x256xf32>
    %46 = arith.addf %37, %45 : vector<16x256xf32>
    %c1_i32_33 = arith.constant 1 : i32
    %47 = arith.addi %0, %c1_i32_33 : i32
    %c0_34 = arith.constant 0 : index
    %48 = arith.index_cast %47 : i32 to index
    %c2_35 = arith.constant 2 : index
    %c0_36 = arith.constant 0 : index
    %49 = vector.load %arg2[%c0_34, %48, %c2_35, %c0_36] : memref<1x6x6x128xbf16, #tpu.memory_space<vmem>>, vector<1x4x4x128xbf16>
    %50 = vector.shape_cast %49 : vector<1x4x4x128xbf16> to vector<4x4x128xbf16>
    %51 = vector.shape_cast %50 : vector<4x4x128xbf16> to vector<16x128xbf16>
    %c5 = arith.constant 5 : index
    %c0_37 = arith.constant 0 : index
    %c0_38 = arith.constant 0 : index
    %52 = vector.load %arg3[%c5, %c0_37, %c0_38] : memref<9x128x256xbf16, #tpu.memory_space<vmem>>, vector<1x128x256xbf16>
    %53 = vector.shape_cast %52 : vector<1x128x256xbf16> to vector<128x256xbf16>
    %cst_39 = arith.constant dense<0.000000e+00> : vector<16x256xf32>
    %54 = tpu.matmul %51, %53, %cst_39 {dimension_numbers = #tpu.dot_dimension_numbers<[1], [0], [0], [1], [0, 0, 1, 1], [], []>} : vector<16x128xbf16>, vector<128x256xbf16>, vector<16x256xf32> -> vector<16x256xf32>
    %55 = arith.addf %46, %54 : vector<16x256xf32>
    %c2_i32 = arith.constant 2 : i32
    %56 = arith.addi %0, %c2_i32 : i32
    %c0_40 = arith.constant 0 : index
    %57 = arith.index_cast %56 : i32 to index
    %c0_41 = arith.constant 0 : index
    %c0_42 = arith.constant 0 : index
    %58 = vector.load %arg2[%c0_40, %57, %c0_41, %c0_42] : memref<1x6x6x128xbf16, #tpu.memory_space<vmem>>, vector<1x4x4x128xbf16>
    %59 = vector.shape_cast %58 : vector<1x4x4x128xbf16> to vector<4x4x128xbf16>
    %60 = vector.shape_cast %59 : vector<4x4x128xbf16> to vector<16x128xbf16>
    %c6 = arith.constant 6 : index
    %c0_43 = arith.constant 0 : index
    %c0_44 = arith.constant 0 : index
    %61 = vector.load %arg3[%c6, %c0_43, %c0_44] : memref<9x128x256xbf16, #tpu.memory_space<vmem>>, vector<1x128x256xbf16>
    %62 = vector.shape_cast %61 : vector<1x128x256xbf16> to vector<128x256xbf16>
    %cst_45 = arith.constant dense<0.000000e+00> : vector<16x256xf32>
    %63 = tpu.matmul %60, %62, %cst_45 {dimension_numbers = #tpu.dot_dimension_numbers<[1], [0], [0], [1], [0, 0, 1, 1], [], []>} : vector<16x128xbf16>, vector<128x256xbf16>, vector<16x256xf32> -> vector<16x256xf32>
    %64 = arith.addf %55, %63 : vector<16x256xf32>
    %c2_i32_46 = arith.constant 2 : i32
    %65 = arith.addi %0, %c2_i32_46 : i32
    %c0_47 = arith.constant 0 : index
    %66 = arith.index_cast %65 : i32 to index
    %c1_48 = arith.constant 1 : index
    %c0_49 = arith.constant 0 : index
    %67 = vector.load %arg2[%c0_47, %66, %c1_48, %c0_49] : memref<1x6x6x128xbf16, #tpu.memory_space<vmem>>, vector<1x4x4x128xbf16>
    %68 = vector.shape_cast %67 : vector<1x4x4x128xbf16> to vector<4x4x128xbf16>
    %69 = vector.shape_cast %68 : vector<4x4x128xbf16> to vector<16x128xbf16>
    %c7 = arith.constant 7 : index
    %c0_50 = arith.constant 0 : index
    %c0_51 = arith.constant 0 : index
    %70 = vector.load %arg3[%c7, %c0_50, %c0_51] : memref<9x128x256xbf16, #tpu.memory_space<vmem>>, vector<1x128x256xbf16>
    %71 = vector.shape_cast %70 : vector<1x128x256xbf16> to vector<128x256xbf16>
    %cst_52 = arith.constant dense<0.000000e+00> : vector<16x256xf32>
    %72 = tpu.matmul %69, %71, %cst_52 {dimension_numbers = #tpu.dot_dimension_numbers<[1], [0], [0], [1], [0, 0, 1, 1], [], []>} : vector<16x128xbf16>, vector<128x256xbf16>, vector<16x256xf32> -> vector<16x256xf32>
    %73 = arith.addf %64, %72 : vector<16x256xf32>
    %c2_i32_53 = arith.constant 2 : i32
    %74 = arith.addi %0, %c2_i32_53 : i32
    %c0_54 = arith.constant 0 : index
    %75 = arith.index_cast %74 : i32 to index
    %c2_55 = arith.constant 2 : index
    %c0_56 = arith.constant 0 : index
    %76 = vector.load %arg2[%c0_54, %75, %c2_55, %c0_56] : memref<1x6x6x128xbf16, #tpu.memory_space<vmem>>, vector<1x4x4x128xbf16>
    %77 = vector.shape_cast %76 : vector<1x4x4x128xbf16> to vector<4x4x128xbf16>
    %78 = vector.shape_cast %77 : vector<4x4x128xbf16> to vector<16x128xbf16>
    %c8 = arith.constant 8 : index
    %c0_57 = arith.constant 0 : index
    %c0_58 = arith.constant 0 : index
    %79 = vector.load %arg3[%c8, %c0_57, %c0_58] : memref<9x128x256xbf16, #tpu.memory_space<vmem>>, vector<1x128x256xbf16>
    %80 = vector.shape_cast %79 : vector<1x128x256xbf16> to vector<128x256xbf16>
    %cst_59 = arith.constant dense<0.000000e+00> : vector<16x256xf32>
    %81 = tpu.matmul %78, %80, %cst_59 {dimension_numbers = #tpu.dot_dimension_numbers<[1], [0], [0], [1], [0, 0, 1, 1], [], []>} : vector<16x128xbf16>, vector<128x256xbf16>, vector<16x256xf32> -> vector<16x256xf32>
    %82 = arith.addf %73, %81 : vector<16x256xf32>
    %c0_60 = arith.constant 0 : index
    %c0_61 = arith.constant 0 : index
    %83 = vector.load %arg4[%c0_60, %c0_61] : memref<1x256xf32, #tpu.memory_space<vmem>>, vector<1x256xf32>
    %84 = vector.broadcast %83 : vector<1x256xf32> to vector<16x256xf32>
    %85 = arith.addf %82, %84 : vector<16x256xf32>
    %cst_62 = arith.constant dense<0.000000e+00> : vector<256xf32>
    %86 = vector.multi_reduction <add>, %85, %cst_62 [0] : vector<16x256xf32> to vector<256xf32>
    %c0_63 = arith.constant 0 : index
    %c0_64 = arith.constant 0 : index
    %c0_65 = arith.constant 0 : index
    %c0_66 = arith.constant 0 : index
    %87 = vector.load %arg6[%c0_63, %c0_64, %c0_65, %c0_66] : memref<1x1x2x256xf32, #tpu.memory_space<vmem>>, vector<1x1x1x256xf32>
    %88 = vector.shape_cast %87 : vector<1x1x1x256xf32> to vector<256xf32>
    %89 = vector.shape_cast %86 : vector<256xf32> to vector<1x1x1x256xf32>
    tpu.vector_store %arg6[%c0_63, %c0_64, %c0_65, %c0_66], %89 {strides = array<i32>} : memref<1x1x2x256xf32, #tpu.memory_space<vmem>>, vector<1x1x1x256xf32>,
    %90 = arith.mulf %85, %85 : vector<16x256xf32>
    %cst_67 = arith.constant dense<0.000000e+00> : vector<256xf32>
    %91 = vector.multi_reduction <add>, %90, %cst_67 [0] : vector<16x256xf32> to vector<256xf32>
    %c0_68 = arith.constant 0 : index
    %c0_69 = arith.constant 0 : index
    %c1_70 = arith.constant 1 : index
    %c0_71 = arith.constant 0 : index
    %92 = vector.load %arg6[%c0_68, %c0_69, %c1_70, %c0_71] : memref<1x1x2x256xf32, #tpu.memory_space<vmem>>, vector<1x1x1x256xf32>
    %93 = vector.shape_cast %92 : vector<1x1x1x256xf32> to vector<256xf32>
    %94 = vector.shape_cast %91 : vector<256xf32> to vector<1x1x1x256xf32>
    tpu.vector_store %arg6[%c0_68, %c0_69, %c1_70, %c0_71], %94 {strides = array<i32>} : memref<1x1x2x256xf32, #tpu.memory_space<vmem>>, vector<1x1x1x256xf32>,
    %95 = vector.shape_cast %85 : vector<16x256xf32> to vector<1x16x256xf32>
    %96 = arith.truncf %95 : vector<1x16x256xf32> to vector<1x16x256xbf16>
    %c0_72 = arith.constant 0 : index
    %c0_73 = arith.constant 0 : index
    %c0_74 = arith.constant 0 : index
    %97 = vector.load %arg5[%c0_72, %c0_73, %c0_74] : memref<1x16x256xbf16, #tpu.memory_space<vmem>>, vector<1x16x256xbf16>
    tpu.vector_store %arg5[%c0_72, %c0_73, %c0_74], %96 {strides = array<i32>} : memref<1x16x256xbf16, #tpu.memory_space<vmem>>, vector<1x16x256xbf16>,
    return
  }
  func.func @transform_0(%arg0: i32, %arg1: i32) -> (i32, i32, i32, i32) {
    %c0_i32 = arith.constant 0 : i32
    %c0_i32_0 = arith.constant 0 : i32
    %c0_i32_1 = arith.constant 0 : i32
    %c0_i32_2 = arith.constant 0 : i32
    return %arg0, %c0_i32, %c0_i32_0, %c0_i32_1 : i32, i32, i32, i32
  }
  func.func @transform_1(%arg0: i32, %arg1: i32) -> (i32, i32, i32) {
    %c0_i32 = arith.constant 0 : i32
    %c0_i32_0 = arith.constant 0 : i32
    %c0_i32_1 = arith.constant 0 : i32
    %c0_i32_2 = arith.constant 0 : i32
    return %c0_i32, %c0_i32_0, %c0_i32_1 : i32, i32, i32
  }
  func.func @transform_2(%arg0: i32, %arg1: i32) -> (i32, i32) {
    %c0_i32 = arith.constant 0 : i32
    %c0_i32_0 = arith.constant 0 : i32
    %c0_i32_1 = arith.constant 0 : i32
    return %c0_i32, %c0_i32_0 : i32, i32
  }
  func.func @transform_3(%arg0: i32, %arg1: i32) -> (i32, i32, i32) {
    %c0_i32 = arith.constant 0 : i32
    %c0_i32_0 = arith.constant 0 : i32
    return %arg0, %arg1, %c0_i32 : i32, i32, i32
  }
  func.func @transform_4(%arg0: i32, %arg1: i32) -> (i32, i32, i32, i32) {
    %c0_i32 = arith.constant 0 : i32
    %c0_i32_0 = arith.constant 0 : i32
    %c0_i32_1 = arith.constant 0 : i32
    return %arg0, %arg1, %c0_i32, %c0_i32_0 : i32, i32, i32, i32
  }
}

module attributes {stable_mosaic.version = 11 : i64} {
  func.func @_scale_shift_relu_kernel(%arg0: i32, %arg1: i32, %arg2: memref<1x16x256xbf16, #tpu.memory_space<vmem>>, %arg3: memref<1x1x256xf32, #tpu.memory_space<vmem>>, %arg4: memref<1x1x256xf32, #tpu.memory_space<vmem>>, %arg5: memref<1x16x256xbf16, #tpu.memory_space<vmem>>) attributes {dimension_semantics = [#tpu.dimension_semantics<parallel>, #tpu.dimension_semantics<arbitrary>], iteration_bounds = array<i64: 2, 1>, scalar_prefetch = 0 : i64, scratch_operands = 0 : i64, tpu.core_type = #tpu.core_type<tc>, window_params = [{transform_indices = @transform_0, window_bounds = array<i64: 1, 16, 256>}, {pipeline_mode = #tpu.pipeline_mode<synchronous>, transform_indices = @transform_1, window_bounds = array<i64: 1, 1, 256>}, {pipeline_mode = #tpu.pipeline_mode<synchronous>, transform_indices = @transform_2, window_bounds = array<i64: 1, 1, 256>}, {transform_indices = @transform_3, window_bounds = array<i64: 1, 16, 256>}]} {
    %c0 = arith.constant 0 : index
    %c0_0 = arith.constant 0 : index
    %c0_1 = arith.constant 0 : index
    %0 = vector.load %arg2[%c0, %c0_0, %c0_1] : memref<1x16x256xbf16, #tpu.memory_space<vmem>>, vector<1x16x256xbf16>
    %1 = arith.extf %0 : vector<1x16x256xbf16> to vector<1x16x256xf32>
    %c0_2 = arith.constant 0 : index
    %c0_3 = arith.constant 0 : index
    %c0_4 = arith.constant 0 : index
    %2 = vector.load %arg3[%c0_2, %c0_3, %c0_4] : memref<1x1x256xf32, #tpu.memory_space<vmem>>, vector<1x1x256xf32>
    %3 = vector.broadcast %2 : vector<1x1x256xf32> to vector<1x16x256xf32>
    %4 = arith.mulf %1, %3 : vector<1x16x256xf32>
    %c0_5 = arith.constant 0 : index
    %c0_6 = arith.constant 0 : index
    %c0_7 = arith.constant 0 : index
    %5 = vector.load %arg4[%c0_5, %c0_6, %c0_7] : memref<1x1x256xf32, #tpu.memory_space<vmem>>, vector<1x1x256xf32>
    %6 = vector.broadcast %5 : vector<1x1x256xf32> to vector<1x16x256xf32>
    %7 = arith.addf %4, %6 : vector<1x16x256xf32>
    %cst = arith.constant 0.000000e+00 : f32
    %8 = vector.broadcast %cst : f32 to vector<1x16x256xf32>
    %9 = arith.maximumf %7, %8 : vector<1x16x256xf32>
    %10 = arith.truncf %9 : vector<1x16x256xf32> to vector<1x16x256xbf16>
    %c0_8 = arith.constant 0 : index
    %c0_9 = arith.constant 0 : index
    %c0_10 = arith.constant 0 : index
    %11 = vector.load %arg5[%c0_8, %c0_9, %c0_10] : memref<1x16x256xbf16, #tpu.memory_space<vmem>>, vector<1x16x256xbf16>
    tpu.vector_store %arg5[%c0_8, %c0_9, %c0_10], %10 {strides = array<i32>} : memref<1x16x256xbf16, #tpu.memory_space<vmem>>, vector<1x16x256xbf16>,
    return
  }
  func.func @transform_0(%arg0: i32, %arg1: i32) -> (i32, i32, i32) {
    %c0_i32 = arith.constant 0 : i32
    %c0_i32_0 = arith.constant 0 : i32
    return %arg0, %arg1, %c0_i32 : i32, i32, i32
  }
  func.func @transform_1(%arg0: i32, %arg1: i32) -> (i32, i32, i32) {
    %c0_i32 = arith.constant 0 : i32
    %c0_i32_0 = arith.constant 0 : i32
    %c0_i32_1 = arith.constant 0 : i32
    %c0_i32_2 = arith.constant 0 : i32
    return %c0_i32, %c0_i32_0, %c0_i32_1 : i32, i32, i32
  }
  func.func @transform_2(%arg0: i32, %arg1: i32) -> (i32, i32, i32) {
    %c0_i32 = arith.constant 0 : i32
    %c0_i32_0 = arith.constant 0 : i32
    %c0_i32_1 = arith.constant 0 : i32
    %c0_i32_2 = arith.constant 0 : i32
    return %c0_i32, %c0_i32_0, %c0_i32_1 : i32, i32, i32
  }
  func.func @transform_3(%arg0: i32, %arg1: i32) -> (i32, i32, i32) {
    %c0_i32 = arith.constant 0 : i32
    %c0_i32_0 = arith.constant 0 : i32
    return %arg0, %arg1, %c0_i32 : i32, i32, i32
  }
}

module attributes {stable_mosaic.version = 11 : i64} {
  func.func @_conv_taps_kernel(%arg0: i32, %arg1: i32, %arg2: memref<1x10x10x64xbf16, #tpu.memory_space<vmem>>, %arg3: memref<9x64x12xbf16, #tpu.memory_space<vmem>>, %arg4: memref<1x12xf32, #tpu.memory_space<vmem>>, %arg5: memref<1x64x12xf32, #tpu.memory_space<vmem>>) attributes {dimension_semantics = [#tpu.dimension_semantics<parallel>, #tpu.dimension_semantics<arbitrary>], iteration_bounds = array<i64: 2, 1>, scalar_prefetch = 0 : i64, scratch_operands = 0 : i64, tpu.core_type = #tpu.core_type<tc>, window_params = [{transform_indices = @transform_0, window_bounds = array<i64: 1, 10, 10, 64>}, {pipeline_mode = #tpu.pipeline_mode<synchronous>, transform_indices = @transform_1, window_bounds = array<i64: 9, 64, 12>}, {pipeline_mode = #tpu.pipeline_mode<synchronous>, transform_indices = @transform_2, window_bounds = array<i64: 1, 12>}, {transform_indices = @transform_3, window_bounds = array<i64: 1, 64, 12>}]} {
    %c8_i32 = arith.constant 8 : i32
    %0 = arith.muli %arg1, %c8_i32 : i32
    %cst = arith.constant 0.000000e+00 : f32
    %1 = vector.broadcast %cst : f32 to vector<64x12xf32>
    %c0_i32 = arith.constant 0 : i32
    %2 = arith.addi %0, %c0_i32 : i32
    %c0 = arith.constant 0 : index
    %3 = arith.index_cast %2 : i32 to index
    %c0_0 = arith.constant 0 : index
    %c0_1 = arith.constant 0 : index
    %4 = vector.load %arg2[%c0, %3, %c0_0, %c0_1] : memref<1x10x10x64xbf16, #tpu.memory_space<vmem>>, vector<1x8x8x64xbf16>
    %5 = vector.shape_cast %4 : vector<1x8x8x64xbf16> to vector<8x8x64xbf16>
    %6 = vector.shape_cast %5 : vector<8x8x64xbf16> to vector<64x64xbf16>
    %c0_2 = arith.constant 0 : index
    %c0_3 = arith.constant 0 : index
    %c0_4 = arith.constant 0 : index
    %7 = vector.load %arg3[%c0_2, %c0_3, %c0_4] : memref<9x64x12xbf16, #tpu.memory_space<vmem>>, vector<1x64x12xbf16>
    %8 = vector.shape_cast %7 : vector<1x64x12xbf16> to vector<64x12xbf16>
    %cst_5 = arith.constant dense<0.000000e+00> : vector<64x12xf32>
    %9 = tpu.matmul %6, %8, %cst_5 {dimension_numbers = #tpu.dot_dimension_numbers<[1], [0], [0], [1], [0, 0, 1, 1], [], []>} : vector<64x64xbf16>, vector<64x12xbf16>, vector<64x12xf32> -> vector<64x12xf32>
    %10 = arith.addf %1, %9 : vector<64x12xf32>
    %c0_i32_6 = arith.constant 0 : i32
    %11 = arith.addi %0, %c0_i32_6 : i32
    %c0_7 = arith.constant 0 : index
    %12 = arith.index_cast %11 : i32 to index
    %c1 = arith.constant 1 : index
    %c0_8 = arith.constant 0 : index
    %13 = vector.load %arg2[%c0_7, %12, %c1, %c0_8] : memref<1x10x10x64xbf16, #tpu.memory_space<vmem>>, vector<1x8x8x64xbf16>
    %14 = vector.shape_cast %13 : vector<1x8x8x64xbf16> to vector<8x8x64xbf16>
    %15 = vector.shape_cast %14 : vector<8x8x64xbf16> to vector<64x64xbf16>
    %c1_9 = arith.constant 1 : index
    %c0_10 = arith.constant 0 : index
    %c0_11 = arith.constant 0 : index
    %16 = vector.load %arg3[%c1_9, %c0_10, %c0_11] : memref<9x64x12xbf16, #tpu.memory_space<vmem>>, vector<1x64x12xbf16>
    %17 = vector.shape_cast %16 : vector<1x64x12xbf16> to vector<64x12xbf16>
    %cst_12 = arith.constant dense<0.000000e+00> : vector<64x12xf32>
    %18 = tpu.matmul %15, %17, %cst_12 {dimension_numbers = #tpu.dot_dimension_numbers<[1], [0], [0], [1], [0, 0, 1, 1], [], []>} : vector<64x64xbf16>, vector<64x12xbf16>, vector<64x12xf32> -> vector<64x12xf32>
    %19 = arith.addf %10, %18 : vector<64x12xf32>
    %c0_i32_13 = arith.constant 0 : i32
    %20 = arith.addi %0, %c0_i32_13 : i32
    %c0_14 = arith.constant 0 : index
    %21 = arith.index_cast %20 : i32 to index
    %c2 = arith.constant 2 : index
    %c0_15 = arith.constant 0 : index
    %22 = vector.load %arg2[%c0_14, %21, %c2, %c0_15] : memref<1x10x10x64xbf16, #tpu.memory_space<vmem>>, vector<1x8x8x64xbf16>
    %23 = vector.shape_cast %22 : vector<1x8x8x64xbf16> to vector<8x8x64xbf16>
    %24 = vector.shape_cast %23 : vector<8x8x64xbf16> to vector<64x64xbf16>
    %c2_16 = arith.constant 2 : index
    %c0_17 = arith.constant 0 : index
    %c0_18 = arith.constant 0 : index
    %25 = vector.load %arg3[%c2_16, %c0_17, %c0_18] : memref<9x64x12xbf16, #tpu.memory_space<vmem>>, vector<1x64x12xbf16>
    %26 = vector.shape_cast %25 : vector<1x64x12xbf16> to vector<64x12xbf16>
    %cst_19 = arith.constant dense<0.000000e+00> : vector<64x12xf32>
    %27 = tpu.matmul %24, %26, %cst_19 {dimension_numbers = #tpu.dot_dimension_numbers<[1], [0], [0], [1], [0, 0, 1, 1], [], []>} : vector<64x64xbf16>, vector<64x12xbf16>, vector<64x12xf32> -> vector<64x12xf32>
    %28 = arith.addf %19, %27 : vector<64x12xf32>
    %c1_i32 = arith.constant 1 : i32
    %29 = arith.addi %0, %c1_i32 : i32
    %c0_20 = arith.constant 0 : index
    %30 = arith.index_cast %29 : i32 to index
    %c0_21 = arith.constant 0 : index
    %c0_22 = arith.constant 0 : index
    %31 = vector.load %arg2[%c0_20, %30, %c0_21, %c0_22] : memref<1x10x10x64xbf16, #tpu.memory_space<vmem>>, vector<1x8x8x64xbf16>
    %32 = vector.shape_cast %31 : vector<1x8x8x64xbf16> to vector<8x8x64xbf16>
    %33 = vector.shape_cast %32 : vector<8x8x64xbf16> to vector<64x64xbf16>
    %c3 = arith.constant 3 : index
    %c0_23 = arith.constant 0 : index
    %c0_24 = arith.constant 0 : index
    %34 = vector.load %arg3[%c3, %c0_23, %c0_24] : memref<9x64x12xbf16, #tpu.memory_space<vmem>>, vector<1x64x12xbf16>
    %35 = vector.shape_cast %34 : vector<1x64x12xbf16> to vector<64x12xbf16>
    %cst_25 = arith.constant dense<0.000000e+00> : vector<64x12xf32>
    %36 = tpu.matmul %33, %35, %cst_25 {dimension_numbers = #tpu.dot_dimension_numbers<[1], [0], [0], [1], [0, 0, 1, 1], [], []>} : vector<64x64xbf16>, vector<64x12xbf16>, vector<64x12xf32> -> vector<64x12xf32>
    %37 = arith.addf %28, %36 : vector<64x12xf32>
    %c1_i32_26 = arith.constant 1 : i32
    %38 = arith.addi %0, %c1_i32_26 : i32
    %c0_27 = arith.constant 0 : index
    %39 = arith.index_cast %38 : i32 to index
    %c1_28 = arith.constant 1 : index
    %c0_29 = arith.constant 0 : index
    %40 = vector.load %arg2[%c0_27, %39, %c1_28, %c0_29] : memref<1x10x10x64xbf16, #tpu.memory_space<vmem>>, vector<1x8x8x64xbf16>
    %41 = vector.shape_cast %40 : vector<1x8x8x64xbf16> to vector<8x8x64xbf16>
    %42 = vector.shape_cast %41 : vector<8x8x64xbf16> to vector<64x64xbf16>
    %c4 = arith.constant 4 : index
    %c0_30 = arith.constant 0 : index
    %c0_31 = arith.constant 0 : index
    %43 = vector.load %arg3[%c4, %c0_30, %c0_31] : memref<9x64x12xbf16, #tpu.memory_space<vmem>>, vector<1x64x12xbf16>
    %44 = vector.shape_cast %43 : vector<1x64x12xbf16> to vector<64x12xbf16>
    %cst_32 = arith.constant dense<0.000000e+00> : vector<64x12xf32>
    %45 = tpu.matmul %42, %44, %cst_32 {dimension_numbers = #tpu.dot_dimension_numbers<[1], [0], [0], [1], [0, 0, 1, 1], [], []>} : vector<64x64xbf16>, vector<64x12xbf16>, vector<64x12xf32> -> vector<64x12xf32>
    %46 = arith.addf %37, %45 : vector<64x12xf32>
    %c1_i32_33 = arith.constant 1 : i32
    %47 = arith.addi %0, %c1_i32_33 : i32
    %c0_34 = arith.constant 0 : index
    %48 = arith.index_cast %47 : i32 to index
    %c2_35 = arith.constant 2 : index
    %c0_36 = arith.constant 0 : index
    %49 = vector.load %arg2[%c0_34, %48, %c2_35, %c0_36] : memref<1x10x10x64xbf16, #tpu.memory_space<vmem>>, vector<1x8x8x64xbf16>
    %50 = vector.shape_cast %49 : vector<1x8x8x64xbf16> to vector<8x8x64xbf16>
    %51 = vector.shape_cast %50 : vector<8x8x64xbf16> to vector<64x64xbf16>
    %c5 = arith.constant 5 : index
    %c0_37 = arith.constant 0 : index
    %c0_38 = arith.constant 0 : index
    %52 = vector.load %arg3[%c5, %c0_37, %c0_38] : memref<9x64x12xbf16, #tpu.memory_space<vmem>>, vector<1x64x12xbf16>
    %53 = vector.shape_cast %52 : vector<1x64x12xbf16> to vector<64x12xbf16>
    %cst_39 = arith.constant dense<0.000000e+00> : vector<64x12xf32>
    %54 = tpu.matmul %51, %53, %cst_39 {dimension_numbers = #tpu.dot_dimension_numbers<[1], [0], [0], [1], [0, 0, 1, 1], [], []>} : vector<64x64xbf16>, vector<64x12xbf16>, vector<64x12xf32> -> vector<64x12xf32>
    %55 = arith.addf %46, %54 : vector<64x12xf32>
    %c2_i32 = arith.constant 2 : i32
    %56 = arith.addi %0, %c2_i32 : i32
    %c0_40 = arith.constant 0 : index
    %57 = arith.index_cast %56 : i32 to index
    %c0_41 = arith.constant 0 : index
    %c0_42 = arith.constant 0 : index
    %58 = vector.load %arg2[%c0_40, %57, %c0_41, %c0_42] : memref<1x10x10x64xbf16, #tpu.memory_space<vmem>>, vector<1x8x8x64xbf16>
    %59 = vector.shape_cast %58 : vector<1x8x8x64xbf16> to vector<8x8x64xbf16>
    %60 = vector.shape_cast %59 : vector<8x8x64xbf16> to vector<64x64xbf16>
    %c6 = arith.constant 6 : index
    %c0_43 = arith.constant 0 : index
    %c0_44 = arith.constant 0 : index
    %61 = vector.load %arg3[%c6, %c0_43, %c0_44] : memref<9x64x12xbf16, #tpu.memory_space<vmem>>, vector<1x64x12xbf16>
    %62 = vector.shape_cast %61 : vector<1x64x12xbf16> to vector<64x12xbf16>
    %cst_45 = arith.constant dense<0.000000e+00> : vector<64x12xf32>
    %63 = tpu.matmul %60, %62, %cst_45 {dimension_numbers = #tpu.dot_dimension_numbers<[1], [0], [0], [1], [0, 0, 1, 1], [], []>} : vector<64x64xbf16>, vector<64x12xbf16>, vector<64x12xf32> -> vector<64x12xf32>
    %64 = arith.addf %55, %63 : vector<64x12xf32>
    %c2_i32_46 = arith.constant 2 : i32
    %65 = arith.addi %0, %c2_i32_46 : i32
    %c0_47 = arith.constant 0 : index
    %66 = arith.index_cast %65 : i32 to index
    %c1_48 = arith.constant 1 : index
    %c0_49 = arith.constant 0 : index
    %67 = vector.load %arg2[%c0_47, %66, %c1_48, %c0_49] : memref<1x10x10x64xbf16, #tpu.memory_space<vmem>>, vector<1x8x8x64xbf16>
    %68 = vector.shape_cast %67 : vector<1x8x8x64xbf16> to vector<8x8x64xbf16>
    %69 = vector.shape_cast %68 : vector<8x8x64xbf16> to vector<64x64xbf16>
    %c7 = arith.constant 7 : index
    %c0_50 = arith.constant 0 : index
    %c0_51 = arith.constant 0 : index
    %70 = vector.load %arg3[%c7, %c0_50, %c0_51] : memref<9x64x12xbf16, #tpu.memory_space<vmem>>, vector<1x64x12xbf16>
    %71 = vector.shape_cast %70 : vector<1x64x12xbf16> to vector<64x12xbf16>
    %cst_52 = arith.constant dense<0.000000e+00> : vector<64x12xf32>
    %72 = tpu.matmul %69, %71, %cst_52 {dimension_numbers = #tpu.dot_dimension_numbers<[1], [0], [0], [1], [0, 0, 1, 1], [], []>} : vector<64x64xbf16>, vector<64x12xbf16>, vector<64x12xf32> -> vector<64x12xf32>
    %73 = arith.addf %64, %72 : vector<64x12xf32>
    %c2_i32_53 = arith.constant 2 : i32
    %74 = arith.addi %0, %c2_i32_53 : i32
    %c0_54 = arith.constant 0 : index
    %75 = arith.index_cast %74 : i32 to index
    %c2_55 = arith.constant 2 : index
    %c0_56 = arith.constant 0 : index
    %76 = vector.load %arg2[%c0_54, %75, %c2_55, %c0_56] : memref<1x10x10x64xbf16, #tpu.memory_space<vmem>>, vector<1x8x8x64xbf16>
    %77 = vector.shape_cast %76 : vector<1x8x8x64xbf16> to vector<8x8x64xbf16>
    %78 = vector.shape_cast %77 : vector<8x8x64xbf16> to vector<64x64xbf16>
    %c8 = arith.constant 8 : index
    %c0_57 = arith.constant 0 : index
    %c0_58 = arith.constant 0 : index
    %79 = vector.load %arg3[%c8, %c0_57, %c0_58] : memref<9x64x12xbf16, #tpu.memory_space<vmem>>, vector<1x64x12xbf16>
    %80 = vector.shape_cast %79 : vector<1x64x12xbf16> to vector<64x12xbf16>
    %cst_59 = arith.constant dense<0.000000e+00> : vector<64x12xf32>
    %81 = tpu.matmul %78, %80, %cst_59 {dimension_numbers = #tpu.dot_dimension_numbers<[1], [0], [0], [1], [0, 0, 1, 1], [], []>} : vector<64x64xbf16>, vector<64x12xbf16>, vector<64x12xf32> -> vector<64x12xf32>
    %82 = arith.addf %73, %81 : vector<64x12xf32>
    %c0_60 = arith.constant 0 : index
    %c0_61 = arith.constant 0 : index
    %83 = vector.load %arg4[%c0_60, %c0_61] : memref<1x12xf32, #tpu.memory_space<vmem>>, vector<1x12xf32>
    %84 = vector.broadcast %83 : vector<1x12xf32> to vector<64x12xf32>
    %85 = arith.addf %82, %84 : vector<64x12xf32>
    %86 = math.tanh %85 : vector<64x12xf32>
    %87 = vector.shape_cast %86 : vector<64x12xf32> to vector<1x64x12xf32>
    %c0_62 = arith.constant 0 : index
    %c0_63 = arith.constant 0 : index
    %c0_64 = arith.constant 0 : index
    %88 = vector.load %arg5[%c0_62, %c0_63, %c0_64] : memref<1x64x12xf32, #tpu.memory_space<vmem>>, vector<1x64x12xf32>
    tpu.vector_store %arg5[%c0_62, %c0_63, %c0_64], %87 {strides = array<i32>} : memref<1x64x12xf32, #tpu.memory_space<vmem>>, vector<1x64x12xf32>,
    return
  }
  func.func @transform_0(%arg0: i32, %arg1: i32) -> (i32, i32, i32, i32) {
    %c0_i32 = arith.constant 0 : i32
    %c0_i32_0 = arith.constant 0 : i32
    %c0_i32_1 = arith.constant 0 : i32
    %c0_i32_2 = arith.constant 0 : i32
    return %arg0, %c0_i32, %c0_i32_0, %c0_i32_1 : i32, i32, i32, i32
  }
  func.func @transform_1(%arg0: i32, %arg1: i32) -> (i32, i32, i32) {
    %c0_i32 = arith.constant 0 : i32
    %c0_i32_0 = arith.constant 0 : i32
    %c0_i32_1 = arith.constant 0 : i32
    %c0_i32_2 = arith.constant 0 : i32
    return %c0_i32, %c0_i32_0, %c0_i32_1 : i32, i32, i32
  }
  func.func @transform_2(%arg0: i32, %arg1: i32) -> (i32, i32) {
    %c0_i32 = arith.constant 0 : i32
    %c0_i32_0 = arith.constant 0 : i32
    %c0_i32_1 = arith.constant 0 : i32
    return %c0_i32, %c0_i32_0 : i32, i32
  }
  func.func @transform_3(%arg0: i32, %arg1: i32) -> (i32, i32, i32) {
    %c0_i32 = arith.constant 0 : i32
    %c0_i32_0 = arith.constant 0 : i32
    return %arg0, %arg1, %c0_i32 : i32, i32, i32
  }
}

</mosaic_0001>

<llo_original>
// kernel: generator_forward.6
$region0: #{generator_forward.6}
  #allocation0 [shape = 'u32[]', space=smem, size = 0x4, offset = 0x4, fixed_abs, tag = 'smem constant byte address 0x4 - core index']
  #allocation1 [shape = 'u32[144,128]{1,0:T(1,128)}', space=vmem, size = 0x12000, scoped, tag = 'internal scratch']
  %s0 = inlined_call_operand.vmem [shape: bf16[2,9,9,12], index: 0, kind: input, shape index: {}]
  %s1 = inlined_call_operand.vmem [shape: bf16[4,12,128], index: 1, kind: input, shape index: {}]
  %s2 = inlined_call_operand.vmem [shape: f32[1,128], index: 2, kind: input, shape index: {}]
  %s3 = inlined_call_operand.vmem [shape: bf16[2,64,128], index: 3, kind: output, shape index: {}]
  %s4 = sld [smem:[#allocation0]]
  $region45: #{generator_forward.6} parent=0
    _
  %s6 = ssub.s32 1, %s4
  %s7 = scalar_select 0, %s6, %s4
  loop: start=0, step=1, limit=4
  $region2: #{generator_forward.6} parent=0 // loop_pre_header
    _
  $region3: #{generator_forward.6} parent=0 // loop_header
    %s9 = sphi 0, %s13
    %p10 = scmp.ge.s32.totalorder %s9, 4
    %s16 = sphi 0, %s28
    %s17 = sphi 0, %s24
    %s18 = sphi 0, %s16
    %s19 = sphi 0, %s17
    %s20 = sphi 0, %s18
    %s21 = sphi 0, %s19
    %s31 = sphi 0, %s33
    %s34 = sphi 0, %s31
    %s35 = sphi 0, %s34
    %s51 = sphi 0, %s35
    %s55 = sphi 0, %s55
    %s57 = sphi 0, %s55
    %s58 = sphi 0, %s57
    %s72 = sphi 0, %s58
    %s76 = sphi 0, %s76
    %s78 = sphi 0, %s76
    %s79 = sphi 0, %s78
    %s93 = sphi 0, %s79
    %s101 = sphi 0, %s103
    %s104 = sphi 0, %s101
    %s105 = sphi 0, %s104
    %s121 = sphi 0, %s105
  $region4: #{generator_forward.6} parent=0 // loop_header_branch
    %12 = sbr.rel (%p10) target = $region8
  $region5: #{generator_forward.6} parent=0 // loop_body
    %s14 = ssub.s32 %s9, 1
    %s15 = ssub.s32 %s9, 2
    %s22 = sadd.s32 1, %s17
    %p23 = scmp.ge.s32.totalorder %s22, 1
    %s24 = scalar_select %p23, 0, %s22
    %s25 = sadd.s32 1, %s16
    %s26 = scalar_select %p23, %s25, %s16
    %p27 = scmp.ge.s32.totalorder %s26, 2
    %s28 = scalar_select %p27, 0, %s26
    %s29 = ssub.s32 %s16, %s28
    %p30 = scmp.eq.s32.totalorder %s29, 0
    %s32 = sadd.s32 %s31, 1
    %s33 = scalar_select %p30, %s31, %s32
    %p36 = pneg %p30
    %p37 = scmp.eq.s32.totalorder %s9, 1
    %p38 = por %p36, %p37
    %p39 = scmp.ne.s32.totalorder %s31, %s34
    %p40 = scmp.eq.s32.totalorder %s9, 0
    %p41 = por %p39, %p40
    %p42 = scmp.ne.s32.totalorder %s31, %s34
    %p43 = scmp.eq.s32.totalorder %s14, 1
    %p44 = por %p42, %p43
    %p45 = scmp.ne.s32.totalorder %s34, %s35
    %p46 = scmp.eq.s32.totalorder %s14, 0
    %p47 = por %p45, %p46
    %p48 = scmp.ne.s32.totalorder %s34, %s35
    %p49 = scmp.eq.s32.totalorder %s15, 1
    %p50 = por %p48, %p49
    %p52 = scmp.ne.s32.totalorder %s35, %s51
    %p53 = scmp.eq.s32.totalorder %s15, 0
    %p54 = por %p52, %p53
    %s56 = sadd.s32 %s55, 1
    %p59 = scmp.eq.s32.totalorder %s9, 1
    %p60 = scmp.ne.s32.totalorder %s55, %s57
    %p61 = scmp.eq.s32.totalorder %s9, 0
    %p62 = por %p60, %p61
    %p63 = scmp.ne.s32.totalorder %s55, %s57
    %p64 = scmp.eq.s32.totalorder %s14, 1
    %p65 = por %p63, %p64
    %p66 = scmp.ne.s32.totalorder %s57, %s58
    %p67 = scmp.eq.s32.totalorder %s14, 0
    %p68 = por %p66, %p67
    %p69 = scmp.ne.s32.totalorder %s57, %s58
    %p70 = scmp.eq.s32.totalorder %s15, 1
    %p71 = por %p69, %p70
    %p73 = scmp.ne.s32.totalorder %s58, %s72
    %p74 = scmp.eq.s32.totalorder %s15, 0
    %p75 = por %p73, %p74
    %s77 = sadd.s32 %s76, 1
    %p80 = scmp.eq.s32.totalorder %s9, 1
    %p81 = scmp.ne.s32.totalorder %s76, %s78
    %p82 = scmp.eq.s32.totalorder %s9, 0
    %p83 = por %p81, %p82
    %p84 = scmp.ne.s32.totalorder %s76, %s78
    %p85 = scmp.eq.s32.totalorder %s14, 1
    %p86 = por %p84, %p85
    %p87 = scmp.ne.s32.totalorder %s78, %s79
    %p88 = scmp.eq.s32.totalorder %s14, 0
    %p89 = por %p87, %p88
    %p90 = scmp.ne.s32.totalorder %s78, %s79
    %p91 = scmp.eq.s32.totalorder %s15, 1
    %p92 = por %p90, %p91
    %p94 = scmp.ne.s32.totalorder %s79, %s93
    %p95 = scmp.eq.s32.totalorder %s15, 0
    %p96 = por %p94, %p95
    %s97 = ssub.s32 %s16, %s28
    %s98 = ssub.s32 %s17, %s24
    %s99 = sor.u32 %s97, %s98
    %p100 = scmp.eq.s32.totalorder %s99, 0
    %s102 = sadd.s32 %s101, 1
    %s103 = scalar_select %p100, %s101, %s102
    %p106 = pneg %p100
    %p107 = scmp.eq.s32.totalorder %s9, 1
    %p108 = por %p106, %p107
    %p109 = scmp.ne.s32.totalorder %s101, %s104
    %p110 = scmp.eq.s32.totalorder %s9, 0
    %p111 = por %p109, %p110
    %p112 = scmp.ne.s32.totalorder %s101, %s104
    %p113 = scmp.eq.s32.totalorder %s14, 1
    %p114 = por %p112, %p113
    %p115 = scmp.ne.s32.totalorder %s104, %s105
    %p116 = scmp.eq.s32.totalorder %s14, 0
    %p117 = por %p115, %p116
    %p118 = scmp.ne.s32.totalorder %s104, %s105
    %p119 = scmp.eq.s32.totalorder %s15, 1
    %p120 = por %p118, %p119
    %p122 = scmp.ne.s32.totalorder %s105, %s121
    %p123 = scmp.eq.s32.totalorder %s15, 0
    %p124 = por %p122, %p123
    %p125 = scmp.le.s32.totalorder 1, %s9
    %p126 = scmp.lt.s32.totalorder %s9, 3
    %p127 = pnand %p125, %p126
    %p128 = pneg %p127
    // Predicated region
    $region9: #{generator_forward.6} parent=5 // pred_check
      _
    $region10: #{generator_forward.6} parent=5 // pred_check_branch
      %130 = sbr.rel (%p127) target = $region12
    $region11: #{generator_forward.6} parent=5 // pred_region
      %s131 = ssub.s32 %s9, 1
      // Predicated region
      $region13: #{generator_forward.6} parent=11 // pred_check
        %p132 = pneg %p68
      $region14: #{generator_forward.6} parent=11 // pred_check_branch
        %134 = sbr.rel (%p132) target = $region16
      $region15: #{generator_forward.6} parent=11 // pred_region
        _
      $region16: #{generator_forward.6} parent=11 // pred_fallthru
        _
      // Predicated region
      $region17: #{generator_forward.6} parent=11 // pred_check
        %p135 = pneg %p89
      $region18: #{generator_forward.6} parent=11 // pred_check_branch
        %137 = sbr.rel (%p135) target = $region20
      $region19: #{generator_forward.6} parent=11 // pred_region
        _
      $region20: #{generator_forward.6} parent=11 // pred_fallthru
        _
    $region12: #{generator_forward.6} parent=5 // pred_fallthru
      _
    %p138 = scmp.lt.s32.totalorder %s9, 2
    // Predicated region
    $region21: #{generator_forward.6} parent=5 // pred_check
      %p139 = pneg %p138
    $region22: #{generator_forward.6} parent=5 // pred_check_branch
      %141 = sbr.rel (%p139) target = $region24
    $region23: #{generator_forward.6} parent=5 // pred_region
      // Predicated region
      $region25: #{generator_forward.6} parent=23 // pred_check
        %p142 = pneg %p41
      $region26: #{generator_forward.6} parent=23 // pred_check_branch
        %144 = sbr.rel (%p142) target = $region28
      $region27: #{generator_forward.6} parent=23 // pred_region
        %p145 = scmp.lt.s32.totalorder %s16, 1
        %s146 = scalar_select %p145, %s16, 1
        %s147 = smul.addr %s146, 18
        %s148 = smul.addr %s147, 4
        %s149 = scalar_lea.vmem %s0, %s148
      $region28: #{generator_forward.6} parent=23 // pred_fallthru
        _
    $region24: #{generator_forward.6} parent=5 // pred_fallthru
      _
    %p150 = scmp.le.s32.totalorder 1, %s9
    %p151 = scmp.lt.s32.totalorder %s9, 3
    %p152 = pnand %p150, %p151
    %p153 = pneg %p152
    // Predicated region
    $region29: #{generator_forward.6} parent=5 // pred_check
      _
    $region30: #{generator_forward.6} parent=5 // pred_check_branch
      %155 = sbr.rel (%p152) target = $region32
    $region31: #{generator_forward.6} parent=5 // pred_region
      %s156 = ssub.s32 %s9, 1
      %p157 = scmp.lt.s32.totalorder %s18, 1
      %s158 = scalar_select %p157, %s18, 1
      %s159 = smul.addr %s158, 18
      %s160 = smul.addr %s159, 4
      %s161 = scalar_lea.vmem %s0, %s160
      %p162 = pneg %p47
      %p163 = pneg %p44
      %p164 = pneg %p68
      %p165 = pneg %p65
      %p166 = pneg %p89
      %p167 = pneg %p86
      %p168 = pneg %p117
      %p169 = pneg %p114
      %s170 = smul.u32 8, %s19
      %p171 = scmp.lt.s32.totalorder %s18, 1
      %s172 = scalar_select %p171, %s18, 1
      %p173 = scmp.lt.s32.totalorder %s170, 7
      %s174 = scalar_select %p173, %s170, 7
      %s175 = smul.addr %s172, 8
      %s176 = sadd.s32 %s174, %s175
      %s177 = smul.addr %s176, 4
      %s178 = scalar_lea.vmem %s3, %s177
      %p179 = scmp.lt.s32.totalorder %s18, 1
      %s180 = scalar_select %p179, %s18, 1
      %s181 = smul.addr %s180, 18
      %s182 = smul.addr %s181, 4
      %s183 = scalar_lea.vmem %s0, %s182
      %s184 = smul.u32 8, %s19
      %p185 = scmp.lt.s32.totalorder %s18, 1
      %s186 = scalar_select %p185, %s18, 1
      %p187 = scmp.lt.s32.totalorder %s184, 7
      %s188 = scalar_select %p187, %s184, 7
      %s189 = smul.addr %s186, 8
      %s190 = sadd.s32 %s188, %s189
      %s191 = smul.addr %s190, 4
      %s192 = scalar_lea.vmem %s3, %s191
      %s193 = smul.u32 8, %s19
      %s195 = smul.u32 %s19, 8
      %s196 = smul.u32 %s195, 2
      %s197 = smul.addr %s196, 4
      %s198 = scalar_lea.vmem %s183, %s197
      %v199 = vld [vmem:[%s198] sm:$0xf]
      %v200 = vld [vmem:[%s198 + $0x8] sm:$0xf]
      %v201 = vld [vmem:[%s198 + $0x10] sm:$0xf]
      %v202 = vld [vmem:[%s198 + $0x18] sm:$0xf]
      %v203 = vld [vmem:[%s198 + $0x20] sm:$0xf]
      %v204 = vld [vmem:[%s198 + $0x28] sm:$0xf]
      %v205 = vld [vmem:[%s198 + $0x30] sm:$0xf]
      %v206 = vld [vmem:[%s198 + $0x38] sm:$0xf]
      %v207 = vld [vmem:[%s1] sm:$0xf]
      %v208 = vld [vmem:[%s1 + $0x4] sm:$0x3]
      %v209 = vld [vmem:[%s198 + $0x4] sm:$0x1]
      %v210 = vld [vmem:[%s198 + $0xc] sm:$0x1]
      %v211 = vld [vmem:[%s198 + $0x14] sm:$0x1]
      %v212 = vld [vmem:[%s198 + $0x1c] sm:$0x1]
      %v213 = vld [vmem:[%s198 + $0x24] sm:$0x1]
      %v214 = vld [vmem:[%s198 + $0x2c] sm:$0x1]
      %v215 = vld [vmem:[%s198 + $0x34] sm:$0x1]
      %v216 = vld [vmem:[%s198 + $0x3c] sm:$0x1]
      %vm217 = vsmask.f32 3328
      %vm218 = vsmask.f32 7440
      %vm219 = vmor %vm217, %vm218
      %v221 = vshrl.u32 %v199, 16
      %v223 = vrot.slane %v221, 4
      %v224 = vshll.u32 %v199, 16
      %v226 = vrot.slane %v224, 5
      %v227 = vor.u32 %v223, %v226
      %v228 = vrot.slane %v227, 4
      %v230 = vshll.u32 %v209, 16
      %v232 = vrot.slane %v230, 5
      %v233 = vsel %vm219, %v228, %v232
      %v235 = vshrl.u32 %v200, 16
      %v237 = vrot.slane %v235, 4
      %v238 = vshll.u32 %v200, 16
      %v240 = vrot.slane %v238, 5
      %v241 = vor.u32 %v237, %v240
      %v242 = vrot.slane %v241, 4
      %v244 = vshll.u32 %v210, 16
      %v246 = vrot.slane %v244, 5
      %v247 = vsel %vm219, %v242, %v246
      %v249 = vshrl.u32 %v201, 16
      %v251 = vrot.slane %v249, 4
      %v252 = vshll.u32 %v201, 16
      %v254 = vrot.slane %v252, 5
      %v255 = vor.u32 %v251, %v254
      %v256 = vrot.slane %v255, 4
      %v258 = vshll.u32 %v211, 16
      %v260 = vrot.slane %v258, 5
      %v261 = vsel %vm219, %v256, %v260
      %v263 = vshrl.u32 %v202, 16
      %v265 = vrot.slane %v263, 4
      %v266 = vshll.u32 %v202, 16
      %v268 = vrot.slane %v266, 5
      %v269 = vor.u32 %v265, %v268
      %v270 = vrot.slane %v269, 4
      %v272 = vshll.u32 %v212, 16
      %v274 = vrot.slane %v272, 5
      %v275 = vsel %vm219, %v270, %v274
      %v277 = vshrl.u32 %v203, 16
      %v279 = vrot.slane %v277, 4
      %v280 = vshll.u32 %v203, 16
      %v282 = vrot.slane %v280, 5
      %v283 = vor.u32 %v279, %v282
      %v284 = vrot.slane %v283, 4
      %v286 = vshll.u32 %v213, 16
      %v288 = vrot.slane %v286, 5
      %v289 = vsel %vm219, %v284, %v288
      %v291 = vshrl.u32 %v204, 16
      %v293 = vrot.slane %v291, 4
      %v294 = vshll.u32 %v204, 16
      %v296 = vrot.slane %v294, 5
      %v297 = vor.u32 %v293, %v296
      %v298 = vrot.slane %v297, 4
      %v300 = vshll.u32 %v214, 16
      %v302 = vrot.slane %v300, 5
      %v303 = vsel %vm219, %v298, %v302
      %v305 = vshrl.u32 %v205, 16
      %v307 = vrot.slane %v305, 4
      %v308 = vshll.u32 %v205, 16
      %v310 = vrot.slane %v308, 5
      %v311 = vor.u32 %v307, %v310
      %v312 = vrot.slane %v311, 4
      %v314 = vshll.u32 %v215, 16
      %v316 = vrot.slane %v314, 5
      %v317 = vsel %vm219, %v312, %v316
      %v319 = vshrl.u32 %v206, 16
      %v321 = vrot.slane %v319, 4
      %v322 = vshll.u32 %v206, 16
      %v324 = vrot.slane %v322, 5
      %v325 = vor.u32 %v321, %v324
      %v326 = vrot.slane %v325, 4
      %v328 = vshll.u32 %v216, 16
      %v330 = vrot.slane %v328, 5
      %v331 = vsel %vm219, %v326, %v330
      %s332 = scalar_lea.vmem %s1, 8
      %v333 = vld [vmem:[%s332] sm:$0xf]
      %v334 = vld [vmem:[%s332 + $0x4] sm:$0x3]
      %v335 = vunpack.c.l.b16 %v233
      %v336 = vunpack.c.l.b16 %v247
      %v337 = vunpack.c.l.b16 %v261
      %v338 = vunpack.c.l.b16 %v275
      %v339 = vunpack.c.l.b16 %v289
      %v340 = vunpack.c.l.b16 %v303
      %v341 = vunpack.c.l.b16 %v317
      %v342 = vunpack.c.l.b16 %v331
      %v343 = vpack.c.b16 %v336, %v335
      %v344 = vpack.c.b16 %v338, %v337
      %v345 = vpack.c.b16 %v340, %v339
      %v346 = vpack.c.b16 %v342, %v341
      %v349 = vunpack.c.l.b16 %v333
      %v350 = vunpack.c.l.b16 %v334
      %v351 = vpack.c.b16 %v350, %v349
      %vm352 = vcmask 97280
      %v354 = vsel %vm352, %v343, 0
      %v357 = vsel %vm352, %v344, 0
      %v360 = vsel %vm352, %v345, 0
      %v363 = vsel %vm352, %v346, 0
      %vm365 = vcmask 1045504
      %v367 = vsel %vm365, %v351, 0
      %369 = vmatprep.subr.bf16.mxu0 0
      %370 = vmatpush1.bf16.msra.mxu0 %v367
      %371 = vmatprep.subr.bf16.mxu0 0
      %372 = vmatpush1.bf16.msra.mxu0 0
      %373 = vmatprep.subr.bf16.mxu0 0
      %374 = vmatpush1.bf16.msra.mxu0 0
      %375 = vmatprep.subr.bf16.mxu0 0
      %376 = vmatpush1.bf16.msra.mxu0 0
      %377 = vmatprep.subr.bf16.mxu0 0
      %378 = vmatpush1.bf16.msra.mxu0 0
      %379 = vmatprep.subr.bf16.mxu0 0
      %380 = vmatpush1.bf16.msra.mxu0 0
      %381 = vmatprep.subr.bf16.mxu0 0
      %382 = vmatpush1.bf16.msra.mxu0 0
      %383 = vmatprep.subr.bf16.mxu0 0
      %384 = vmatpush1.bf16.msra.mxu0 0
      %385 = vmatprep.subr.bf16.mxu0 0
      %386 = vmatpush1.bf16.msra.mxu0 0
      %387 = vmatprep.subr.bf16.mxu0 0
      %388 = vmatpush1.bf16.msra.mxu0 0
      %389 = vmatprep.subr.bf16.mxu0 0
      %390 = vmatpush1.bf16.msra.mxu0 0
      %391 = vmatprep.subr.bf16.mxu0 0
      %392 = vmatpush1.bf16.msra.mxu0 0
      %393 = vmatprep.subr.bf16.mxu0 0
      %394 = vmatpush1.bf16.msra.mxu0 0
      %395 = vmatprep.subr.bf16.mxu0 0
      %396 = vmatpush1.bf16.msra.mxu0 0
      %397 = vmatprep.subr.bf16.mxu0 0
      %398 = vmatpush1.bf16.msra.mxu0 0
      %399 = vmatprep.subr.bf16.mxu0 0
      %400 = vmatpush1.bf16.msra.mxu0 0
      %401 = vmatprep.mubr.bf16.mxu0 0
      %402 = vmatmul.mubr.bf16.gmra.mrb[0].mxu0 %v354
      %v403 = vpop.f32.mrb[0].mxu0
      %v404 = vadd.f32 0.0, %v403
      %v405 = vpop.f32.mrb[0].mxu0
      %v406 = vpop.f32.mrb[0].mxu0
      %v407 = vadd.f32 0.0, %v406
      %v408 = vpop.f32.mrb[0].mxu0
      %409 = vmatprep.mubr.bf16.mxu0 0
      %410 = vmatmul.mubr.bf16.gmra.mrb[0].mxu0 %v357
      %v411 = vpop.f32.mrb[0].mxu0
      %v412 = vadd.f32 0.0, %v411
      %v413 = vpop.f32.mrb[0].mxu0
      %v414 = vpop.f32.mrb[0].mxu0
      %v415 = vadd.f32 0.0, %v414
      %v416 = vpop.f32.mrb[0].mxu0
      %417 = vmatprep.mubr.bf16.mxu0 0
      %418 = vmatmul.mubr.bf16.gmra.mrb[0].mxu0 %v360
      %v419 = vpop.f32.mrb[0].mxu0
      %v420 = vadd.f32 0.0, %v419
      %v421 = vpop.f32.mrb[0].mxu0
      %v422 = vpop.f32.mrb[0].mxu0
      %v423 = vadd.f32 0.0, %v422
      %v424 = vpop.f32.mrb[0].mxu0
      %425 = vmatprep.mubr.bf16.mxu0 0
      %426 = vmatmul.mubr.bf16.gmra.mrb[0].mxu0 %v363
      %v427 = vpop.f32.mrb[0].mxu0
      %v428 = vadd.f32 0.0, %v427
      %v429 = vpop.f32.mrb[0].mxu0
      %v430 = vpop.f32.mrb[0].mxu0
      %v431 = vadd.f32 0.0, %v430
      %v432 = vpop.f32.mrb[0].mxu0
      %433 = vdwg.mxu0
      %v442 = vunpack.c.l.b16 %v199
      %v443 = vunpack.c.l.b16 %v200
      %v444 = vunpack.c.l.b16 %v201
      %v445 = vunpack.c.l.b16 %v202
      %v446 = vunpack.c.l.b16 %v203
      %v447 = vunpack.c.l.b16 %v204
      %v448 = vunpack.c.l.b16 %v205
      %v449 = vunpack.c.l.b16 %v206
      %v450 = vpack.c.b16 %v443, %v442
      %v451 = vpack.c.b16 %v445, %v444
      %v452 = vpack.c.b16 %v447, %v446
      %v453 = vpack.c.b16 %v449, %v448
      %v456 = vunpack.c.l.b16 %v207
      %v457 = vunpack.c.l.b16 %v208
      %v458 = vpack.c.b16 %v457, %v456
      %v460 = vsel %vm352, %v450, 0
      %v463 = vsel %vm352, %v451, 0
      %v466 = vsel %vm352, %v452, 0
      %v469 = vsel %vm352, %v453, 0
      %v472 = vsel %vm365, %v458, 0
      %474 = vmatprep.subr.bf16.mxu0 0
      %475 = vmatpush1.bf16.msra.mxu0 %v472
      %476 = vmatprep.subr.bf16.mxu0 0
      %477 = vmatpush1.bf16.msra.mxu0 0
      %478 = vmatprep.subr.bf16.mxu0 0
      %479 = vmatpush1.bf16.msra.mxu0 0
      %480 = vmatprep.subr.bf16.mxu0 0
      %481 = vmatpush1.bf16.msra.mxu0 0
      %482 = vmatprep.subr.bf16.mxu0 0
      %483 = vmatpush1.bf16.msra.mxu0 0
      %484 = vmatprep.subr.bf16.mxu0 0
      %485 = vmatpush1.bf16.msra.mxu0 0
      %486 = vmatprep.subr.bf16.mxu0 0
      %487 = vmatpush1.bf16.msra.mxu0 0
      %488 = vmatprep.subr.bf16.mxu0 0
      %489 = vmatpush1.bf16.msra.mxu0 0
      %490 = vmatprep.subr.bf16.mxu0 0
      %491 = vmatpush1.bf16.msra.mxu0 0
      %492 = vmatprep.subr.bf16.mxu0 0
      %493 = vmatpush1.bf16.msra.mxu0 0
      %494 = vmatprep.subr.bf16.mxu0 0
      %495 = vmatpush1.bf16.msra.mxu0 0
      %496 = vmatprep.subr.bf16.mxu0 0
      %497 = vmatpush1.bf16.msra.mxu0 0
      %498 = vmatprep.subr.bf16.mxu0 0
      %499 = vmatpush1.bf16.msra.mxu0 0
      %500 = vmatprep.subr.bf16.mxu0 0
      %501 = vmatpush1.bf16.msra.mxu0 0
      %502 = vmatprep.subr.bf16.mxu0 0
      %503 = vmatpush1.bf16.msra.mxu0 0
      %504 = vmatprep.subr.bf16.mxu0 0
      %505 = vmatpush1.bf16.msra.mxu0 0
      %506 = vmatprep.mubr.bf16.mxu0 0
      %507 = vmatmul.mubr.bf16.gmra.mrb[0].mxu0 %v460
      %v508 = vpop.f32.mrb[0].mxu0
      %v509 = vadd.f32 %v404, %v508
      %v510 = vpop.f32.mrb[0].mxu0
      %v511 = vpop.f32.mrb[0].mxu0
      %v512 = vadd.f32 %v407, %v511
      %v513 = vpop.f32.mrb[0].mxu0
      %514 = vmatprep.mubr.bf16.mxu0 0
      %515 = vmatmul.mubr.bf16.gmra.mrb[0].mxu0 %v463
      %v516 = vpop.f32.mrb[0].mxu0
      %v517 = vadd.f32 %v412, %v516
      %v518 = vpop.f32.mrb[0].mxu0
      %v519 = vpop.f32.mrb[0].mxu0
      %v520 = vadd.f32 %v415, %v519
      %v521 = vpop.f32.mrb[0].mxu0
      %522 = vmatprep.mubr.bf16.mxu0 0
      %523 = vmatmul.mubr.bf16.gmra.mrb[0].mxu0 %v466
      %v524 = vpop.f32.mrb[0].mxu0
      %v525 = vadd.f32 %v420, %v524
      %v526 = vpop.f32.mrb[0].mxu0
      %v527 = vpop.f32.mrb[0].mxu0
      %v528 = vadd.f32 %v423, %v527
      %v529 = vpop.f32.mrb[0].mxu0
      %530 = vmatprep.mubr.bf16.mxu0 0
      %531 = vmatmul.mubr.bf16.gmra.mrb[0].mxu0 %v469
      %v532 = vpop.f32.mrb[0].mxu0
      %v533 = vadd.f32 %v428, %v532
      %v534 = vpop.f32.mrb[0].mxu0
      %v535 = vpop.f32.mrb[0].mxu0
      %v536 = vadd.f32 %v431, %v535
      %v537 = vpop.f32.mrb[0].mxu0
      %538 = vdwg.mxu0
      %s539 = sadd.s32 %s195, 1
      %s540 = smul.u32 %s539, 2
      %s541 = smul.addr %s540, 4
      %s542 = scalar_lea.vmem %s183, %s541
      %v543 = vld [vmem:[%s542] sm:$0xf]
      %v544 = vld [vmem:[%s542 + $0x8] sm:$0xf]
      %v545 = vld [vmem:[%s542 + $0x10] sm:$0xf]
      %v546 = vld [vmem:[%s542 + $0x18] sm:$0xf]
      %v547 = vld [vmem:[%s542 + $0x20] sm:$0xf]
      %v548 = vld [vmem:[%s542 + $0x28] sm:$0xf]
      %v549 = vld [vmem:[%s542 + $0x30] sm:$0xf]
      %v550 = vld [vmem:[%s542 + $0x38] sm:$0xf]
      %s551 = scalar_lea.vmem %s1, 16
      %v552 = vld [vmem:[%s551] sm:$0xf]
      %v553 = vld [vmem:[%s551 + $0x4] sm:$0x3]
      %v562 = vunpack.c.l.b16 %v543
      %v563 = vunpack.c.l.b16 %v544
      %v564 = vunpack.c.l.b16 %v545
      %v565 = vunpack.c.l.b16 %v546
      %v566 = vunpack.c.l.b16 %v547
      %v567 = vunpack.c.l.b16 %v548
      %v568 = vunpack.c.l.b16 %v549
      %v569 = vunpack.c.l.b16 %v550
      %v570 = vpack.c.b16 %v563, %v562
      %v571 = vpack.c.b16 %v565, %v564
      %v572 = vpack.c.b16 %v567, %v566
      %v573 = vpack.c.b16 %v569, %v568
      %v576 = vunpack.c.l.b16 %v552
      %v577 = vunpack.c.l.b16 %v553
      %v578 = vpack.c.b16 %v577, %v576
      %v580 = vsel %vm352, %v570, 0
      %v583 = vsel %vm352, %v571, 0
      %v586 = vsel %vm352, %v572, 0
      %v589 = vsel %vm352, %v573, 0
      %v592 = vsel %vm365, %v578, 0
      %594 = vmatprep.subr.bf16.mxu0 0
      %595 = vmatpush1.bf16.msra.mxu0 %v592
      %596 = vmatprep.subr.bf16.mxu0 0
      %597 = vmatpush1.bf16.msra.mxu0 0
      %598 = vmatprep.subr.bf16.mxu0 0
      %599 = vmatpush1.bf16.msra.mxu0 0
      %600 = vmatprep.subr.bf16.mxu0 0
      %601 = vmatpush1.bf16.msra.mxu0 0
      %602 = vmatprep.subr.bf16.mxu0 0
      %603 = vmatpush1.bf16.msra.mxu0 0
      %604 = vmatprep.subr.bf16.mxu0 0
      %605 = vmatpush1.bf16.msra.mxu0 0
      %606 = vmatprep.subr.bf16.mxu0 0
      %607 = vmatpush1.bf16.msra.mxu0 0
      %608 = vmatprep.subr.bf16.mxu0 0
      %609 = vmatpush1.bf16.msra.mxu0 0
      %610 = vmatprep.subr.bf16.mxu0 0
      %611 = vmatpush1.bf16.msra.mxu0 0
      %612 = vmatprep.subr.bf16.mxu0 0
      %613 = vmatpush1.bf16.msra.mxu0 0
      %614 = vmatprep.subr.bf16.mxu0 0
      %615 = vmatpush1.bf16.msra.mxu0 0
      %616 = vmatprep.subr.bf16.mxu0 0
      %617 = vmatpush1.bf16.msra.mxu0 0
      %618 = vmatprep.subr.bf16.mxu0 0
      %619 = vmatpush1.bf16.msra.mxu0 0
      %620 = vmatprep.subr.bf16.mxu0 0
      %621 = vmatpush1.bf16.msra.mxu0 0
      %622 = vmatprep.subr.bf16.mxu0 0
      %623 = vmatpush1.bf16.msra.mxu0 0
      %624 = vmatprep.subr.bf16.mxu0 0
      %625 = vmatpush1.bf16.msra.mxu0 0
      %626 = vmatprep.mubr.bf16.mxu0 0
      %627 = vmatmul.mubr.bf16.gmra.mrb[0].mxu0 %v580
      %v628 = vpop.f32.mrb[0].mxu0
      %v629 = vadd.f32 0.0, %v628
      %v630 = vpop.f32.mrb[0].mxu0
      %v631 = vpop.f32.mrb[0].mxu0
      %v632 = vadd.f32 0.0, %v631
      %v633 = vpop.f32.mrb[0].mxu0
      %634 = vmatprep.mubr.bf16.mxu0 0
      %635 = vmatmul.mubr.bf16.gmra.mrb[0].mxu0 %v583
      %v636 = vpop.f32.mrb[0].mxu0
      %v637 = vadd.f32 0.0, %v636
      %v638 = vpop.f32.mrb[0].mxu0
      %v639 = vpop.f32.mrb[0].mxu0
      %v640 = vadd.f32 0.0, %v639
      %v641 = vpop.f32.mrb[0].mxu0
      %642 = vmatprep.mubr.bf16.mxu0 0
      %643 = vmatmul.mubr.bf16.gmra.mrb[0].mxu0 %v586
      %v644 = vpop.f32.mrb[0].mxu0
      %v645 = vadd.f32 0.0, %v644
      %v646 = vpop.f32.mrb[0].mxu0
      %v647 = vpop.f32.mrb[0].mxu0
      %v648 = vadd.f32 0.0, %v647
      %v649 = vpop.f32.mrb[0].mxu0
      %650 = vmatprep.mubr.bf16.mxu0 0
      %651 = vmatmul.mubr.bf16.gmra.mrb[0].mxu0 %v589
      %v652 = vpop.f32.mrb[0].mxu0
      %v653 = vadd.f32 0.0, %v652
      %v654 = vpop.f32.mrb[0].mxu0
      %v655 = vpop.f32.mrb[0].mxu0
      %v656 = vadd.f32 0.0, %v655
      %v657 = vpop.f32.mrb[0].mxu0
      %658 = vdwg.mxu0
      %v659 = vadd.f32 %v509, %v629
      %v660 = vadd.f32 %v512, %v632
      %v661 = vadd.f32 %v517, %v637
      %v662 = vadd.f32 %v520, %v640
      %v663 = vadd.f32 %v525, %v645
      %v664 = vadd.f32 %v528, %v648
      %v665 = vadd.f32 %v533, %v653
      %v666 = vadd.f32 %v536, %v656
      %v667 = vld [vmem:[%s542] sm:$0xf]
      %v668 = vld [vmem:[%s542 + $0x4] sm:$0x1]
      %v669 = vld [vmem:[%s542 + $0x8] sm:$0xf]
      %v670 = vld [vmem:[%s542 + $0xc] sm:$0x1]
      %v671 = vld [vmem:[%s542 + $0x10] sm:$0xf]
      %v672 = vld [vmem:[%s542 + $0x14] sm:$0x1]
      %v673 = vld [vmem:[%s542 + $0x18] sm:$0xf]
      %v674 = vld [vmem:[%s542 + $0x1c] sm:$0x1]
      %v675 = vld [vmem:[%s542 + $0x20] sm:$0xf]
      %v676 = vld [vmem:[%s542 + $0x24] sm:$0x1]
      %v677 = vld [vmem:[%s542 + $0x28] sm:$0xf]
      %v678 = vld [vmem:[%s542 + $0x2c] sm:$0x1]
      %v679 = vld [vmem:[%s542 + $0x30] sm:$0xf]
      %v680 = vld [vmem:[%s542 + $0x34] sm:$0x1]
      %v681 = vld [vmem:[%s542 + $0x38] sm:$0xf]
      %v682 = vld [vmem:[%s542 + $0x3c] sm:$0x1]
      %v684 = vshrl.u32 %v667, 16
      %v686 = vrot.slane %v684, 4
      %v687 = vshll.u32 %v667, 16
      %v689 = vrot.slane %v687, 5
      %v690 = vor.u32 %v686, %v689
      %v691 = vrot.slane %v690, 4
      %v693 = vshll.u32 %v668, 16
      %v695 = vrot.slane %v693, 5
      %v696 = vsel %vm219, %v691, %v695
      %v698 = vshrl.u32 %v669, 16
      %v700 = vrot.slane %v698, 4
      %v701 = vshll.u32 %v669, 16
      %v703 = vrot.slane %v701, 5
      %v704 = vor.u32 %v700, %v703
      %v705 = vrot.slane %v704, 4
      %v707 = vshll.u32 %v670, 16
      %v709 = vrot.slane %v707, 5
      %v710 = vsel %vm219, %v705, %v709
      %v712 = vshrl.u32 %v671, 16
      %v714 = vrot.slane %v712, 4
      %v715 = vshll.u32 %v671, 16
      %v717 = vrot.slane %v715, 5
      %v718 = vor.u32 %v714, %v717
      %v719 = vrot.slane %v718, 4
      %v721 = vshll.u32 %v672, 16
      %v723 = vrot.slane %v721, 5
      %v724 = vsel %vm219, %v719, %v723
      %v726 = vshrl.u32 %v673, 16
      %v728 = vrot.slane %v726, 4
      %v729 = vshll.u32 %v673, 16
      %v731 = vrot.slane %v729, 5
      %v732 = vor.u32 %v728, %v731
      %v733 = vrot.slane %v732, 4
      %v735 = vshll.u32 %v674, 16
      %v737 = vrot.slane %v735, 5
      %v738 = vsel %vm219, %v733, %v737
      %v740 = vshrl.u32 %v675, 16
      %v742 = vrot.slane %v740, 4
      %v743 = vshll.u32 %v675, 16
      %v745 = vrot.slane %v743, 5
      %v746 = vor.u32 %v742, %v745
      %v747 = vrot.slane %v746, 4
      %v749 = vshll.u32 %v676, 16
      %v751 = vrot.slane %v749, 5
      %v752 = vsel %vm219, %v747, %v751
      %v754 = vshrl.u32 %v677, 16
      %v756 = vrot.slane %v754, 4
      %v757 = vshll.u32 %v677, 16
      %v759 = vrot.slane %v757, 5
      %v760 = vor.u32 %v756, %v759
      %v761 = vrot.slane %v760, 4
      %v763 = vshll.u32 %v678, 16
      %v765 = vrot.slane %v763, 5
      %v766 = vsel %vm219, %v761, %v765
      %v768 = vshrl.u32 %v679, 16
      %v770 = vrot.slane %v768, 4
      %v771 = vshll.u32 %v679, 16
      %v773 = vrot.slane %v771, 5
      %v774 = vor.u32 %v770, %v773
      %v775 = vrot.slane %v774, 4
      %v777 = vshll.u32 %v680, 16
      %v779 = vrot.slane %v777, 5
      %v780 = vsel %vm219, %v775, %v779
      %v782 = vshrl.u32 %v681, 16
      %v784 = vrot.slane %v782, 4
      %v785 = vshll.u32 %v681, 16
      %v787 = vrot.slane %v785, 5
      %v788 = vor.u32 %v784, %v787
      %v789 = vrot.slane %v788, 4
      %v791 = vshll.u32 %v682, 16
      %v793 = vrot.slane %v791, 5
      %v794 = vsel %vm219, %v789, %v793
      %s795 = scalar_lea.vmem %s1, 24
      %v796 = vld [vmem:[%s795] sm:$0xf]
      %v797 = vld [vmem:[%s795 + $0x4] sm:$0x3]
      %v798 = vunpack.c.l.b16 %v696
      %v799 = vunpack.c.l.b16 %v710
      %v800 = vunpack.c.l.b16 %v724
      %v801 = vunpack.c.l.b16 %v738
      %v802 = vunpack.c.l.b16 %v752
      %v803 = vunpack.c.l.b16 %v766
      %v804 = vunpack.c.l.b16 %v780
      %v805 = vunpack.c.l.b16 %v794
      %v806 = vpack.c.b16 %v799, %v798
      %v807 = vpack.c.b16 %v801, %v800
      %v808 = vpack.c.b16 %v803, %v802
      %v809 = vpack.c.b16 %v805, %v804
      %v812 = vunpack.c.l.b16 %v796
      %v813 = vunpack.c.l.b16 %v797
      %v814 = vpack.c.b16 %v813, %v812
      %v816 = vsel %vm352, %v806, 0
      %v819 = vsel %vm352, %v807, 0
      %v822 = vsel %vm352, %v808, 0
      %v825 = vsel %vm352, %v809, 0
      %v828 = vsel %vm365, %v814, 0
      %830 = vmatprep.subr.bf16.mxu0 0
      %831 = vmatpush1.bf16.msra.mxu0 %v828
      %832 = vmatprep.subr.bf16.mxu0 0
      %833 = vmatpush1.bf16.msra.mxu0 0
      %834 = vmatprep.subr.bf16.mxu0 0
      %835 = vmatpush1.bf16.msra.mxu0 0
      %836 = vmatprep.subr.bf16.mxu0 0
      %837 = vmatpush1.bf16.msra.mxu0 0
      %838 = vmatprep.subr.bf16.mxu0 0
      %839 = vmatpush1.bf16.msra.mxu0 0
      %840 = vmatprep.subr.bf16.mxu0 0
      %841 = vmatpush1.bf16.msra.mxu0 0
      %842 = vmatprep.subr.bf16.mxu0 0
      %843 = vmatpush1.bf16.msra.mxu0 0
      %844 = vmatprep.subr.bf16.mxu0 0
      %845 = vmatpush1.bf16.msra.mxu0 0
      %846 = vmatprep.subr.bf16.mxu0 0
      %847 = vmatpush1.bf16.msra.mxu0 0
      %848 = vmatprep.subr.bf16.mxu0 0
      %849 = vmatpush1.bf16.msra.mxu0 0
      %850 = vmatprep.subr.bf16.mxu0 0
      %851 = vmatpush1.bf16.msra.mxu0 0
      %852 = vmatprep.subr.bf16.mxu0 0
      %853 = vmatpush1.bf16.msra.mxu0 0
      %854 = vmatprep.subr.bf16.mxu0 0
      %855 = vmatpush1.bf16.msra.mxu0 0
      %856 = vmatprep.subr.bf16.mxu0 0
      %857 = vmatpush1.bf16.msra.mxu0 0
      %858 = vmatprep.subr.bf16.mxu0 0
      %859 = vmatpush1.bf16.msra.mxu0 0
      %860 = vmatprep.subr.bf16.mxu0 0
      %861 = vmatpush1.bf16.msra.mxu0 0
      %862 = vmatprep.mubr.bf16.mxu0 0
      %863 = vmatmul.mubr.bf16.gmra.mrb[0].mxu0 %v816
      %v864 = vpop.f32.mrb[0].mxu0
      %v865 = vadd.f32 0.0, %v864
      %v866 = vpop.f32.mrb[0].mxu0
      %v867 = vpop.f32.mrb[0].mxu0
      %v868 = vadd.f32 0.0, %v867
      %v869 = vpop.f32.mrb[0].mxu0
      %870 = vmatprep.mubr.bf16.mxu0 0
      %871 = vmatmul.mubr.bf16.gmra.mrb[0].mxu0 %v819
      %v872 = vpop.f32.mrb[0].mxu0
      %v873 = vadd.f32 0.0, %v872
      %v874 = vpop.f32.mrb[0].mxu0
      %v875 = vpop.f32.mrb[0].mxu0
      %v876 = vadd.f32 0.0, %v875
      %v877 = vpop.f32.mrb[0].mxu0
      %878 = vmatprep.mubr.bf16.mxu0 0
      %879 = vmatmul.mubr.bf16.gmra.mrb[0].mxu0 %v822
      %v880 = vpop.f32.mrb[0].mxu0
      %v881 = vadd.f32 0.0, %v880
      %v882 = vpop.f32.mrb[0].mxu0
      %v883 = vpop.f32.mrb[0].mxu0
      %v884 = vadd.f32 0.0, %v883
      %v885 = vpop.f32.mrb[0].mxu0
      %886 = vmatprep.mubr.bf16.mxu0 0
      %887 = vmatmul.mubr.bf16.gmra.mrb[0].mxu0 %v825
      %v888 = vpop.f32.mrb[0].mxu0
      %v889 = vadd.f32 0.0, %v888
      %v890 = vpop.f32.mrb[0].mxu0
      %v891 = vpop.f32.mrb[0].mxu0
      %v892 = vadd.f32 0.0, %v891
      %v893 = vpop.f32.mrb[0].mxu0
      %894 = vdwg.mxu0
      %v895 = vadd.f32 %v659, %v865
      %v896 = vadd.f32 %v660, %v868
      %v897 = vadd.f32 %v661, %v873
      %v898 = vadd.f32 %v662, %v876
      %v899 = vadd.f32 %v663, %v881
      %v900 = vadd.f32 %v664, %v884
      %v901 = vadd.f32 %v665, %v889
      %v902 = vadd.f32 %v666, %v892
      %v903 = vld [vmem:[%s2] sm:$0x1]
      %v905 = vlaneseq
      %v906 = vshrl.u32 %v905, 7
      %v907 = vsub.s32 0, %v906
      %v908 = vrot.slane %v903, %v907
      %v910 = vadd.f32 %v895, %v908
      %v911 = vadd.f32 %v896, %v908
      %v912 = vadd.f32 %v897, %v908
      %v913 = vadd.f32 %v898, %v908
      %v914 = vadd.f32 %v899, %v908
      %v915 = vadd.f32 %v900, %v908
      %v916 = vadd.f32 %v901, %v908
      %v917 = vadd.f32 %v902, %v908
      %v918 = vmax.f32 %v910, 0.0
      %v919 = vmax.f32 %v911, 0.0
      %v920 = vmax.f32 %v912, 0.0
      %v921 = vmax.f32 %v913, 0.0
      %v922 = vmax.f32 %v914, 0.0
      %v923 = vmax.f32 %v915, 0.0
      %v924 = vmax.f32 %v916, 0.0
      %v925 = vmax.f32 %v917, 0.0
      %v926 = vpack.c.bf16 %v919, %v918
      %v927 = vpack.c.bf16 %v921, %v920
      %v928 = vpack.c.bf16 %v923, %v922
      %v929 = vpack.c.bf16 %v925, %v924
      %v934 = vunpack.c.l.b16 %v926
      %v935 = vunpack.c.h.b16 %v926
      %v936 = vunpack.c.l.b16 %v927
      %v937 = vunpack.c.h.b16 %v927
      %v938 = vunpack.c.l.b16 %v928
      %v939 = vunpack.c.h.b16 %v928
      %v940 = vunpack.c.l.b16 %v929
      %v941 = vunpack.c.h.b16 %v929
      %v942 = vpack.c.b16 %v934, %v934
      %v943 = vpack.c.b16 %v935, %v935
      %v944 = vpack.c.b16 %v936, %v936
      %v945 = vpack.c.b16 %v937, %v937
      %v946 = vpack.c.b16 %v938, %v938
      %v947 = vpack.c.b16 %v939, %v939
      %v948 = vpack.c.b16 %v940, %v940
      %v949 = vpack.c.b16 %v941, %v941
      %958 = vst [vmem:[%s192] sm:$0xf] %v942
      %959 = vst [vmem:[%s192 + $0x4] sm:$0xf] %v943
      %960 = vst [vmem:[%s192 + $0x8] sm:$0xf] %v944
      %961 = vst [vmem:[%s192 + $0xc] sm:$0xf] %v945
      %962 = vst [vmem:[%s192 + $0x10] sm:$0xf] %v946
      %963 = vst [vmem:[%s192 + $0x14] sm:$0xf] %v947
      %964 = vst [vmem:[%s192 + $0x18] sm:$0xf] %v948
      %965 = vst [vmem:[%s192 + $0x1c] sm:$0xf] %v949
      %s966 = smul.u32 8, %s19
      %p967 = scmp.lt.s32.totalorder %s18, 1
      %s968 = scalar_select %p967, %s18, 1
      %p969 = scmp.lt.s32.totalorder %s966, 7
      %s970 = scalar_select %p969, %s966, 7
      %s971 = smul.addr %s968, 8
      %s972 = sadd.s32 %s970, %s971
      %s973 = smul.addr %s972, 4
      %s974 = scalar_lea.vmem %s3, %s973
      // Predicated region
      $region33: #{generator_forward.6} parent=31 // pred_check
        %p975 = pneg %p114
      $region34: #{generator_forward.6} parent=31 // pred_check_branch
        %977 = sbr.rel (%p975) target = $region36
      $region35: #{generator_forward.6} parent=31 // pred_region
        %s978 = smul.u32 8, %s19
      $region36: #{generator_forward.6} parent=31 // pred_fallthru
        _
    $region32: #{generator_forward.6} parent=5 // pred_fallthru
      _
    %p979 = scmp.le.s32.totalorder 2, %s9
    // Predicated region
    $region37: #{generator_forward.6} parent=5 // pred_check
      %p980 = pneg %p979
    $region38: #{generator_forward.6} parent=5 // pred_check_branch
      %982 = sbr.rel (%p980) target = $region40
    $region39: #{generator_forward.6} parent=5 // pred_region
      %s983 = ssub.s32 %s9, 2
      // Predicated region
      $region41: #{generator_forward.6} parent=39 // pred_check
        %p984 = pneg %p120
      $region42: #{generator_forward.6} parent=39 // pred_check_branch
        %986 = sbr.rel (%p984) target = $region44
      $region43: #{generator_forward.6} parent=39 // pred_region
        %s987 = smul.u32 8, %s21
        %p988 = scmp.lt.s32.totalorder %s20, 1
        %s989 = scalar_select %p988, %s20, 1
        %p990 = scmp.lt.s32.totalorder %s987, 7
        %s991 = scalar_select %p990, %s987, 7
        %s992 = smul.addr %s989, 8
        %s993 = sadd.s32 %s991, %s992
        %s994 = smul.addr %s993, 4
        %s995 = scalar_lea.vmem %s3, %s994
      $region44: #{generator_forward.6} parent=39 // pred_fallthru
        _
    $region40: #{generator_forward.6} parent=5 // pred_fallthru
      _
  $region6: #{generator_forward.6} parent=0 // loop_footer
    %s13 = sadd.s32 1, %s9
  $region7: #{generator_forward.6} parent=0 // loop_footer_branch
    %8 = sbr.rel target = $region3
  $region8: #{generator_forward.6} parent=0 // loop_exit
    _

// kernel: generator_forward.8
$region0: #{generator_forward.8}
  #allocation0 [shape = 'u32[]', space=smem, size = 0x4, offset = 0x4, fixed_abs, tag = 'smem constant byte address 0x4 - core index']
  #allocation1 [shape = 'u32[144,128]{1,0:T(1,128)}', space=vmem, size = 0x12000, scoped, tag = 'internal scratch']
  %s0 = inlined_call_operand.vmem [shape: bf16[2,16,128], index: 0, kind: input, shape index: {}]
  %s1 = inlined_call_operand.vmem [shape: f32[1,1,128], index: 1, kind: input, shape index: {}]
  %s2 = inlined_call_operand.vmem [shape: f32[1,1,128], index: 2, kind: input, shape index: {}]
  %s3 = inlined_call_operand.vmem [shape: bf16[2,16,128], index: 3, kind: output, shape index: {}]
  %s4 = sld [smem:[#allocation0]]
  $region45: #{generator_forward.8} parent=0
    _
  %s6 = ssub.s32 1, %s4
  %s7 = scalar_select 0, %s6, %s4
  loop: start=0, step=1, limit=4
  $region2: #{generator_forward.8} parent=0 // loop_pre_header
    _
  $region3: #{generator_forward.8} parent=0 // loop_header
    %s9 = sphi 0, %s13
    %p10 = scmp.ge.s32.totalorder %s9, 4
    %s16 = sphi 0, %s28
    %s17 = sphi 0, %s24
    %s18 = sphi 0, %s16
    %s19 = sphi 0, %s17
    %s20 = sphi 0, %s18
    %s21 = sphi 0, %s19
    %s33 = sphi 0, %s35
    %s36 = sphi 0, %s33
    %s37 = sphi 0, %s36
    %s53 = sphi 0, %s37
    %s57 = sphi 0, %s57
    %s59 = sphi 0, %s57
    %s60 = sphi 0, %s59
    %s74 = sphi 0, %s60
    %s78 = sphi 0, %s78
    %s80 = sphi 0, %s78
    %s81 = sphi 0, %s80
    %s95 = sphi 0, %s81
    %s103 = sphi 0, %s105
    %s106 = sphi 0, %s103
    %s107 = sphi 0, %s106
    %s123 = sphi 0, %s107
  $region4: #{generator_forward.8} parent=0 // loop_header_branch
    %12 = sbr.rel (%p10) target = $region8
  $region5: #{generator_forward.8} parent=0 // loop_body
    %s14 = ssub.s32 %s9, 1
    %s15 = ssub.s32 %s9, 2
    %s22 = sadd.s32 1, %s17
    %p23 = scmp.ge.s32.totalorder %s22, 1
    %s24 = scalar_select %p23, 0, %s22
    %s25 = sadd.s32 1, %s16
    %s26 = scalar_select %p23, %s25, %s16
    %p27 = scmp.ge.s32.totalorder %s26, 2
    %s28 = scalar_select %p27, 0, %s26
    %s29 = ssub.s32 %s16, %s28
    %s30 = ssub.s32 %s17, %s24
    %s31 = sor.u32 %s29, %s30
    %p32 = scmp.eq.s32.totalorder %s31, 0
    %s34 = sadd.s32 %s33, 1
    %s35 = scalar_select %p32, %s33, %s34
    %p38 = pneg %p32
    %p39 = scmp.eq.s32.totalorder %s9, 1
    %p40 = por %p38, %p39
    %p41 = scmp.ne.s32.totalorder %s33, %s36
    %p42 = scmp.eq.s32.totalorder %s9, 0
    %p43 = por %p41, %p42
    %p44 = scmp.ne.s32.totalorder %s33, %s36
    %p45 = scmp.eq.s32.totalorder %s14, 1
    %p46 = por %p44, %p45
    %p47 = scmp.ne.s32.totalorder %s36, %s37
    %p48 = scmp.eq.s32.totalorder %s14, 0
    %p49 = por %p47, %p48
    %p50 = scmp.ne.s32.totalorder %s36, %s37
    %p51 = scmp.eq.s32.totalorder %s15, 1
    %p52 = por %p50, %p51
    %p54 = scmp.ne.s32.totalorder %s37, %s53
    %p55 = scmp.eq.s32.totalorder %s15, 0
    %p56 = por %p54, %p55
    %s58 = sadd.s32 %s57, 1
    %p61 = scmp.eq.s32.totalorder %s9, 1
    %p62 = scmp.ne.s32.totalorder %s57, %s59
    %p63 = scmp.eq.s32.totalorder %s9, 0
    %p64 = por %p62, %p63
    %p65 = scmp.ne.s32.totalorder %s57, %s59
    %p66 = scmp.eq.s32.totalorder %s14, 1
    %p67 = por %p65, %p66
    %p68 = scmp.ne.s32.totalorder %s59, %s60
    %p69 = scmp.eq.s32.totalorder %s14, 0
    %p70 = por %p68, %p69
    %p71 = scmp.ne.s32.totalorder %s59, %s60
    %p72 = scmp.eq.s32.totalorder %s15, 1
    %p73 = por %p71, %p72
    %p75 = scmp.ne.s32.totalorder %s60, %s74
    %p76 = scmp.eq.s32.totalorder %s15, 0
    %p77 = por %p75, %p76
    %s79 = sadd.s32 %s78, 1
    %p82 = scmp.eq.s32.totalorder %s9, 1
    %p83 = scmp.ne.s32.totalorder %s78, %s80
    %p84 = scmp.eq.s32.totalorder %s9, 0
    %p85 = por %p83, %p84
    %p86 = scmp.ne.s32.totalorder %s78, %s80
    %p87 = scmp.eq.s32.totalorder %s14, 1
    %p88 = por %p86, %p87
    %p89 = scmp.ne.s32.totalorder %s80, %s81
    %p90 = scmp.eq.s32.totalorder %s14, 0
    %p91 = por %p89, %p90
    %p92 = scmp.ne.s32.totalorder %s80, %s81
    %p93 = scmp.eq.s32.totalorder %s15, 1
    %p94 = por %p92, %p93
    %p96 = scmp.ne.s32.totalorder %s81, %s95
    %p97 = scmp.eq.s32.totalorder %s15, 0
    %p98 = por %p96, %p97
    %s99 = ssub.s32 %s16, %s28
    %s100 = ssub.s32 %s17, %s24
    %s101 = sor.u32 %s99, %s100
    %p102 = scmp.eq.s32.totalorder %s101, 0
    %s104 = sadd.s32 %s103, 1
    %s105 = scalar_select %p102, %s103, %s104
    %p108 = pneg %p102
    %p109 = scmp.eq.s32.totalorder %s9, 1
    %p110 = por %p108, %p109
    %p111 = scmp.ne.s32.totalorder %s103, %s106
    %p112 = scmp.eq.s32.totalorder %s9, 0
    %p113 = por %p111, %p112
    %p114 = scmp.ne.s32.totalorder %s103, %s106
    %p115 = scmp.eq.s32.totalorder %s14, 1
    %p116 = por %p114, %p115
    %p117 = scmp.ne.s32.totalorder %s106, %s107
    %p118 = scmp.eq.s32.totalorder %s14, 0
    %p119 = por %p117, %p118
    %p120 = scmp.ne.s32.totalorder %s106, %s107
    %p121 = scmp.eq.s32.totalorder %s15, 1
    %p122 = por %p120, %p121
    %p124 = scmp.ne.s32.totalorder %s107, %s123
    %p125 = scmp.eq.s32.totalorder %s15, 0
    %p126 = por %p124, %p125
    %p127 = scmp.le.s32.totalorder 1, %s9
    %p128 = scmp.lt.s32.totalorder %s9, 3
    %p129 = pnand %p127, %p128
    %p130 = pneg %p129
    // Predicated region
    $region9: #{generator_forward.8} parent=5 // pred_check
      _
    $region10: #{generator_forward.8} parent=5 // pred_check_branch
      %132 = sbr.rel (%p129) target = $region12
    $region11: #{generator_forward.8} parent=5 // pred_region
      %s133 = ssub.s32 %s9, 1
      // Predicated region
      $region13: #{generator_forward.8} parent=11 // pred_check
        %p134 = pneg %p70
      $region14: #{generator_forward.8} parent=11 // pred_check_branch
        %136 = sbr.rel (%p134) target = $region16
      $region15: #{generator_forward.8} parent=11 // pred_region
        _
      $region16: #{generator_forward.8} parent=11 // pred_fallthru
        _
      // Predicated region
      $region17: #{generator_forward.8} parent=11 // pred_check
        %p137 = pneg %p91
      $region18: #{generator_forward.8} parent=11 // pred_check_branch
        %139 = sbr.rel (%p137) target = $region20
      $region19: #{generator_forward.8} parent=11 // pred_region
        _
      $region20: #{generator_forward.8} parent=11 // pred_fallthru
        _
    $region12: #{generator_forward.8} parent=5 // pred_fallthru
      _
    %p140 = scmp.lt.s32.totalorder %s9, 2
    // Predicated region
    $region21: #{generator_forward.8} parent=5 // pred_check
      %p141 = pneg %p140
    $region22: #{generator_forward.8} parent=5 // pred_check_branch
      %143 = sbr.rel (%p141) target = $region24
    $region23: #{generator_forward.8} parent=5 // pred_region
      // Predicated region
      $region25: #{generator_forward.8} parent=23 // pred_check
        %p144 = pneg %p43
      $region26: #{generator_forward.8} parent=23 // pred_check_branch
        %146 = sbr.rel (%p144) target = $region28
      $region27: #{generator_forward.8} parent=23 // pred_region
        %s147 = smul.u32 2, %s17
        %p148 = scmp.lt.s32.totalorder %s16, 1
        %s149 = scalar_select %p148, %s16, 1
        %p150 = scmp.lt.s32.totalorder %s147, 1
        %s151 = scalar_select %p150, %s147, 1
        %s152 = smul.addr %s149, 2
        %s153 = sadd.s32 %s151, %s152
        %s154 = smul.addr %s153, 4
        %s155 = scalar_lea.vmem %s0, %s154
        %s156 = smul.u32 2, %s17
      $region28: #{generator_forward.8} parent=23 // pred_fallthru
        _
    $region24: #{generator_forward.8} parent=5 // pred_fallthru
      _
    %p157 = scmp.le.s32.totalorder 1, %s9
    %p158 = scmp.lt.s32.totalorder %s9, 3
    %p159 = pnand %p157, %p158
    %p160 = pneg %p159
    // Predicated region
    $region29: #{generator_forward.8} parent=5 // pred_check
      _
    $region30: #{generator_forward.8} parent=5 // pred_check_branch
      %162 = sbr.rel (%p159) target = $region32
    $region31: #{generator_forward.8} parent=5 // pred_region
      %s163 = ssub.s32 %s9, 1
      %s164 = smul.u32 2, %s19
      %p165 = scmp.lt.s32.totalorder %s18, 1
      %s166 = scalar_select %p165, %s18, 1
      %p167 = scmp.lt.s32.totalorder %s164, 1
      %s168 = scalar_select %p167, %s164, 1
      %s169 = smul.addr %s166, 2
      %s170 = sadd.s32 %s168, %s169
      %s171 = smul.addr %s170, 4
      %s172 = scalar_lea.vmem %s0, %s171
      %p173 = pneg %p49
      %p174 = pneg %p46
      %p175 = pneg %p70
      %p176 = pneg %p67
      %p177 = pneg %p91
      %p178 = pneg %p88
      %p179 = pneg %p119
      %p180 = pneg %p116
      %s181 = smul.u32 2, %s19
      %p182 = scmp.lt.s32.totalorder %s18, 1
      %s183 = scalar_select %p182, %s18, 1
      %p184 = scmp.lt.s32.totalorder %s181, 1
      %s185 = scalar_select %p184, %s181, 1
      %s186 = smul.addr %s183, 2
      %s187 = sadd.s32 %s185, %s186
      %s188 = smul.addr %s187, 4
      %s189 = scalar_lea.vmem %s3, %s188
      %s190 = smul.u32 2, %s19
      %p191 = scmp.lt.s32.totalorder %s18, 1
      %s192 = scalar_select %p191, %s18, 1
      %p193 = scmp.lt.s32.totalorder %s190, 1
      %s194 = scalar_select %p193, %s190, 1
      %s195 = smul.addr %s192, 2
      %s196 = sadd.s32 %s194, %s195
      %s197 = smul.addr %s196, 4
      %s198 = scalar_lea.vmem %s0, %s197
      %s199 = smul.u32 2, %s19
      %s200 = smul.u32 2, %s19
      %p201 = scmp.lt.s32.totalorder %s18, 1
      %s202 = scalar_select %p201, %s18, 1
      %p203 = scmp.lt.s32.totalorder %s200, 1
      %s204 = scalar_select %p203, %s200, 1
      %s205 = smul.addr %s202, 2
      %s206 = sadd.s32 %s204, %s205
      %s207 = smul.addr %s206, 4
      %s208 = scalar_lea.vmem %s3, %s207
      %s209 = smul.u32 2, %s19
      %v210 = vld [vmem:[%s198] sm:$0xf]
      %v211 = vld [vmem:[%s198 + $0x4] sm:$0xf]
      %v212 = vunpack.c.l.bf16 %v210
      %v213 = vunpack.c.l.bf16 %v211
      %v214 = vld [vmem:[%s1] sm:$0x1]
      %v216 = vlaneseq
      %v217 = vshrl.u32 %v216, 7
      %v218 = vsub.s32 0, %v217
      %v219 = vrot.slane %v214, %v218
      %v221 = vmul.f32 %v212, %v219
      %v222 = vmul.f32 %v213, %v219
      %v223 = vld [vmem:[%s2] sm:$0x1]
      %v225 = vlaneseq
      %v226 = vshrl.u32 %v225, 7
      %v227 = vsub.s32 0, %v226
      %v228 = vrot.slane %v223, %v227
      %v230 = vadd.f32 %v221, %v228
      %v231 = vadd.f32 %v222, %v228
      %v232 = vmax.f32 %v230, 0.0
      %v233 = vmax.f32 %v231, 0.0
      %v234 = vpack.c.bf16 %v233, %v232
      %v236 = vunpack.c.l.b16 %v234
      %v237 = vunpack.c.h.b16 %v234
      %v238 = vpack.c.b16 %v236, %v236
      %v239 = vpack.c.b16 %v237, %v237
      %242 = vst [vmem:[%s208] sm:$0xf] %v238
      %243 = vst [vmem:[%s208 + $0x4] sm:$0xf] %v239
      %s244 = smul.u32 2, %s19
      %p245 = scmp.lt.s32.totalorder %s18, 1
      %s246 = scalar_select %p245, %s18, 1
      %p247 = scmp.lt.s32.totalorder %s244, 1
      %s248 = scalar_select %p247, %s244, 1
      %s249 = smul.addr %s246, 2
      %s250 = sadd.s32 %s248, %s249
      %s251 = smul.addr %s250, 4
      %s252 = scalar_lea.vmem %s3, %s251
      // Predicated region
      $region33: #{generator_forward.8} parent=31 // pred_check
        %p253 = pneg %p116
      $region34: #{generator_forward.8} parent=31 // pred_check_branch
        %255 = sbr.rel (%p253) target = $region36
      $region35: #{generator_forward.8} parent=31 // pred_region
        %s256 = smul.u32 2, %s19
      $region36: #{generator_forward.8} parent=31 // pred_fallthru
        _
    $region32: #{generator_forward.8} parent=5 // pred_fallthru
      _
    %p257 = scmp.le.s32.totalorder 2, %s9
    // Predicated region
    $region37: #{generator_forward.8} parent=5 // pred_check
      %p258 = pneg %p257
    $region38: #{generator_forward.8} parent=5 // pred_check_branch
      %260 = sbr.rel (%p258) target = $region40
    $region39: #{generator_forward.8} parent=5 // pred_region
      %s261 = ssub.s32 %s9, 2
      // Predicated region
      $region41: #{generator_forward.8} parent=39 // pred_check
        %p262 = pneg %p122
      $region42: #{generator_forward.8} parent=39 // pred_check_branch
        %264 = sbr.rel (%p262) target = $region44
      $region43: #{generator_forward.8} parent=39 // pred_region
        %s265 = smul.u32 2, %s21
        %p266 = scmp.lt.s32.totalorder %s20, 1
        %s267 = scalar_select %p266, %s20, 1
        %p268 = scmp.lt.s32.totalorder %s265, 1
        %s269 = scalar_select %p268, %s265, 1
        %s270 = smul.addr %s267, 2
        %s271 = sadd.s32 %s269, %s270
        %s272 = smul.addr %s271, 4
        %s273 = scalar_lea.vmem %s3, %s272
      $region44: #{generator_forward.8} parent=39 // pred_fallthru
        _
    $region40: #{generator_forward.8} parent=5 // pred_fallthru
      _
  $region6: #{generator_forward.8} parent=0 // loop_footer
    %s13 = sadd.s32 1, %s9
  $region7: #{generator_forward.8} parent=0 // loop_footer_branch
    %8 = sbr.rel target = $region3
  $region8: #{generator_forward.8} parent=0 // loop_exit
    _

// kernel: generator_forward.7
$region0: #{generator_forward.7}
  #allocation0 [shape = 'u32[]', space=smem, size = 0x4, offset = 0x4, fixed_abs, tag = 'smem constant byte address 0x4 - core index']
  #allocation1 [shape = 'u32[144,128]{1,0:T(1,128)}', space=vmem, size = 0x12000, scoped, tag = 'internal scratch']
  %s0 = inlined_call_operand.vmem [shape: bf16[2,5,5,256], index: 0, kind: input, shape index: {}]
  %s1 = inlined_call_operand.vmem [shape: bf16[4,256,128], index: 1, kind: input, shape index: {}]
  %s2 = inlined_call_operand.vmem [shape: f32[1,128], index: 2, kind: input, shape index: {}]
  %s3 = inlined_call_operand.vmem [shape: bf16[2,16,128], index: 3, kind: output, shape index: {0}]
  %s4 = inlined_call_operand.vmem [shape: f32[2,1,2,128], index: 4, kind: output, shape index: {1}]
  %5 = xla_tuple %s3, %s4
  %s6 = sld [smem:[#allocation0]]
  $region53: #{generator_forward.7} parent=0
    _
  %s8 = ssub.s32 1, %s6
  %s9 = scalar_select 0, %s8, %s6
  loop: start=0, step=1, limit=4
  $region2: #{generator_forward.7} parent=0 // loop_pre_header
    _
  $region3: #{generator_forward.7} parent=0 // loop_header
    %s11 = sphi 0, %s15
    %p12 = scmp.ge.s32.totalorder %s11, 4
    %s18 = sphi 0, %s30
    %s19 = sphi 0, %s26
    %s20 = sphi 0, %s18
    %s21 = sphi 0, %s19
    %s22 = sphi 0, %s20
    %s23 = sphi 0, %s21
    %s33 = sphi 0, %s35
    %s36 = sphi 0, %s33
    %s37 = sphi 0, %s36
    %s53 = sphi 0, %s37
    %s57 = sphi 0, %s57
    %s59 = sphi 0, %s57
    %s60 = sphi 0, %s59
    %s74 = sphi 0, %s60
    %s78 = sphi 0, %s78
    %s80 = sphi 0, %s78
    %s81 = sphi 0, %s80
    %s95 = sphi 0, %s81
    %s103 = sphi 0, %s105
    %s106 = sphi 0, %s103
    %s107 = sphi 0, %s106
    %s123 = sphi 0, %s107
    %s131 = sphi 0, %s133
    %s134 = sphi 0, %s131
    %s135 = sphi 0, %s134
    %s151 = sphi 0, %s135
  $region4: #{generator_forward.7} parent=0 // loop_header_branch
    %14 = sbr.rel (%p12) target = $region8
  $region5: #{generator_forward.7} parent=0 // loop_body
    %s16 = ssub.s32 %s11, 1
    %s17 = ssub.s32 %s11, 2
    %s24 = sadd.s32 1, %s19
    %p25 = scmp.ge.s32.totalorder %s24, 1
    %s26 = scalar_select %p25, 0, %s24
    %s27 = sadd.s32 1, %s18
    %s28 = scalar_select %p25, %s27, %s18
    %p29 = scmp.ge.s32.totalorder %s28, 2
    %s30 = scalar_select %p29, 0, %s28
    %s31 = ssub.s32 %s18, %s30
    %p32 = scmp.eq.s32.totalorder %s31, 0
    %s34 = sadd.s32 %s33, 1
    %s35 = scalar_select %p32, %s33, %s34
    %p38 = pneg %p32
    %p39 = scmp.eq.s32.totalorder %s11, 1
    %p40 = por %p38, %p39
    %p41 = scmp.ne.s32.totalorder %s33, %s36
    %p42 = scmp.eq.s32.totalorder %s11, 0
    %p43 = por %p41, %p42
    %p44 = scmp.ne.s32.totalorder %s33, %s36
    %p45 = scmp.eq.s32.totalorder %s16, 1
    %p46 = por %p44, %p45
    %p47 = scmp.ne.s32.totalorder %s36, %s37
    %p48 = scmp.eq.s32.totalorder %s16, 0
    %p49 = por %p47, %p48
    %p50 = scmp.ne.s32.totalorder %s36, %s37
    %p51 = scmp.eq.s32.totalorder %s17, 1
    %p52 = por %p50, %p51
    %p54 = scmp.ne.s32.totalorder %s37, %s53
    %p55 = scmp.eq.s32.totalorder %s17, 0
    %p56 = por %p54, %p55
    %s58 = sadd.s32 %s57, 1
    %p61 = scmp.eq.s32.totalorder %s11, 1
    %p62 = scmp.ne.s32.totalorder %s57, %s59
    %p63 = scmp.eq.s32.totalorder %s11, 0
    %p64 = por %p62, %p63
    %p65 = scmp.ne.s32.totalorder %s57, %s59
    %p66 = scmp.eq.s32.totalorder %s16, 1
    %p67 = por %p65, %p66
    %p68 = scmp.ne.s32.totalorder %s59, %s60
    %p69 = scmp.eq.s32.totalorder %s16, 0
    %p70 = por %p68, %p69
    %p71 = scmp.ne.s32.totalorder %s59, %s60
    %p72 = scmp.eq.s32.totalorder %s17, 1
    %p73 = por %p71, %p72
    %p75 = scmp.ne.s32.totalorder %s60, %s74
    %p76 = scmp.eq.s32.totalorder %s17, 0
    %p77 = por %p75, %p76
    %s79 = sadd.s32 %s78, 1
    %p82 = scmp.eq.s32.totalorder %s11, 1
    %p83 = scmp.ne.s32.totalorder %s78, %s80
    %p84 = scmp.eq.s32.totalorder %s11, 0
    %p85 = por %p83, %p84
    %p86 = scmp.ne.s32.totalorder %s78, %s80
    %p87 = scmp.eq.s32.totalorder %s16, 1
    %p88 = por %p86, %p87
    %p89 = scmp.ne.s32.totalorder %s80, %s81
    %p90 = scmp.eq.s32.totalorder %s16, 0
    %p91 = por %p89, %p90
    %p92 = scmp.ne.s32.totalorder %s80, %s81
    %p93 = scmp.eq.s32.totalorder %s17, 1
    %p94 = por %p92, %p93
    %p96 = scmp.ne.s32.totalorder %s81, %s95
    %p97 = scmp.eq.s32.totalorder %s17, 0
    %p98 = por %p96, %p97
    %s99 = ssub.s32 %s18, %s30
    %s100 = ssub.s32 %s19, %s26
    %s101 = sor.u32 %s99, %s100
    %p102 = scmp.eq.s32.totalorder %s101, 0
    %s104 = sadd.s32 %s103, 1
    %s105 = scalar_select %p102, %s103, %s104
    %p108 = pneg %p102
    %p109 = scmp.eq.s32.totalorder %s11, 1
    %p110 = por %p108, %p109
    %p111 = scmp.ne.s32.totalorder %s103, %s106
    %p112 = scmp.eq.s32.totalorder %s11, 0
    %p113 = por %p111, %p112
    %p114 = scmp.ne.s32.totalorder %s103, %s106
    %p115 = scmp.eq.s32.totalorder %s16, 1
    %p116 = por %p114, %p115
    %p117 = scmp.ne.s32.totalorder %s106, %s107
    %p118 = scmp.eq.s32.totalorder %s16, 0
    %p119 = por %p117, %p118
    %p120 = scmp.ne.s32.totalorder %s106, %s107
    %p121 = scmp.eq.s32.totalorder %s17, 1
    %p122 = por %p120, %p121
    %p124 = scmp.ne.s32.totalorder %s107, %s123
    %p125 = scmp.eq.s32.totalorder %s17, 0
    %p126 = por %p124, %p125
    %s127 = ssub.s32 %s18, %s30
    %s128 = ssub.s32 %s19, %s26
    %s129 = sor.u32 %s127, %s128
    %p130 = scmp.eq.s32.totalorder %s129, 0
    %s132 = sadd.s32 %s131, 1
    %s133 = scalar_select %p130, %s131, %s132
    %p136 = pneg %p130
    %p137 = scmp.eq.s32.totalorder %s11, 1
    %p138 = por %p136, %p137
    %p139 = scmp.ne.s32.totalorder %s131, %s134
    %p140 = scmp.eq.s32.totalorder %s11, 0
    %p141 = por %p139, %p140
    %p142 = scmp.ne.s32.totalorder %s131, %s134
    %p143 = scmp.eq.s32.totalorder %s16, 1
    %p144 = por %p142, %p143
    %p145 = scmp.ne.s32.totalorder %s134, %s135
    %p146 = scmp.eq.s32.totalorder %s16, 0
    %p147 = por %p145, %p146
    %p148 = scmp.ne.s32.totalorder %s134, %s135
    %p149 = scmp.eq.s32.totalorder %s17, 1
    %p150 = por %p148, %p149
    %p152 = scmp.ne.s32.totalorder %s135, %s151
    %p153 = scmp.eq.s32.totalorder %s17, 0
    %p154 = por %p152, %p153
    %p155 = scmp.le.s32.totalorder 1, %s11
    %p156 = scmp.lt.s32.totalorder %s11, 3
    %p157 = pnand %p155, %p156
    %p158 = pneg %p157
    // Predicated region
    $region9: #{generator_forward.7} parent=5 // pred_check
      _
    $region10: #{generator_forward.7} parent=5 // pred_check_branch
      %160 = sbr.rel (%p157) target = $region12
    $region11: #{generator_forward.7} parent=5 // pred_region
      %s161 = ssub.s32 %s11, 1
      // Predicated region
      $region13: #{generator_forward.7} parent=11 // pred_check
        %p162 = pneg %p70
      $region14: #{generator_forward.7} parent=11 // pred_check_branch
        %164 = sbr.rel (%p162) target = $region16
      $region15: #{generator_forward.7} parent=11 // pred_region
        _
      $region16: #{generator_forward.7} parent=11 // pred_fallthru
        _
      // Predicated region
      $region17: #{generator_forward.7} parent=11 // pred_check
        %p165 = pneg %p91
      $region18: #{generator_forward.7} parent=11 // pred_check_branch
        %167 = sbr.rel (%p165) target = $region20
      $region19: #{generator_forward.7} parent=11 // pred_region
        _
      $region20: #{generator_forward.7} parent=11 // pred_fallthru
        _
    $region12: #{generator_forward.7} parent=5 // pred_fallthru
      _
    %p168 = scmp.lt.s32.totalorder %s11, 2
    // Predicated region
    $region21: #{generator_forward.7} parent=5 // pred_check
      %p169 = pneg %p168
    $region22: #{generator_forward.7} parent=5 // pred_check_branch
      %171 = sbr.rel (%p169) target = $region24
    $region23: #{generator_forward.7} parent=5 // pred_region
      // Predicated region
      $region25: #{generator_forward.7} parent=23 // pred_check
        %p172 = pneg %p43
      $region26: #{generator_forward.7} parent=23 // pred_check_branch
        %174 = sbr.rel (%p172) target = $region28
      $region27: #{generator_forward.7} parent=23 // pred_region
        %p175 = scmp.lt.s32.totalorder %s18, 1
        %s176 = scalar_select %p175, %s18, 1
        %s177 = smul.addr %s176, 10
        %s178 = smul.addr %s177, 4
        %s179 = scalar_lea.vmem %s0, %s178
      $region28: #{generator_forward.7} parent=23 // pred_fallthru
        _
    $region24: #{generator_forward.7} parent=5 // pred_fallthru
      _
    %p180 = scmp.le.s32.totalorder 1, %s11
    %p181 = scmp.lt.s32.totalorder %s11, 3
    %p182 = pnand %p180, %p181
    %p183 = pneg %p182
    // Predicated region
    $region29: #{generator_forward.7} parent=5 // pred_check
      _
    $region30: #{generator_forward.7} parent=5 // pred_check_branch
      %185 = sbr.rel (%p182) target = $region32
    $region31: #{generator_forward.7} parent=5 // pred_region
      %s186 = ssub.s32 %s11, 1
      %p187 = scmp.lt.s32.totalorder %s20, 1
      %s188 = scalar_select %p187, %s20, 1
      %s189 = smul.addr %s188, 10
      %s190 = smul.addr %s189, 4
      %s191 = scalar_lea.vmem %s0, %s190
      %p192 = pneg %p49
      %p193 = pneg %p46
      %p194 = pneg %p70
      %p195 = pneg %p67
      %p196 = pneg %p91
      %p197 = pneg %p88
      %p198 = pneg %p119
      %p199 = pneg %p116
      %s200 = smul.u32 2, %s21
      %p201 = scmp.lt.s32.totalorder %s20, 1
      %s202 = scalar_select %p201, %s20, 1
      %p203 = scmp.lt.s32.totalorder %s200, 1
      %s204 = scalar_select %p203, %s200, 1
      %s205 = smul.addr %s202, 2
      %s206 = sadd.s32 %s204, %s205
      %s207 = smul.addr %s206, 4
      %s208 = scalar_lea.vmem %s3, %s207
      %p209 = pneg %p147
      %p210 = pneg %p144
      %p211 = scmp.lt.s32.totalorder %s20, 1
      %s212 = scalar_select %p211, %s20, 1
      %p213 = scmp.lt.s32.totalorder %s21, 0
      %s214 = scalar_select %p213, %s21, 0
      %s215 = sadd.s32 %s214, %s212
      %s216 = smul.addr %s215, 2
      %s217 = scalar_lea.vmem %s4, %s216
      %p218 = scmp.lt.s32.totalorder %s20, 1
      %s219 = scalar_select %p218, %s20, 1
      %s220 = smul.addr %s219, 10
      %s221 = smul.addr %s220, 4
      %s222 = scalar_lea.vmem %s0, %s221
      %s223 = smul.u32 2, %s21
      %p224 = scmp.lt.s32.totalorder %s20, 1
      %s225 = scalar_select %p224, %s20, 1
      %p226 = scmp.lt.s32.totalorder %s223, 1
      %s227 = scalar_select %p226, %s223, 1
      %s228 = smul.addr %s225, 2
      %s229 = sadd.s32 %s227, %s228
      %s230 = smul.addr %s229, 4
      %s231 = scalar_lea.vmem %s3, %s230
      %s232 = smul.u32 2, %s21
      %p233 = scmp.lt.s32.totalorder %s20, 1
      %s234 = scalar_select %p233, %s20, 1
      %p235 = scmp.lt.s32.totalorder %s21, 0
      %s236 = scalar_select %p235, %s21, 0
      %s237 = sadd.s32 %s236, %s234
      %s238 = smul.addr %s237, 2
      %s239 = scalar_lea.vmem %s4, %s238
      %s241 = smul.u32 %s21, 4
      %s242 = smul.u32 %s241, 2
      %s243 = smul.addr %s242, 4
      %s244 = scalar_lea.vmem %s222, %s243
      %v245 = vld [vmem:[%s244] sm:$0x33]
      %v246 = vld [vmem:[%s244 + $0x8] sm:$0x33]
      %v247 = vld [vmem:[%s244 + $0x10] sm:$0x33]
      %v248 = vld [vmem:[%s244 + $0x18] sm:$0x33]
      %v254 = vunpack.c.l.s4 1983009808
      %v255 = vunpack.c.0.s8 %v254
      %v256 = vlaneseq
      %v257 = vshrl.u32 %v256, 7
      %v258 = vsub.s32 %v255, %v257
      %v259 = vrot.slane %v245, %v258
      %v261 = vunpack.c.l.s4 1983009808
      %v262 = vunpack.c.0.s8 %v261
      %v263 = vlaneseq
      %v264 = vshrl.u32 %v263, 7
      %v265 = vsub.s32 %v262, %v264
      %v266 = vrot.slane %v246, %v265
      %v268 = vunpack.c.l.s4 1983009808
      %v269 = vunpack.c.0.s8 %v268
      %v270 = vlaneseq
      %v271 = vshrl.u32 %v270, 7
      %v272 = vsub.s32 %v269, %v271
      %v273 = vrot.slane %v247, %v272
      %v275 = vunpack.c.l.s4 1983009808
      %v276 = vunpack.c.0.s8 %v275
      %v277 = vlaneseq
      %v278 = vshrl.u32 %v277, 7
      %v279 = vsub.s32 %v276, %v278
      %v280 = vrot.slane %v248, %v279
      %v281 = vld [vmem:[%s1] sm:$0xf]
      %v282 = vld [vmem:[%s1 + $0x4] sm:$0xf]
      %v283 = vld [vmem:[%s1 + $0x8] sm:$0xf]
      %v284 = vld [vmem:[%s1 + $0xc] sm:$0xf]
      %v285 = vld [vmem:[%s1 + $0x10] sm:$0xf]
      %v286 = vld [vmem:[%s1 + $0x14] sm:$0xf]
      %v287 = vld [vmem:[%s1 + $0x18] sm:$0xf]
      %v288 = vld [vmem:[%s1 + $0x1c] sm:$0xf]
      %v289 = vld [vmem:[%s1 + $0x20] sm:$0xf]
      %v290 = vld [vmem:[%s1 + $0x24] sm:$0xf]
      %v291 = vld [vmem:[%s1 + $0x28] sm:$0xf]
      %v292 = vld [vmem:[%s1 + $0x2c] sm:$0xf]
      %v293 = vld [vmem:[%s1 + $0x30] sm:$0xf]
      %v294 = vld [vmem:[%s1 + $0x34] sm:$0xf]
      %v295 = vld [vmem:[%s1 + $0x38] sm:$0xf]
      %v296 = vld [vmem:[%s1 + $0x3c] sm:$0xf]
      %v297 = vld [vmem:[%s1 + $0x40] sm:$0xf]
      %v298 = vld [vmem:[%s1 + $0x44] sm:$0xf]
      %v299 = vld [vmem:[%s1 + $0x48] sm:$0xf]
      %v300 = vld [vmem:[%s1 + $0x4c] sm:$0xf]
      %v301 = vld [vmem:[%s1 + $0x50] sm:$0xf]
      %v302 = vld [vmem:[%s1 + $0x54] sm:$0xf]
      %v303 = vld [vmem:[%s1 + $0x58] sm:$0xf]
      %v304 = vld [vmem:[%s1 + $0x5c] sm:$0xf]
      %v305 = vld [vmem:[%s1 + $0x60] sm:$0xf]
      %v306 = vld [vmem:[%s1 + $0x64] sm:$0xf]
      %v307 = vld [vmem:[%s1 + $0x68] sm:$0xf]
      %v308 = vld [vmem:[%s1 + $0x6c] sm:$0xf]
      %v309 = vld [vmem:[%s1 + $0x70] sm:$0xf]
      %v310 = vld [vmem:[%s1 + $0x74] sm:$0xf]
      %v311 = vld [vmem:[%s1 + $0x78] sm:$0xf]
      %v312 = vld [vmem:[%s1 + $0x7c] sm:$0xf]
      %v313 = vld [vmem:[%s244] sm:$0x77]
      %v314 = vld [vmem:[%s244 + $0x8] sm:$0x77]
      %v315 = vld [vmem:[%s244 + $0x10] sm:$0x77]
      %v316 = vld [vmem:[%s244 + $0x18] sm:$0x77]
      %v322 = vunpack.c.l.s4 1983009808
      %v323 = vunpack.c.0.s8 %v322
      %v324 = vlaneseq
      %v325 = vshrl.u32 %v324, 7
      %v326 = vsub.s32 %v323, %v325
      %v327 = vrot.slane %v313, %v326
      %v328 = vcombine.high %v327, %v327
      %v330 = vunpack.c.l.s4 1983009808
      %v331 = vunpack.c.0.s8 %v330
      %v332 = vlaneseq
      %v333 = vshrl.u32 %v332, 7
      %v334 = vsub.s32 %v331, %v333
      %v335 = vrot.slane %v314, %v334
      %v336 = vcombine.high %v335, %v335
      %v338 = vunpack.c.l.s4 1983009808
      %v339 = vunpack.c.0.s8 %v338
      %v340 = vlaneseq
      %v341 = vshrl.u32 %v340, 7
      %v342 = vsub.s32 %v339, %v341
      %v343 = vrot.slane %v315, %v342
      %v344 = vcombine.high %v343, %v343
      %v346 = vunpack.c.l.s4 1983009808
      %v347 = vunpack.c.0.s8 %v346
      %v348 = vlaneseq
      %v349 = vshrl.u32 %v348, 7
      %v350 = vsub.s32 %v347, %v349
      %v351 = vrot.slane %v316, %v350
      %v352 = vcombine.high %v351, %v351
      %vm353 = vsmask.f32 1280
      %vm354 = vsmask.f32 3336
      %vm355 = vmor %vm353, %vm354
      %vm356 = vsmask.f32 5392
      %vm357 = vmor %vm355, %vm356
      %vm358 = vsmask.f32 7448
      %vm359 = vmor %vm357, %vm358
      %v361 = vshrl.u32 %v327, 16
      %v363 = vrot.slane %v361, 6
      %v364 = vshll.u32 %v327, 16
      %v366 = vrot.slane %v364, 7
      %v367 = vor.u32 %v363, %v366
      %v368 = vrot.slane %v367, 2
      %v370 = vshll.u32 %v328, 16
      %v372 = vrot.slane %v370, 7
      %v373 = vsel %vm359, %v368, %v372
      %v375 = vshrl.u32 %v335, 16
      %v377 = vrot.slane %v375, 6
      %v378 = vshll.u32 %v335, 16
      %v380 = vrot.slane %v378, 7
      %v381 = vor.u32 %v377, %v380
      %v382 = vrot.slane %v381, 2
      %v384 = vshll.u32 %v336, 16
      %v386 = vrot.slane %v384, 7
      %v387 = vsel %vm359, %v382, %v386
      %v389 = vshrl.u32 %v343, 16
      %v391 = vrot.slane %v389, 6
      %v392 = vshll.u32 %v343, 16
      %v394 = vrot.slane %v392, 7
      %v395 = vor.u32 %v391, %v394
      %v396 = vrot.slane %v395, 2
      %v398 = vshll.u32 %v344, 16
      %v400 = vrot.slane %v398, 7
      %v401 = vsel %vm359, %v396, %v400
      %v403 = vshrl.u32 %v351, 16
      %v405 = vrot.slane %v403, 6
      %v406 = vshll.u32 %v351, 16
      %v408 = vrot.slane %v406, 7
      %v409 = vor.u32 %v405, %v408
      %v410 = vrot.slane %v409, 2
      %v412 = vshll.u32 %v352, 16
      %v414 = vrot.slane %v412, 7
      %v415 = vsel %vm359, %v410, %v414
      %s416 = scalar_lea.vmem %s1, 128
      %v417 = vld [vmem:[%s416] sm:$0xf]
      %v418 = vld [vmem:[%s416 + $0x4] sm:$0xf]
      %v419 = vld [vmem:[%s416 + $0x8] sm:$0xf]
      %v420 = vld [vmem:[%s416 + $0xc] sm:$0xf]
      %v421 = vld [vmem:[%s416 + $0x10] sm:$0xf]
      %v422 = vld [vmem:[%s416 + $0x14] sm:$0xf]
      %v423 = vld [vmem:[%s416 + $0x18] sm:$0xf]
      %v424 = vld [vmem:[%s416 + $0x1c] sm:$0xf]
      %v425 = vld [vmem:[%s416 + $0x20] sm:$0xf]
      %v426 = vld [vmem:[%s416 + $0x24] sm:$0xf]
      %v427 = vld [vmem:[%s416 + $0x28] sm:$0xf]
      %v428 = vld [vmem:[%s416 + $0x2c] sm:$0xf]
      %v429 = vld [vmem:[%s416 + $0x30] sm:$0xf]
      %v430 = vld [vmem:[%s416 + $0x34] sm:$0xf]
      %v431 = vld [vmem:[%s416 + $0x38] sm:$0xf]
      %v432 = vld [vmem:[%s416 + $0x3c] sm:$0xf]
      %v433 = vld [vmem:[%s416 + $0x40] sm:$0xf]
      %v434 = vld [vmem:[%s416 + $0x44] sm:$0xf]
      %v435 = vld [vmem:[%s416 + $0x48] sm:$0xf]
      %v436 = vld [vmem:[%s416 + $0x4c] sm:$0xf]
      %v437 = vld [vmem:[%s416 + $0x50] sm:$0xf]
      %v438 = vld [vmem:[%s416 + $0x54] sm:$0xf]
      %v439 = vld [vmem:[%s416 + $0x58] sm:$0xf]
      %v440 = vld [vmem:[%s416 + $0x5c] sm:$0xf]
      %v441 = vld [vmem:[%s416 + $0x60] sm:$0xf]
      %v442 = vld [vmem:[%s416 + $0x64] sm:$0xf]
      %v443 = vld [vmem:[%s416 + $0x68] sm:$0xf]
      %v444 = vld [vmem:[%s416 + $0x6c] sm:$0xf]
      %v445 = vld [vmem:[%s416 + $0x70] sm:$0xf]
      %v446 = vld [vmem:[%s416 + $0x74] sm:$0xf]
      %v447 = vld [vmem:[%s416 + $0x78] sm:$0xf]
      %v448 = vld [vmem:[%s416 + $0x7c] sm:$0xf]
      %v449 = vcombine.low %v373, %v387
      %v450 = vcombine.low %v401, %v415
      %v452 = vunpack.c.l.s4 1983009808
      %v453 = vunpack.c.0.s8 %v452
      %v454 = vlaneseq
      %v455 = vshrl.u32 %v454, 7
      %v456 = vsub.s32 %v453, %v455
      %v457 = vrot.slane %v449, %v456
      %v459 = vunpack.c.l.s4 1983009808
      %v460 = vunpack.c.0.s8 %v459
      %v461 = vlaneseq
      %v462 = vshrl.u32 %v461, 7
      %v463 = vsub.s32 %v460, %v462
      %v464 = vrot.slane %v450, %v463
      %v465 = vcombine.low %v457, %v464
      %v466 = vcombine.high %v457, %v464
      %v501 = vunpack.c.l.b16 %v417
      %v502 = vunpack.c.l.b16 %v418
      %v503 = vunpack.c.l.b16 %v419
      %v504 = vunpack.c.l.b16 %v420
      %v505 = vunpack.c.l.b16 %v421
      %v506 = vunpack.c.l.b16 %v422
      %v507 = vunpack.c.l.b16 %v423
      %v508 = vunpack.c.l.b16 %v424
      %v509 = vunpack.c.l.b16 %v425
      %v510 = vunpack.c.l.b16 %v426
      %v511 = vunpack.c.l.b16 %v427
      %v512 = vunpack.c.l.b16 %v428
      %v513 = vunpack.c.l.b16 %v429
      %v514 = vunpack.c.l.b16 %v430
      %v515 = vunpack.c.l.b16 %v431
      %v516 = vunpack.c.l.b16 %v432
      %v517 = vunpack.c.l.b16 %v433
      %v518 = vunpack.c.l.b16 %v434
      %v519 = vunpack.c.l.b16 %v435
      %v520 = vunpack.c.l.b16 %v436
      %v521 = vunpack.c.l.b16 %v437
      %v522 = vunpack.c.l.b16 %v438
      %v523 = vunpack.c.l.b16 %v439
      %v524 = vunpack.c.l.b16 %v440
      %v525 = vunpack.c.l.b16 %v441
      %v526 = vunpack.c.l.b16 %v442
      %v527 = vunpack.c.l.b16 %v443
      %v528 = vunpack.c.l.b16 %v444
      %v529 = vunpack.c.l.b16 %v445
      %v530 = vunpack.c.l.b16 %v446
      %v531 = vunpack.c.l.b16 %v447
      %v532 = vunpack.c.l.b16 %v448
      %v533 = vpack.c.b16 %v502, %v501
      %v534 = vpack.c.b16 %v504, %v503
      %v535 = vpack.c.b16 %v506, %v505
      %v536 = vpack.c.b16 %v508, %v507
      %v537 = vpack.c.b16 %v510, %v509
      %v538 = vpack.c.b16 %v512, %v511
      %v539 = vpack.c.b16 %v514, %v513
      %v540 = vpack.c.b16 %v516, %v515
      %v541 = vpack.c.b16 %v518, %v517
      %v542 = vpack.c.b16 %v520, %v519
      %v543 = vpack.c.b16 %v522, %v521
      %v544 = vpack.c.b16 %v524, %v523
      %v545 = vpack.c.b16 %v526, %v525
      %v546 = vpack.c.b16 %v528, %v527
      %v547 = vpack.c.b16 %v530, %v529
      %v548 = vpack.c.b16 %v532, %v531
      %565 = vmatprep.subr.bf16.mxu0 0
      %566 = vmatpush1.bf16.msra.mxu0 %v533
      %567 = vmatprep.subr.bf16.mxu0 0
      %568 = vmatpush1.bf16.msra.mxu0 %v534
      %569 = vmatprep.subr.bf16.mxu0 0
      %570 = vmatpush1.bf16.msra.mxu0 %v535
      %571 = vmatprep.subr.bf16.mxu0 0
      %572 = vmatpush1.bf16.msra.mxu0 %v536
      %573 = vmatprep.subr.bf16.mxu0 0
      %574 = vmatpush1.bf16.msra.mxu0 %v537
      %575 = vmatprep.subr.bf16.mxu0 0
      %576 = vmatpush1.bf16.msra.mxu0 %v538
      %577 = vmatprep.subr.bf16.mxu0 0
      %578 = vmatpush1.bf16.msra.mxu0 %v539
      %579 = vmatprep.subr.bf16.mxu0 0
      %580 = vmatpush1.bf16.msra.mxu0 %v540
      %581 = vmatprep.subr.bf16.mxu0 0
      %582 = vmatpush1.bf16.msra.mxu0 %v541
      %583 = vmatprep.subr.bf16.mxu0 0
      %584 = vmatpush1.bf16.msra.mxu0 %v542
      %585 = vmatprep.subr.bf16.mxu0 0
      %586 = vmatpush1.bf16.msra.mxu0 %v543
      %587 = vmatprep.subr.bf16.mxu0 0
      %588 = vmatpush1.bf16.msra.mxu0 %v544
      %589 = vmatprep.subr.bf16.mxu0 0
      %590 = vmatpush1.bf16.msra.mxu0 %v545
      %591 = vmatprep.subr.bf16.mxu0 0
      %592 = vmatpush1.bf16.msra.mxu0 %v546
      %593 = vmatprep.subr.bf16.mxu0 0
      %594 = vmatpush1.bf16.msra.mxu0 %v547
      %595 = vmatprep.subr.bf16.mxu0 0
      %596 = vmatpush1.bf16.msra.mxu0 %v548
      %597 = vmatprep.mubr.bf16.mxu0 %v466
      %598 = vmatmul.mubr.bf16.gmra.mrb[0].mxu0 %v465
      %v599 = vpop.f32.mrb[0].mxu0
      %v600 = vadd.f32 0.0, %v599
      %v601 = vpop.f32.mrb[0].mxu0
      %v602 = vpop.f32.mrb[0].mxu0
      %v603 = vadd.f32 0.0, %v602
      %v604 = vpop.f32.mrb[0].mxu0
      %605 = vdwg.mxu0
      %v606 = vcombine.low %v259, %v266
      %v607 = vcombine.low %v273, %v280
      %v609 = vunpack.c.l.s4 1983009808
      %v610 = vunpack.c.0.s8 %v609
      %v611 = vlaneseq
      %v612 = vshrl.u32 %v611, 7
      %v613 = vsub.s32 %v610, %v612
      %v614 = vrot.slane %v606, %v613
      %v616 = vunpack.c.l.s4 1983009808
      %v617 = vunpack.c.0.s8 %v616
      %v618 = vlaneseq
      %v619 = vshrl.u32 %v618, 7
      %v620 = vsub.s32 %v617, %v619
      %v621 = vrot.slane %v607, %v620
      %v622 = vcombine.low %v614, %v621
      %v623 = vcombine.high %v614, %v621
      %v658 = vunpack.c.l.b16 %v281
      %v659 = vunpack.c.l.b16 %v282
      %v660 = vunpack.c.l.b16 %v283
      %v661 = vunpack.c.l.b16 %v284
      %v662 = vunpack.c.l.b16 %v285
      %v663 = vunpack.c.l.b16 %v286
      %v664 = vunpack.c.l.b16 %v287
      %v665 = vunpack.c.l.b16 %v288
      %v666 = vunpack.c.l.b16 %v289
      %v667 = vunpack.c.l.b16 %v290
      %v668 = vunpack.c.l.b16 %v291
      %v669 = vunpack.c.l.b16 %v292
      %v670 = vunpack.c.l.b16 %v293
      %v671 = vunpack.c.l.b16 %v294
      %v672 = vunpack.c.l.b16 %v295
      %v673 = vunpack.c.l.b16 %v296
      %v674 = vunpack.c.l.b16 %v297
      %v675 = vunpack.c.l.b16 %v298
      %v676 = vunpack.c.l.b16 %v299
      %v677 = vunpack.c.l.b16 %v300
      %v678 = vunpack.c.l.b16 %v301
      %v679 = vunpack.c.l.b16 %v302
      %v680 = vunpack.c.l.b16 %v303
      %v681 = vunpack.c.l.b16 %v304
      %v682 = vunpack.c.l.b16 %v305
      %v683 = vunpack.c.l.b16 %v306
      %v684 = vunpack.c.l.b16 %v307
      %v685 = vunpack.c.l.b16 %v308
      %v686 = vunpack.c.l.b16 %v309
      %v687 = vunpack.c.l.b16 %v310
      %v688 = vunpack.c.l.b16 %v311
      %v689 = vunpack.c.l.b16 %v312
      %v690 = vpack.c.b16 %v659, %v658
      %v691 = vpack.c.b16 %v661, %v660
      %v692 = vpack.c.b16 %v663, %v662
      %v693 = vpack.c.b16 %v665, %v664
      %v694 = vpack.c.b16 %v667, %v666
      %v695 = vpack.c.b16 %v669, %v668
      %v696 = vpack.c.b16 %v671, %v670
      %v697 = vpack.c.b16 %v673, %v672
      %v698 = vpack.c.b16 %v675, %v674
      %v699 = vpack.c.b16 %v677, %v676
      %v700 = vpack.c.b16 %v679, %v678
      %v701 = vpack.c.b16 %v681, %v680
      %v702 = vpack.c.b16 %v683, %v682
      %v703 = vpack.c.b16 %v685, %v684
      %v704 = vpack.c.b16 %v687, %v686
      %v705 = vpack.c.b16 %v689, %v688
      %722 = vmatprep.subr.bf16.mxu0 0
      %723 = vmatpush1.bf16.msra.mxu0 %v690
      %724 = vmatprep.subr.bf16.mxu0 0
      %725 = vmatpush1.bf16.msra.mxu0 %v691
      %726 = vmatprep.subr.bf16.mxu0 0
      %727 = vmatpush1.bf16.msra.mxu0 %v692
      %728 = vmatprep.subr.bf16.mxu0 0
      %729 = vmatpush1.bf16.msra.mxu0 %v693
      %730 = vmatprep.subr.bf16.mxu0 0
      %731 = vmatpush1.bf16.msra.mxu0 %v694
      %732 = vmatprep.subr.bf16.mxu0 0
      %733 = vmatpush1.bf16.msra.mxu0 %v695
      %734 = vmatprep.subr.bf16.mxu0 0
      %735 = vmatpush1.bf16.msra.mxu0 %v696
      %736 = vmatprep.subr.bf16.mxu0 0
      %737 = vmatpush1.bf16.msra.mxu0 %v697
      %738 = vmatprep.subr.bf16.mxu0 0
      %739 = vmatpush1.bf16.msra.mxu0 %v698
      %740 = vmatprep.subr.bf16.mxu0 0
      %741 = vmatpush1.bf16.msra.mxu0 %v699
      %742 = vmatprep.subr.bf16.mxu0 0
      %743 = vmatpush1.bf16.msra.mxu0 %v700
      %744 = vmatprep.subr.bf16.mxu0 0
      %745 = vmatpush1.bf16.msra.mxu0 %v701
      %746 = vmatprep.subr.bf16.mxu0 0
      %747 = vmatpush1.bf16.msra.mxu0 %v702
      %748 = vmatprep.subr.bf16.mxu0 0
      %749 = vmatpush1.bf16.msra.mxu0 %v703
      %750 = vmatprep.subr.bf16.mxu0 0
      %751 = vmatpush1.bf16.msra.mxu0 %v704
      %752 = vmatprep.subr.bf16.mxu0 0
      %753 = vmatpush1.bf16.msra.mxu0 %v705
      %754 = vmatprep.mubr.bf16.mxu0 %v623
      %755 = vmatmul.mubr.bf16.gmra.mrb[0].mxu0 %v622
      %v756 = vpop.f32.mrb[0].mxu0
      %v757 = vadd.f32 %v600, %v756
      %v758 = vpop.f32.mrb[0].mxu0
      %v759 = vpop.f32.mrb[0].mxu0
      %v760 = vadd.f32 %v603, %v759
      %v761 = vpop.f32.mrb[0].mxu0
      %762 = vdwg.mxu0
      %s763 = sadd.s32 %s241, 1
      %s764 = smul.u32 %s763, 2
      %s765 = smul.addr %s764, 4
      %s766 = scalar_lea.vmem %s222, %s765
      %v767 = vld [vmem:[%s766] sm:$0x33]
      %v768 = vld [vmem:[%s766 + $0x8] sm:$0x33]
      %v769 = vld [vmem:[%s766 + $0x10] sm:$0x33]
      %v770 = vld [vmem:[%s766 + $0x18] sm:$0x33]
      %v776 = vunpack.c.l.s4 1983009808
      %v777 = vunpack.c.0.s8 %v776
      %v778 = vlaneseq
      %v779 = vshrl.u32 %v778, 7
      %v780 = vsub.s32 %v777, %v779
      %v781 = vrot.slane %v767, %v780
      %v783 = vunpack.c.l.s4 1983009808
      %v784 = vunpack.c.0.s8 %v783
      %v785 = vlaneseq
      %v786 = vshrl.u32 %v785, 7
      %v787 = vsub.s32 %v784, %v786
      %v788 = vrot.slane %v768, %v787
      %v790 = vunpack.c.l.s4 1983009808
      %v791 = vunpack.c.0.s8 %v790
      %v792 = vlaneseq
      %v793 = vshrl.u32 %v792, 7
      %v794 = vsub.s32 %v791, %v793
      %v795 = vrot.slane %v769, %v794
      %v797 = vunpack.c.l.s4 1983009808
      %v798 = vunpack.c.0.s8 %v797
      %v799 = vlaneseq
      %v800 = vshrl.u32 %v799, 7
      %v801 = vsub.s32 %v798, %v800
      %v802 = vrot.slane %v770, %v801
      %s803 = scalar_lea.vmem %s1, 256
      %v804 = vld [vmem:[%s803] sm:$0xf]
      %v805 = vld [vmem:[%s803 + $0x4] sm:$0xf]
      %v806 = vld [vmem:[%s803 + $0x8] sm:$0xf]
      %v807 = vld [vmem:[%s803 + $0xc] sm:$0xf]
      %v808 = vld [vmem:[%s803 + $0x10] sm:$0xf]
      %v809 = vld [vmem:[%s803 + $0x14] sm:$0xf]
      %v810 = vld [vmem:[%s803 + $0x18] sm:$0xf]
      %v811 = vld [vmem:[%s803 + $0x1c] sm:$0xf]
      %v812 = vld [vmem:[%s803 + $0x20] sm:$0xf]
      %v813 = vld [vmem:[%s803 + $0x24] sm:$0xf]
      %v814 = vld [vmem:[%s803 + $0x28] sm:$0xf]
      %v815 = vld [vmem:[%s803 + $0x2c] sm:$0xf]
      %v816 = vld [vmem:[%s803 + $0x30] sm:$0xf]
      %v817 = vld [vmem:[%s803 + $0x34] sm:$0xf]
      %v818 = vld [vmem:[%s803 + $0x38] sm:$0xf]
      %v819 = vld [vmem:[%s803 + $0x3c] sm:$0xf]
      %v820 = vld [vmem:[%s803 + $0x40] sm:$0xf]
      %v821 = vld [vmem:[%s803 + $0x44] sm:$0xf]
      %v822 = vld [vmem:[%s803 + $0x48] sm:$0xf]
      %v823 = vld [vmem:[%s803 + $0x4c] sm:$0xf]
      %v824 = vld [vmem:[%s803 + $0x50] sm:$0xf]
      %v825 = vld [vmem:[%s803 + $0x54] sm:$0xf]
      %v826 = vld [vmem:[%s803 + $0x58] sm:$0xf]
      %v827 = vld [vmem:[%s803 + $0x5c] sm:$0xf]
      %v828 = vld [vmem:[%s803 + $0x60] sm:$0xf]
      %v829 = vld [vmem:[%s803 + $0x64] sm:$0xf]
      %v830 = vld [vmem:[%s803 + $0x68] sm:$0xf]
      %v831 = vld [vmem:[%s803 + $0x6c] sm:$0xf]
      %v832 = vld [vmem:[%s803 + $0x70] sm:$0xf]
      %v833 = vld [vmem:[%s803 + $0x74] sm:$0xf]
      %v834 = vld [vmem:[%s803 + $0x78] sm:$0xf]
      %v835 = vld [vmem:[%s803 + $0x7c] sm:$0xf]
      %v836 = vcombine.low %v781, %v788
      %v837 = vcombine.low %v795, %v802
      %v839 = vunpack.c.l.s4 1983009808
      %v840 = vunpack.c.0.s8 %v839
      %v841 = vlaneseq
      %v842 = vshrl.u32 %v841, 7
      %v843 = vsub.s32 %v840, %v842
      %v844 = vrot.slane %v836, %v843
      %v846 = vunpack.c.l.s4 1983009808
      %v847 = vunpack.c.0.s8 %v846
      %v848 = vlaneseq
      %v849 = vshrl.u32 %v848, 7
      %v850 = vsub.s32 %v847, %v849
      %v851 = vrot.slane %v837, %v850
      %v852 = vcombine.low %v844, %v851
      %v853 = vcombine.high %v844, %v851
      %v888 = vunpack.c.l.b16 %v804
      %v889 = vunpack.c.l.b16 %v805
      %v890 = vunpack.c.l.b16 %v806
      %v891 = vunpack.c.l.b16 %v807
      %v892 = vunpack.c.l.b16 %v808
      %v893 = vunpack.c.l.b16 %v809
      %v894 = vunpack.c.l.b16 %v810
      %v895 = vunpack.c.l.b16 %v811
      %v896 = vunpack.c.l.b16 %v812
      %v897 = vunpack.c.l.b16 %v813
      %v898 = vunpack.c.l.b16 %v814
      %v899 = vunpack.c.l.b16 %v815
      %v900 = vunpack.c.l.b16 %v816
      %v901 = vunpack.c.l.b16 %v817
      %v902 = vunpack.c.l.b16 %v818
      %v903 = vunpack.c.l.b16 %v819
      %v904 = vunpack.c.l.b16 %v820
      %v905 = vunpack.c.l.b16 %v821
      %v906 = vunpack.c.l.b16 %v822
      %v907 = vunpack.c.l.b16 %v823
      %v908 = vunpack.c.l.b16 %v824
      %v909 = vunpack.c.l.b16 %v825
      %v910 = vunpack.c.l.b16 %v826
      %v911 = vunpack.c.l.b16 %v827
      %v912 = vunpack.c.l.b16 %v828
      %v913 = vunpack.c.l.b16 %v829
      %v914 = vunpack.c.l.b16 %v830
      %v915 = vunpack.c.l.b16 %v831
      %v916 = vunpack.c.l.b16 %v832
      %v917 = vunpack.c.l.b16 %v833
      %v918 = vunpack.c.l.b16 %v834
      %v919 = vunpack.c.l.b16 %v835
      %v920 = vpack.c.b16 %v889, %v888
      %v921 = vpack.c.b16 %v891, %v890
      %v922 = vpack.c.b16 %v893, %v892
      %v923 = vpack.c.b16 %v895, %v894
      %v924 = vpack.c.b16 %v897, %v896
      %v925 = vpack.c.b16 %v899, %v898
      %v926 = vpack.c.b16 %v901, %v900
      %v927 = vpack.c.b16 %v903, %v902
      %v928 = vpack.c.b16 %v905, %v904
      %v929 = vpack.c.b16 %v907, %v906
      %v930 = vpack.c.b16 %v909, %v908
      %v931 = vpack.c.b16 %v911, %v910
      %v932 = vpack.c.b16 %v913, %v912
      %v933 = vpack.c.b16 %v915, %v914
      %v934 = vpack.c.b16 %v917, %v916
      %v935 = vpack.c.b16 %v919, %v918
      %952 = vmatprep.subr.bf16.mxu0 0
      %953 = vmatpush1.bf16.msra.mxu0 %v920
      %954 = vmatprep.subr.bf16.mxu0 0
      %955 = vmatpush1.bf16.msra.mxu0 %v921
      %956 = vmatprep.subr.bf16.mxu0 0
      %957 = vmatpush1.bf16.msra.mxu0 %v922
      %958 = vmatprep.subr.bf16.mxu0 0
      %959 = vmatpush1.bf16.msra.mxu0 %v923
      %960 = vmatprep.subr.bf16.mxu0 0
      %961 = vmatpush1.bf16.msra.mxu0 %v924
      %962 = vmatprep.subr.bf16.mxu0 0
      %963 = vmatpush1.bf16.msra.mxu0 %v925
      %964 = vmatprep.subr.bf16.mxu0 0
      %965 = vmatpush1.bf16.msra.mxu0 %v926
      %966 = vmatprep.subr.bf16.mxu0 0
      %967 = vmatpush1.bf16.msra.mxu0 %v927
      %968 = vmatprep.subr.bf16.mxu0 0
      %969 = vmatpush1.bf16.msra.mxu0 %v928
      %970 = vmatprep.subr.bf16.mxu0 0
      %971 = vmatpush1.bf16.msra.mxu0 %v929
      %972 = vmatprep.subr.bf16.mxu0 0
      %973 = vmatpush1.bf16.msra.mxu0 %v930
      %974 = vmatprep.subr.bf16.mxu0 0
      %975 = vmatpush1.bf16.msra.mxu0 %v931
      %976 = vmatprep.subr.bf16.mxu0 0
      %977 = vmatpush1.bf16.msra.mxu0 %v932
      %978 = vmatprep.subr.bf16.mxu0 0
      %979 = vmatpush1.bf16.msra.mxu0 %v933
      %980 = vmatprep.subr.bf16.mxu0 0
      %981 = vmatpush1.bf16.msra.mxu0 %v934
      %982 = vmatprep.subr.bf16.mxu0 0
      %983 = vmatpush1.bf16.msra.mxu0 %v935
      %984 = vmatprep.mubr.bf16.mxu0 %v853
      %985 = vmatmul.mubr.bf16.gmra.mrb[0].mxu0 %v852
      %v986 = vpop.f32.mrb[0].mxu0
      %v987 = vadd.f32 0.0, %v986
      %v988 = vpop.f32.mrb[0].mxu0
      %v989 = vpop.f32.mrb[0].mxu0
      %v990 = vadd.f32 0.0, %v989
      %v991 = vpop.f32.mrb[0].mxu0
      %992 = vdwg.mxu0
      %v993 = vadd.f32 %v757, %v987
      %v994 = vadd.f32 %v760, %v990
      %v995 = vld [vmem:[%s766] sm:$0x77]
      %v996 = vld [vmem:[%s766 + $0x8] sm:$0x77]
      %v997 = vld [vmem:[%s766 + $0x10] sm:$0x77]
      %v998 = vld [vmem:[%s766 + $0x18] sm:$0x77]
      %v1004 = vunpack.c.l.s4 1983009808
      %v1005 = vunpack.c.0.s8 %v1004
      %v1006 = vlaneseq
      %v1007 = vshrl.u32 %v1006, 7
      %v1008 = vsub.s32 %v1005, %v1007
      %v1009 = vrot.slane %v995, %v1008
      %v1010 = vcombine.high %v1009, %v1009
      %v1012 = vunpack.c.l.s4 1983009808
      %v1013 = vunpack.c.0.s8 %v1012
      %v1014 = vlaneseq
      %v1015 = vshrl.u32 %v1014, 7
      %v1016 = vsub.s32 %v1013, %v1015
      %v1017 = vrot.slane %v996, %v1016
      %v1018 = vcombine.high %v1017, %v1017
      %v1020 = vunpack.c.l.s4 1983009808
      %v1021 = vunpack.c.0.s8 %v1020
      %v1022 = vlaneseq
      %v1023 = vshrl.u32 %v1022, 7
      %v1024 = vsub.s32 %v1021, %v1023
      %v1025 = vrot.slane %v997, %v1024
      %v1026 = vcombine.high %v1025, %v1025
      %v1028 = vunpack.c.l.s4 1983009808
      %v1029 = vunpack.c.0.s8 %v1028
      %v1030 = vlaneseq
      %v1031 = vshrl.u32 %v1030, 7
      %v1032 = vsub.s32 %v1029, %v1031
      %v1033 = vrot.slane %v998, %v1032
      %v1034 = vcombine.high %v1033, %v1033
      %v1036 = vshrl.u32 %v1009, 16
      %v1038 = vrot.slane %v1036, 6
      %v1039 = vshll.u32 %v1009, 16
      %v1041 = vrot.slane %v1039, 7
      %v1042 = vor.u32 %v1038, %v1041
      %v1043 = vrot.slane %v1042, 2
      %v1045 = vshll.u32 %v1010, 16
      %v1047 = vrot.slane %v1045, 7
      %v1048 = vsel %vm359, %v1043, %v1047
      %v1050 = vshrl.u32 %v1017, 16
      %v1052 = vrot.slane %v1050, 6
      %v1053 = vshll.u32 %v1017, 16
      %v1055 = vrot.slane %v1053, 7
      %v1056 = vor.u32 %v1052, %v1055
      %v1057 = vrot.slane %v1056, 2
      %v1059 = vshll.u32 %v1018, 16
      %v1061 = vrot.slane %v1059, 7
      %v1062 = vsel %vm359, %v1057, %v1061
      %v1064 = vshrl.u32 %v1025, 16
      %v1066 = vrot.slane %v1064, 6
      %v1067 = vshll.u32 %v1025, 16
      %v1069 = vrot.slane %v1067, 7
      %v1070 = vor.u32 %v1066, %v1069
      %v1071 = vrot.slane %v1070, 2
      %v1073 = vshll.u32 %v1026, 16
      %v1075 = vrot.slane %v1073, 7
      %v1076 = vsel %vm359, %v1071, %v1075
      %v1078 = vshrl.u32 %v1033, 16
      %v1080 = vrot.slane %v1078, 6
      %v1081 = vshll.u32 %v1033, 16
      %v1083 = vrot.slane %v1081, 7
      %v1084 = vor.u32 %v1080, %v1083
      %v1085 = vrot.slane %v1084, 2
      %v1087 = vshll.u32 %v1034, 16
      %v1089 = vrot.slane %v1087, 7
      %v1090 = vsel %vm359, %v1085, %v1089
      %s1091 = scalar_lea.vmem %s1, 384
      %v1092 = vld [vmem:[%s1091] sm:$0xf]
      %v1093 = vld [vmem:[%s1091 + $0x4] sm:$0xf]
      %v1094 = vld [vmem:[%s1091 + $0x8] sm:$0xf]
      %v1095 = vld [vmem:[%s1091 + $0xc] sm:$0xf]
      %v1096 = vld [vmem:[%s1091 + $0x10] sm:$0xf]
      %v1097 = vld [vmem:[%s1091 + $0x14] sm:$0xf]
      %v1098 = vld [vmem:[%s1091 + $0x18] sm:$0xf]
      %v1099 = vld [vmem:[%s1091 + $0x1c] sm:$0xf]
      %v1100 = vld [vmem:[%s1091 + $0x20] sm:$0xf]
      %v1101 = vld [vmem:[%s1091 + $0x24] sm:$0xf]
      %v1102 = vld [vmem:[%s1091 + $0x28] sm:$0xf]
      %v1103 = vld [vmem:[%s1091 + $0x2c] sm:$0xf]
      %v1104 = vld [vmem:[%s1091 + $0x30] sm:$0xf]
      %v1105 = vld [vmem:[%s1091 + $0x34] sm:$0xf]
      %v1106 = vld [vmem:[%s1091 + $0x38] sm:$0xf]
      %v1107 = vld [vmem:[%s1091 + $0x3c] sm:$0xf]
      %v1108 = vld [vmem:[%s1091 + $0x40] sm:$0xf]
      %v1109 = vld [vmem:[%s1091 + $0x44] sm:$0xf]
      %v1110 = vld [vmem:[%s1091 + $0x48] sm:$0xf]
      %v1111 = vld [vmem:[%s1091 + $0x4c] sm:$0xf]
      %v1112 = vld [vmem:[%s1091 + $0x50] sm:$0xf]
      %v1113 = vld [vmem:[%s1091 + $0x54] sm:$0xf]
      %v1114 = vld [vmem:[%s1091 + $0x58] sm:$0xf]
      %v1115 = vld [vmem:[%s1091 + $0x5c] sm:$0xf]
      %v1116 = vld [vmem:[%s1091 + $0x60] sm:$0xf]
      %v1117 = vld [vmem:[%s1091 + $0x64] sm:$0xf]
      %v1118 = vld [vmem:[%s1091 + $0x68] sm:$0xf]
      %v1119 = vld [vmem:[%s1091 + $0x6c] sm:$0xf]
      %v1120 = vld [vmem:[%s1091 + $0x70] sm:$0xf]
      %v1121 = vld [vmem:[%s1091 + $0x74] sm:$0xf]
      %v1122 = vld [vmem:[%s1091 + $0x78] sm:$0xf]
      %v1123 = vld [vmem:[%s1091 + $0x7c] sm:$0xf]
      %v1124 = vcombine.low %v1048, %v1062
      %v1125 = vcombine.low %v1076, %v1090
      %v1127 = vunpack.c.l.s4 1983009808
      %v1128 = vunpack.c.0.s8 %v1127
      %v1129 = vlaneseq
      %v1130 = vshrl.u32 %v1129, 7
      %v1131 = vsub.s32 %v1128, %v1130
      %v1132 = vrot.slane %v1124, %v1131
      %v1134 = vunpack.c.l.s4 1983009808
      %v1135 = vunpack.c.0.s8 %v1134
      %v1136 = vlaneseq
      %v1137 = vshrl.u32 %v1136, 7
      %v1138 = vsub.s32 %v1135, %v1137
      %v1139 = vrot.slane %v1125, %v1138
      %v1140 = vcombine.low %v1132, %v1139
      %v1141 = vcombine.high %v1132, %v1139
      %v1176 = vunpack.c.l.b16 %v1092
      %v1177 = vunpack.c.l.b16 %v1093
      %v1178 = vunpack.c.l.b16 %v1094
      %v1179 = vunpack.c.l.b16 %v1095
      %v1180 = vunpack.c.l.b16 %v1096
      %v1181 = vunpack.c.l.b16 %v1097
      %v1182 = vunpack.c.l.b16 %v1098
      %v1183 = vunpack.c.l.b16 %v1099
      %v1184 = vunpack.c.l.b16 %v1100
      %v1185 = vunpack.c.l.b16 %v1101
      %v1186 = vunpack.c.l.b16 %v1102
      %v1187 = vunpack.c.l.b16 %v1103
      %v1188 = vunpack.c.l.b16 %v1104
      %v1189 = vunpack.c.l.b16 %v1105
      %v1190 = vunpack.c.l.b16 %v1106
      %v1191 = vunpack.c.l.b16 %v1107
      %v1192 = vunpack.c.l.b16 %v1108
      %v1193 = vunpack.c.l.b16 %v1109
      %v1194 = vunpack.c.l.b16 %v1110
      %v1195 = vunpack.c.l.b16 %v1111
      %v1196 = vunpack.c.l.b16 %v1112
      %v1197 = vunpack.c.l.b16 %v1113
      %v1198 = vunpack.c.l.b16 %v1114
      %v1199 = vunpack.c.l.b16 %v1115
      %v1200 = vunpack.c.l.b16 %v1116
      %v1201 = vunpack.c.l.b16 %v1117
      %v1202 = vunpack.c.l.b16 %v1118
      %v1203 = vunpack.c.l.b16 %v1119
      %v1204 = vunpack.c.l.b16 %v1120
      %v1205 = vunpack.c.l.b16 %v1121
      %v1206 = vunpack.c.l.b16 %v1122
      %v1207 = vunpack.c.l.b16 %v1123
      %v1208 = vpack.c.b16 %v1177, %v1176
      %v1209 = vpack.c.b16 %v1179, %v1178
      %v1210 = vpack.c.b16 %v1181, %v1180
      %v1211 = vpack.c.b16 %v1183, %v1182
      %v1212 = vpack.c.b16 %v1185, %v1184
      %v1213 = vpack.c.b16 %v1187, %v1186
      %v1214 = vpack.c.b16 %v1189, %v1188
      %v1215 = vpack.c.b16 %v1191, %v1190
      %v1216 = vpack.c.b16 %v1193, %v1192
      %v1217 = vpack.c.b16 %v1195, %v1194
      %v1218 = vpack.c.b16 %v1197, %v1196
      %v1219 = vpack.c.b16 %v1199, %v1198
      %v1220 = vpack.c.b16 %v1201, %v1200
      %v1221 = vpack.c.b16 %v1203, %v1202
      %v1222 = vpack.c.b16 %v1205, %v1204
      %v1223 = vpack.c.b16 %v1207, %v1206
      %1240 = vmatprep.subr.bf16.mxu0 0
      %1241 = vmatpush1.bf16.msra.mxu0 %v1208
      %1242 = vmatprep.subr.bf16.mxu0 0
      %1243 = vmatpush1.bf16.msra.mxu0 %v1209
      %1244 = vmatprep.subr.bf16.mxu0 0
      %1245 = vmatpush1.bf16.msra.mxu0 %v1210
      %1246 = vmatprep.subr.bf16.mxu0 0
      %1247 = vmatpush1.bf16.msra.mxu0 %v1211
      %1248 = vmatprep.subr.bf16.mxu0 0
      %1249 = vmatpush1.bf16.msra.mxu0 %v1212
      %1250 = vmatprep.subr.bf16.mxu0 0
      %1251 = vmatpush1.bf16.msra.mxu0 %v1213
      %1252 = vmatprep.subr.bf16.mxu0 0
      %1253 = vmatpush1.bf16.msra.mxu0 %v1214
      %1254 = vmatprep.subr.bf16.mxu0 0
      %1255 = vmatpush1.bf16.msra.mxu0 %v1215
      %1256 = vmatprep.subr.bf16.mxu0 0
      %1257 = vmatpush1.bf16.msra.mxu0 %v1216
      %1258 = vmatprep.subr.bf16.mxu0 0
      %1259 = vmatpush1.bf16.msra.mxu0 %v1217
      %1260 = vmatprep.subr.bf16.mxu0 0
      %1261 = vmatpush1.bf16.msra.mxu0 %v1218
      %1262 = vmatprep.subr.bf16.mxu0 0
      %1263 = vmatpush1.bf16.msra.mxu0 %v1219
      %1264 = vmatprep.subr.bf16.mxu0 0
      %1265 = vmatpush1.bf16.msra.mxu0 %v1220
      %1266 = vmatprep.subr.bf16.mxu0 0
      %1267 = vmatpush1.bf16.msra.mxu0 %v1221
      %1268 = vmatprep.subr.bf16.mxu0 0
      %1269 = vmatpush1.bf16.msra.mxu0 %v1222
      %1270 = vmatprep.subr.bf16.mxu0 0
      %1271 = vmatpush1.bf16.msra.mxu0 %v1223
      %1272 = vmatprep.mubr.bf16.mxu0 %v1141
      %1273 = vmatmul.mubr.bf16.gmra.mrb[0].mxu0 %v1140
      %v1274 = vpop.f32.mrb[0].mxu0
      %v1275 = vadd.f32 0.0, %v1274
      %v1276 = vpop.f32.mrb[0].mxu0
      %v1277 = vpop.f32.mrb[0].mxu0
      %v1278 = vadd.f32 0.0, %v1277
      %v1279 = vpop.f32.mrb[0].mxu0
      %1280 = vdwg.mxu0
      %v1281 = vadd.f32 %v993, %v1275
      %v1282 = vadd.f32 %v994, %v1278
      %v1283 = vld [vmem:[%s2] sm:$0x1]
      %v1285 = vlaneseq
      %v1286 = vshrl.u32 %v1285, 7
      %v1287 = vsub.s32 0, %v1286
      %v1288 = vrot.slane %v1283, %v1287
      %v1290 = vadd.f32 %v1281, %v1288
      %v1291 = vadd.f32 %v1282, %v1288
      %v1292 = vadd.f32 %v1290, %v1291
      %v1293 = vrot.slane %v1292, 4
      %v1294 = vadd.f32 %v1292, %v1293
      %v1295 = vrot.slane %v1294, 2
      %v1296 = vadd.f32 %v1294, %v1295
      %v1297 = vrot.slane %v1296, 1
      %v1298 = vadd.f32 %v1296, %v1297
      %1299 = vst [vmem:[%s239] sm:$0x1] %v1298
      %v1300 = vmul.f32 %v1290, %v1290
      %v1301 = vmul.f32 %v1291, %v1291
      %v1302 = vadd.f32 %v1300, %v1301
      %v1303 = vrot.slane %v1302, 4
      %v1304 = vadd.f32 %v1302, %v1303
      %v1305 = vrot.slane %v1304, 2
      %v1306 = vadd.f32 %v1304, %v1305
      %v1307 = vrot.slane %v1306, 1
      %v1308 = vadd.f32 %v1306, %v1307
      %1309 = vst [vmem:[%s239 + $0x1] sm:$0x1] %v1308
      %v1310 = vpack.c.bf16 %v1291, %v1290
      %v1312 = vunpack.c.l.b16 %v1310
      %v1313 = vunpack.c.h.b16 %v1310
      %v1314 = vpack.c.b16 %v1312, %v1312
      %v1315 = vpack.c.b16 %v1313, %v1313
      %1318 = vst [vmem:[%s231] sm:$0xf] %v1314
      %1319 = vst [vmem:[%s231 + $0x4] sm:$0xf] %v1315
      %s1320 = smul.u32 2, %s21
      %p1321 = scmp.lt.s32.totalorder %s20, 1
      %s1322 = scalar_select %p1321, %s20, 1
      %p1323 = scmp.lt.s32.totalorder %s1320, 1
      %s1324 = scalar_select %p1323, %s1320, 1
      %s1325 = smul.addr %s1322, 2
      %s1326 = sadd.s32 %s1324, %s1325
      %s1327 = smul.addr %s1326, 4
      %s1328 = scalar_lea.vmem %s3, %s1327
      %p1329 = scmp.lt.s32.totalorder %s20, 1
      %s1330 = scalar_select %p1329, %s20, 1
      %p1331 = scmp.lt.s32.totalorder %s21, 0
      %s1332 = scalar_select %p1331, %s21, 0
      %s1333 = sadd.s32 %s1332, %s1330
      %s1334 = smul.addr %s1333, 2
      %s1335 = scalar_lea.vmem %s4, %s1334
      // Predicated region
      $region33: #{generator_forward.7} parent=31 // pred_check
        %p1336 = pneg %p116
      $region34: #{generator_forward.7} parent=31 // pred_check_branch
        %1338 = sbr.rel (%p1336) target = $region36
      $region35: #{generator_forward.7} parent=31 // pred_region
        %s1339 = smul.u32 2, %s21
      $region36: #{generator_forward.7} parent=31 // pred_fallthru
        _
      // Predicated region
      $region37: #{generator_forward.7} parent=31 // pred_check
        %p1340 = pneg %p144
      $region38: #{generator_forward.7} parent=31 // pred_check_branch
        %1342 = sbr.rel (%p1340) target = $region40
      $region39: #{generator_forward.7} parent=31 // pred_region
        _
      $region40: #{generator_forward.7} parent=31 // pred_fallthru
        _
    $region32: #{generator_forward.7} parent=5 // pred_fallthru
      _
    %p1343 = scmp.le.s32.totalorder 2, %s11
    // Predicated region
    $region41: #{generator_forward.7} parent=5 // pred_check
      %p1344 = pneg %p1343
    $region42: #{generator_forward.7} parent=5 // pred_check_branch
      %1346 = sbr.rel (%p1344) target = $region44
    $region43: #{generator_forward.7} parent=5 // pred_region
      %s1347 = ssub.s32 %s11, 2
      // Predicated region
      $region45: #{generator_forward.7} parent=43 // pred_check
        %p1348 = pneg %p122
      $region46: #{generator_forward.7} parent=43 // pred_check_branch
        %1350 = sbr.rel (%p1348) target = $region48
      $region47: #{generator_forward.7} parent=43 // pred_region
        %s1351 = smul.u32 2, %s23
        %p1352 = scmp.lt.s32.totalorder %s22, 1
        %s1353 = scalar_select %p1352, %s22, 1
        %p1354 = scmp.lt.s32.totalorder %s1351, 1
        %s1355 = scalar_select %p1354, %s1351, 1
        %s1356 = smul.addr %s1353, 2
        %s1357 = sadd.s32 %s1355, %s1356
        %s1358 = smul.addr %s1357, 4
        %s1359 = scalar_lea.vmem %s3, %s1358
      $region48: #{generator_forward.7} parent=43 // pred_fallthru
        _
      // Predicated region
      $region49: #{generator_forward.7} parent=43 // pred_check
        %p1360 = pneg %p150
      $region50: #{generator_forward.7} parent=43 // pred_check_branch
        %1362 = sbr.rel (%p1360) target = $region52
      $region51: #{generator_forward.7} parent=43 // pred_region
        %p1363 = scmp.lt.s32.totalorder %s22, 1
        %s1364 = scalar_select %p1363, %s22, 1
        %p1365 = scmp.lt.s32.totalorder %s23, 0
        %s1366 = scalar_select %p1365, %s23, 0
        %s1367 = sadd.s32 %s1366, %s1364
        %s1368 = smul.addr %s1367, 2
        %s1369 = scalar_lea.vmem %s4, %s1368
      $region52: #{generator_forward.7} parent=43 // pred_fallthru
        _
    $region44: #{generator_forward.7} parent=5 // pred_fallthru
      _
  $region6: #{generator_forward.7} parent=0 // loop_footer
    %s15 = sadd.s32 1, %s11
  $region7: #{generator_forward.7} parent=0 // loop_footer_branch
    %10 = sbr.rel target = $region3
  $region8: #{generator_forward.7} parent=0 // loop_exit
    _

// kernel: tile.27
$region0: #{tile.27}
  #allocation0 [shape = 's32[1]{0}', space=sflag, size = 0x4, scoped, tag = 'scoped memory for tile.27']
  %s0 = inlined_call_operand.vmem [shape: f32[64], index: 0, kind: input, shape index: {}]
  %s1 = inlined_call_operand.vmem [shape: f32[4,64], index: 1, kind: output, shape index: {}]
  // Predicated region
  $region2: #{tile.27} parent=0 // pred_check
    _
  $region3: #{tile.27} parent=0 // pred_check_branch
    %3 = sbr.rel (0) target = $region5
  $region4: #{tile.27} parent=0 // pred_region
    _
  $region5: #{tile.27} parent=0 // pred_fallthru
    _
  %v4 = vld [vmem:[%s0] ss:$0 sm:$0xff]
  %5 = vst [vmem:[%s1] sm:$0xf] %v4

// kernel: tile.28
$region0: #{tile.28}
  %s0 = inlined_call_operand.vmem [shape: f32[4,64], index: 0, kind: input, shape index: {}]
  %s1 = inlined_call_operand.vmem [shape: f32[1,256], index: 1, kind: output, shape index: {}]
  $region1: #{tile.28} parent=0
    #allocation0 [shape = 'u8[8192]{0}', space=vmem, size = 0x2000, scoped, tag = 'scoped mem for output reshape']
    #allocation1 [shape = 'u8[4096]{0}', space=vmem, size = 0x1000, scoped, tag = 'scoped mem for input reshape']
    %s3 = sshllo.u32 0, 4
    %v4 = vld [vmem:[%s0] sm:%s3]
    %5 = vst [vmem:[#allocation1] sm:%s3] %v4
    %s6 = smov 3
    %v7 = vld [vmem:[#allocation1] ss:$2 sm:%s6]
    %vm8 = vcmask 523264
    %9 = vst.msk [vmem:[#allocation0] ss:$8 sm:$0x3] %vm8, %v7
    %s10 = scalar_lea.vmem [#allocation1], 1
    %s11 = smov 3
    %v12 = vld [vmem:[%s10] ss:$2 sm:%s11]
    %13 = vrot.lane.b32.xlu0 %v12, 64
    %v14 = vpop.permute.xlu0 %13
    %vm15 = vcmask 1048064
    %16 = vst.msk [vmem:[#allocation0] ss:$8 sm:$0x3] %vm15, %v14
    %s18 = sshllo.u32 0, 1
    %v20 = vld [vmem:[#allocation0] sm:%s18]
    %s21 = sshllo.u32 0, 1
    %22 = vst [vmem:[%s1] sm:%s21] %v20
    %s23 = scalar_lea.vmem [#allocation0], 8
    %v24 = vld [vmem:[%s23] sm:%s18]
    %s25 = sshllo.u32 0, 1
    %s26 = scalar_lea.vmem %s1, 1
    %27 = vst [vmem:[%s26] sm:%s25] %v24

// kernel: squeeze.2
$region0: #{squeeze.2}
  %s0 = inlined_call_operand.vmem [shape: f32[256], index: 0, kind: input, shape index: {}]
  %s1 = inlined_call_operand.vmem [shape: f32[4,64], index: 1, kind: output, shape index: {}]
  $region1: #{squeeze.2} parent=0
    #allocation0 [shape = 'u8[4096]{0}', space=vmem, size = 0x1000, scoped, tag = 'scoped mem for output reshape']
    #allocation1 [shape = 'u8[4096]{0}', space=vmem, size = 0x1000, scoped, tag = 'scoped mem for input reshape']
    %s3 = sshllo.u32 0, 2
    %v4 = vld [vmem:[%s0] sm:%s3]
    %5 = vst [vmem:[#allocation1] sm:%s3] %v4
    %v6 = vld [vmem:[#allocation1] sm:$0x3]
    %vm7 = vcmask 523264
    %8 = vst.msk [vmem:[#allocation0] ss:$2 sm:$0x3] %vm7, %v6
    %v9 = vld [vmem:[#allocation1] sm:$0x3]
    %10 = vrot.lane.b32.xlu0 %v9, 64
    %v11 = vpop.permute.xlu0 %10
    %vm12 = vcmask 523264
    %s13 = scalar_lea.vmem [#allocation0], 1
    %14 = vst.msk [vmem:[%s13] ss:$2 sm:$0x3] %vm12, %v11
    %s16 = sshllo.u32 0, 4
    %v18 = vld [vmem:[#allocation0] sm:%s16]
    %s19 = sshllo.u32 0, 4
    %20 = vst [vmem:[%s1] sm:%s19] %v18

// kernel: tile.37
$region0: #{tile.37}
  %s0 = inlined_call_operand.vmem [shape: f32[4,64], index: 0, kind: input, shape index: {}]
  %s1 = inlined_call_operand.vmem [shape: f32[1,1,256], index: 1, kind: output, shape index: {}]
  $region1: #{tile.37} parent=0
    #allocation0 [shape = 'u8[8192]{0}', space=vmem, size = 0x2000, scoped, tag = 'scoped mem for output reshape']
    #allocation1 [shape = 'u8[4096]{0}', space=vmem, size = 0x1000, scoped, tag = 'scoped mem for input reshape']
    %s3 = sshllo.u32 0, 4
    %v4 = vld [vmem:[%s0] sm:%s3]
    %5 = vst [vmem:[#allocation1] sm:%s3] %v4
    %s6 = smov 3
    %v7 = vld [vmem:[#allocation1] ss:$2 sm:%s6]
    %vm8 = vcmask 523264
    %9 = vst.msk [vmem:[#allocation0] ss:$8 sm:$0x3] %vm8, %v7
    %s10 = scalar_lea.vmem [#allocation1], 1
    %s11 = smov 3
    %v12 = vld [vmem:[%s10] ss:$2 sm:%s11]
    %13 = vrot.lane.b32.xlu0 %v12, 64
    %v14 = vpop.permute.xlu0 %13
    %vm15 = vcmask 1048064
    %16 = vst.msk [vmem:[#allocation0] ss:$8 sm:$0x3] %vm15, %v14
    %s18 = sshllo.u32 0, 1
    %v20 = vld [vmem:[#allocation0] sm:%s18]
    %s21 = sshllo.u32 0, 1
    %22 = vst [vmem:[%s1] sm:%s21] %v20
    %s23 = scalar_lea.vmem [#allocation0], 8
    %v24 = vld [vmem:[%s23] sm:%s18]
    %s25 = sshllo.u32 0, 1
    %s26 = scalar_lea.vmem %s1, 1
    %27 = vst [vmem:[%s26] sm:%s25] %v24

// kernel: generator_forward.10
$region0: #{generator_forward.10}
  #allocation0 [shape = 'u32[]', space=smem, size = 0x4, offset = 0x4, fixed_abs, tag = 'smem constant byte address 0x4 - core index']
  #allocation1 [shape = 'u32[144,128]{1,0:T(1,128)}', space=vmem, size = 0x12000, scoped, tag = 'internal scratch']
  %s0 = inlined_call_operand.vmem [shape: bf16[2,16,256], index: 0, kind: input, shape index: {}]
  %s1 = inlined_call_operand.vmem [shape: f32[1,1,256], index: 1, kind: input, shape index: {}]
  %s2 = inlined_call_operand.vmem [shape: f32[1,1,256], index: 2, kind: input, shape index: {}]
  %s3 = inlined_call_operand.vmem [shape: bf16[2,16,256], index: 3, kind: output, shape index: {}]
  %s4 = sld [smem:[#allocation0]]
  $region45: #{generator_forward.10} parent=0
    _
  %s6 = ssub.s32 1, %s4
  %s7 = scalar_select 0, %s6, %s4
  loop: start=0, step=1, limit=4
  $region2: #{generator_forward.10} parent=0 // loop_pre_header
    _
  $region3: #{generator_forward.10} parent=0 // loop_header
    %s9 = sphi 0, %s13
    %p10 = scmp.ge.s32.totalorder %s9, 4
    %s16 = sphi 0, %s28
    %s17 = sphi 0, %s24
    %s18 = sphi 0, %s16
    %s19 = sphi 0, %s17
    %s20 = sphi 0, %s18
    %s21 = sphi 0, %s19
    %s33 = sphi 0, %s35
    %s36 = sphi 0, %s33
    %s37 = sphi 0, %s36
    %s53 = sphi 0, %s37
    %s57 = sphi 0, %s57
    %s59 = sphi 0, %s57
    %s60 = sphi 0, %s59
    %s74 = sphi 0, %s60
    %s78 = sphi 0, %s78
    %s80 = sphi 0, %s78
    %s81 = sphi 0, %s80
    %s95 = sphi 0, %s81
    %s103 = sphi 0, %s105
    %s106 = sphi 0, %s103
    %s107 = sphi 0, %s106
    %s123 = sphi 0, %s107
  $region4: #{generator_forward.10} parent=0 // loop_header_branch
    %12 = sbr.rel (%p10) target = $region8
  $region5: #{generator_forward.10} parent=0 // loop_body
    %s14 = ssub.s32 %s9, 1
    %s15 = ssub.s32 %s9, 2
    %s22 = sadd.s32 1, %s17
    %p23 = scmp.ge.s32.totalorder %s22, 1
    %s24 = scalar_select %p23, 0, %s22
    %s25 = sadd.s32 1, %s16
    %s26 = scalar_select %p23, %s25, %s16
    %p27 = scmp.ge.s32.totalorder %s26, 2
    %s28 = scalar_select %p27, 0, %s26
    %s29 = ssub.s32 %s16, %s28
    %s30 = ssub.s32 %s17, %s24
    %s31 = sor.u32 %s29, %s30
    %p32 = scmp.eq.s32.totalorder %s31, 0
    %s34 = sadd.s32 %s33, 1
    %s35 = scalar_select %p32, %s33, %s34
    %p38 = pneg %p32
    %p39 = scmp.eq.s32.totalorder %s9, 1
    %p40 = por %p38, %p39
    %p41 = scmp.ne.s32.totalorder %s33, %s36
    %p42 = scmp.eq.s32.totalorder %s9, 0
    %p43 = por %p41, %p42
    %p44 = scmp.ne.s32.totalorder %s33, %s36
    %p45 = scmp.eq.s32.totalorder %s14, 1
    %p46 = por %p44, %p45
    %p47 = scmp.ne.s32.totalorder %s36, %s37
    %p48 = scmp.eq.s32.totalorder %s14, 0
    %p49 = por %p47, %p48
    %p50 = scmp.ne.s32.totalorder %s36, %s37
    %p51 = scmp.eq.s32.totalorder %s15, 1
    %p52 = por %p50, %p51
    %p54 = scmp.ne.s32.totalorder %s37, %s53
    %p55 = scmp.eq.s32.totalorder %s15, 0
    %p56 = por %p54, %p55
    %s58 = sadd.s32 %s57, 1
    %p61 = scmp.eq.s32.totalorder %s9, 1
    %p62 = scmp.ne.s32.totalorder %s57, %s59
    %p63 = scmp.eq.s32.totalorder %s9, 0
    %p64 = por %p62, %p63
    %p65 = scmp.ne.s32.totalorder %s57, %s59
    %p66 = scmp.eq.s32.totalorder %s14, 1
    %p67 = por %p65, %p66
    %p68 = scmp.ne.s32.totalorder %s59, %s60
    %p69 = scmp.eq.s32.totalorder %s14, 0
    %p70 = por %p68, %p69
    %p71 = scmp.ne.s32.totalorder %s59, %s60
    %p72 = scmp.eq.s32.totalorder %s15, 1
    %p73 = por %p71, %p72
    %p75 = scmp.ne.s32.totalorder %s60, %s74
    %p76 = scmp.eq.s32.totalorder %s15, 0
    %p77 = por %p75, %p76
    %s79 = sadd.s32 %s78, 1
    %p82 = scmp.eq.s32.totalorder %s9, 1
    %p83 = scmp.ne.s32.totalorder %s78, %s80
    %p84 = scmp.eq.s32.totalorder %s9, 0
    %p85 = por %p83, %p84
    %p86 = scmp.ne.s32.totalorder %s78, %s80
    %p87 = scmp.eq.s32.totalorder %s14, 1
    %p88 = por %p86, %p87
    %p89 = scmp.ne.s32.totalorder %s80, %s81
    %p90 = scmp.eq.s32.totalorder %s14, 0
    %p91 = por %p89, %p90
    %p92 = scmp.ne.s32.totalorder %s80, %s81
    %p93 = scmp.eq.s32.totalorder %s15, 1
    %p94 = por %p92, %p93
    %p96 = scmp.ne.s32.totalorder %s81, %s95
    %p97 = scmp.eq.s32.totalorder %s15, 0
    %p98 = por %p96, %p97
    %s99 = ssub.s32 %s16, %s28
    %s100 = ssub.s32 %s17, %s24
    %s101 = sor.u32 %s99, %s100
    %p102 = scmp.eq.s32.totalorder %s101, 0
    %s104 = sadd.s32 %s103, 1
    %s105 = scalar_select %p102, %s103, %s104
    %p108 = pneg %p102
    %p109 = scmp.eq.s32.totalorder %s9, 1
    %p110 = por %p108, %p109
    %p111 = scmp.ne.s32.totalorder %s103, %s106
    %p112 = scmp.eq.s32.totalorder %s9, 0
    %p113 = por %p111, %p112
    %p114 = scmp.ne.s32.totalorder %s103, %s106
    %p115 = scmp.eq.s32.totalorder %s14, 1
    %p116 = por %p114, %p115
    %p117 = scmp.ne.s32.totalorder %s106, %s107
    %p118 = scmp.eq.s32.totalorder %s14, 0
    %p119 = por %p117, %p118
    %p120 = scmp.ne.s32.totalorder %s106, %s107
    %p121 = scmp.eq.s32.totalorder %s15, 1
    %p122 = por %p120, %p121
    %p124 = scmp.ne.s32.totalorder %s107, %s123
    %p125 = scmp.eq.s32.totalorder %s15, 0
    %p126 = por %p124, %p125
    %p127 = scmp.le.s32.totalorder 1, %s9
    %p128 = scmp.lt.s32.totalorder %s9, 3
    %p129 = pnand %p127, %p128
    %p130 = pneg %p129
    // Predicated region
    $region9: #{generator_forward.10} parent=5 // pred_check
      _
    $region10: #{generator_forward.10} parent=5 // pred_check_branch
      %132 = sbr.rel (%p129) target = $region12
    $region11: #{generator_forward.10} parent=5 // pred_region
      %s133 = ssub.s32 %s9, 1
      // Predicated region
      $region13: #{generator_forward.10} parent=11 // pred_check
        %p134 = pneg %p70
      $region14: #{generator_forward.10} parent=11 // pred_check_branch
        %136 = sbr.rel (%p134) target = $region16
      $region15: #{generator_forward.10} parent=11 // pred_region
        _
      $region16: #{generator_forward.10} parent=11 // pred_fallthru
        _
      // Predicated region
      $region17: #{generator_forward.10} parent=11 // pred_check
        %p137 = pneg %p91
      $region18: #{generator_forward.10} parent=11 // pred_check_branch
        %139 = sbr.rel (%p137) target = $region20
      $region19: #{generator_forward.10} parent=11 // pred_region
        _
      $region20: #{generator_forward.10} parent=11 // pred_fallthru
        _
    $region12: #{generator_forward.10} parent=5 // pred_fallthru
      _
    %p140 = scmp.lt.s32.totalorder %s9, 2
    // Predicated region
    $region21: #{generator_forward.10} parent=5 // pred_check
      %p141 = pneg %p140
    $region22: #{generator_forward.10} parent=5 // pred_check_branch
      %143 = sbr.rel (%p141) target = $region24
    $region23: #{generator_forward.10} parent=5 // pred_region
      // Predicated region
      $region25: #{generator_forward.10} parent=23 // pred_check
        %p144 = pneg %p43
      $region26: #{generator_forward.10} parent=23 // pred_check_branch
        %146 = sbr.rel (%p144) target = $region28
      $region27: #{generator_forward.10} parent=23 // pred_region
        %s147 = smul.u32 2, %s17
        %p148 = scmp.lt.s32.totalorder %s16, 1
        %s149 = scalar_select %p148, %s16, 1
        %p150 = scmp.lt.s32.totalorder %s147, 1
        %s151 = scalar_select %p150, %s147, 1
        %s152 = smul.addr %s151, 2
        %s153 = smul.addr %s149, 4
        %s154 = sadd.s32 %s152, %s153
        %s155 = smul.addr %s154, 4
        %s156 = scalar_lea.vmem %s0, %s155
        %s157 = smul.u32 2, %s17
      $region28: #{generator_forward.10} parent=23 // pred_fallthru
        _
    $region24: #{generator_forward.10} parent=5 // pred_fallthru
      _
    %p158 = scmp.le.s32.totalorder 1, %s9
    %p159 = scmp.lt.s32.totalorder %s9, 3
    %p160 = pnand %p158, %p159
    %p161 = pneg %p160
    // Predicated region
    $region29: #{generator_forward.10} parent=5 // pred_check
      _
    $region30: #{generator_forward.10} parent=5 // pred_check_branch
      %163 = sbr.rel (%p160) target = $region32
    $region31: #{generator_forward.10} parent=5 // pred_region
      %s164 = ssub.s32 %s9, 1
      %s165 = smul.u32 2, %s19
      %p166 = scmp.lt.s32.totalorder %s18, 1
      %s167 = scalar_select %p166, %s18, 1
      %p168 = scmp.lt.s32.totalorder %s165, 1
      %s169 = scalar_select %p168, %s165, 1
      %s170 = smul.addr %s169, 2
      %s171 = smul.addr %s167, 4
      %s172 = sadd.s32 %s170, %s171
      %s173 = smul.addr %s172, 4
      %s174 = scalar_lea.vmem %s0, %s173
      %p175 = pneg %p49
      %p176 = pneg %p46
      %p177 = pneg %p70
      %p178 = pneg %p67
      %p179 = pneg %p91
      %p180 = pneg %p88
      %p181 = pneg %p119
      %p182 = pneg %p116
      %s183 = smul.u32 2, %s19
      %p184 = scmp.lt.s32.totalorder %s18, 1
      %s185 = scalar_select %p184, %s18, 1
      %p186 = scmp.lt.s32.totalorder %s183, 1
      %s187 = scalar_select %p186, %s183, 1
      %s188 = smul.addr %s187, 2
      %s189 = smul.addr %s185, 4
      %s190 = sadd.s32 %s188, %s189
      %s191 = smul.addr %s190, 4
      %s192 = scalar_lea.vmem %s3, %s191
      %s193 = smul.u32 2, %s19
      %p194 = scmp.lt.s32.totalorder %s18, 1
      %s195 = scalar_select %p194, %s18, 1
      %p196 = scmp.lt.s32.totalorder %s193, 1
      %s197 = scalar_select %p196, %s193, 1
      %s198 = smul.addr %s197, 2
      %s199 = smul.addr %s195, 4
      %s200 = sadd.s32 %s198, %s199
      %s201 = smul.addr %s200, 4
      %s202 = scalar_lea.vmem %s0, %s201
      %s203 = smul.u32 2, %s19
      %s204 = smul.u32 2, %s19
      %p205 = scmp.lt.s32.totalorder %s18, 1
      %s206 = scalar_select %p205, %s18, 1
      %p207 = scmp.lt.s32.totalorder %s204, 1
      %s208 = scalar_select %p207, %s204, 1
      %s209 = smul.addr %s208, 2
      %s210 = smul.addr %s206, 4
      %s211 = sadd.s32 %s209, %s210
      %s212 = smul.addr %s211, 4
      %s213 = scalar_lea.vmem %s3, %s212
      %s214 = smul.u32 2, %s19
      %v215 = vld [vmem:[%s202] sm:$0xff]
      %v216 = vld [vmem:[%s202 + $0x8] sm:$0xff]
      %v217 = vunpack.c.l.bf16 %v215
      %v218 = vunpack.c.h.bf16 %v215
      %v219 = vunpack.c.l.bf16 %v216
      %v220 = vunpack.c.h.bf16 %v216
      %v221 = vld [vmem:[%s1] sm:$0x3]
      %v223 = vlaneseq
      %v224 = vshrl.u32 %v223, 7
      %v225 = vsub.s32 0, %v224
      %v226 = vrot.slane %v221, %v225
      %v227 = vlaneseq
      %v228 = vshrl.u32 %v227, 7
      %v229 = vsub.s32 1, %v228
      %v230 = vrot.slane %v221, %v229
      %v233 = vmul.f32 %v217, %v226
      %v234 = vmul.f32 %v218, %v230
      %v235 = vmul.f32 %v219, %v226
      %v236 = vmul.f32 %v220, %v230
      %v237 = vld [vmem:[%s2] sm:$0x3]
      %v239 = vlaneseq
      %v240 = vshrl.u32 %v239, 7
      %v241 = vsub.s32 0, %v240
      %v242 = vrot.slane %v237, %v241
      %v243 = vlaneseq
      %v244 = vshrl.u32 %v243, 7
      %v245 = vsub.s32 1, %v244
      %v246 = vrot.slane %v237, %v245
      %v249 = vadd.f32 %v233, %v242
      %v250 = vadd.f32 %v234, %v246
      %v251 = vadd.f32 %v235, %v242
      %v252 = vadd.f32 %v236, %v246
      %v253 = vmax.f32 %v249, 0.0
      %v254 = vmax.f32 %v250, 0.0
      %v255 = vmax.f32 %v251, 0.0
      %v256 = vmax.f32 %v252, 0.0
      %v257 = vpack.c.bf16 %v255, %v253
      %v258 = vpack.c.bf16 %v256, %v254
      %v261 = vunpack.c.l.b16 %v257
      %v262 = vunpack.c.l.b16 %v258
      %v263 = vunpack.c.h.b16 %v257
      %v264 = vunpack.c.h.b16 %v258
      %v265 = vpack.c.b16 %v262, %v261
      %v266 = vpack.c.b16 %v264, %v263
      %269 = vst [vmem:[%s213] sm:$0xff] %v265
      %270 = vst [vmem:[%s213 + $0x8] sm:$0xff] %v266
      %s271 = smul.u32 2, %s19
      %p272 = scmp.lt.s32.totalorder %s18, 1
      %s273 = scalar_select %p272, %s18, 1
      %p274 = scmp.lt.s32.totalorder %s271, 1
      %s275 = scalar_select %p274, %s271, 1
      %s276 = smul.addr %s275, 2
      %s277 = smul.addr %s273, 4
      %s278 = sadd.s32 %s276, %s277
      %s279 = smul.addr %s278, 4
      %s280 = scalar_lea.vmem %s3, %s279
      // Predicated region
      $region33: #{generator_forward.10} parent=31 // pred_check
        %p281 = pneg %p116
      $region34: #{generator_forward.10} parent=31 // pred_check_branch
        %283 = sbr.rel (%p281) target = $region36
      $region35: #{generator_forward.10} parent=31 // pred_region
        %s284 = smul.u32 2, %s19
      $region36: #{generator_forward.10} parent=31 // pred_fallthru
        _
    $region32: #{generator_forward.10} parent=5 // pred_fallthru
      _
    %p285 = scmp.le.s32.totalorder 2, %s9
    // Predicated region
    $region37: #{generator_forward.10} parent=5 // pred_check
      %p286 = pneg %p285
    $region38: #{generator_forward.10} parent=5 // pred_check_branch
      %288 = sbr.rel (%p286) target = $region40
    $region39: #{generator_forward.10} parent=5 // pred_region
      %s289 = ssub.s32 %s9, 2
      // Predicated region
      $region41: #{generator_forward.10} parent=39 // pred_check
        %p290 = pneg %p122
      $region42: #{generator_forward.10} parent=39 // pred_check_branch
        %292 = sbr.rel (%p290) target = $region44
      $region43: #{generator_forward.10} parent=39 // pred_region
        %s293 = smul.u32 2, %s21
        %p294 = scmp.lt.s32.totalorder %s20, 1
        %s295 = scalar_select %p294, %s20, 1
        %p296 = scmp.lt.s32.totalorder %s293, 1
        %s297 = scalar_select %p296, %s293, 1
        %s298 = smul.addr %s297, 2
        %s299 = smul.addr %s295, 4
        %s300 = sadd.s32 %s298, %s299
        %s301 = smul.addr %s300, 4
        %s302 = scalar_lea.vmem %s3, %s301
      $region44: #{generator_forward.10} parent=39 // pred_fallthru
        _
    $region40: #{generator_forward.10} parent=5 // pred_fallthru
      _
  $region6: #{generator_forward.10} parent=0 // loop_footer
    %s13 = sadd.s32 1, %s9
  $region7: #{generator_forward.10} parent=0 // loop_footer_branch
    %8 = sbr.rel target = $region3
  $region8: #{generator_forward.10} parent=0 // loop_exit
    _

// kernel: generator_forward.9
$region0: #{generator_forward.9}
  #allocation0 [shape = 'u32[]', space=smem, size = 0x4, offset = 0x4, fixed_abs, tag = 'smem constant byte address 0x4 - core index']
  #allocation1 [shape = 'u32[144,128]{1,0:T(1,128)}', space=vmem, size = 0x12000, scoped, tag = 'internal scratch']
  %s0 = inlined_call_operand.vmem [shape: bf16[2,6,6,128], index: 0, kind: input, shape index: {}]
  %s1 = inlined_call_operand.vmem [shape: bf16[9,128,256], index: 1, kind: input, shape index: {}]
  %s2 = inlined_call_operand.vmem [shape: f32[1,256], index: 2, kind: input, shape index: {}]
  %s3 = inlined_call_operand.vmem [shape: bf16[2,16,256], index: 3, kind: output, shape index: {0}]
  %s4 = inlined_call_operand.vmem [shape: f32[2,1,2,256], index: 4, kind: output, shape index: {1}]
  %5 = xla_tuple %s3, %s4
  %s6 = sld [smem:[#allocation0]]
  $region53: #{generator_forward.9} parent=0
    _
  %s8 = ssub.s32 1, %s6
  %s9 = scalar_select 0, %s8, %s6
  loop: start=0, step=1, limit=4
  $region2: #{generator_forward.9} parent=0 // loop_pre_header
    _
  $region3: #{generator_forward.9} parent=0 // loop_header
    %s11 = sphi 0, %s15
    %p12 = scmp.ge.s32.totalorder %s11, 4
    %s18 = sphi 0, %s30
    %s19 = sphi 0, %s26
    %s20 = sphi 0, %s18
    %s21 = sphi 0, %s19
    %s22 = sphi 0, %s20
    %s23 = sphi 0, %s21
    %s33 = sphi 0, %s35
    %s36 = sphi 0, %s33
    %s37 = sphi 0, %s36
    %s53 = sphi 0, %s37
    %s57 = sphi 0, %s57
    %s59 = sphi 0, %s57
    %s60 = sphi 0, %s59
    %s74 = sphi 0, %s60
    %s78 = sphi 0, %s78
    %s80 = sphi 0, %s78
    %s81 = sphi 0, %s80
    %s95 = sphi 0, %s81
    %s103 = sphi 0, %s105
    %s106 = sphi 0, %s103
    %s107 = sphi 0, %s106
    %s123 = sphi 0, %s107
    %s131 = sphi 0, %s133
    %s134 = sphi 0, %s131
    %s135 = sphi 0, %s134
    %s151 = sphi 0, %s135
  $region4: #{generator_forward.9} parent=0 // loop_header_branch
    %14 = sbr.rel (%p12) target = $region8
  $region5: #{generator_forward.9} parent=0 // loop_body
    %s16 = ssub.s32 %s11, 1
    %s17 = ssub.s32 %s11, 2
    %s24 = sadd.s32 1, %s19
    %p25 = scmp.ge.s32.totalorder %s24, 1
    %s26 = scalar_select %p25, 0, %s24
    %s27 = sadd.s32 1, %s18
    %s28 = scalar_select %p25, %s27, %s18
    %p29 = scmp.ge.s32.totalorder %s28, 2
    %s30 = scalar_select %p29, 0, %s28
    %s31 = ssub.s32 %s18, %s30
    %p32 = scmp.eq.s32.totalorder %s31, 0
    %s34 = sadd.s32 %s33, 1
    %s35 = scalar_select %p32, %s33, %s34
    %p38 = pneg %p32
    %p39 = scmp.eq.s32.totalorder %s11, 1
    %p40 = por %p38, %p39
    %p41 = scmp.ne.s32.totalorder %s33, %s36
    %p42 = scmp.eq.s32.totalorder %s11, 0
    %p43 = por %p41, %p42
    %p44 = scmp.ne.s32.totalorder %s33, %s36
    %p45 = scmp.eq.s32.totalorder %s16, 1
    %p46 = por %p44, %p45
    %p47 = scmp.ne.s32.totalorder %s36, %s37
    %p48 = scmp.eq.s32.totalorder %s16, 0
    %p49 = por %p47, %p48
    %p50 = scmp.ne.s32.totalorder %s36, %s37
    %p51 = scmp.eq.s32.totalorder %s17, 1
    %p52 = por %p50, %p51
    %p54 = scmp.ne.s32.totalorder %s37, %s53
    %p55 = scmp.eq.s32.totalorder %s17, 0
    %p56 = por %p54, %p55
    %s58 = sadd.s32 %s57, 1
    %p61 = scmp.eq.s32.totalorder %s11, 1
    %p62 = scmp.ne.s32.totalorder %s57, %s59
    %p63 = scmp.eq.s32.totalorder %s11, 0
    %p64 = por %p62, %p63
    %p65 = scmp.ne.s32.totalorder %s57, %s59
    %p66 = scmp.eq.s32.totalorder %s16, 1
    %p67 = por %p65, %p66
    %p68 = scmp.ne.s32.totalorder %s59, %s60
    %p69 = scmp.eq.s32.totalorder %s16, 0
    %p70 = por %p68, %p69
    %p71 = scmp.ne.s32.totalorder %s59, %s60
    %p72 = scmp.eq.s32.totalorder %s17, 1
    %p73 = por %p71, %p72
    %p75 = scmp.ne.s32.totalorder %s60, %s74
    %p76 = scmp.eq.s32.totalorder %s17, 0
    %p77 = por %p75, %p76
    %s79 = sadd.s32 %s78, 1
    %p82 = scmp.eq.s32.totalorder %s11, 1
    %p83 = scmp.ne.s32.totalorder %s78, %s80
    %p84 = scmp.eq.s32.totalorder %s11, 0
    %p85 = por %p83, %p84
    %p86 = scmp.ne.s32.totalorder %s78, %s80
    %p87 = scmp.eq.s32.totalorder %s16, 1
    %p88 = por %p86, %p87
    %p89 = scmp.ne.s32.totalorder %s80, %s81
    %p90 = scmp.eq.s32.totalorder %s16, 0
    %p91 = por %p89, %p90
    %p92 = scmp.ne.s32.totalorder %s80, %s81
    %p93 = scmp.eq.s32.totalorder %s17, 1
    %p94 = por %p92, %p93
    %p96 = scmp.ne.s32.totalorder %s81, %s95
    %p97 = scmp.eq.s32.totalorder %s17, 0
    %p98 = por %p96, %p97
    %s99 = ssub.s32 %s18, %s30
    %s100 = ssub.s32 %s19, %s26
    %s101 = sor.u32 %s99, %s100
    %p102 = scmp.eq.s32.totalorder %s101, 0
    %s104 = sadd.s32 %s103, 1
    %s105 = scalar_select %p102, %s103, %s104
    %p108 = pneg %p102
    %p109 = scmp.eq.s32.totalorder %s11, 1
    %p110 = por %p108, %p109
    %p111 = scmp.ne.s32.totalorder %s103, %s106
    %p112 = scmp.eq.s32.totalorder %s11, 0
    %p113 = por %p111, %p112
    %p114 = scmp.ne.s32.totalorder %s103, %s106
    %p115 = scmp.eq.s32.totalorder %s16, 1
    %p116 = por %p114, %p115
    %p117 = scmp.ne.s32.totalorder %s106, %s107
    %p118 = scmp.eq.s32.totalorder %s16, 0
    %p119 = por %p117, %p118
    %p120 = scmp.ne.s32.totalorder %s106, %s107
    %p121 = scmp.eq.s32.totalorder %s17, 1
    %p122 = por %p120, %p121
    %p124 = scmp.ne.s32.totalorder %s107, %s123
    %p125 = scmp.eq.s32.totalorder %s17, 0
    %p126 = por %p124, %p125
    %s127 = ssub.s32 %s18, %s30
    %s128 = ssub.s32 %s19, %s26
    %s129 = sor.u32 %s127, %s128
    %p130 = scmp.eq.s32.totalorder %s129, 0
    %s132 = sadd.s32 %s131, 1
    %s133 = scalar_select %p130, %s131, %s132
    %p136 = pneg %p130
    %p137 = scmp.eq.s32.totalorder %s11, 1
    %p138 = por %p136, %p137
    %p139 = scmp.ne.s32.totalorder %s131, %s134
    %p140 = scmp.eq.s32.totalorder %s11, 0
    %p141 = por %p139, %p140
    %p142 = scmp.ne.s32.totalorder %s131, %s134
    %p143 = scmp.eq.s32.totalorder %s16, 1
    %p144 = por %p142, %p143
    %p145 = scmp.ne.s32.totalorder %s134, %s135
    %p146 = scmp.eq.s32.totalorder %s16, 0
    %p147 = por %p145, %p146
    %p148 = scmp.ne.s32.totalorder %s134, %s135
    %p149 = scmp.eq.s32.totalorder %s17, 1
    %p150 = por %p148, %p149
    %p152 = scmp.ne.s32.totalorder %s135, %s151
    %p153 = scmp.eq.s32.totalorder %s17, 0
    %p154 = por %p152, %p153
    %p155 = scmp.le.s32.totalorder 1, %s11
    %p156 = scmp.lt.s32.totalorder %s11, 3
    %p157 = pnand %p155, %p156
    %p158 = pneg %p157
    // Predicated region
    $region9: #{generator_forward.9} parent=5 // pred_check
      _
    $region10: #{generator_forward.9} parent=5 // pred_check_branch
      %160 = sbr.rel (%p157) target = $region12
    $region11: #{generator_forward.9} parent=5 // pred_region
      %s161 = ssub.s32 %s11, 1
      // Predicated region
      $region13: #{generator_forward.9} parent=11 // pred_check
        %p162 = pneg %p70
      $region14: #{generator_forward.9} parent=11 // pred_check_branch
        %164 = sbr.rel (%p162) target = $region16
      $region15: #{generator_forward.9} parent=11 // pred_region
        _
      $region16: #{generator_forward.9} parent=11 // pred_fallthru
        _
      // Predicated region
      $region17: #{generator_forward.9} parent=11 // pred_check
        %p165 = pneg %p91
      $region18: #{generator_forward.9} parent=11 // pred_check_branch
        %167 = sbr.rel (%p165) target = $region20
      $region19: #{generator_forward.9} parent=11 // pred_region
        _
      $region20: #{generator_forward.9} parent=11 // pred_fallthru
        _
    $region12: #{generator_forward.9} parent=5 // pred_fallthru
      _
    %p168 = scmp.lt.s32.totalorder %s11, 2
    // Predicated region
    $region21: #{generator_forward.9} parent=5 // pred_check
      %p169 = pneg %p168
    $region22: #{generator_forward.9} parent=5 // pred_check_branch
      %171 = sbr.rel (%p169) target = $region24
    $region23: #{generator_forward.9} parent=5 // pred_region
      // Predicated region
      $region25: #{generator_forward.9} parent=23 // pred_check
        %p172 = pneg %p43
      $region26: #{generator_forward.9} parent=23 // pred_check_branch
        %174 = sbr.rel (%p172) target = $region28
      $region27: #{generator_forward.9} parent=23 // pred_region
        %p175 = scmp.lt.s32.totalorder %s18, 1
        %s176 = scalar_select %p175, %s18, 1
        %s177 = smul.addr %s176, 6
        %s178 = smul.addr %s177, 4
        %s179 = scalar_lea.vmem %s0, %s178
      $region28: #{generator_forward.9} parent=23 // pred_fallthru
        _
    $region24: #{generator_forward.9} parent=5 // pred_fallthru
      _
    %p180 = scmp.le.s32.totalorder 1, %s11
    %p181 = scmp.lt.s32.totalorder %s11, 3
    %p182 = pnand %p180, %p181
    %p183 = pneg %p182
    // Predicated region
    $region29: #{generator_forward.9} parent=5 // pred_check
      _
    $region30: #{generator_forward.9} parent=5 // pred_check_branch
      %185 = sbr.rel (%p182) target = $region32
    $region31: #{generator_forward.9} parent=5 // pred_region
      %s186 = ssub.s32 %s11, 1
      %p187 = scmp.lt.s32.totalorder %s20, 1
      %s188 = scalar_select %p187, %s20, 1
      %s189 = smul.addr %s188, 6
      %s190 = smul.addr %s189, 4
      %s191 = scalar_lea.vmem %s0, %s190
      %p192 = pneg %p49
      %p193 = pneg %p46
      %p194 = pneg %p70
      %p195 = pneg %p67
      %p196 = pneg %p91
      %p197 = pneg %p88
      %p198 = pneg %p119
      %p199 = pneg %p116
      %s200 = smul.u32 2, %s21
      %p201 = scmp.lt.s32.totalorder %s20, 1
      %s202 = scalar_select %p201, %s20, 1
      %p203 = scmp.lt.s32.totalorder %s200, 1
      %s204 = scalar_select %p203, %s200, 1
      %s205 = smul.addr %s204, 2
      %s206 = smul.addr %s202, 4
      %s207 = sadd.s32 %s205, %s206
      %s208 = smul.addr %s207, 4
      %s209 = scalar_lea.vmem %s3, %s208
      %p210 = pneg %p147
      %p211 = pneg %p144
      %p212 = scmp.lt.s32.totalorder %s20, 1
      %s213 = scalar_select %p212, %s20, 1
      %p214 = scmp.lt.s32.totalorder %s21, 0
      %s215 = scalar_select %p214, %s21, 0
      %s216 = smul.addr %s215, 2
      %s217 = smul.addr %s213, 2
      %s218 = sadd.s32 %s216, %s217
      %s219 = smul.addr %s218, 2
      %s220 = scalar_lea.vmem %s4, %s219
      %p221 = scmp.lt.s32.totalorder %s20, 1
      %s222 = scalar_select %p221, %s20, 1
      %s223 = smul.addr %s222, 6
      %s224 = smul.addr %s223, 4
      %s225 = scalar_lea.vmem %s0, %s224
      %s226 = smul.u32 2, %s21
      %p227 = scmp.lt.s32.totalorder %s20, 1
      %s228 = scalar_select %p227, %s20, 1
      %p229 = scmp.lt.s32.totalorder %s226, 1
      %s230 = scalar_select %p229, %s226, 1
      %s231 = smul.addr %s230, 2
      %s232 = smul.addr %s228, 4
      %s233 = sadd.s32 %s231, %s232
      %s234 = smul.addr %s233, 4
      %s235 = scalar_lea.vmem %s3, %s234
      %s236 = smul.u32 2, %s21
      %p237 = scmp.lt.s32.totalorder %s20, 1
      %s238 = scalar_select %p237, %s20, 1
      %p239 = scmp.lt.s32.totalorder %s21, 0
      %s240 = scalar_select %p239, %s21, 0
      %s241 = smul.addr %s240, 2
      %s242 = smul.addr %s238, 2
      %s243 = sadd.s32 %s241, %s242
      %s244 = smul.addr %s243, 2
      %s245 = scalar_lea.vmem %s4, %s244
      %s247 = smul.u32 %s21, 4
      %s248 = smul.addr %s247, 4
      %s249 = scalar_lea.vmem %s225, %s248
      %v250 = vld [vmem:[%s249] sm:$0x3]
      %v251 = vld [vmem:[%s249 + $0x4] sm:$0x3]
      %v252 = vld [vmem:[%s249 + $0x8] sm:$0x3]
      %v253 = vld [vmem:[%s249 + $0xc] sm:$0x3]
      %v254 = vld [vmem:[%s1] sm:$0xff]
      %v255 = vld [vmem:[%s1 + $0x8] sm:$0xff]
      %v256 = vld [vmem:[%s1 + $0x10] sm:$0xff]
      %v257 = vld [vmem:[%s1 + $0x18] sm:$0xff]
      %v258 = vld [vmem:[%s1 + $0x20] sm:$0xff]
      %v259 = vld [vmem:[%s1 + $0x28] sm:$0xff]
      %v260 = vld [vmem:[%s1 + $0x30] sm:$0xff]
      %v261 = vld [vmem:[%s1 + $0x38] sm:$0xff]
      %v262 = vld [vmem:[%s1 + $0x40] sm:$0xff]
      %v263 = vld [vmem:[%s1 + $0x48] sm:$0xff]
      %v264 = vld [vmem:[%s1 + $0x50] sm:$0xff]
      %v265 = vld [vmem:[%s1 + $0x58] sm:$0xff]
      %v266 = vld [vmem:[%s1 + $0x60] sm:$0xff]
      %v267 = vld [vmem:[%s1 + $0x68] sm:$0xff]
      %v268 = vld [vmem:[%s1 + $0x70] sm:$0xff]
      %v269 = vld [vmem:[%s1 + $0x78] sm:$0xff]
      %v270 = vld [vmem:[%s249] sm:$0x7]
      %v271 = vld [vmem:[%s249 + $0x4] sm:$0x7]
      %v272 = vld [vmem:[%s249 + $0x8] sm:$0x7]
      %v273 = vld [vmem:[%s249 + $0xc] sm:$0x7]
      %v279 = vunpack.c.l.s4 1983009808
      %v280 = vunpack.c.0.s8 %v279
      %v281 = vlaneseq
      %v282 = vshrl.u32 %v281, 7
      %v283 = vsub.s32 %v280, %v282
      %v284 = vrot.slane %v270, %v283
      %v285 = vcombine.high %v284, %v284
      %v287 = vunpack.c.l.s4 1983009808
      %v288 = vunpack.c.0.s8 %v287
      %v289 = vlaneseq
      %v290 = vshrl.u32 %v289, 7
      %v291 = vsub.s32 %v288, %v290
      %v292 = vrot.slane %v271, %v291
      %v293 = vcombine.high %v292, %v292
      %v295 = vunpack.c.l.s4 1983009808
      %v296 = vunpack.c.0.s8 %v295
      %v297 = vlaneseq
      %v298 = vshrl.u32 %v297, 7
      %v299 = vsub.s32 %v296, %v298
      %v300 = vrot.slane %v272, %v299
      %v301 = vcombine.high %v300, %v300
      %v303 = vunpack.c.l.s4 1983009808
      %v304 = vunpack.c.0.s8 %v303
      %v305 = vlaneseq
      %v306 = vshrl.u32 %v305, 7
      %v307 = vsub.s32 %v304, %v306
      %v308 = vrot.slane %v273, %v307
      %v309 = vcombine.high %v308, %v308
      %vm310 = vsmask.f32 1280
      %vm311 = vsmask.f32 3336
      %vm312 = vmor %vm310, %vm311
      %vm313 = vsmask.f32 5392
      %vm314 = vmor %vm312, %vm313
      %vm315 = vsmask.f32 7448
      %vm316 = vmor %vm314, %vm315
      %v318 = vshrl.u32 %v284, 16
      %v320 = vrot.slane %v318, 6
      %v321 = vshll.u32 %v284, 16
      %v323 = vrot.slane %v321, 7
      %v324 = vor.u32 %v320, %v323
      %v325 = vrot.slane %v324, 2
      %v327 = vshll.u32 %v285, 16
      %v329 = vrot.slane %v327, 7
      %v330 = vsel %vm316, %v325, %v329
      %v332 = vshrl.u32 %v292, 16
      %v334 = vrot.slane %v332, 6
      %v335 = vshll.u32 %v292, 16
      %v337 = vrot.slane %v335, 7
      %v338 = vor.u32 %v334, %v337
      %v339 = vrot.slane %v338, 2
      %v341 = vshll.u32 %v293, 16
      %v343 = vrot.slane %v341, 7
      %v344 = vsel %vm316, %v339, %v343
      %v346 = vshrl.u32 %v300, 16
      %v348 = vrot.slane %v346, 6
      %v349 = vshll.u32 %v300, 16
      %v351 = vrot.slane %v349, 7
      %v352 = vor.u32 %v348, %v351
      %v353 = vrot.slane %v352, 2
      %v355 = vshll.u32 %v301, 16
      %v357 = vrot.slane %v355, 7
      %v358 = vsel %vm316, %v353, %v357
      %v360 = vshrl.u32 %v308, 16
      %v362 = vrot.slane %v360, 6
      %v363 = vshll.u32 %v308, 16
      %v365 = vrot.slane %v363, 7
      %v366 = vor.u32 %v362, %v365
      %v367 = vrot.slane %v366, 2
      %v369 = vshll.u32 %v309, 16
      %v371 = vrot.slane %v369, 7
      %v372 = vsel %vm316, %v367, %v371
      %s373 = scalar_lea.vmem %s1, 128
      %v374 = vld [vmem:[%s373] sm:$0xff]
      %v375 = vld [vmem:[%s373 + $0x8] sm:$0xff]
      %v376 = vld [vmem:[%s373 + $0x10] sm:$0xff]
      %v377 = vld [vmem:[%s373 + $0x18] sm:$0xff]
      %v378 = vld [vmem:[%s373 + $0x20] sm:$0xff]
      %v379 = vld [vmem:[%s373 + $0x28] sm:$0xff]
      %v380 = vld [vmem:[%s373 + $0x30] sm:$0xff]
      %v381 = vld [vmem:[%s373 + $0x38] sm:$0xff]
      %v382 = vld [vmem:[%s373 + $0x40] sm:$0xff]
      %v383 = vld [vmem:[%s373 + $0x48] sm:$0xff]
      %v384 = vld [vmem:[%s373 + $0x50] sm:$0xff]
      %v385 = vld [vmem:[%s373 + $0x58] sm:$0xff]
      %v386 = vld [vmem:[%s373 + $0x60] sm:$0xff]
      %v387 = vld [vmem:[%s373 + $0x68] sm:$0xff]
      %v388 = vld [vmem:[%s373 + $0x70] sm:$0xff]
      %v389 = vld [vmem:[%s373 + $0x78] sm:$0xff]
      %v390 = vcombine.low %v330, %v344
      %v391 = vcombine.low %v358, %v372
      %v393 = vunpack.c.l.s4 1983009808
      %v394 = vunpack.c.0.s8 %v393
      %v395 = vlaneseq
      %v396 = vshrl.u32 %v395, 7
      %v397 = vsub.s32 %v394, %v396
      %v398 = vrot.slane %v390, %v397
      %v400 = vunpack.c.l.s4 1983009808
      %v401 = vunpack.c.0.s8 %v400
      %v402 = vlaneseq
      %v403 = vshrl.u32 %v402, 7
      %v404 = vsub.s32 %v401, %v403
      %v405 = vrot.slane %v391, %v404
      %v406 = vcombine.low %v398, %v405
      %v424 = vunpack.c.l.b16 %v374
      %v425 = vunpack.c.h.b16 %v374
      %v426 = vunpack.c.l.b16 %v375
      %v427 = vunpack.c.h.b16 %v375
      %v428 = vunpack.c.l.b16 %v376
      %v429 = vunpack.c.h.b16 %v376
      %v430 = vunpack.c.l.b16 %v377
      %v431 = vunpack.c.h.b16 %v377
      %v432 = vunpack.c.l.b16 %v378
      %v433 = vunpack.c.h.b16 %v378
      %v434 = vunpack.c.l.b16 %v379
      %v435 = vunpack.c.h.b16 %v379
      %v436 = vunpack.c.l.b16 %v380
      %v437 = vunpack.c.h.b16 %v380
      %v438 = vunpack.c.l.b16 %v381
      %v439 = vunpack.c.h.b16 %v381
      %v440 = vunpack.c.l.b16 %v382
      %v441 = vunpack.c.h.b16 %v382
      %v442 = vunpack.c.l.b16 %v383
      %v443 = vunpack.c.h.b16 %v383
      %v444 = vunpack.c.l.b16 %v384
      %v445 = vunpack.c.h.b16 %v384
      %v446 = vunpack.c.l.b16 %v385
      %v447 = vunpack.c.h.b16 %v385
      %v448 = vunpack.c.l.b16 %v386
      %v449 = vunpack.c.h.b16 %v386
      %v450 = vunpack.c.l.b16 %v387
      %v451 = vunpack.c.h.b16 %v387
      %v452 = vunpack.c.l.b16 %v388
      %v453 = vunpack.c.h.b16 %v388
      %v454 = vunpack.c.l.b16 %v389
      %v455 = vunpack.c.h.b16 %v389
      %v456 = vpack.c.b16 %v426, %v424
      %v457 = vpack.c.b16 %v427, %v425
      %v458 = vpack.c.b16 %v430, %v428
      %v459 = vpack.c.b16 %v431, %v429
      %v460 = vpack.c.b16 %v434, %v432
      %v461 = vpack.c.b16 %v435, %v433
      %v462 = vpack.c.b16 %v438, %v436
      %v463 = vpack.c.b16 %v439, %v437
      %v464 = vpack.c.b16 %v442, %v440
      %v465 = vpack.c.b16 %v443, %v441
      %v466 = vpack.c.b16 %v446, %v444
      %v467 = vpack.c.b16 %v447, %v445
      %v468 = vpack.c.b16 %v450, %v448
      %v469 = vpack.c.b16 %v451, %v449
      %v470 = vpack.c.b16 %v454, %v452
      %v471 = vpack.c.b16 %v455, %v453
      %488 = vmatprep.subr.bf16.mxu0 %v457
      %489 = vmatpush1.bf16.msra.mxu0 %v456
      %490 = vmatprep.subr.bf16.mxu0 %v459
      %491 = vmatpush1.bf16.msra.mxu0 %v458
      %492 = vmatprep.subr.bf16.mxu0 %v461
      %493 = vmatpush1.bf16.msra.mxu0 %v460
      %494 = vmatprep.subr.bf16.mxu0 %v463
      %495 = vmatpush1.bf16.msra.mxu0 %v462
      %496 = vmatprep.subr.bf16.mxu0 %v465
      %497 = vmatpush1.bf16.msra.mxu0 %v464
      %498 = vmatprep.subr.bf16.mxu0 %v467
      %499 = vmatpush1.bf16.msra.mxu0 %v466
      %500 = vmatprep.subr.bf16.mxu0 %v469
      %501 = vmatpush1.bf16.msra.mxu0 %v468
      %502 = vmatprep.subr.bf16.mxu0 %v471
      %503 = vmatpush1.bf16.msra.mxu0 %v470
      %504 = vmatprep.subr.bf16.mxu0 0
      %505 = vmatpush1.bf16.msra.mxu0 0
      %506 = vmatprep.subr.bf16.mxu0 0
      %507 = vmatpush1.bf16.msra.mxu0 0
      %508 = vmatprep.subr.bf16.mxu0 0
      %509 = vmatpush1.bf16.msra.mxu0 0
      %510 = vmatprep.subr.bf16.mxu0 0
      %511 = vmatpush1.bf16.msra.mxu0 0
      %512 = vmatprep.subr.bf16.mxu0 0
      %513 = vmatpush1.bf16.msra.mxu0 0
      %514 = vmatprep.subr.bf16.mxu0 0
      %515 = vmatpush1.bf16.msra.mxu0 0
      %516 = vmatprep.subr.bf16.mxu0 0
      %517 = vmatpush1.bf16.msra.mxu0 0
      %518 = vmatprep.subr.bf16.mxu0 0
      %519 = vmatpush1.bf16.msra.mxu0 0
      %520 = vmatprep.mubr.bf16.mxu0 0
      %521 = vmatmul.mubr.bf16.gmra.mrb[0].mxu0 %v406
      %v522 = vpop.f32.mrb[0].mxu0
      %v523 = vadd.f32 0.0, %v522
      %v524 = vpop.f32.mrb[0].mxu0
      %v525 = vadd.f32 0.0, %v524
      %v526 = vpop.f32.mrb[0].mxu0
      %v527 = vadd.f32 0.0, %v526
      %v528 = vpop.f32.mrb[0].mxu0
      %v529 = vadd.f32 0.0, %v528
      %530 = vdwg.mxu0
      %v535 = vcombine.low %v250, %v251
      %v536 = vcombine.low %v252, %v253
      %v538 = vunpack.c.l.s4 1983009808
      %v539 = vunpack.c.0.s8 %v538
      %v540 = vlaneseq
      %v541 = vshrl.u32 %v540, 7
      %v542 = vsub.s32 %v539, %v541
      %v543 = vrot.slane %v535, %v542
      %v545 = vunpack.c.l.s4 1983009808
      %v546 = vunpack.c.0.s8 %v545
      %v547 = vlaneseq
      %v548 = vshrl.u32 %v547, 7
      %v549 = vsub.s32 %v546, %v548
      %v550 = vrot.slane %v536, %v549
      %v551 = vcombine.low %v543, %v550
      %v569 = vunpack.c.l.b16 %v254
      %v570 = vunpack.c.h.b16 %v254
      %v571 = vunpack.c.l.b16 %v255
      %v572 = vunpack.c.h.b16 %v255
      %v573 = vunpack.c.l.b16 %v256
      %v574 = vunpack.c.h.b16 %v256
      %v575 = vunpack.c.l.b16 %v257
      %v576 = vunpack.c.h.b16 %v257
      %v577 = vunpack.c.l.b16 %v258
      %v578 = vunpack.c.h.b16 %v258
      %v579 = vunpack.c.l.b16 %v259
      %v580 = vunpack.c.h.b16 %v259
      %v581 = vunpack.c.l.b16 %v260
      %v582 = vunpack.c.h.b16 %v260
      %v583 = vunpack.c.l.b16 %v261
      %v584 = vunpack.c.h.b16 %v261
      %v585 = vunpack.c.l.b16 %v262
      %v586 = vunpack.c.h.b16 %v262
      %v587 = vunpack.c.l.b16 %v263
      %v588 = vunpack.c.h.b16 %v263
      %v589 = vunpack.c.l.b16 %v264
      %v590 = vunpack.c.h.b16 %v264
      %v591 = vunpack.c.l.b16 %v265
      %v592 = vunpack.c.h.b16 %v265
      %v593 = vunpack.c.l.b16 %v266
      %v594 = vunpack.c.h.b16 %v266
      %v595 = vunpack.c.l.b16 %v267
      %v596 = vunpack.c.h.b16 %v267
      %v597 = vunpack.c.l.b16 %v268
      %v598 = vunpack.c.h.b16 %v268
      %v599 = vunpack.c.l.b16 %v269
      %v600 = vunpack.c.h.b16 %v269
      %v601 = vpack.c.b16 %v571, %v569
      %v602 = vpack.c.b16 %v572, %v570
      %v603 = vpack.c.b16 %v575, %v573
      %v604 = vpack.c.b16 %v576, %v574
      %v605 = vpack.c.b16 %v579, %v577
      %v606 = vpack.c.b16 %v580, %v578
      %v607 = vpack.c.b16 %v583, %v581
      %v608 = vpack.c.b16 %v584, %v582
      %v609 = vpack.c.b16 %v587, %v585
      %v610 = vpack.c.b16 %v588, %v586
      %v611 = vpack.c.b16 %v591, %v589
      %v612 = vpack.c.b16 %v592, %v590
      %v613 = vpack.c.b16 %v595, %v593
      %v614 = vpack.c.b16 %v596, %v594
      %v615 = vpack.c.b16 %v599, %v597
      %v616 = vpack.c.b16 %v600, %v598
      %633 = vmatprep.subr.bf16.mxu0 %v602
      %634 = vmatpush1.bf16.msra.mxu0 %v601
      %635 = vmatprep.subr.bf16.mxu0 %v604
      %636 = vmatpush1.bf16.msra.mxu0 %v603
      %637 = vmatprep.subr.bf16.mxu0 %v606
      %638 = vmatpush1.bf16.msra.mxu0 %v605
      %639 = vmatprep.subr.bf16.mxu0 %v608
      %640 = vmatpush1.bf16.msra.mxu0 %v607
      %641 = vmatprep.subr.bf16.mxu0 %v610
      %642 = vmatpush1.bf16.msra.mxu0 %v609
      %643 = vmatprep.subr.bf16.mxu0 %v612
      %644 = vmatpush1.bf16.msra.mxu0 %v611
      %645 = vmatprep.subr.bf16.mxu0 %v614
      %646 = vmatpush1.bf16.msra.mxu0 %v613
      %647 = vmatprep.subr.bf16.mxu0 %v616
      %648 = vmatpush1.bf16.msra.mxu0 %v615
      %649 = vmatprep.subr.bf16.mxu0 0
      %650 = vmatpush1.bf16.msra.mxu0 0
      %651 = vmatprep.subr.bf16.mxu0 0
      %652 = vmatpush1.bf16.msra.mxu0 0
      %653 = vmatprep.subr.bf16.mxu0 0
      %654 = vmatpush1.bf16.msra.mxu0 0
      %655 = vmatprep.subr.bf16.mxu0 0
      %656 = vmatpush1.bf16.msra.mxu0 0
      %657 = vmatprep.subr.bf16.mxu0 0
      %658 = vmatpush1.bf16.msra.mxu0 0
      %659 = vmatprep.subr.bf16.mxu0 0
      %660 = vmatpush1.bf16.msra.mxu0 0
      %661 = vmatprep.subr.bf16.mxu0 0
      %662 = vmatpush1.bf16.msra.mxu0 0
      %663 = vmatprep.subr.bf16.mxu0 0
      %664 = vmatpush1.bf16.msra.mxu0 0
      %665 = vmatprep.mubr.bf16.mxu0 0
      %666 = vmatmul.mubr.bf16.gmra.mrb[0].mxu0 %v551
      %v667 = vpop.f32.mrb[0].mxu0
      %v668 = vadd.f32 %v523, %v667
      %v669 = vpop.f32.mrb[0].mxu0
      %v670 = vadd.f32 %v525, %v669
      %v671 = vpop.f32.mrb[0].mxu0
      %v672 = vadd.f32 %v527, %v671
      %v673 = vpop.f32.mrb[0].mxu0
      %v674 = vadd.f32 %v529, %v673
      %675 = vdwg.mxu0
      %v676 = vld [vmem:[%s249] sm:$0x6]
      %v677 = vld [vmem:[%s249 + $0x4] sm:$0x6]
      %v678 = vld [vmem:[%s249 + $0x8] sm:$0x6]
      %v679 = vld [vmem:[%s249 + $0xc] sm:$0x6]
      %v685 = vunpack.c.l.s4 1983009808
      %v686 = vunpack.c.0.s8 %v685
      %v687 = vlaneseq
      %v688 = vshrl.u32 %v687, 7
      %v689 = vsub.s32 %v686, %v688
      %v690 = vrot.slane %v676, %v689
      %v691 = vcombine.high %v690, %v690
      %v693 = vunpack.c.l.s4 1983009808
      %v694 = vunpack.c.0.s8 %v693
      %v695 = vlaneseq
      %v696 = vshrl.u32 %v695, 7
      %v697 = vsub.s32 %v694, %v696
      %v698 = vrot.slane %v677, %v697
      %v699 = vcombine.high %v698, %v698
      %v701 = vunpack.c.l.s4 1983009808
      %v702 = vunpack.c.0.s8 %v701
      %v703 = vlaneseq
      %v704 = vshrl.u32 %v703, 7
      %v705 = vsub.s32 %v702, %v704
      %v706 = vrot.slane %v678, %v705
      %v707 = vcombine.high %v706, %v706
      %v709 = vunpack.c.l.s4 1983009808
      %v710 = vunpack.c.0.s8 %v709
      %v711 = vlaneseq
      %v712 = vshrl.u32 %v711, 7
      %v713 = vsub.s32 %v710, %v712
      %v714 = vrot.slane %v679, %v713
      %v715 = vcombine.high %v714, %v714
      %vm716 = vcmask 1040384
      %vm717 = vcmask 1042434
      %vm718 = vmor %vm716, %vm717
      %vm719 = vcmask 1044484
      %vm720 = vmor %vm718, %vm719
      %vm721 = vcmask 1046534
      %vm722 = vmor %vm720, %vm721
      %v723 = vrot.slane %v690, 7
      %v724 = vrot.slane %v723, 2
      %v725 = vrot.slane %v691, 7
      %v726 = vsel %vm722, %v724, %v725
      %v727 = vrot.slane %v698, 7
      %v728 = vrot.slane %v727, 2
      %v729 = vrot.slane %v699, 7
      %v730 = vsel %vm722, %v728, %v729
      %v731 = vrot.slane %v706, 7
      %v732 = vrot.slane %v731, 2
      %v733 = vrot.slane %v707, 7
      %v734 = vsel %vm722, %v732, %v733
      %v735 = vrot.slane %v714, 7
      %v736 = vrot.slane %v735, 2
      %v737 = vrot.slane %v715, 7
      %v738 = vsel %vm722, %v736, %v737
      %s739 = scalar_lea.vmem %s1, 256
      %v740 = vld [vmem:[%s739] sm:$0xff]
      %v741 = vld [vmem:[%s739 + $0x8] sm:$0xff]
      %v742 = vld [vmem:[%s739 + $0x10] sm:$0xff]
      %v743 = vld [vmem:[%s739 + $0x18] sm:$0xff]
      %v744 = vld [vmem:[%s739 + $0x20] sm:$0xff]
      %v745 = vld [vmem:[%s739 + $0x28] sm:$0xff]
      %v746 = vld [vmem:[%s739 + $0x30] sm:$0xff]
      %v747 = vld [vmem:[%s739 + $0x38] sm:$0xff]
      %v748 = vld [vmem:[%s739 + $0x40] sm:$0xff]
      %v749 = vld [vmem:[%s739 + $0x48] sm:$0xff]
      %v750 = vld [vmem:[%s739 + $0x50] sm:$0xff]
      %v751 = vld [vmem:[%s739 + $0x58] sm:$0xff]
      %v752 = vld [vmem:[%s739 + $0x60] sm:$0xff]
      %v753 = vld [vmem:[%s739 + $0x68] sm:$0xff]
      %v754 = vld [vmem:[%s739 + $0x70] sm:$0xff]
      %v755 = vld [vmem:[%s739 + $0x78] sm:$0xff]
      %v756 = vcombine.low %v726, %v730
      %v757 = vcombine.low %v734, %v738
      %v759 = vunpack.c.l.s4 1983009808
      %v760 = vunpack.c.0.s8 %v759
      %v761 = vlaneseq
      %v762 = vshrl.u32 %v761, 7
      %v763 = vsub.s32 %v760, %v762
      %v764 = vrot.slane %v756, %v763
      %v766 = vunpack.c.l.s4 1983009808
      %v767 = vunpack.c.0.s8 %v766
      %v768 = vlaneseq
      %v769 = vshrl.u32 %v768, 7
      %v770 = vsub.s32 %v767, %v769
      %v771 = vrot.slane %v757, %v770
      %v772 = vcombine.low %v764, %v771
      %v790 = vunpack.c.l.b16 %v740
      %v791 = vunpack.c.h.b16 %v740
      %v792 = vunpack.c.l.b16 %v741
      %v793 = vunpack.c.h.b16 %v741
      %v794 = vunpack.c.l.b16 %v742
      %v795 = vunpack.c.h.b16 %v742
      %v796 = vunpack.c.l.b16 %v743
      %v797 = vunpack.c.h.b16 %v743
      %v798 = vunpack.c.l.b16 %v744
      %v799 = vunpack.c.h.b16 %v744
      %v800 = vunpack.c.l.b16 %v745
      %v801 = vunpack.c.h.b16 %v745
      %v802 = vunpack.c.l.b16 %v746
      %v803 = vunpack.c.h.b16 %v746
      %v804 = vunpack.c.l.b16 %v747
      %v805 = vunpack.c.h.b16 %v747
      %v806 = vunpack.c.l.b16 %v748
      %v807 = vunpack.c.h.b16 %v748
      %v808 = vunpack.c.l.b16 %v749
      %v809 = vunpack.c.h.b16 %v749
      %v810 = vunpack.c.l.b16 %v750
      %v811 = vunpack.c.h.b16 %v750
      %v812 = vunpack.c.l.b16 %v751
      %v813 = vunpack.c.h.b16 %v751
      %v814 = vunpack.c.l.b16 %v752
      %v815 = vunpack.c.h.b16 %v752
      %v816 = vunpack.c.l.b16 %v753
      %v817 = vunpack.c.h.b16 %v753
      %v818 = vunpack.c.l.b16 %v754
      %v819 = vunpack.c.h.b16 %v754
      %v820 = vunpack.c.l.b16 %v755
      %v821 = vunpack.c.h.b16 %v755
      %v822 = vpack.c.b16 %v792, %v790
      %v823 = vpack.c.b16 %v793, %v791
      %v824 = vpack.c.b16 %v796, %v794
      %v825 = vpack.c.b16 %v797, %v795
      %v826 = vpack.c.b16 %v800, %v798
      %v827 = vpack.c.b16 %v801, %v799
      %v828 = vpack.c.b16 %v804, %v802
      %v829 = vpack.c.b16 %v805, %v803
      %v830 = vpack.c.b16 %v808, %v806
      %v831 = vpack.c.b16 %v809, %v807
      %v832 = vpack.c.b16 %v812, %v810
      %v833 = vpack.c.b16 %v813, %v811
      %v834 = vpack.c.b16 %v816, %v814
      %v835 = vpack.c.b16 %v817, %v815
      %v836 = vpack.c.b16 %v820, %v818
      %v837 = vpack.c.b16 %v821, %v819
      %854 = vmatprep.subr.bf16.mxu0 %v823
      %855 = vmatpush1.bf16.msra.mxu0 %v822
      %856 = vmatprep.subr.bf16.mxu0 %v825
      %857 = vmatpush1.bf16.msra.mxu0 %v824
      %858 = vmatprep.subr.bf16.mxu0 %v827
      %859 = vmatpush1.bf16.msra.mxu0 %v826
      %860 = vmatprep.subr.bf16.mxu0 %v829
      %861 = vmatpush1.bf16.msra.mxu0 %v828
      %862 = vmatprep.subr.bf16.mxu0 %v831
      %863 = vmatpush1.bf16.msra.mxu0 %v830
      %864 = vmatprep.subr.bf16.mxu0 %v833
      %865 = vmatpush1.bf16.msra.mxu0 %v832
      %866 = vmatprep.subr.bf16.mxu0 %v835
      %867 = vmatpush1.bf16.msra.mxu0 %v834
      %868 = vmatprep.subr.bf16.mxu0 %v837
      %869 = vmatpush1.bf16.msra.mxu0 %v836
      %870 = vmatprep.subr.bf16.mxu0 0
      %871 = vmatpush1.bf16.msra.mxu0 0
      %872 = vmatprep.subr.bf16.mxu0 0
      %873 = vmatpush1.bf16.msra.mxu0 0
      %874 = vmatprep.subr.bf16.mxu0 0
      %875 = vmatpush1.bf16.msra.mxu0 0
      %876 = vmatprep.subr.bf16.mxu0 0
      %877 = vmatpush1.bf16.msra.mxu0 0
      %878 = vmatprep.subr.bf16.mxu0 0
      %879 = vmatpush1.bf16.msra.mxu0 0
      %880 = vmatprep.subr.bf16.mxu0 0
      %881 = vmatpush1.bf16.msra.mxu0 0
      %882 = vmatprep.subr.bf16.mxu0 0
      %883 = vmatpush1.bf16.msra.mxu0 0
      %884 = vmatprep.subr.bf16.mxu0 0
      %885 = vmatpush1.bf16.msra.mxu0 0
      %886 = vmatprep.mubr.bf16.mxu0 0
      %887 = vmatmul.mubr.bf16.gmra.mrb[0].mxu0 %v772
      %v888 = vpop.f32.mrb[0].mxu0
      %v889 = vadd.f32 0.0, %v888
      %v890 = vpop.f32.mrb[0].mxu0
      %v891 = vadd.f32 0.0, %v890
      %v892 = vpop.f32.mrb[0].mxu0
      %v893 = vadd.f32 0.0, %v892
      %v894 = vpop.f32.mrb[0].mxu0
      %v895 = vadd.f32 0.0, %v894
      %896 = vdwg.mxu0
      %v897 = vadd.f32 %v668, %v889
      %v898 = vadd.f32 %v670, %v891
      %v899 = vadd.f32 %v672, %v893
      %v900 = vadd.f32 %v674, %v895
      %s901 = sadd.s32 %s247, 1
      %s902 = smul.addr %s901, 4
      %s903 = scalar_lea.vmem %s225, %s902
      %v904 = vld [vmem:[%s903] sm:$0x3]
      %v905 = vld [vmem:[%s903 + $0x4] sm:$0x3]
      %v906 = vld [vmem:[%s903 + $0x8] sm:$0x3]
      %v907 = vld [vmem:[%s903 + $0xc] sm:$0x3]
      %s908 = scalar_lea.vmem %s1, 384
      %v909 = vld [vmem:[%s908] sm:$0xff]
      %v910 = vld [vmem:[%s908 + $0x8] sm:$0xff]
      %v911 = vld [vmem:[%s908 + $0x10] sm:$0xff]
      %v912 = vld [vmem:[%s908 + $0x18] sm:$0xff]
      %v913 = vld [vmem:[%s908 + $0x20] sm:$0xff]
      %v914 = vld [vmem:[%s908 + $0x28] sm:$0xff]
      %v915 = vld [vmem:[%s908 + $0x30] sm:$0xff]
      %v916 = vld [vmem:[%s908 + $0x38] sm:$0xff]
      %v917 = vld [vmem:[%s908 + $0x40] sm:$0xff]
      %v918 = vld [vmem:[%s908 + $0x48] sm:$0xff]
      %v919 = vld [vmem:[%s908 + $0x50] sm:$0xff]
      %v920 = vld [vmem:[%s908 + $0x58] sm:$0xff]
      %v921 = vld [vmem:[%s908 + $0x60] sm:$0xff]
      %v922 = vld [vmem:[%s908 + $0x68] sm:$0xff]
      %v923 = vld [vmem:[%s908 + $0x70] sm:$0xff]
      %v924 = vld [vmem:[%s908 + $0x78] sm:$0xff]
      %v929 = vcombine.low %v904, %v905
      %v930 = vcombine.low %v906, %v907
      %v932 = vunpack.c.l.s4 1983009808
      %v933 = vunpack.c.0.s8 %v932
      %v934 = vlaneseq
      %v935 = vshrl.u32 %v934, 7
      %v936 = vsub.s32 %v933, %v935
      %v937 = vrot.slane %v929, %v936
      %v939 = vunpack.c.l.s4 1983009808
      %v940 = vunpack.c.0.s8 %v939
      %v941 = vlaneseq
      %v942 = vshrl.u32 %v941, 7
      %v943 = vsub.s32 %v940, %v942
      %v944 = vrot.slane %v930, %v943
      %v945 = vcombine.low %v937, %v944
      %v963 = vunpack.c.l.b16 %v909
      %v964 = vunpack.c.h.b16 %v909
      %v965 = vunpack.c.l.b16 %v910
      %v966 = vunpack.c.h.b16 %v910
      %v967 = vunpack.c.l.b16 %v911
      %v968 = vunpack.c.h.b16 %v911
      %v969 = vunpack.c.l.b16 %v912
      %v970 = vunpack.c.h.b16 %v912
      %v971 = vunpack.c.l.b16 %v913
      %v972 = vunpack.c.h.b16 %v913
      %v973 = vunpack.c.l.b16 %v914
      %v974 = vunpack.c.h.b16 %v914
      %v975 = vunpack.c.l.b16 %v915
      %v976 = vunpack.c.h.b16 %v915
      %v977 = vunpack.c.l.b16 %v916
      %v978 = vunpack.c.h.b16 %v916
      %v979 = vunpack.c.l.b16 %v917
      %v980 = vunpack.c.h.b16 %v917
      %v981 = vunpack.c.l.b16 %v918
      %v982 = vunpack.c.h.b16 %v918
      %v983 = vunpack.c.l.b16 %v919
      %v984 = vunpack.c.h.b16 %v919
      %v985 = vunpack.c.l.b16 %v920
      %v986 = vunpack.c.h.b16 %v920
      %v987 = vunpack.c.l.b16 %v921
      %v988 = vunpack.c.h.b16 %v921
      %v989 = vunpack.c.l.b16 %v922
      %v990 = vunpack.c.h.b16 %v922
      %v991 = vunpack.c.l.b16 %v923
      %v992 = vunpack.c.h.b16 %v923
      %v993 = vunpack.c.l.b16 %v924
      %v994 = vunpack.c.h.b16 %v924
      %v995 = vpack.c.b16 %v965, %v963
      %v996 = vpack.c.b16 %v966, %v964
      %v997 = vpack.c.b16 %v969, %v967
      %v998 = vpack.c.b16 %v970, %v968
      %v999 = vpack.c.b16 %v973, %v971
      %v1000 = vpack.c.b16 %v974, %v972
      %v1001 = vpack.c.b16 %v977, %v975
      %v1002 = vpack.c.b16 %v978, %v976
      %v1003 = vpack.c.b16 %v981, %v979
      %v1004 = vpack.c.b16 %v982, %v980
      %v1005 = vpack.c.b16 %v985, %v983
      %v1006 = vpack.c.b16 %v986, %v984
      %v1007 = vpack.c.b16 %v989, %v987
      %v1008 = vpack.c.b16 %v990, %v988
      %v1009 = vpack.c.b16 %v993, %v991
      %v1010 = vpack.c.b16 %v994, %v992
      %1027 = vmatprep.subr.bf16.mxu0 %v996
      %1028 = vmatpush1.bf16.msra.mxu0 %v995
      %1029 = vmatprep.subr.bf16.mxu0 %v998
      %1030 = vmatpush1.bf16.msra.mxu0 %v997
      %1031 = vmatprep.subr.bf16.mxu0 %v1000
      %1032 = vmatpush1.bf16.msra.mxu0 %v999
      %1033 = vmatprep.subr.bf16.mxu0 %v1002
      %1034 = vmatpush1.bf16.msra.mxu0 %v1001
      %1035 = vmatprep.subr.bf16.mxu0 %v1004
      %1036 = vmatpush1.bf16.msra.mxu0 %v1003
      %1037 = vmatprep.subr.bf16.mxu0 %v1006
      %1038 = vmatpush1.bf16.msra.mxu0 %v1005
      %1039 = vmatprep.subr.bf16.mxu0 %v1008
      %1040 = vmatpush1.bf16.msra.mxu0 %v1007
      %1041 = vmatprep.subr.bf16.mxu0 %v1010
      %1042 = vmatpush1.bf16.msra.mxu0 %v1009
      %1043 = vmatprep.subr.bf16.mxu0 0
      %1044 = vmatpush1.bf16.msra.mxu0 0
      %1045 = vmatprep.subr.bf16.mxu0 0
      %1046 = vmatpush1.bf16.msra.mxu0 0
      %1047 = vmatprep.subr.bf16.mxu0 0
      %1048 = vmatpush1.bf16.msra.mxu0 0
      %1049 = vmatprep.subr.bf16.mxu0 0
      %1050 = vmatpush1.bf16.msra.mxu0 0
      %1051 = vmatprep.subr.bf16.mxu0 0
      %1052 = vmatpush1.bf16.msra.mxu0 0
      %1053 = vmatprep.subr.bf16.mxu0 0
      %1054 = vmatpush1.bf16.msra.mxu0 0
      %1055 = vmatprep.subr.bf16.mxu0 0
      %1056 = vmatpush1.bf16.msra.mxu0 0
      %1057 = vmatprep.subr.bf16.mxu0 0
      %1058 = vmatpush1.bf16.msra.mxu0 0
      %1059 = vmatprep.mubr.bf16.mxu0 0
      %1060 = vmatmul.mubr.bf16.gmra.mrb[0].mxu0 %v945
      %v1061 = vpop.f32.mrb[0].mxu0
      %v1062 = vadd.f32 0.0, %v1061
      %v1063 = vpop.f32.mrb[0].mxu0
      %v1064 = vadd.f32 0.0, %v1063
      %v1065 = vpop.f32.mrb[0].mxu0
      %v1066 = vadd.f32 0.0, %v1065
      %v1067 = vpop.f32.mrb[0].mxu0
      %v1068 = vadd.f32 0.0, %v1067
      %1069 = vdwg.mxu0
      %v1070 = vadd.f32 %v897, %v1062
      %v1071 = vadd.f32 %v898, %v1064
      %v1072 = vadd.f32 %v899, %v1066
      %v1073 = vadd.f32 %v900, %v1068
      %v1074 = vld [vmem:[%s903] sm:$0x7]
      %v1075 = vld [vmem:[%s903 + $0x4] sm:$0x7]
      %v1076 = vld [vmem:[%s903 + $0x8] sm:$0x7]
      %v1077 = vld [vmem:[%s903 + $0xc] sm:$0x7]
      %v1083 = vunpack.c.l.s4 1983009808
      %v1084 = vunpack.c.0.s8 %v1083
      %v1085 = vlaneseq
      %v1086 = vshrl.u32 %v1085, 7
      %v1087 = vsub.s32 %v1084, %v1086
      %v1088 = vrot.slane %v1074, %v1087
      %v1089 = vcombine.high %v1088, %v1088
      %v1091 = vunpack.c.l.s4 1983009808
      %v1092 = vunpack.c.0.s8 %v1091
      %v1093 = vlaneseq
      %v1094 = vshrl.u32 %v1093, 7
      %v1095 = vsub.s32 %v1092, %v1094
      %v1096 = vrot.slane %v1075, %v1095
      %v1097 = vcombine.high %v1096, %v1096
      %v1099 = vunpack.c.l.s4 1983009808
      %v1100 = vunpack.c.0.s8 %v1099
      %v1101 = vlaneseq
      %v1102 = vshrl.u32 %v1101, 7
      %v1103 = vsub.s32 %v1100, %v1102
      %v1104 = vrot.slane %v1076, %v1103
      %v1105 = vcombine.high %v1104, %v1104
      %v1107 = vunpack.c.l.s4 1983009808
      %v1108 = vunpack.c.0.s8 %v1107
      %v1109 = vlaneseq
      %v1110 = vshrl.u32 %v1109, 7
      %v1111 = vsub.s32 %v1108, %v1110
      %v1112 = vrot.slane %v1077, %v1111
      %v1113 = vcombine.high %v1112, %v1112
      %v1115 = vshrl.u32 %v1088, 16
      %v1117 = vrot.slane %v1115, 6
      %v1118 = vshll.u32 %v1088, 16
      %v1120 = vrot.slane %v1118, 7
      %v1121 = vor.u32 %v1117, %v1120
      %v1122 = vrot.slane %v1121, 2
      %v1124 = vshll.u32 %v1089, 16
      %v1126 = vrot.slane %v1124, 7
      %v1127 = vsel %vm316, %v1122, %v1126
      %v1129 = vshrl.u32 %v1096, 16
      %v1131 = vrot.slane %v1129, 6
      %v1132 = vshll.u32 %v1096, 16
      %v1134 = vrot.slane %v1132, 7
      %v1135 = vor.u32 %v1131, %v1134
      %v1136 = vrot.slane %v1135, 2
      %v1138 = vshll.u32 %v1097, 16
      %v1140 = vrot.slane %v1138, 7
      %v1141 = vsel %vm316, %v1136, %v1140
      %v1143 = vshrl.u32 %v1104, 16
      %v1145 = vrot.slane %v1143, 6
      %v1146 = vshll.u32 %v1104, 16
      %v1148 = vrot.slane %v1146, 7
      %v1149 = vor.u32 %v1145, %v1148
      %v1150 = vrot.slane %v1149, 2
      %v1152 = vshll.u32 %v1105, 16
      %v1154 = vrot.slane %v1152, 7
      %v1155 = vsel %vm316, %v1150, %v1154
      %v1157 = vshrl.u32 %v1112, 16
      %v1159 = vrot.slane %v1157, 6
      %v1160 = vshll.u32 %v1112, 16
      %v1162 = vrot.slane %v1160, 7
      %v1163 = vor.u32 %v1159, %v1162
      %v1164 = vrot.slane %v1163, 2
      %v1166 = vshll.u32 %v1113, 16
      %v1168 = vrot.slane %v1166, 7
      %v1169 = vsel %vm316, %v1164, %v1168
      %s1170 = scalar_lea.vmem %s1, 512
      %v1171 = vld [vmem:[%s1170] sm:$0xff]
      %v1172 = vld [vmem:[%s1170 + $0x8] sm:$0xff]
      %v1173 = vld [vmem:[%s1170 + $0x10] sm:$0xff]
      %v1174 = vld [vmem:[%s1170 + $0x18] sm:$0xff]
      %v1175 = vld [vmem:[%s1170 + $0x20] sm:$0xff]
      %v1176 = vld [vmem:[%s1170 + $0x28] sm:$0xff]
      %v1177 = vld [vmem:[%s1170 + $0x30] sm:$0xff]
      %v1178 = vld [vmem:[%s1170 + $0x38] sm:$0xff]
      %v1179 = vld [vmem:[%s1170 + $0x40] sm:$0xff]
      %v1180 = vld [vmem:[%s1170 + $0x48] sm:$0xff]
      %v1181 = vld [vmem:[%s1170 + $0x50] sm:$0xff]
      %v1182 = vld [vmem:[%s1170 + $0x58] sm:$0xff]
      %v1183 = vld [vmem:[%s1170 + $0x60] sm:$0xff]
      %v1184 = vld [vmem:[%s1170 + $0x68] sm:$0xff]
      %v1185 = vld [vmem:[%s1170 + $0x70] sm:$0xff]
      %v1186 = vld [vmem:[%s1170 + $0x78] sm:$0xff]
      %v1187 = vcombine.low %v1127, %v1141
      %v1188 = vcombine.low %v1155, %v1169
      %v1190 = vunpack.c.l.s4 1983009808
      %v1191 = vunpack.c.0.s8 %v1190
      %v1192 = vlaneseq
      %v1193 = vshrl.u32 %v1192, 7
      %v1194 = vsub.s32 %v1191, %v1193
      %v1195 = vrot.slane %v1187, %v1194
      %v1197 = vunpack.c.l.s4 1983009808
      %v1198 = vunpack.c.0.s8 %v1197
      %v1199 = vlaneseq
      %v1200 = vshrl.u32 %v1199, 7
      %v1201 = vsub.s32 %v1198, %v1200
      %v1202 = vrot.slane %v1188, %v1201
      %v1203 = vcombine.low %v1195, %v1202
      %v1221 = vunpack.c.l.b16 %v1171
      %v1222 = vunpack.c.h.b16 %v1171
      %v1223 = vunpack.c.l.b16 %v1172
      %v1224 = vunpack.c.h.b16 %v1172
      %v1225 = vunpack.c.l.b16 %v1173
      %v1226 = vunpack.c.h.b16 %v1173
      %v1227 = vunpack.c.l.b16 %v1174
      %v1228 = vunpack.c.h.b16 %v1174
      %v1229 = vunpack.c.l.b16 %v1175
      %v1230 = vunpack.c.h.b16 %v1175
      %v1231 = vunpack.c.l.b16 %v1176
      %v1232 = vunpack.c.h.b16 %v1176
      %v1233 = vunpack.c.l.b16 %v1177
      %v1234 = vunpack.c.h.b16 %v1177
      %v1235 = vunpack.c.l.b16 %v1178
      %v1236 = vunpack.c.h.b16 %v1178
      %v1237 = vunpack.c.l.b16 %v1179
      %v1238 = vunpack.c.h.b16 %v1179
      %v1239 = vunpack.c.l.b16 %v1180
      %v1240 = vunpack.c.h.b16 %v1180
      %v1241 = vunpack.c.l.b16 %v1181
      %v1242 = vunpack.c.h.b16 %v1181
      %v1243 = vunpack.c.l.b16 %v1182
      %v1244 = vunpack.c.h.b16 %v1182
      %v1245 = vunpack.c.l.b16 %v1183
      %v1246 = vunpack.c.h.b16 %v1183
      %v1247 = vunpack.c.l.b16 %v1184
      %v1248 = vunpack.c.h.b16 %v1184
      %v1249 = vunpack.c.l.b16 %v1185
      %v1250 = vunpack.c.h.b16 %v1185
      %v1251 = vunpack.c.l.b16 %v1186
      %v1252 = vunpack.c.h.b16 %v1186
      %v1253 = vpack.c.b16 %v1223, %v1221
      %v1254 = vpack.c.b16 %v1224, %v1222
      %v1255 = vpack.c.b16 %v1227, %v1225
      %v1256 = vpack.c.b16 %v1228, %v1226
      %v1257 = vpack.c.b16 %v1231, %v1229
      %v1258 = vpack.c.b16 %v1232, %v1230
      %v1259 = vpack.c.b16 %v1235, %v1233
      %v1260 = vpack.c.b16 %v1236, %v1234
      %v1261 = vpack.c.b16 %v1239, %v1237
      %v1262 = vpack.c.b16 %v1240, %v1238
      %v1263 = vpack.c.b16 %v1243, %v1241
      %v1264 = vpack.c.b16 %v1244, %v1242
      %v1265 = vpack.c.b16 %v1247, %v1245
      %v1266 = vpack.c.b16 %v1248, %v1246
      %v1267 = vpack.c.b16 %v1251, %v1249
      %v1268 = vpack.c.b16 %v1252, %v1250
      %1285 = vmatprep.subr.bf16.mxu0 %v1254
      %1286 = vmatpush1.bf16.msra.mxu0 %v1253
      %1287 = vmatprep.subr.bf16.mxu0 %v1256
      %1288 = vmatpush1.bf16.msra.mxu0 %v1255
      %1289 = vmatprep.subr.bf16.mxu0 %v1258
      %1290 = vmatpush1.bf16.msra.mxu0 %v1257
      %1291 = vmatprep.subr.bf16.mxu0 %v1260
      %1292 = vmatpush1.bf16.msra.mxu0 %v1259
      %1293 = vmatprep.subr.bf16.mxu0 %v1262
      %1294 = vmatpush1.bf16.msra.mxu0 %v1261
      %1295 = vmatprep.subr.bf16.mxu0 %v1264
      %1296 = vmatpush1.bf16.msra.mxu0 %v1263
      %1297 = vmatprep.subr.bf16.mxu0 %v1266
      %1298 = vmatpush1.bf16.msra.mxu0 %v1265
      %1299 = vmatprep.subr.bf16.mxu0 %v1268
      %1300 = vmatpush1.bf16.msra.mxu0 %v1267
      %1301 = vmatprep.subr.bf16.mxu0 0
      %1302 = vmatpush1.bf16.msra.mxu0 0
      %1303 = vmatprep.subr.bf16.mxu0 0
      %1304 = vmatpush1.bf16.msra.mxu0 0
      %1305 = vmatprep.subr.bf16.mxu0 0
      %1306 = vmatpush1.bf16.msra.mxu0 0
      %1307 = vmatprep.subr.bf16.mxu0 0
      %1308 = vmatpush1.bf16.msra.mxu0 0
      %1309 = vmatprep.subr.bf16.mxu0 0
      %1310 = vmatpush1.bf16.msra.mxu0 0
      %1311 = vmatprep.subr.bf16.mxu0 0
      %1312 = vmatpush1.bf16.msra.mxu0 0
      %1313 = vmatprep.subr.bf16.mxu0 0
      %1314 = vmatpush1.bf16.msra.mxu0 0
      %1315 = vmatprep.subr.bf16.mxu0 0
      %1316 = vmatpush1.bf16.msra.mxu0 0
      %1317 = vmatprep.mubr.bf16.mxu0 0
      %1318 = vmatmul.mubr.bf16.gmra.mrb[0].mxu0 %v1203
      %v1319 = vpop.f32.mrb[0].mxu0
      %v1320 = vadd.f32 0.0, %v1319
      %v1321 = vpop.f32.mrb[0].mxu0
      %v1322 = vadd.f32 0.0, %v1321
      %v1323 = vpop.f32.mrb[0].mxu0
      %v1324 = vadd.f32 0.0, %v1323
      %v1325 = vpop.f32.mrb[0].mxu0
      %v1326 = vadd.f32 0.0, %v1325
      %1327 = vdwg.mxu0
      %v1328 = vadd.f32 %v1070, %v1320
      %v1329 = vadd.f32 %v1071, %v1322
      %v1330 = vadd.f32 %v1072, %v1324
      %v1331 = vadd.f32 %v1073, %v1326
      %v1332 = vld [vmem:[%s903] sm:$0x6]
      %v1333 = vld [vmem:[%s903 + $0x4] sm:$0x6]
      %v1334 = vld [vmem:[%s903 + $0x8] sm:$0x6]
      %v1335 = vld [vmem:[%s903 + $0xc] sm:$0x6]
      %v1341 = vunpack.c.l.s4 1983009808
      %v1342 = vunpack.c.0.s8 %v1341
      %v1343 = vlaneseq
      %v1344 = vshrl.u32 %v1343, 7
      %v1345 = vsub.s32 %v1342, %v1344
      %v1346 = vrot.slane %v1332, %v1345
      %v1347 = vcombine.high %v1346, %v1346
      %v1349 = vunpack.c.l.s4 1983009808
      %v1350 = vunpack.c.0.s8 %v1349
      %v1351 = vlaneseq
      %v1352 = vshrl.u32 %v1351, 7
      %v1353 = vsub.s32 %v1350, %v1352
      %v1354 = vrot.slane %v1333, %v1353
      %v1355 = vcombine.high %v1354, %v1354
      %v1357 = vunpack.c.l.s4 1983009808
      %v1358 = vunpack.c.0.s8 %v1357
      %v1359 = vlaneseq
      %v1360 = vshrl.u32 %v1359, 7
      %v1361 = vsub.s32 %v1358, %v1360
      %v1362 = vrot.slane %v1334, %v1361
      %v1363 = vcombine.high %v1362, %v1362
      %v1365 = vunpack.c.l.s4 1983009808
      %v1366 = vunpack.c.0.s8 %v1365
      %v1367 = vlaneseq
      %v1368 = vshrl.u32 %v1367, 7
      %v1369 = vsub.s32 %v1366, %v1368
      %v1370 = vrot.slane %v1335, %v1369
      %v1371 = vcombine.high %v1370, %v1370
      %v1372 = vrot.slane %v1346, 7
      %v1373 = vrot.slane %v1372, 2
      %v1374 = vrot.slane %v1347, 7
      %v1375 = vsel %vm722, %v1373, %v1374
      %v1376 = vrot.slane %v1354, 7
      %v1377 = vrot.slane %v1376, 2
      %v1378 = vrot.slane %v1355, 7
      %v1379 = vsel %vm722, %v1377, %v1378
      %v1380 = vrot.slane %v1362, 7
      %v1381 = vrot.slane %v1380, 2
      %v1382 = vrot.slane %v1363, 7
      %v1383 = vsel %vm722, %v1381, %v1382
      %v1384 = vrot.slane %v1370, 7
      %v1385 = vrot.slane %v1384, 2
      %v1386 = vrot.slane %v1371, 7
      %v1387 = vsel %vm722, %v1385, %v1386
      %s1388 = scalar_lea.vmem %s1, 640
      %v1389 = vld [vmem:[%s1388] sm:$0xff]
      %v1390 = vld [vmem:[%s1388 + $0x8] sm:$0xff]
      %v1391 = vld [vmem:[%s1388 + $0x10] sm:$0xff]
      %v1392 = vld [vmem:[%s1388 + $0x18] sm:$0xff]
      %v1393 = vld [vmem:[%s1388 + $0x20] sm:$0xff]
      %v1394 = vld [vmem:[%s1388 + $0x28] sm:$0xff]
      %v1395 = vld [vmem:[%s1388 + $0x30] sm:$0xff]
      %v1396 = vld [vmem:[%s1388 + $0x38] sm:$0xff]
      %v1397 = vld [vmem:[%s1388 + $0x40] sm:$0xff]
      %v1398 = vld [vmem:[%s1388 + $0x48] sm:$0xff]
      %v1399 = vld [vmem:[%s1388 + $0x50] sm:$0xff]
      %v1400 = vld [vmem:[%s1388 + $0x58] sm:$0xff]
      %v1401 = vld [vmem:[%s1388 + $0x60] sm:$0xff]
      %v1402 = vld [vmem:[%s1388 + $0x68] sm:$0xff]
      %v1403 = vld [vmem:[%s1388 + $0x70] sm:$0xff]
      %v1404 = vld [vmem:[%s1388 + $0x78] sm:$0xff]
      %v1405 = vcombine.low %v1375, %v1379
      %v1406 = vcombine.low %v1383, %v1387
      %v1408 = vunpack.c.l.s4 1983009808
      %v1409 = vunpack.c.0.s8 %v1408
      %v1410 = vlaneseq
      %v1411 = vshrl.u32 %v1410, 7
      %v1412 = vsub.s32 %v1409, %v1411
      %v1413 = vrot.slane %v1405, %v1412
      %v1415 = vunpack.c.l.s4 1983009808
      %v1416 = vunpack.c.0.s8 %v1415
      %v1417 = vlaneseq
      %v1418 = vshrl.u32 %v1417, 7
      %v1419 = vsub.s32 %v1416, %v1418
      %v1420 = vrot.slane %v1406, %v1419
      %v1421 = vcombine.low %v1413, %v1420
      %v1439 = vunpack.c.l.b16 %v1389
      %v1440 = vunpack.c.h.b16 %v1389
      %v1441 = vunpack.c.l.b16 %v1390
      %v1442 = vunpack.c.h.b16 %v1390
      %v1443 = vunpack.c.l.b16 %v1391
      %v1444 = vunpack.c.h.b16 %v1391
      %v1445 = vunpack.c.l.b16 %v1392
      %v1446 = vunpack.c.h.b16 %v1392
      %v1447 = vunpack.c.l.b16 %v1393
      %v1448 = vunpack.c.h.b16 %v1393
      %v1449 = vunpack.c.l.b16 %v1394
      %v1450 = vunpack.c.h.b16 %v1394
      %v1451 = vunpack.c.l.b16 %v1395
      %v1452 = vunpack.c.h.b16 %v1395
      %v1453 = vunpack.c.l.b16 %v1396
      %v1454 = vunpack.c.h.b16 %v1396
      %v1455 = vunpack.c.l.b16 %v1397
      %v1456 = vunpack.c.h.b16 %v1397
      %v1457 = vunpack.c.l.b16 %v1398
      %v1458 = vunpack.c.h.b16 %v1398
      %v1459 = vunpack.c.l.b16 %v1399
      %v1460 = vunpack.c.h.b16 %v1399
      %v1461 = vunpack.c.l.b16 %v1400
      %v1462 = vunpack.c.h.b16 %v1400
      %v1463 = vunpack.c.l.b16 %v1401
      %v1464 = vunpack.c.h.b16 %v1401
      %v1465 = vunpack.c.l.b16 %v1402
      %v1466 = vunpack.c.h.b16 %v1402
      %v1467 = vunpack.c.l.b16 %v1403
      %v1468 = vunpack.c.h.b16 %v1403
      %v1469 = vunpack.c.l.b16 %v1404
      %v1470 = vunpack.c.h.b16 %v1404
      %v1471 = vpack.c.b16 %v1441, %v1439
      %v1472 = vpack.c.b16 %v1442, %v1440
      %v1473 = vpack.c.b16 %v1445, %v1443
      %v1474 = vpack.c.b16 %v1446, %v1444
      %v1475 = vpack.c.b16 %v1449, %v1447
      %v1476 = vpack.c.b16 %v1450, %v1448
      %v1477 = vpack.c.b16 %v1453, %v1451
      %v1478 = vpack.c.b16 %v1454, %v1452
      %v1479 = vpack.c.b16 %v1457, %v1455
      %v1480 = vpack.c.b16 %v1458, %v1456
      %v1481 = vpack.c.b16 %v1461, %v1459
      %v1482 = vpack.c.b16 %v1462, %v1460
      %v1483 = vpack.c.b16 %v1465, %v1463
      %v1484 = vpack.c.b16 %v1466, %v1464
      %v1485 = vpack.c.b16 %v1469, %v1467
      %v1486 = vpack.c.b16 %v1470, %v1468
      %1503 = vmatprep.subr.bf16.mxu0 %v1472
      %1504 = vmatpush1.bf16.msra.mxu0 %v1471
      %1505 = vmatprep.subr.bf16.mxu0 %v1474
      %1506 = vmatpush1.bf16.msra.mxu0 %v1473
      %1507 = vmatprep.subr.bf16.mxu0 %v1476
      %1508 = vmatpush1.bf16.msra.mxu0 %v1475
      %1509 = vmatprep.subr.bf16.mxu0 %v1478
      %1510 = vmatpush1.bf16.msra.mxu0 %v1477
      %1511 = vmatprep.subr.bf16.mxu0 %v1480
      %1512 = vmatpush1.bf16.msra.mxu0 %v1479
      %1513 = vmatprep.subr.bf16.mxu0 %v1482
      %1514 = vmatpush1.bf16.msra.mxu0 %v1481
      %1515 = vmatprep.subr.bf16.mxu0 %v1484
      %1516 = vmatpush1.bf16.msra.mxu0 %v1483
      %1517 = vmatprep.subr.bf16.mxu0 %v1486
      %1518 = vmatpush1.bf16.msra.mxu0 %v1485
      %1519 = vmatprep.subr.bf16.mxu0 0
      %1520 = vmatpush1.bf16.msra.mxu0 0
      %1521 = vmatprep.subr.bf16.mxu0 0
      %1522 = vmatpush1.bf16.msra.mxu0 0
      %1523 = vmatprep.subr.bf16.mxu0 0
      %1524 = vmatpush1.bf16.msra.mxu0 0
      %1525 = vmatprep.subr.bf16.mxu0 0
      %1526 = vmatpush1.bf16.msra.mxu0 0
      %1527 = vmatprep.subr.bf16.mxu0 0
      %1528 = vmatpush1.bf16.msra.mxu0 0
      %1529 = vmatprep.subr.bf16.mxu0 0
      %1530 = vmatpush1.bf16.msra.mxu0 0
      %1531 = vmatprep.subr.bf16.mxu0 0
      %1532 = vmatpush1.bf16.msra.mxu0 0
      %1533 = vmatprep.subr.bf16.mxu0 0
      %1534 = vmatpush1.bf16.msra.mxu0 0
      %1535 = vmatprep.mubr.bf16.mxu0 0
      %1536 = vmatmul.mubr.bf16.gmra.mrb[0].mxu0 %v1421
      %v1537 = vpop.f32.mrb[0].mxu0
      %v1538 = vadd.f32 0.0, %v1537
      %v1539 = vpop.f32.mrb[0].mxu0
      %v1540 = vadd.f32 0.0, %v1539
      %v1541 = vpop.f32.mrb[0].mxu0
      %v1542 = vadd.f32 0.0, %v1541
      %v1543 = vpop.f32.mrb[0].mxu0
      %v1544 = vadd.f32 0.0, %v1543
      %1545 = vdwg.mxu0
      %v1546 = vadd.f32 %v1328, %v1538
      %v1547 = vadd.f32 %v1329, %v1540
      %v1548 = vadd.f32 %v1330, %v1542
      %v1549 = vadd.f32 %v1331, %v1544
      %s1550 = sadd.s32 %s247, 2
      %s1551 = smul.addr %s1550, 4
      %s1552 = scalar_lea.vmem %s225, %s1551
      %v1553 = vld [vmem:[%s1552] sm:$0x3]
      %v1554 = vld [vmem:[%s1552 + $0x4] sm:$0x3]
      %v1555 = vld [vmem:[%s1552 + $0x8] sm:$0x3]
      %v1556 = vld [vmem:[%s1552 + $0xc] sm:$0x3]
      %s1557 = scalar_lea.vmem %s1, 768
      %v1558 = vld [vmem:[%s1557] sm:$0xff]
      %v1559 = vld [vmem:[%s1557 + $0x8] sm:$0xff]
      %v1560 = vld [vmem:[%s1557 + $0x10] sm:$0xff]
      %v1561 = vld [vmem:[%s1557 + $0x18] sm:$0xff]
      %v1562 = vld [vmem:[%s1557 + $0x20] sm:$0xff]
      %v1563 = vld [vmem:[%s1557 + $0x28] sm:$0xff]
      %v1564 = vld [vmem:[%s1557 + $0x30] sm:$0xff]
      %v1565 = vld [vmem:[%s1557 + $0x38] sm:$0xff]
      %v1566 = vld [vmem:[%s1557 + $0x40] sm:$0xff]
      %v1567 = vld [vmem:[%s1557 + $0x48] sm:$0xff]
      %v1568 = vld [vmem:[%s1557 + $0x50] sm:$0xff]
      %v1569 = vld [vmem:[%s1557 + $0x58] sm:$0xff]
      %v1570 = vld [vmem:[%s1557 + $0x60] sm:$0xff]
      %v1571 = vld [vmem:[%s1557 + $0x68] sm:$0xff]
      %v1572 = vld [vmem:[%s1557 + $0x70] sm:$0xff]
      %v1573 = vld [vmem:[%s1557 + $0x78] sm:$0xff]
      %v1578 = vcombine.low %v1553, %v1554
      %v1579 = vcombine.low %v1555, %v1556
      %v1581 = vunpack.c.l.s4 1983009808
      %v1582 = vunpack.c.0.s8 %v1581
      %v1583 = vlaneseq
      %v1584 = vshrl.u32 %v1583, 7
      %v1585 = vsub.s32 %v1582, %v1584
      %v1586 = vrot.slane %v1578, %v1585
      %v1588 = vunpack.c.l.s4 1983009808
      %v1589 = vunpack.c.0.s8 %v1588
      %v1590 = vlaneseq
      %v1591 = vshrl.u32 %v1590, 7
      %v1592 = vsub.s32 %v1589, %v1591
      %v1593 = vrot.slane %v1579, %v1592
      %v1594 = vcombine.low %v1586, %v1593
      %v1612 = vunpack.c.l.b16 %v1558
      %v1613 = vunpack.c.h.b16 %v1558
      %v1614 = vunpack.c.l.b16 %v1559
      %v1615 = vunpack.c.h.b16 %v1559
      %v1616 = vunpack.c.l.b16 %v1560
      %v1617 = vunpack.c.h.b16 %v1560
      %v1618 = vunpack.c.l.b16 %v1561
      %v1619 = vunpack.c.h.b16 %v1561
      %v1620 = vunpack.c.l.b16 %v1562
      %v1621 = vunpack.c.h.b16 %v1562
      %v1622 = vunpack.c.l.b16 %v1563
      %v1623 = vunpack.c.h.b16 %v1563
      %v1624 = vunpack.c.l.b16 %v1564
      %v1625 = vunpack.c.h.b16 %v1564
      %v1626 = vunpack.c.l.b16 %v1565
      %v1627 = vunpack.c.h.b16 %v1565
      %v1628 = vunpack.c.l.b16 %v1566
      %v1629 = vunpack.c.h.b16 %v1566
      %v1630 = vunpack.c.l.b16 %v1567
      %v1631 = vunpack.c.h.b16 %v1567
      %v1632 = vunpack.c.l.b16 %v1568
      %v1633 = vunpack.c.h.b16 %v1568
      %v1634 = vunpack.c.l.b16 %v1569
      %v1635 = vunpack.c.h.b16 %v1569
      %v1636 = vunpack.c.l.b16 %v1570
      %v1637 = vunpack.c.h.b16 %v1570
      %v1638 = vunpack.c.l.b16 %v1571
      %v1639 = vunpack.c.h.b16 %v1571
      %v1640 = vunpack.c.l.b16 %v1572
      %v1641 = vunpack.c.h.b16 %v1572
      %v1642 = vunpack.c.l.b16 %v1573
      %v1643 = vunpack.c.h.b16 %v1573
      %v1644 = vpack.c.b16 %v1614, %v1612
      %v1645 = vpack.c.b16 %v1615, %v1613
      %v1646 = vpack.c.b16 %v1618, %v1616
      %v1647 = vpack.c.b16 %v1619, %v1617
      %v1648 = vpack.c.b16 %v1622, %v1620
      %v1649 = vpack.c.b16 %v1623, %v1621
      %v1650 = vpack.c.b16 %v1626, %v1624
      %v1651 = vpack.c.b16 %v1627, %v1625
      %v1652 = vpack.c.b16 %v1630, %v1628
      %v1653 = vpack.c.b16 %v1631, %v1629
      %v1654 = vpack.c.b16 %v1634, %v1632
      %v1655 = vpack.c.b16 %v1635, %v1633
      %v1656 = vpack.c.b16 %v1638, %v1636
      %v1657 = vpack.c.b16 %v1639, %v1637
      %v1658 = vpack.c.b16 %v1642, %v1640
      %v1659 = vpack.c.b16 %v1643, %v1641
      %1676 = vmatprep.subr.bf16.mxu0 %v1645
      %1677 = vmatpush1.bf16.msra.mxu0 %v1644
      %1678 = vmatprep.subr.bf16.mxu0 %v1647
      %1679 = vmatpush1.bf16.msra.mxu0 %v1646
      %1680 = vmatprep.subr.bf16.mxu0 %v1649
      %1681 = vmatpush1.bf16.msra.mxu0 %v1648
      %1682 = vmatprep.subr.bf16.mxu0 %v1651
      %1683 = vmatpush1.bf16.msra.mxu0 %v1650
      %1684 = vmatprep.subr.bf16.mxu0 %v1653
      %1685 = vmatpush1.bf16.msra.mxu0 %v1652
      %1686 = vmatprep.subr.bf16.mxu0 %v1655
      %1687 = vmatpush1.bf16.msra.mxu0 %v1654
      %1688 = vmatprep.subr.bf16.mxu0 %v1657
      %1689 = vmatpush1.bf16.msra.mxu0 %v1656
      %1690 = vmatprep.subr.bf16.mxu0 %v1659
      %1691 = vmatpush1.bf16.msra.mxu0 %v1658
      %1692 = vmatprep.subr.bf16.mxu0 0
      %1693 = vmatpush1.bf16.msra.mxu0 0
      %1694 = vmatprep.subr.bf16.mxu0 0
      %1695 = vmatpush1.bf16.msra.mxu0 0
      %1696 = vmatprep.subr.bf16.mxu0 0
      %1697 = vmatpush1.bf16.msra.mxu0 0
      %1698 = vmatprep.subr.bf16.mxu0 0
      %1699 = vmatpush1.bf16.msra.mxu0 0
      %1700 = vmatprep.subr.bf16.mxu0 0
      %1701 = vmatpush1.bf16.msra.mxu0 0
      %1702 = vmatprep.subr.bf16.mxu0 0
      %1703 = vmatpush1.bf16.msra.mxu0 0
      %1704 = vmatprep.subr.bf16.mxu0 0
      %1705 = vmatpush1.bf16.msra.mxu0 0
      %1706 = vmatprep.subr.bf16.mxu0 0
      %1707 = vmatpush1.bf16.msra.mxu0 0
      %1708 = vmatprep.mubr.bf16.mxu0 0
      %1709 = vmatmul.mubr.bf16.gmra.mrb[0].mxu0 %v1594
      %v1710 = vpop.f32.mrb[0].mxu0
      %v1711 = vadd.f32 0.0, %v1710
      %v1712 = vpop.f32.mrb[0].mxu0
      %v1713 = vadd.f32 0.0, %v1712
      %v1714 = vpop.f32.mrb[0].mxu0
      %v1715 = vadd.f32 0.0, %v1714
      %v1716 = vpop.f32.mrb[0].mxu0
      %v1717 = vadd.f32 0.0, %v1716
      %1718 = vdwg.mxu0
      %v1719 = vadd.f32 %v1546, %v1711
      %v1720 = vadd.f32 %v1547, %v1713
      %v1721 = vadd.f32 %v1548, %v1715
      %v1722 = vadd.f32 %v1549, %v1717
      %v1723 = vld [vmem:[%s1552] sm:$0x7]
      %v1724 = vld [vmem:[%s1552 + $0x4] sm:$0x7]
      %v1725 = vld [vmem:[%s1552 + $0x8] sm:$0x7]
      %v1726 = vld [vmem:[%s1552 + $0xc] sm:$0x7]
      %v1732 = vunpack.c.l.s4 1983009808
      %v1733 = vunpack.c.0.s8 %v1732
      %v1734 = vlaneseq
      %v1735 = vshrl.u32 %v1734, 7
      %v1736 = vsub.s32 %v1733, %v1735
      %v1737 = vrot.slane %v1723, %v1736
      %v1738 = vcombine.high %v1737, %v1737
      %v1740 = vunpack.c.l.s4 1983009808
      %v1741 = vunpack.c.0.s8 %v1740
      %v1742 = vlaneseq
      %v1743 = vshrl.u32 %v1742, 7
      %v1744 = vsub.s32 %v1741, %v1743
      %v1745 = vrot.slane %v1724, %v1744
      %v1746 = vcombine.high %v1745, %v1745
      %v1748 = vunpack.c.l.s4 1983009808
      %v1749 = vunpack.c.0.s8 %v1748
      %v1750 = vlaneseq
      %v1751 = vshrl.u32 %v1750, 7
      %v1752 = vsub.s32 %v1749, %v1751
      %v1753 = vrot.slane %v1725, %v1752
      %v1754 = vcombine.high %v1753, %v1753
      %v1756 = vunpack.c.l.s4 1983009808
      %v1757 = vunpack.c.0.s8 %v1756
      %v1758 = vlaneseq
      %v1759 = vshrl.u32 %v1758, 7
      %v1760 = vsub.s32 %v1757, %v1759
      %v1761 = vrot.slane %v1726, %v1760
      %v1762 = vcombine.high %v1761, %v1761
      %v1764 = vshrl.u32 %v1737, 16
      %v1766 = vrot.slane %v1764, 6
      %v1767 = vshll.u32 %v1737, 16
      %v1769 = vrot.slane %v1767, 7
      %v1770 = vor.u32 %v1766, %v1769
      %v1771 = vrot.slane %v1770, 2
      %v1773 = vshll.u32 %v1738, 16
      %v1775 = vrot.slane %v1773, 7
      %v1776 = vsel %vm316, %v1771, %v1775
      %v1778 = vshrl.u32 %v1745, 16
      %v1780 = vrot.slane %v1778, 6
      %v1781 = vshll.u32 %v1745, 16
      %v1783 = vrot.slane %v1781, 7
      %v1784 = vor.u32 %v1780, %v1783
      %v1785 = vrot.slane %v1784, 2
      %v1787 = vshll.u32 %v1746, 16
      %v1789 = vrot.slane %v1787, 7
      %v1790 = vsel %vm316, %v1785, %v1789
      %v1792 = vshrl.u32 %v1753, 16
      %v1794 = vrot.slane %v1792, 6
      %v1795 = vshll.u32 %v1753, 16
      %v1797 = vrot.slane %v1795, 7
      %v1798 = vor.u32 %v1794, %v1797
      %v1799 = vrot.slane %v1798, 2
      %v1801 = vshll.u32 %v1754, 16
      %v1803 = vrot.slane %v1801, 7
      %v1804 = vsel %vm316, %v1799, %v1803
      %v1806 = vshrl.u32 %v1761, 16
      %v1808 = vrot.slane %v1806, 6
      %v1809 = vshll.u32 %v1761, 16
      %v1811 = vrot.slane %v1809, 7
      %v1812 = vor.u32 %v1808, %v1811
      %v1813 = vrot.slane %v1812, 2
      %v1815 = vshll.u32 %v1762, 16
      %v1817 = vrot.slane %v1815, 7
      %v1818 = vsel %vm316, %v1813, %v1817
      %s1819 = scalar_lea.vmem %s1, 896
      %v1820 = vld [vmem:[%s1819] sm:$0xff]
      %v1821 = vld [vmem:[%s1819 + $0x8] sm:$0xff]
      %v1822 = vld [vmem:[%s1819 + $0x10] sm:$0xff]
      %v1823 = vld [vmem:[%s1819 + $0x18] sm:$0xff]
      %v1824 = vld [vmem:[%s1819 + $0x20] sm:$0xff]
      %v1825 = vld [vmem:[%s1819 + $0x28] sm:$0xff]
      %v1826 = vld [vmem:[%s1819 + $0x30] sm:$0xff]
      %v1827 = vld [vmem:[%s1819 + $0x38] sm:$0xff]
      %v1828 = vld [vmem:[%s1819 + $0x40] sm:$0xff]
      %v1829 = vld [vmem:[%s1819 + $0x48] sm:$0xff]
      %v1830 = vld [vmem:[%s1819 + $0x50] sm:$0xff]
      %v1831 = vld [vmem:[%s1819 + $0x58] sm:$0xff]
      %v1832 = vld [vmem:[%s1819 + $0x60] sm:$0xff]
      %v1833 = vld [vmem:[%s1819 + $0x68] sm:$0xff]
      %v1834 = vld [vmem:[%s1819 + $0x70] sm:$0xff]
      %v1835 = vld [vmem:[%s1819 + $0x78] sm:$0xff]
      %v1836 = vcombine.low %v1776, %v1790
      %v1837 = vcombine.low %v1804, %v1818
      %v1839 = vunpack.c.l.s4 1983009808
      %v1840 = vunpack.c.0.s8 %v1839
      %v1841 = vlaneseq
      %v1842 = vshrl.u32 %v1841, 7
      %v1843 = vsub.s32 %v1840, %v1842
      %v1844 = vrot.slane %v1836, %v1843
      %v1846 = vunpack.c.l.s4 1983009808
      %v1847 = vunpack.c.0.s8 %v1846
      %v1848 = vlaneseq
      %v1849 = vshrl.u32 %v1848, 7
      %v1850 = vsub.s32 %v1847, %v1849
      %v1851 = vrot.slane %v1837, %v1850
      %v1852 = vcombine.low %v1844, %v1851
      %v1870 = vunpack.c.l.b16 %v1820
      %v1871 = vunpack.c.h.b16 %v1820
      %v1872 = vunpack.c.l.b16 %v1821
      %v1873 = vunpack.c.h.b16 %v1821
      %v1874 = vunpack.c.l.b16 %v1822
      %v1875 = vunpack.c.h.b16 %v1822
      %v1876 = vunpack.c.l.b16 %v1823
      %v1877 = vunpack.c.h.b16 %v1823
      %v1878 = vunpack.c.l.b16 %v1824
      %v1879 = vunpack.c.h.b16 %v1824
      %v1880 = vunpack.c.l.b16 %v1825
      %v1881 = vunpack.c.h.b16 %v1825
      %v1882 = vunpack.c.l.b16 %v1826
      %v1883 = vunpack.c.h.b16 %v1826
      %v1884 = vunpack.c.l.b16 %v1827
      %v1885 = vunpack.c.h.b16 %v1827
      %v1886 = vunpack.c.l.b16 %v1828
      %v1887 = vunpack.c.h.b16 %v1828
      %v1888 = vunpack.c.l.b16 %v1829
      %v1889 = vunpack.c.h.b16 %v1829
      %v1890 = vunpack.c.l.b16 %v1830
      %v1891 = vunpack.c.h.b16 %v1830
      %v1892 = vunpack.c.l.b16 %v1831
      %v1893 = vunpack.c.h.b16 %v1831
      %v1894 = vunpack.c.l.b16 %v1832
      %v1895 = vunpack.c.h.b16 %v1832
      %v1896 = vunpack.c.l.b16 %v1833
      %v1897 = vunpack.c.h.b16 %v1833
      %v1898 = vunpack.c.l.b16 %v1834
      %v1899 = vunpack.c.h.b16 %v1834
      %v1900 = vunpack.c.l.b16 %v1835
      %v1901 = vunpack.c.h.b16 %v1835
      %v1902 = vpack.c.b16 %v1872, %v1870
      %v1903 = vpack.c.b16 %v1873, %v1871
      %v1904 = vpack.c.b16 %v1876, %v1874
      %v1905 = vpack.c.b16 %v1877, %v1875
      %v1906 = vpack.c.b16 %v1880, %v1878
      %v1907 = vpack.c.b16 %v1881, %v1879
      %v1908 = vpack.c.b16 %v1884, %v1882
      %v1909 = vpack.c.b16 %v1885, %v1883
      %v1910 = vpack.c.b16 %v1888, %v1886
      %v1911 = vpack.c.b16 %v1889, %v1887
      %v1912 = vpack.c.b16 %v1892, %v1890
      %v1913 = vpack.c.b16 %v1893, %v1891
      %v1914 = vpack.c.b16 %v1896, %v1894
      %v1915 = vpack.c.b16 %v1897, %v1895
      %v1916 = vpack.c.b16 %v1900, %v1898
      %v1917 = vpack.c.b16 %v1901, %v1899
      %1934 = vmatprep.subr.bf16.mxu0 %v1903
      %1935 = vmatpush1.bf16.msra.mxu0 %v1902
      %1936 = vmatprep.subr.bf16.mxu0 %v1905
      %1937 = vmatpush1.bf16.msra.mxu0 %v1904
      %1938 = vmatprep.subr.bf16.mxu0 %v1907
      %1939 = vmatpush1.bf16.msra.mxu0 %v1906
      %1940 = vmatprep.subr.bf16.mxu0 %v1909
      %1941 = vmatpush1.bf16.msra.mxu0 %v1908
      %1942 = vmatprep.subr.bf16.mxu0 %v1911
      %1943 = vmatpush1.bf16.msra.mxu0 %v1910
      %1944 = vmatprep.subr.bf16.mxu0 %v1913
      %1945 = vmatpush1.bf16.msra.mxu0 %v1912
      %1946 = vmatprep.subr.bf16.mxu0 %v1915
      %1947 = vmatpush1.bf16.msra.mxu0 %v1914
      %1948 = vmatprep.subr.bf16.mxu0 %v1917
      %1949 = vmatpush1.bf16.msra.mxu0 %v1916
      %1950 = vmatprep.subr.bf16.mxu0 0
      %1951 = vmatpush1.bf16.msra.mxu0 0
      %1952 = vmatprep.subr.bf16.mxu0 0
      %1953 = vmatpush1.bf16.msra.mxu0 0
      %1954 = vmatprep.subr.bf16.mxu0 0
      %1955 = vmatpush1.bf16.msra.mxu0 0
      %1956 = vmatprep.subr.bf16.mxu0 0
      %1957 = vmatpush1.bf16.msra.mxu0 0
      %1958 = vmatprep.subr.bf16.mxu0 0
      %1959 = vmatpush1.bf16.msra.mxu0 0
      %1960 = vmatprep.subr.bf16.mxu0 0
      %1961 = vmatpush1.bf16.msra.mxu0 0
      %1962 = vmatprep.subr.bf16.mxu0 0
      %1963 = vmatpush1.bf16.msra.mxu0 0
      %1964 = vmatprep.subr.bf16.mxu0 0
      %1965 = vmatpush1.bf16.msra.mxu0 0
      %1966 = vmatprep.mubr.bf16.mxu0 0
      %1967 = vmatmul.mubr.bf16.gmra.mrb[0].mxu0 %v1852
      %v1968 = vpop.f32.mrb[0].mxu0
      %v1969 = vadd.f32 0.0, %v1968
      %v1970 = vpop.f32.mrb[0].mxu0
      %v1971 = vadd.f32 0.0, %v1970
      %v1972 = vpop.f32.mrb[0].mxu0
      %v1973 = vadd.f32 0.0, %v1972
      %v1974 = vpop.f32.mrb[0].mxu0
      %v1975 = vadd.f32 0.0, %v1974
      %1976 = vdwg.mxu0
      %v1977 = vadd.f32 %v1719, %v1969
      %v1978 = vadd.f32 %v1720, %v1971
      %v1979 = vadd.f32 %v1721, %v1973
      %v1980 = vadd.f32 %v1722, %v1975
      %v1981 = vld [vmem:[%s1552] sm:$0x6]
      %v1982 = vld [vmem:[%s1552 + $0x4] sm:$0x6]
      %v1983 = vld [vmem:[%s1552 + $0x8] sm:$0x6]
      %v1984 = vld [vmem:[%s1552 + $0xc] sm:$0x6]
      %v1990 = vunpack.c.l.s4 1983009808
      %v1991 = vunpack.c.0.s8 %v1990
      %v1992 = vlaneseq
      %v1993 = vshrl.u32 %v1992, 7
      %v1994 = vsub.s32 %v1991, %v1993
      %v1995 = vrot.slane %v1981, %v1994
      %v1996 = vcombine.high %v1995, %v1995
      %v1998 = vunpack.c.l.s4 1983009808
      %v1999 = vunpack.c.0.s8 %v1998
      %v2000 = vlaneseq
      %v2001 = vshrl.u32 %v2000, 7
      %v2002 = vsub.s32 %v1999, %v2001
      %v2003 = vrot.slane %v1982, %v2002
      %v2004 = vcombine.high %v2003, %v2003
      %v2006 = vunpack.c.l.s4 1983009808
      %v2007 = vunpack.c.0.s8 %v2006
      %v2008 = vlaneseq
      %v2009 = vshrl.u32 %v2008, 7
      %v2010 = vsub.s32 %v2007, %v2009
      %v2011 = vrot.slane %v1983, %v2010
      %v2012 = vcombine.high %v2011, %v2011
      %v2014 = vunpack.c.l.s4 1983009808
      %v2015 = vunpack.c.0.s8 %v2014
      %v2016 = vlaneseq
      %v2017 = vshrl.u32 %v2016, 7
      %v2018 = vsub.s32 %v2015, %v2017
      %v2019 = vrot.slane %v1984, %v2018
      %v2020 = vcombine.high %v2019, %v2019
      %v2021 = vrot.slane %v1995, 7
      %v2022 = vrot.slane %v2021, 2
      %v2023 = vrot.slane %v1996, 7
      %v2024 = vsel %vm722, %v2022, %v2023
      %v2025 = vrot.slane %v2003, 7
      %v2026 = vrot.slane %v2025, 2
      %v2027 = vrot.slane %v2004, 7
      %v2028 = vsel %vm722, %v2026, %v2027
      %v2029 = vrot.slane %v2011, 7
      %v2030 = vrot.slane %v2029, 2
      %v2031 = vrot.slane %v2012, 7
      %v2032 = vsel %vm722, %v2030, %v2031
      %v2033 = vrot.slane %v2019, 7
      %v2034 = vrot.slane %v2033, 2
      %v2035 = vrot.slane %v2020, 7
      %v2036 = vsel %vm722, %v2034, %v2035
      %s2037 = scalar_lea.vmem %s1, 1024
      %v2038 = vld [vmem:[%s2037] sm:$0xff]
      %v2039 = vld [vmem:[%s2037 + $0x8] sm:$0xff]
      %v2040 = vld [vmem:[%s2037 + $0x10] sm:$0xff]
      %v2041 = vld [vmem:[%s2037 + $0x18] sm:$0xff]
      %v2042 = vld [vmem:[%s2037 + $0x20] sm:$0xff]
      %v2043 = vld [vmem:[%s2037 + $0x28] sm:$0xff]
      %v2044 = vld [vmem:[%s2037 + $0x30] sm:$0xff]
      %v2045 = vld [vmem:[%s2037 + $0x38] sm:$0xff]
      %v2046 = vld [vmem:[%s2037 + $0x40] sm:$0xff]
      %v2047 = vld [vmem:[%s2037 + $0x48] sm:$0xff]
      %v2048 = vld [vmem:[%s2037 + $0x50] sm:$0xff]
      %v2049 = vld [vmem:[%s2037 + $0x58] sm:$0xff]
      %v2050 = vld [vmem:[%s2037 + $0x60] sm:$0xff]
      %v2051 = vld [vmem:[%s2037 + $0x68] sm:$0xff]
      %v2052 = vld [vmem:[%s2037 + $0x70] sm:$0xff]
      %v2053 = vld [vmem:[%s2037 + $0x78] sm:$0xff]
      %v2054 = vcombine.low %v2024, %v2028
      %v2055 = vcombine.low %v2032, %v2036
      %v2057 = vunpack.c.l.s4 1983009808
      %v2058 = vunpack.c.0.s8 %v2057
      %v2059 = vlaneseq
      %v2060 = vshrl.u32 %v2059, 7
      %v2061 = vsub.s32 %v2058, %v2060
      %v2062 = vrot.slane %v2054, %v2061
      %v2064 = vunpack.c.l.s4 1983009808
      %v2065 = vunpack.c.0.s8 %v2064
      %v2066 = vlaneseq
      %v2067 = vshrl.u32 %v2066, 7
      %v2068 = vsub.s32 %v2065, %v2067
      %v2069 = vrot.slane %v2055, %v2068
      %v2070 = vcombine.low %v2062, %v2069
      %v2088 = vunpack.c.l.b16 %v2038
      %v2089 = vunpack.c.h.b16 %v2038
      %v2090 = vunpack.c.l.b16 %v2039
      %v2091 = vunpack.c.h.b16 %v2039
      %v2092 = vunpack.c.l.b16 %v2040
      %v2093 = vunpack.c.h.b16 %v2040
      %v2094 = vunpack.c.l.b16 %v2041
      %v2095 = vunpack.c.h.b16 %v2041
      %v2096 = vunpack.c.l.b16 %v2042
      %v2097 = vunpack.c.h.b16 %v2042
      %v2098 = vunpack.c.l.b16 %v2043
      %v2099 = vunpack.c.h.b16 %v2043
      %v2100 = vunpack.c.l.b16 %v2044
      %v2101 = vunpack.c.h.b16 %v2044
      %v2102 = vunpack.c.l.b16 %v2045
      %v2103 = vunpack.c.h.b16 %v2045
      %v2104 = vunpack.c.l.b16 %v2046
      %v2105 = vunpack.c.h.b16 %v2046
      %v2106 = vunpack.c.l.b16 %v2047
      %v2107 = vunpack.c.h.b16 %v2047
      %v2108 = vunpack.c.l.b16 %v2048
      %v2109 = vunpack.c.h.b16 %v2048
      %v2110 = vunpack.c.l.b16 %v2049
      %v2111 = vunpack.c.h.b16 %v2049
      %v2112 = vunpack.c.l.b16 %v2050
      %v2113 = vunpack.c.h.b16 %v2050
      %v2114 = vunpack.c.l.b16 %v2051
      %v2115 = vunpack.c.h.b16 %v2051
      %v2116 = vunpack.c.l.b16 %v2052
      %v2117 = vunpack.c.h.b16 %v2052
      %v2118 = vunpack.c.l.b16 %v2053
      %v2119 = vunpack.c.h.b16 %v2053
      %v2120 = vpack.c.b16 %v2090, %v2088
      %v2121 = vpack.c.b16 %v2091, %v2089
      %v2122 = vpack.c.b16 %v2094, %v2092
      %v2123 = vpack.c.b16 %v2095, %v2093
      %v2124 = vpack.c.b16 %v2098, %v2096
      %v2125 = vpack.c.b16 %v2099, %v2097
      %v2126 = vpack.c.b16 %v2102, %v2100
      %v2127 = vpack.c.b16 %v2103, %v2101
      %v2128 = vpack.c.b16 %v2106, %v2104
      %v2129 = vpack.c.b16 %v2107, %v2105
      %v2130 = vpack.c.b16 %v2110, %v2108
      %v2131 = vpack.c.b16 %v2111, %v2109
      %v2132 = vpack.c.b16 %v2114, %v2112
      %v2133 = vpack.c.b16 %v2115, %v2113
      %v2134 = vpack.c.b16 %v2118, %v2116
      %v2135 = vpack.c.b16 %v2119, %v2117
      %2152 = vmatprep.subr.bf16.mxu0 %v2121
      %2153 = vmatpush1.bf16.msra.mxu0 %v2120
      %2154 = vmatprep.subr.bf16.mxu0 %v2123
      %2155 = vmatpush1.bf16.msra.mxu0 %v2122
      %2156 = vmatprep.subr.bf16.mxu0 %v2125
      %2157 = vmatpush1.bf16.msra.mxu0 %v2124
      %2158 = vmatprep.subr.bf16.mxu0 %v2127
      %2159 = vmatpush1.bf16.msra.mxu0 %v2126
      %2160 = vmatprep.subr.bf16.mxu0 %v2129
      %2161 = vmatpush1.bf16.msra.mxu0 %v2128
      %2162 = vmatprep.subr.bf16.mxu0 %v2131
      %2163 = vmatpush1.bf16.msra.mxu0 %v2130
      %2164 = vmatprep.subr.bf16.mxu0 %v2133
      %2165 = vmatpush1.bf16.msra.mxu0 %v2132
      %2166 = vmatprep.subr.bf16.mxu0 %v2135
      %2167 = vmatpush1.bf16.msra.mxu0 %v2134
      %2168 = vmatprep.subr.bf16.mxu0 0
      %2169 = vmatpush1.bf16.msra.mxu0 0
      %2170 = vmatprep.subr.bf16.mxu0 0
      %2171 = vmatpush1.bf16.msra.mxu0 0
      %2172 = vmatprep.subr.bf16.mxu0 0
      %2173 = vmatpush1.bf16.msra.mxu0 0
      %2174 = vmatprep.subr.bf16.mxu0 0
      %2175 = vmatpush1.bf16.msra.mxu0 0
      %2176 = vmatprep.subr.bf16.mxu0 0
      %2177 = vmatpush1.bf16.msra.mxu0 0
      %2178 = vmatprep.subr.bf16.mxu0 0
      %2179 = vmatpush1.bf16.msra.mxu0 0
      %2180 = vmatprep.subr.bf16.mxu0 0
      %2181 = vmatpush1.bf16.msra.mxu0 0
      %2182 = vmatprep.subr.bf16.mxu0 0
      %2183 = vmatpush1.bf16.msra.mxu0 0
      %2184 = vmatprep.mubr.bf16.mxu0 0
      %2185 = vmatmul.mubr.bf16.gmra.mrb[0].mxu0 %v2070
      %v2186 = vpop.f32.mrb[0].mxu0
      %v2187 = vadd.f32 0.0, %v2186
      %v2188 = vpop.f32.mrb[0].mxu0
      %v2189 = vadd.f32 0.0, %v2188
      %v2190 = vpop.f32.mrb[0].mxu0
      %v2191 = vadd.f32 0.0, %v2190
      %v2192 = vpop.f32.mrb[0].mxu0
      %v2193 = vadd.f32 0.0, %v2192
      %2194 = vdwg.mxu0
      %v2195 = vadd.f32 %v1977, %v2187
      %v2196 = vadd.f32 %v1978, %v2189
      %v2197 = vadd.f32 %v1979, %v2191
      %v2198 = vadd.f32 %v1980, %v2193
      %v2199 = vld [vmem:[%s2] sm:$0x3]
      %v2201 = vlaneseq
      %v2202 = vshrl.u32 %v2201, 7
      %v2203 = vsub.s32 0, %v2202
      %v2204 = vrot.slane %v2199, %v2203
      %v2205 = vlaneseq
      %v2206 = vshrl.u32 %v2205, 7
      %v2207 = vsub.s32 1, %v2206
      %v2208 = vrot.slane %v2199, %v2207
      %v2211 = vadd.f32 %v2195, %v2204
      %v2212 = vadd.f32 %v2196, %v2208
      %v2213 = vadd.f32 %v2197, %v2204
      %v2214 = vadd.f32 %v2198, %v2208
      %v2215 = vadd.f32 %v2211, %v2213
      %v2216 = vrot.slane %v2215, 4
      %v2217 = vadd.f32 %v2215, %v2216
      %v2218 = vrot.slane %v2217, 2
      %v2219 = vadd.f32 %v2217, %v2218
      %v2220 = vrot.slane %v2219, 1
      %v2221 = vadd.f32 %v2219, %v2220
      %v2222 = vadd.f32 %v2212, %v2214
      %v2223 = vrot.slane %v2222, 4
      %v2224 = vadd.f32 %v2222, %v2223
      %v2225 = vrot.slane %v2224, 2
      %v2226 = vadd.f32 %v2224, %v2225
      %v2227 = vrot.slane %v2226, 1
      %v2228 = vadd.f32 %v2226, %v2227
      %v2231 = vcombine.low %v2221, %v2228
      %v2233 = vunpack.c.l.s4 1966171168
      %v2234 = vunpack.c.0.s8 %v2233
      %v2235 = vlaneseq
      %v2236 = vshrl.u32 %v2235, 7
      %v2237 = vsub.s32 %v2234, %v2236
      %v2238 = vrot.slane %v2231, %v2237
      %v2240 = vunpack.c.l.s4 1966171168
      %v2241 = vunpack.c.0.s8 %v2240
      %v2242 = vlaneseq
      %v2243 = vshrl.u32 %v2242, 7
      %v2244 = vsub.s32 %v2241, %v2243
      %v2245 = vrot.slane %v2238, %v2244
      %v2247 = vlaneseq
      %vm2248 = vcmp.ge.s32.totalorder %v2247, 0
      %vm2249 = vcmp.lt.s32.totalorder %v2247, 256
      %vm2250 = vmand %vm2248, %vm2249
      %2251 = vst.msk [vmem:[%s245] ss:$2 sm:$0x3] %vm2250, %v2245
      %v2252 = vmul.f32 %v2211, %v2211
      %v2253 = vmul.f32 %v2212, %v2212
      %v2254 = vmul.f32 %v2213, %v2213
      %v2255 = vmul.f32 %v2214, %v2214
      %v2256 = vadd.f32 %v2252, %v2254
      %v2257 = vrot.slane %v2256, 4
      %v2258 = vadd.f32 %v2256, %v2257
      %v2259 = vrot.slane %v2258, 2
      %v2260 = vadd.f32 %v2258, %v2259
      %v2261 = vrot.slane %v2260, 1
      %v2262 = vadd.f32 %v2260, %v2261
      %v2263 = vadd.f32 %v2253, %v2255
      %v2264 = vrot.slane %v2263, 4
      %v2265 = vadd.f32 %v2263, %v2264
      %v2266 = vrot.slane %v2265, 2
      %v2267 = vadd.f32 %v2265, %v2266
      %v2268 = vrot.slane %v2267, 1
      %v2269 = vadd.f32 %v2267, %v2268
      %v2272 = vcombine.low %v2262, %v2269
      %v2274 = vunpack.c.l.s4 1966171168
      %v2275 = vunpack.c.0.s8 %v2274
      %v2276 = vlaneseq
      %v2277 = vshrl.u32 %v2276, 7
      %v2278 = vsub.s32 %v2275, %v2277
      %v2279 = vrot.slane %v2272, %v2278
      %v2281 = vunpack.c.l.s4 1966171168
      %v2282 = vunpack.c.0.s8 %v2281
      %v2283 = vlaneseq
      %v2284 = vshrl.u32 %v2283, 7
      %v2285 = vsub.s32 %v2282, %v2284
      %v2286 = vrot.slane %v2279, %v2285
      %s2288 = scalar_lea.vmem %s245, 1
      %2289 = vst.msk [vmem:[%s2288] ss:$2 sm:$0x3] %vm2250, %v2286
      %v2290 = vpack.c.bf16 %v2213, %v2211
      %v2291 = vpack.c.bf16 %v2214, %v2212
      %v2294 = vunpack.c.l.b16 %v2290
      %v2295 = vunpack.c.l.b16 %v2291
      %v2296 = vunpack.c.h.b16 %v2290
      %v2297 = vunpack.c.h.b16 %v2291
      %v2298 = vpack.c.b16 %v2295, %v2294
      %v2299 = vpack.c.b16 %v2297, %v2296
      %2302 = vst [vmem:[%s235] sm:$0xff] %v2298
      %2303 = vst [vmem:[%s235 + $0x8] sm:$0xff] %v2299
      %s2304 = smul.u32 2, %s21
      %p2305 = scmp.lt.s32.totalorder %s20, 1
      %s2306 = scalar_select %p2305, %s20, 1
      %p2307 = scmp.lt.s32.totalorder %s2304, 1
      %s2308 = scalar_select %p2307, %s2304, 1
      %s2309 = smul.addr %s2308, 2
      %s2310 = smul.addr %s2306, 4
      %s2311 = sadd.s32 %s2309, %s2310
      %s2312 = smul.addr %s2311, 4
      %s2313 = scalar_lea.vmem %s3, %s2312
      %p2314 = scmp.lt.s32.totalorder %s20, 1
      %s2315 = scalar_select %p2314, %s20, 1
      %p2316 = scmp.lt.s32.totalorder %s21, 0
      %s2317 = scalar_select %p2316, %s21, 0
      %s2318 = smul.addr %s2317, 2
      %s2319 = smul.addr %s2315, 2
      %s2320 = sadd.s32 %s2318, %s2319
      %s2321 = smul.addr %s2320, 2
      %s2322 = scalar_lea.vmem %s4, %s2321
      // Predicated region
      $region33: #{generator_forward.9} parent=31 // pred_check
        %p2323 = pneg %p116
      $region34: #{generator_forward.9} parent=31 // pred_check_branch
        %2325 = sbr.rel (%p2323) target = $region36
      $region35: #{generator_forward.9} parent=31 // pred_region
        %s2326 = smul.u32 2, %s21
      $region36: #{generator_forward.9} parent=31 // pred_fallthru
        _
      // Predicated region
      $region37: #{generator_forward.9} parent=31 // pred_check
        %p2327 = pneg %p144
      $region38: #{generator_forward.9} parent=31 // pred_check_branch
        %2329 = sbr.rel (%p2327) target = $region40
      $region39: #{generator_forward.9} parent=31 // pred_region
        _
      $region40: #{generator_forward.9} parent=31 // pred_fallthru
        _
    $region32: #{generator_forward.9} parent=5 // pred_fallthru
      _
    %p2330 = scmp.le.s32.totalorder 2, %s11
    // Predicated region
    $region41: #{generator_forward.9} parent=5 // pred_check
      %p2331 = pneg %p2330
    $region42: #{generator_forward.9} parent=5 // pred_check_branch
      %2333 = sbr.rel (%p2331) target = $region44
    $region43: #{generator_forward.9} parent=5 // pred_region
      %s2334 = ssub.s32 %s11, 2
      // Predicated region
      $region45: #{generator_forward.9} parent=43 // pred_check
        %p2335 = pneg %p122
      $region46: #{generator_forward.9} parent=43 // pred_check_branch
        %2337 = sbr.rel (%p2335) target = $region48
      $region47: #{generator_forward.9} parent=43 // pred_region
        %s2338 = smul.u32 2, %s23
        %p2339 = scmp.lt.s32.totalorder %s22, 1
        %s2340 = scalar_select %p2339, %s22, 1
        %p2341 = scmp.lt.s32.totalorder %s2338, 1
        %s2342 = scalar_select %p2341, %s2338, 1
        %s2343 = smul.addr %s2342, 2
        %s2344 = smul.addr %s2340, 4
        %s2345 = sadd.s32 %s2343, %s2344
        %s2346 = smul.addr %s2345, 4
        %s2347 = scalar_lea.vmem %s3, %s2346
      $region48: #{generator_forward.9} parent=43 // pred_fallthru
        _
      // Predicated region
      $region49: #{generator_forward.9} parent=43 // pred_check
        %p2348 = pneg %p150
      $region50: #{generator_forward.9} parent=43 // pred_check_branch
        %2350 = sbr.rel (%p2348) target = $region52
      $region51: #{generator_forward.9} parent=43 // pred_region
        %p2351 = scmp.lt.s32.totalorder %s22, 1
        %s2352 = scalar_select %p2351, %s22, 1
        %p2353 = scmp.lt.s32.totalorder %s23, 0
        %s2354 = scalar_select %p2353, %s23, 0
        %s2355 = smul.addr %s2354, 2
        %s2356 = smul.addr %s2352, 2
        %s2357 = sadd.s32 %s2355, %s2356
        %s2358 = smul.addr %s2357, 2
        %s2359 = scalar_lea.vmem %s4, %s2358
      $region52: #{generator_forward.9} parent=43 // pred_fallthru
        _
    $region44: #{generator_forward.9} parent=5 // pred_fallthru
      _
  $region6: #{generator_forward.9} parent=0 // loop_footer
    %s15 = sadd.s32 1, %s11
  $region7: #{generator_forward.9} parent=0 // loop_footer_branch
    %10 = sbr.rel target = $region3
  $region8: #{generator_forward.9} parent=0 // loop_exit
    _

// kernel: tile.42
$region0: #{tile.42}
  #allocation0 [shape = 's32[1]{0}', space=sflag, size = 0x4, scoped, tag = 'scoped memory for tile.42']
  %s0 = inlined_call_operand.vmem [shape: f32[3], index: 0, kind: input, shape index: {}]
  %s1 = inlined_call_operand.vmem [shape: f32[4,3], index: 1, kind: output, shape index: {}]
  // Predicated region
  $region2: #{tile.42} parent=0 // pred_check
    _
  $region3: #{tile.42} parent=0 // pred_check_branch
    %3 = sbr.rel (0) target = $region5
  $region4: #{tile.42} parent=0 // pred_region
    _
  $region5: #{tile.42} parent=0 // pred_fallthru
    _
  %v4 = vld [vmem:[%s0] ss:$0 sm:$0xff]
  %5 = vst [vmem:[%s1] sm:$0xf] %v4

// kernel: tile.43
$region0: #{tile.43}
  %s0 = inlined_call_operand.vmem [shape: f32[4,3], index: 0, kind: input, shape index: {}]
  %s1 = inlined_call_operand.vmem [shape: f32[1,12], index: 1, kind: output, shape index: {}]
  $region1: #{tile.43} parent=0
    #allocation0 [shape = 'u8[4096]{0}', space=vmem, size = 0x1000, scoped, tag = 'scoped mem for output reshape']
    #allocation1 [shape = 'u8[4096]{0}', space=vmem, size = 0x1000, scoped, tag = 'scoped mem for input reshape']
    %s3 = sshllo.u32 0, 4
    %v4 = vld [vmem:[%s0] sm:%s3]
    %5 = vst [vmem:[#allocation1] sm:%s3] %v4
    %v6 = vld [vmem:[#allocation1] sm:$0x1]
    %vm7 = vcmask 23552
    %8 = vst.msk [vmem:[#allocation0] sm:$0x1] %vm7, %v6
    %s9 = scalar_lea.vmem [#allocation1], 3
    %v10 = vld [vmem:[%s9] sm:$0x1]
    %11 = vrot.lane.b32.xlu0 %v10, 9
    %v12 = vpop.permute.xlu0 %11
    %vm13 = vcmask 97352
    %14 = vst.msk [vmem:[#allocation0] sm:$0x1] %vm13, %v12
    %s15 = scalar_lea.vmem [#allocation1], 2
    %v16 = vld [vmem:[%s15] sm:$0x1]
    %17 = vrot.lane.b32.xlu0 %v16, 6
    %v18 = vpop.permute.xlu0 %17
    %vm19 = vcmask 72752
    %20 = vst.msk [vmem:[#allocation0] sm:$0x1] %vm19, %v18
    %s21 = scalar_lea.vmem [#allocation1], 1
    %v22 = vld [vmem:[%s21] sm:$0x1]
    %23 = vrot.lane.b32.xlu0 %v22, 3
    %v24 = vpop.permute.xlu0 %23
    %vm25 = vcmask 48152
    %26 = vst.msk [vmem:[#allocation0] sm:$0x1] %vm25, %v24
    %s28 = sshllo.u32 0, 1
    %v30 = vld [vmem:[#allocation0] sm:%s28]
    %s31 = sshllo.u32 0, 1
    %32 = vst [vmem:[%s1] sm:%s31] %v30

// kernel: generator_forward.11
$region0: #{generator_forward.11}
  #allocation0 [shape = 'u32[]', space=smem, size = 0x4, offset = 0x4, fixed_abs, tag = 'smem constant byte address 0x4 - core index']
  #allocation1 [shape = 'u32[144,128]{1,0:T(1,128)}', space=vmem, size = 0x12000, scoped, tag = 'internal scratch']
  %s0 = inlined_call_operand.vmem [shape: bf16[2,10,10,64], index: 0, kind: input, shape index: {}]
  %s1 = inlined_call_operand.vmem [shape: bf16[9,64,12], index: 1, kind: input, shape index: {}]
  %s2 = inlined_call_operand.vmem [shape: f32[1,12], index: 2, kind: input, shape index: {}]
  %s3 = inlined_call_operand.vmem [shape: f32[2,64,12], index: 3, kind: output, shape index: {}]
  %s4 = sld [smem:[#allocation0]]
  $region45: #{generator_forward.11} parent=0
    _
  %s6 = ssub.s32 1, %s4
  %s7 = scalar_select 0, %s6, %s4
  loop: start=0, step=1, limit=4
  $region2: #{generator_forward.11} parent=0 // loop_pre_header
    _
  $region3: #{generator_forward.11} parent=0 // loop_header
    %s9 = sphi 0, %s13
    %p10 = scmp.ge.s32.totalorder %s9, 4
    %s16 = sphi 0, %s28
    %s17 = sphi 0, %s24
    %s18 = sphi 0, %s16
    %s19 = sphi 0, %s17
    %s20 = sphi 0, %s18
    %s21 = sphi 0, %s19
    %s31 = sphi 0, %s33
    %s34 = sphi 0, %s31
    %s35 = sphi 0, %s34
    %s51 = sphi 0, %s35
    %s55 = sphi 0, %s55
    %s57 = sphi 0, %s55
    %s58 = sphi 0, %s57
    %s72 = sphi 0, %s58
    %s76 = sphi 0, %s76
    %s78 = sphi 0, %s76
    %s79 = sphi 0, %s78
    %s93 = sphi 0, %s79
    %s101 = sphi 0, %s103
    %s104 = sphi 0, %s101
    %s105 = sphi 0, %s104
    %s121 = sphi 0, %s105
  $region4: #{generator_forward.11} parent=0 // loop_header_branch
    %12 = sbr.rel (%p10) target = $region8
  $region5: #{generator_forward.11} parent=0 // loop_body
    %s14 = ssub.s32 %s9, 1
    %s15 = ssub.s32 %s9, 2
    %s22 = sadd.s32 1, %s17
    %p23 = scmp.ge.s32.totalorder %s22, 1
    %s24 = scalar_select %p23, 0, %s22
    %s25 = sadd.s32 1, %s16
    %s26 = scalar_select %p23, %s25, %s16
    %p27 = scmp.ge.s32.totalorder %s26, 2
    %s28 = scalar_select %p27, 0, %s26
    %s29 = ssub.s32 %s16, %s28
    %p30 = scmp.eq.s32.totalorder %s29, 0
    %s32 = sadd.s32 %s31, 1
    %s33 = scalar_select %p30, %s31, %s32
    %p36 = pneg %p30
    %p37 = scmp.eq.s32.totalorder %s9, 1
    %p38 = por %p36, %p37
    %p39 = scmp.ne.s32.totalorder %s31, %s34
    %p40 = scmp.eq.s32.totalorder %s9, 0
    %p41 = por %p39, %p40
    %p42 = scmp.ne.s32.totalorder %s31, %s34
    %p43 = scmp.eq.s32.totalorder %s14, 1
    %p44 = por %p42, %p43
    %p45 = scmp.ne.s32.totalorder %s34, %s35
    %p46 = scmp.eq.s32.totalorder %s14, 0
    %p47 = por %p45, %p46
    %p48 = scmp.ne.s32.totalorder %s34, %s35
    %p49 = scmp.eq.s32.totalorder %s15, 1
    %p50 = por %p48, %p49
    %p52 = scmp.ne.s32.totalorder %s35, %s51
    %p53 = scmp.eq.s32.totalorder %s15, 0
    %p54 = por %p52, %p53
    %s56 = sadd.s32 %s55, 1
    %p59 = scmp.eq.s32.totalorder %s9, 1
    %p60 = scmp.ne.s32.totalorder %s55, %s57
    %p61 = scmp.eq.s32.totalorder %s9, 0
    %p62 = por %p60, %p61
    %p63 = scmp.ne.s32.totalorder %s55, %s57
    %p64 = scmp.eq.s32.totalorder %s14, 1
    %p65 = por %p63, %p64
    %p66 = scmp.ne.s32.totalorder %s57, %s58
    %p67 = scmp.eq.s32.totalorder %s14, 0
    %p68 = por %p66, %p67
    %p69 = scmp.ne.s32.totalorder %s57, %s58
    %p70 = scmp.eq.s32.totalorder %s15, 1
    %p71 = por %p69, %p70
    %p73 = scmp.ne.s32.totalorder %s58, %s72
    %p74 = scmp.eq.s32.totalorder %s15, 0
    %p75 = por %p73, %p74
    %s77 = sadd.s32 %s76, 1
    %p80 = scmp.eq.s32.totalorder %s9, 1
    %p81 = scmp.ne.s32.totalorder %s76, %s78
    %p82 = scmp.eq.s32.totalorder %s9, 0
    %p83 = por %p81, %p82
    %p84 = scmp.ne.s32.totalorder %s76, %s78
    %p85 = scmp.eq.s32.totalorder %s14, 1
    %p86 = por %p84, %p85
    %p87 = scmp.ne.s32.totalorder %s78, %s79
    %p88 = scmp.eq.s32.totalorder %s14, 0
    %p89 = por %p87, %p88
    %p90 = scmp.ne.s32.totalorder %s78, %s79
    %p91 = scmp.eq.s32.totalorder %s15, 1
    %p92 = por %p90, %p91
    %p94 = scmp.ne.s32.totalorder %s79, %s93
    %p95 = scmp.eq.s32.totalorder %s15, 0
    %p96 = por %p94, %p95
    %s97 = ssub.s32 %s16, %s28
    %s98 = ssub.s32 %s17, %s24
    %s99 = sor.u32 %s97, %s98
    %p100 = scmp.eq.s32.totalorder %s99, 0
    %s102 = sadd.s32 %s101, 1
    %s103 = scalar_select %p100, %s101, %s102
    %p106 = pneg %p100
    %p107 = scmp.eq.s32.totalorder %s9, 1
    %p108 = por %p106, %p107
    %p109 = scmp.ne.s32.totalorder %s101, %s104
    %p110 = scmp.eq.s32.totalorder %s9, 0
    %p111 = por %p109, %p110
    %p112 = scmp.ne.s32.totalorder %s101, %s104
    %p113 = scmp.eq.s32.totalorder %s14, 1
    %p114 = por %p112, %p113
    %p115 = scmp.ne.s32.totalorder %s104, %s105
    %p116 = scmp.eq.s32.totalorder %s14, 0
    %p117 = por %p115, %p116
    %p118 = scmp.ne.s32.totalorder %s104, %s105
    %p119 = scmp.eq.s32.totalorder %s15, 1
    %p120 = por %p118, %p119
    %p122 = scmp.ne.s32.totalorder %s105, %s121
    %p123 = scmp.eq.s32.totalorder %s15, 0
    %p124 = por %p122, %p123
    %p125 = scmp.le.s32.totalorder 1, %s9
    %p126 = scmp.lt.s32.totalorder %s9, 3
    %p127 = pnand %p125, %p126
    %p128 = pneg %p127
    // Predicated region
    $region9: #{generator_forward.11} parent=5 // pred_check
      _
    $region10: #{generator_forward.11} parent=5 // pred_check_branch
      %130 = sbr.rel (%p127) target = $region12
    $region11: #{generator_forward.11} parent=5 // pred_region
      %s131 = ssub.s32 %s9, 1
      // Predicated region
      $region13: #{generator_forward.11} parent=11 // pred_check
        %p132 = pneg %p68
      $region14: #{generator_forward.11} parent=11 // pred_check_branch
        %134 = sbr.rel (%p132) target = $region16
      $region15: #{generator_forward.11} parent=11 // pred_region
        _
      $region16: #{generator_forward.11} parent=11 // pred_fallthru
        _
      // Predicated region
      $region17: #{generator_forward.11} parent=11 // pred_check
        %p135 = pneg %p89
      $region18: #{generator_forward.11} parent=11 // pred_check_branch
        %137 = sbr.rel (%p135) target = $region20
      $region19: #{generator_forward.11} parent=11 // pred_region
        _
      $region20: #{generator_forward.11} parent=11 // pred_fallthru
        _
    $region12: #{generator_forward.11} parent=5 // pred_fallthru
      _
    %p138 = scmp.lt.s32.totalorder %s9, 2
    // Predicated region
    $region21: #{generator_forward.11} parent=5 // pred_check
      %p139 = pneg %p138
    $region22: #{generator_forward.11} parent=5 // pred_check_branch
      %141 = sbr.rel (%p139) target = $region24
    $region23: #{generator_forward.11} parent=5 // pred_region
      // Predicated region
      $region25: #{generator_forward.11} parent=23 // pred_check
        %p142 = pneg %p41
      $region26: #{generator_forward.11} parent=23 // pred_check_branch
        %144 = sbr.rel (%p142) target = $region28
      $region27: #{generator_forward.11} parent=23 // pred_region
        %p145 = scmp.lt.s32.totalorder %s16, 1
        %s146 = scalar_select %p145, %s16, 1
        %s147 = smul.addr %s146, 20
        %s148 = smul.addr %s147, 4
        %s149 = scalar_lea.vmem %s0, %s148
      $region28: #{generator_forward.11} parent=23 // pred_fallthru
        _
    $region24: #{generator_forward.11} parent=5 // pred_fallthru
      _
    %p150 = scmp.le.s32.totalorder 1, %s9
    %p151 = scmp.lt.s32.totalorder %s9, 3
    %p152 = pnand %p150, %p151
    %p153 = pneg %p152
    // Predicated region
    $region29: #{generator_forward.11} parent=5 // pred_check
      _
    $region30: #{generator_forward.11} parent=5 // pred_check_branch
      %155 = sbr.rel (%p152) target = $region32
    $region31: #{generator_forward.11} parent=5 // pred_region
      %s156 = ssub.s32 %s9, 1
      %p157 = scmp.lt.s32.totalorder %s18, 1
      %s158 = scalar_select %p157, %s18, 1
      %s159 = smul.addr %s158, 20
      %s160 = smul.addr %s159, 4
      %s161 = scalar_lea.vmem %s0, %s160
      %p162 = pneg %p47
      %p163 = pneg %p44
      %p164 = pneg %p68
      %p165 = pneg %p65
      %p166 = pneg %p89
      %p167 = pneg %p86
      %p168 = pneg %p117
      %p169 = pneg %p114
      %s170 = smul.u32 8, %s19
      %p171 = scmp.lt.s32.totalorder %s18, 1
      %s172 = scalar_select %p171, %s18, 1
      %p173 = scmp.lt.s32.totalorder %s170, 7
      %s174 = scalar_select %p173, %s170, 7
      %s175 = smul.addr %s172, 8
      %s176 = sadd.s32 %s174, %s175
      %s177 = smul.addr %s176, 8
      %s178 = scalar_lea.vmem %s3, %s177
      %p179 = scmp.lt.s32.totalorder %s18, 1
      %s180 = scalar_select %p179, %s18, 1
      %s181 = smul.addr %s180, 20
      %s182 = smul.addr %s181, 4
      %s183 = scalar_lea.vmem %s0, %s182
      %s184 = smul.u32 8, %s19
      %p185 = scmp.lt.s32.totalorder %s18, 1
      %s186 = scalar_select %p185, %s18, 1
      %p187 = scmp.lt.s32.totalorder %s184, 7
      %s188 = scalar_select %p187, %s184, 7
      %s189 = smul.addr %s186, 8
      %s190 = sadd.s32 %s188, %s189
      %s191 = smul.addr %s190, 8
      %s192 = scalar_lea.vmem %s3, %s191
      %s193 = smul.u32 8, %s19
      %s195 = smul.u32 %s19, 8
      %s196 = smul.u32 %s195, 2
      %s197 = smul.addr %s196, 4
      %s198 = scalar_lea.vmem %s183, %s197
      %v199 = vld [vmem:[%s198] sm:$0xf]
      %v200 = vld [vmem:[%s198 + $0x8] sm:$0xf]
      %v201 = vld [vmem:[%s198 + $0x10] sm:$0xf]
      %v202 = vld [vmem:[%s198 + $0x18] sm:$0xf]
      %v203 = vld [vmem:[%s198 + $0x20] sm:$0xf]
      %v204 = vld [vmem:[%s198 + $0x28] sm:$0xf]
      %v205 = vld [vmem:[%s198 + $0x30] sm:$0xf]
      %v206 = vld [vmem:[%s198 + $0x38] sm:$0xf]
      %v207 = vld [vmem:[%s1] sm:$0xf]
      %v208 = vld [vmem:[%s1 + $0x4] sm:$0xf]
      %v209 = vld [vmem:[%s1 + $0x8] sm:$0xf]
      %v210 = vld [vmem:[%s1 + $0xc] sm:$0xf]
      %v211 = vld [vmem:[%s1 + $0x10] sm:$0xf]
      %v212 = vld [vmem:[%s1 + $0x14] sm:$0xf]
      %v213 = vld [vmem:[%s1 + $0x18] sm:$0xf]
      %v214 = vld [vmem:[%s1 + $0x1c] sm:$0xf]
      %v215 = vld [vmem:[%s198 + $0x4] sm:$0x1]
      %v216 = vld [vmem:[%s198 + $0xc] sm:$0x1]
      %v217 = vld [vmem:[%s198 + $0x14] sm:$0x1]
      %v218 = vld [vmem:[%s198 + $0x1c] sm:$0x1]
      %v219 = vld [vmem:[%s198 + $0x24] sm:$0x1]
      %v220 = vld [vmem:[%s198 + $0x2c] sm:$0x1]
      %v221 = vld [vmem:[%s198 + $0x34] sm:$0x1]
      %v222 = vld [vmem:[%s198 + $0x3c] sm:$0x1]
      %vm223 = vsmask.f32 3328
      %vm224 = vsmask.f32 7440
      %vm225 = vmor %vm223, %vm224
      %v227 = vshrl.u32 %v199, 16
      %v229 = vrot.slane %v227, 4
      %v230 = vshll.u32 %v199, 16
      %v232 = vrot.slane %v230, 5
      %v233 = vor.u32 %v229, %v232
      %v234 = vrot.slane %v233, 4
      %v236 = vshll.u32 %v215, 16
      %v238 = vrot.slane %v236, 5
      %v239 = vsel %vm225, %v234, %v238
      %v241 = vshrl.u32 %v200, 16
      %v243 = vrot.slane %v241, 4
      %v244 = vshll.u32 %v200, 16
      %v246 = vrot.slane %v244, 5
      %v247 = vor.u32 %v243, %v246
      %v248 = vrot.slane %v247, 4
      %v250 = vshll.u32 %v216, 16
      %v252 = vrot.slane %v250, 5
      %v253 = vsel %vm225, %v248, %v252
      %v255 = vshrl.u32 %v201, 16
      %v257 = vrot.slane %v255, 4
      %v258 = vshll.u32 %v201, 16
      %v260 = vrot.slane %v258, 5
      %v261 = vor.u32 %v257, %v260
      %v262 = vrot.slane %v261, 4
      %v264 = vshll.u32 %v217, 16
      %v266 = vrot.slane %v264, 5
      %v267 = vsel %vm225, %v262, %v266
      %v269 = vshrl.u32 %v202, 16
      %v271 = vrot.slane %v269, 4
      %v272 = vshll.u32 %v202, 16
      %v274 = vrot.slane %v272, 5
      %v275 = vor.u32 %v271, %v274
      %v276 = vrot.slane %v275, 4
      %v278 = vshll.u32 %v218, 16
      %v280 = vrot.slane %v278, 5
      %v281 = vsel %vm225, %v276, %v280
      %v283 = vshrl.u32 %v203, 16
      %v285 = vrot.slane %v283, 4
      %v286 = vshll.u32 %v203, 16
      %v288 = vrot.slane %v286, 5
      %v289 = vor.u32 %v285, %v288
      %v290 = vrot.slane %v289, 4
      %v292 = vshll.u32 %v219, 16
      %v294 = vrot.slane %v292, 5
      %v295 = vsel %vm225, %v290, %v294
      %v297 = vshrl.u32 %v204, 16
      %v299 = vrot.slane %v297, 4
      %v300 = vshll.u32 %v204, 16
      %v302 = vrot.slane %v300, 5
      %v303 = vor.u32 %v299, %v302
      %v304 = vrot.slane %v303, 4
      %v306 = vshll.u32 %v220, 16
      %v308 = vrot.slane %v306, 5
      %v309 = vsel %vm225, %v304, %v308
      %v311 = vshrl.u32 %v205, 16
      %v313 = vrot.slane %v311, 4
      %v314 = vshll.u32 %v205, 16
      %v316 = vrot.slane %v314, 5
      %v317 = vor.u32 %v313, %v316
      %v318 = vrot.slane %v317, 4
      %v320 = vshll.u32 %v221, 16
      %v322 = vrot.slane %v320, 5
      %v323 = vsel %vm225, %v318, %v322
      %v325 = vshrl.u32 %v206, 16
      %v327 = vrot.slane %v325, 4
      %v328 = vshll.u32 %v206, 16
      %v330 = vrot.slane %v328, 5
      %v331 = vor.u32 %v327, %v330
      %v332 = vrot.slane %v331, 4
      %v334 = vshll.u32 %v222, 16
      %v336 = vrot.slane %v334, 5
      %v337 = vsel %vm225, %v332, %v336
      %s338 = scalar_lea.vmem %s1, 32
      %v339 = vld [vmem:[%s338] sm:$0xf]
      %v340 = vld [vmem:[%s338 + $0x4] sm:$0xf]
      %v341 = vld [vmem:[%s338 + $0x8] sm:$0xf]
      %v342 = vld [vmem:[%s338 + $0xc] sm:$0xf]
      %v343 = vld [vmem:[%s338 + $0x10] sm:$0xf]
      %v344 = vld [vmem:[%s338 + $0x14] sm:$0xf]
      %v345 = vld [vmem:[%s338 + $0x18] sm:$0xf]
      %v346 = vld [vmem:[%s338 + $0x1c] sm:$0xf]
      %v347 = vunpack.c.l.b16 %v239
      %v348 = vunpack.c.l.b16 %v253
      %v349 = vunpack.c.l.b16 %v267
      %v350 = vunpack.c.l.b16 %v281
      %v351 = vunpack.c.l.b16 %v295
      %v352 = vunpack.c.l.b16 %v309
      %v353 = vunpack.c.l.b16 %v323
      %v354 = vunpack.c.l.b16 %v337
      %v355 = vpack.c.b16 %v348, %v347
      %v356 = vpack.c.b16 %v350, %v349
      %v357 = vpack.c.b16 %v352, %v351
      %v358 = vpack.c.b16 %v354, %v353
      %v367 = vunpack.c.l.b16 %v339
      %v368 = vunpack.c.l.b16 %v340
      %v369 = vunpack.c.l.b16 %v341
      %v370 = vunpack.c.l.b16 %v342
      %v371 = vunpack.c.l.b16 %v343
      %v372 = vunpack.c.l.b16 %v344
      %v373 = vunpack.c.l.b16 %v345
      %v374 = vunpack.c.l.b16 %v346
      %v375 = vpack.c.b16 %v368, %v367
      %v376 = vpack.c.b16 %v370, %v369
      %v377 = vpack.c.b16 %v372, %v371
      %v378 = vpack.c.b16 %v374, %v373
      %vm383 = vcmask 523264
      %v385 = vsel %vm383, %v355, 0
      %v388 = vsel %vm383, %v356, 0
      %v391 = vsel %vm383, %v357, 0
      %v394 = vsel %vm383, %v358, 0
      %396 = vmatprep.subr.bf16.mxu0 0
      %397 = vmatpush1.bf16.msra.mxu0 %v375
      %398 = vmatprep.subr.bf16.mxu0 0
      %399 = vmatpush1.bf16.msra.mxu0 %v376
      %400 = vmatprep.subr.bf16.mxu0 0
      %401 = vmatpush1.bf16.msra.mxu0 %v377
      %402 = vmatprep.subr.bf16.mxu0 0
      %403 = vmatpush1.bf16.msra.mxu0 %v378
      %404 = vmatprep.subr.bf16.mxu0 0
      %405 = vmatpush1.bf16.msra.mxu0 0
      %406 = vmatprep.subr.bf16.mxu0 0
      %407 = vmatpush1.bf16.msra.mxu0 0
      %408 = vmatprep.subr.bf16.mxu0 0
      %409 = vmatpush1.bf16.msra.mxu0 0
      %410 = vmatprep.subr.bf16.mxu0 0
      %411 = vmatpush1.bf16.msra.mxu0 0
      %412 = vmatprep.subr.bf16.mxu0 0
      %413 = vmatpush1.bf16.msra.mxu0 0
      %414 = vmatprep.subr.bf16.mxu0 0
      %415 = vmatpush1.bf16.msra.mxu0 0
      %416 = vmatprep.subr.bf16.mxu0 0
      %417 = vmatpush1.bf16.msra.mxu0 0
      %418 = vmatprep.subr.bf16.mxu0 0
      %419 = vmatpush1.bf16.msra.mxu0 0
      %420 = vmatprep.subr.bf16.mxu0 0
      %421 = vmatpush1.bf16.msra.mxu0 0
      %422 = vmatprep.subr.bf16.mxu0 0
      %423 = vmatpush1.bf16.msra.mxu0 0
      %424 = vmatprep.subr.bf16.mxu0 0
      %425 = vmatpush1.bf16.msra.mxu0 0
      %426 = vmatprep.subr.bf16.mxu0 0
      %427 = vmatpush1.bf16.msra.mxu0 0
      %428 = vmatprep.mubr.bf16.mxu0 0
      %429 = vmatmul.mubr.bf16.gmra.mrb[0].mxu0 %v385
      %v430 = vpop.f32.mrb[0].mxu0
      %v431 = vadd.f32 0.0, %v430
      %v432 = vpop.f32.mrb[0].mxu0
      %v433 = vpop.f32.mrb[0].mxu0
      %v434 = vadd.f32 0.0, %v433
      %v435 = vpop.f32.mrb[0].mxu0
      %436 = vmatprep.mubr.bf16.mxu0 0
      %437 = vmatmul.mubr.bf16.gmra.mrb[0].mxu0 %v388
      %v438 = vpop.f32.mrb[0].mxu0
      %v439 = vadd.f32 0.0, %v438
      %v440 = vpop.f32.mrb[0].mxu0
      %v441 = vpop.f32.mrb[0].mxu0
      %v442 = vadd.f32 0.0, %v441
      %v443 = vpop.f32.mrb[0].mxu0
      %444 = vmatprep.mubr.bf16.mxu0 0
      %445 = vmatmul.mubr.bf16.gmra.mrb[0].mxu0 %v391
      %v446 = vpop.f32.mrb[0].mxu0
      %v447 = vadd.f32 0.0, %v446
      %v448 = vpop.f32.mrb[0].mxu0
      %v449 = vpop.f32.mrb[0].mxu0
      %v450 = vadd.f32 0.0, %v449
      %v451 = vpop.f32.mrb[0].mxu0
      %452 = vmatprep.mubr.bf16.mxu0 0
      %453 = vmatmul.mubr.bf16.gmra.mrb[0].mxu0 %v394
      %v454 = vpop.f32.mrb[0].mxu0
      %v455 = vadd.f32 0.0, %v454
      %v456 = vpop.f32.mrb[0].mxu0
      %v457 = vpop.f32.mrb[0].mxu0
      %v458 = vadd.f32 0.0, %v457
      %v459 = vpop.f32.mrb[0].mxu0
      %460 = vdwg.mxu0
      %v469 = vunpack.c.l.b16 %v199
      %v470 = vunpack.c.l.b16 %v200
      %v471 = vunpack.c.l.b16 %v201
      %v472 = vunpack.c.l.b16 %v202
      %v473 = vunpack.c.l.b16 %v203
      %v474 = vunpack.c.l.b16 %v204
      %v475 = vunpack.c.l.b16 %v205
      %v476 = vunpack.c.l.b16 %v206
      %v477 = vpack.c.b16 %v470, %v469
      %v478 = vpack.c.b16 %v472, %v471
      %v479 = vpack.c.b16 %v474, %v473
      %v480 = vpack.c.b16 %v476, %v475
      %v489 = vunpack.c.l.b16 %v207
      %v490 = vunpack.c.l.b16 %v208
      %v491 = vunpack.c.l.b16 %v209
      %v492 = vunpack.c.l.b16 %v210
      %v493 = vunpack.c.l.b16 %v211
      %v494 = vunpack.c.l.b16 %v212
      %v495 = vunpack.c.l.b16 %v213
      %v496 = vunpack.c.l.b16 %v214
      %v497 = vpack.c.b16 %v490, %v489
      %v498 = vpack.c.b16 %v492, %v491
      %v499 = vpack.c.b16 %v494, %v493
      %v500 = vpack.c.b16 %v496, %v495
      %v506 = vsel %vm383, %v477, 0
      %v509 = vsel %vm383, %v478, 0
      %v512 = vsel %vm383, %v479, 0
      %v515 = vsel %vm383, %v480, 0
      %517 = vmatprep.subr.bf16.mxu0 0
      %518 = vmatpush1.bf16.msra.mxu0 %v497
      %519 = vmatprep.subr.bf16.mxu0 0
      %520 = vmatpush1.bf16.msra.mxu0 %v498
      %521 = vmatprep.subr.bf16.mxu0 0
      %522 = vmatpush1.bf16.msra.mxu0 %v499
      %523 = vmatprep.subr.bf16.mxu0 0
      %524 = vmatpush1.bf16.msra.mxu0 %v500
      %525 = vmatprep.subr.bf16.mxu0 0
      %526 = vmatpush1.bf16.msra.mxu0 0
      %527 = vmatprep.subr.bf16.mxu0 0
      %528 = vmatpush1.bf16.msra.mxu0 0
      %529 = vmatprep.subr.bf16.mxu0 0
      %530 = vmatpush1.bf16.msra.mxu0 0
      %531 = vmatprep.subr.bf16.mxu0 0
      %532 = vmatpush1.bf16.msra.mxu0 0
      %533 = vmatprep.subr.bf16.mxu0 0
      %534 = vmatpush1.bf16.msra.mxu0 0
      %535 = vmatprep.subr.bf16.mxu0 0
      %536 = vmatpush1.bf16.msra.mxu0 0
      %537 = vmatprep.subr.bf16.mxu0 0
      %538 = vmatpush1.bf16.msra.mxu0 0
      %539 = vmatprep.subr.bf16.mxu0 0
      %540 = vmatpush1.bf16.msra.mxu0 0
      %541 = vmatprep.subr.bf16.mxu0 0
      %542 = vmatpush1.bf16.msra.mxu0 0
      %543 = vmatprep.subr.bf16.mxu0 0
      %544 = vmatpush1.bf16.msra.mxu0 0
      %545 = vmatprep.subr.bf16.mxu0 0
      %546 = vmatpush1.bf16.msra.mxu0 0
      %547 = vmatprep.subr.bf16.mxu0 0
      %548 = vmatpush1.bf16.msra.mxu0 0
      %549 = vmatprep.mubr.bf16.mxu0 0
      %550 = vmatmul.mubr.bf16.gmra.mrb[0].mxu0 %v506
      %v551 = vpop.f32.mrb[0].mxu0
      %v552 = vadd.f32 %v431, %v551
      %v553 = vpop.f32.mrb[0].mxu0
      %v554 = vpop.f32.mrb[0].mxu0
      %v555 = vadd.f32 %v434, %v554
      %v556 = vpop.f32.mrb[0].mxu0
      %557 = vmatprep.mubr.bf16.mxu0 0
      %558 = vmatmul.mubr.bf16.gmra.mrb[0].mxu0 %v509
      %v559 = vpop.f32.mrb[0].mxu0
      %v560 = vadd.f32 %v439, %v559
      %v561 = vpop.f32.mrb[0].mxu0
      %v562 = vpop.f32.mrb[0].mxu0
      %v563 = vadd.f32 %v442, %v562
      %v564 = vpop.f32.mrb[0].mxu0
      %565 = vmatprep.mubr.bf16.mxu0 0
      %566 = vmatmul.mubr.bf16.gmra.mrb[0].mxu0 %v512
      %v567 = vpop.f32.mrb[0].mxu0
      %v568 = vadd.f32 %v447, %v567
      %v569 = vpop.f32.mrb[0].mxu0
      %v570 = vpop.f32.mrb[0].mxu0
      %v571 = vadd.f32 %v450, %v570
      %v572 = vpop.f32.mrb[0].mxu0
      %573 = vmatprep.mubr.bf16.mxu0 0
      %574 = vmatmul.mubr.bf16.gmra.mrb[0].mxu0 %v515
      %v575 = vpop.f32.mrb[0].mxu0
      %v576 = vadd.f32 %v455, %v575
      %v577 = vpop.f32.mrb[0].mxu0
      %v578 = vpop.f32.mrb[0].mxu0
      %v579 = vadd.f32 %v458, %v578
      %v580 = vpop.f32.mrb[0].mxu0
      %581 = vdwg.mxu0
      %v582 = vld [vmem:[%s198] sm:$0xe]
      %v583 = vld [vmem:[%s198 + $0x8] sm:$0xe]
      %v584 = vld [vmem:[%s198 + $0x10] sm:$0xe]
      %v585 = vld [vmem:[%s198 + $0x18] sm:$0xe]
      %v586 = vld [vmem:[%s198 + $0x20] sm:$0xe]
      %v587 = vld [vmem:[%s198 + $0x28] sm:$0xe]
      %v588 = vld [vmem:[%s198 + $0x30] sm:$0xe]
      %v589 = vld [vmem:[%s198 + $0x38] sm:$0xe]
      %vm606 = vcmask 1042432
      %vm607 = vcmask 1046532
      %vm608 = vmor %vm606, %vm607
      %v609 = vrot.slane %v582, 5
      %v610 = vrot.slane %v609, 4
      %v611 = vrot.slane %v215, 5
      %v612 = vsel %vm608, %v610, %v611
      %v613 = vrot.slane %v583, 5
      %v614 = vrot.slane %v613, 4
      %v615 = vrot.slane %v216, 5
      %v616 = vsel %vm608, %v614, %v615
      %v617 = vrot.slane %v584, 5
      %v618 = vrot.slane %v617, 4
      %v619 = vrot.slane %v217, 5
      %v620 = vsel %vm608, %v618, %v619
      %v621 = vrot.slane %v585, 5
      %v622 = vrot.slane %v621, 4
      %v623 = vrot.slane %v218, 5
      %v624 = vsel %vm608, %v622, %v623
      %v625 = vrot.slane %v586, 5
      %v626 = vrot.slane %v625, 4
      %v627 = vrot.slane %v219, 5
      %v628 = vsel %vm608, %v626, %v627
      %v629 = vrot.slane %v587, 5
      %v630 = vrot.slane %v629, 4
      %v631 = vrot.slane %v220, 5
      %v632 = vsel %vm608, %v630, %v631
      %v633 = vrot.slane %v588, 5
      %v634 = vrot.slane %v633, 4
      %v635 = vrot.slane %v221, 5
      %v636 = vsel %vm608, %v634, %v635
      %v637 = vrot.slane %v589, 5
      %v638 = vrot.slane %v637, 4
      %v639 = vrot.slane %v222, 5
      %v640 = vsel %vm608, %v638, %v639
      %s641 = scalar_lea.vmem %s1, 64
      %v642 = vld [vmem:[%s641] sm:$0xf]
      %v643 = vld [vmem:[%s641 + $0x4] sm:$0xf]
      %v644 = vld [vmem:[%s641 + $0x8] sm:$0xf]
      %v645 = vld [vmem:[%s641 + $0xc] sm:$0xf]
      %v646 = vld [vmem:[%s641 + $0x10] sm:$0xf]
      %v647 = vld [vmem:[%s641 + $0x14] sm:$0xf]
      %v648 = vld [vmem:[%s641 + $0x18] sm:$0xf]
      %v649 = vld [vmem:[%s641 + $0x1c] sm:$0xf]
      %v650 = vunpack.c.l.b16 %v612
      %v651 = vunpack.c.l.b16 %v616
      %v652 = vunpack.c.l.b16 %v620
      %v653 = vunpack.c.l.b16 %v624
      %v654 = vunpack.c.l.b16 %v628
      %v655 = vunpack.c.l.b16 %v632
      %v656 = vunpack.c.l.b16 %v636
      %v657 = vunpack.c.l.b16 %v640
      %v658 = vpack.c.b16 %v651, %v650
      %v659 = vpack.c.b16 %v653, %v652
      %v660 = vpack.c.b16 %v655, %v654
      %v661 = vpack.c.b16 %v657, %v656
      %v670 = vunpack.c.l.b16 %v642
      %v671 = vunpack.c.l.b16 %v643
      %v672 = vunpack.c.l.b16 %v644
      %v673 = vunpack.c.l.b16 %v645
      %v674 = vunpack.c.l.b16 %v646
      %v675 = vunpack.c.l.b16 %v647
      %v676 = vunpack.c.l.b16 %v648
      %v677 = vunpack.c.l.b16 %v649
      %v678 = vpack.c.b16 %v671, %v670
      %v679 = vpack.c.b16 %v673, %v672
      %v680 = vpack.c.b16 %v675, %v674
      %v681 = vpack.c.b16 %v677, %v676
      %v687 = vsel %vm383, %v658, 0
      %v690 = vsel %vm383, %v659, 0
      %v693 = vsel %vm383, %v660, 0
      %v696 = vsel %vm383, %v661, 0
      %698 = vmatprep.subr.bf16.mxu0 0
      %699 = vmatpush1.bf16.msra.mxu0 %v678
      %700 = vmatprep.subr.bf16.mxu0 0
      %701 = vmatpush1.bf16.msra.mxu0 %v679
      %702 = vmatprep.subr.bf16.mxu0 0
      %703 = vmatpush1.bf16.msra.mxu0 %v680
      %704 = vmatprep.subr.bf16.mxu0 0
      %705 = vmatpush1.bf16.msra.mxu0 %v681
      %706 = vmatprep.subr.bf16.mxu0 0
      %707 = vmatpush1.bf16.msra.mxu0 0
      %708 = vmatprep.subr.bf16.mxu0 0
      %709 = vmatpush1.bf16.msra.mxu0 0
      %710 = vmatprep.subr.bf16.mxu0 0
      %711 = vmatpush1.bf16.msra.mxu0 0
      %712 = vmatprep.subr.bf16.mxu0 0
      %713 = vmatpush1.bf16.msra.mxu0 0
      %714 = vmatprep.subr.bf16.mxu0 0
      %715 = vmatpush1.bf16.msra.mxu0 0
      %716 = vmatprep.subr.bf16.mxu0 0
      %717 = vmatpush1.bf16.msra.mxu0 0
      %718 = vmatprep.subr.bf16.mxu0 0
      %719 = vmatpush1.bf16.msra.mxu0 0
      %720 = vmatprep.subr.bf16.mxu0 0
      %721 = vmatpush1.bf16.msra.mxu0 0
      %722 = vmatprep.subr.bf16.mxu0 0
      %723 = vmatpush1.bf16.msra.mxu0 0
      %724 = vmatprep.subr.bf16.mxu0 0
      %725 = vmatpush1.bf16.msra.mxu0 0
      %726 = vmatprep.subr.bf16.mxu0 0
      %727 = vmatpush1.bf16.msra.mxu0 0
      %728 = vmatprep.subr.bf16.mxu0 0
      %729 = vmatpush1.bf16.msra.mxu0 0
      %730 = vmatprep.mubr.bf16.mxu0 0
      %731 = vmatmul.mubr.bf16.gmra.mrb[0].mxu0 %v687
      %v732 = vpop.f32.mrb[0].mxu0
      %v733 = vadd.f32 0.0, %v732
      %v734 = vpop.f32.mrb[0].mxu0
      %v735 = vpop.f32.mrb[0].mxu0
      %v736 = vadd.f32 0.0, %v735
      %v737 = vpop.f32.mrb[0].mxu0
      %738 = vmatprep.mubr.bf16.mxu0 0
      %739 = vmatmul.mubr.bf16.gmra.mrb[0].mxu0 %v690
      %v740 = vpop.f32.mrb[0].mxu0
      %v741 = vadd.f32 0.0, %v740
      %v742 = vpop.f32.mrb[0].mxu0
      %v743 = vpop.f32.mrb[0].mxu0
      %v744 = vadd.f32 0.0, %v743
      %v745 = vpop.f32.mrb[0].mxu0
      %746 = vmatprep.mubr.bf16.mxu0 0
      %747 = vmatmul.mubr.bf16.gmra.mrb[0].mxu0 %v693
      %v748 = vpop.f32.mrb[0].mxu0
      %v749 = vadd.f32 0.0, %v748
      %v750 = vpop.f32.mrb[0].mxu0
      %v751 = vpop.f32.mrb[0].mxu0
      %v752 = vadd.f32 0.0, %v751
      %v753 = vpop.f32.mrb[0].mxu0
      %754 = vmatprep.mubr.bf16.mxu0 0
      %755 = vmatmul.mubr.bf16.gmra.mrb[0].mxu0 %v696
      %v756 = vpop.f32.mrb[0].mxu0
      %v757 = vadd.f32 0.0, %v756
      %v758 = vpop.f32.mrb[0].mxu0
      %v759 = vpop.f32.mrb[0].mxu0
      %v760 = vadd.f32 0.0, %v759
      %v761 = vpop.f32.mrb[0].mxu0
      %762 = vdwg.mxu0
      %v763 = vadd.f32 %v552, %v733
      %v764 = vadd.f32 %v555, %v736
      %v765 = vadd.f32 %v560, %v741
      %v766 = vadd.f32 %v563, %v744
      %v767 = vadd.f32 %v568, %v749
      %v768 = vadd.f32 %v571, %v752
      %v769 = vadd.f32 %v576, %v757
      %v770 = vadd.f32 %v579, %v760
      %s771 = sadd.s32 %s195, 1
      %s772 = smul.u32 %s771, 2
      %s773 = smul.addr %s772, 4
      %s774 = scalar_lea.vmem %s183, %s773
      %v775 = vld [vmem:[%s774] sm:$0xf]
      %v776 = vld [vmem:[%s774 + $0x8] sm:$0xf]
      %v777 = vld [vmem:[%s774 + $0x10] sm:$0xf]
      %v778 = vld [vmem:[%s774 + $0x18] sm:$0xf]
      %v779 = vld [vmem:[%s774 + $0x20] sm:$0xf]
      %v780 = vld [vmem:[%s774 + $0x28] sm:$0xf]
      %v781 = vld [vmem:[%s774 + $0x30] sm:$0xf]
      %v782 = vld [vmem:[%s774 + $0x38] sm:$0xf]
      %s783 = scalar_lea.vmem %s1, 96
      %v784 = vld [vmem:[%s783] sm:$0xf]
      %v785 = vld [vmem:[%s783 + $0x4] sm:$0xf]
      %v786 = vld [vmem:[%s783 + $0x8] sm:$0xf]
      %v787 = vld [vmem:[%s783 + $0xc] sm:$0xf]
      %v788 = vld [vmem:[%s783 + $0x10] sm:$0xf]
      %v789 = vld [vmem:[%s783 + $0x14] sm:$0xf]
      %v790 = vld [vmem:[%s783 + $0x18] sm:$0xf]
      %v791 = vld [vmem:[%s783 + $0x1c] sm:$0xf]
      %v800 = vunpack.c.l.b16 %v775
      %v801 = vunpack.c.l.b16 %v776
      %v802 = vunpack.c.l.b16 %v777
      %v803 = vunpack.c.l.b16 %v778
      %v804 = vunpack.c.l.b16 %v779
      %v805 = vunpack.c.l.b16 %v780
      %v806 = vunpack.c.l.b16 %v781
      %v807 = vunpack.c.l.b16 %v782
      %v808 = vpack.c.b16 %v801, %v800
      %v809 = vpack.c.b16 %v803, %v802
      %v810 = vpack.c.b16 %v805, %v804
      %v811 = vpack.c.b16 %v807, %v806
      %v820 = vunpack.c.l.b16 %v784
      %v821 = vunpack.c.l.b16 %v785
      %v822 = vunpack.c.l.b16 %v786
      %v823 = vunpack.c.l.b16 %v787
      %v824 = vunpack.c.l.b16 %v788
      %v825 = vunpack.c.l.b16 %v789
      %v826 = vunpack.c.l.b16 %v790
      %v827 = vunpack.c.l.b16 %v791
      %v828 = vpack.c.b16 %v821, %v820
      %v829 = vpack.c.b16 %v823, %v822
      %v830 = vpack.c.b16 %v825, %v824
      %v831 = vpack.c.b16 %v827, %v826
      %v837 = vsel %vm383, %v808, 0
      %v840 = vsel %vm383, %v809, 0
      %v843 = vsel %vm383, %v810, 0
      %v846 = vsel %vm383, %v811, 0
      %848 = vmatprep.subr.bf16.mxu0 0
      %849 = vmatpush1.bf16.msra.mxu0 %v828
      %850 = vmatprep.subr.bf16.mxu0 0
      %851 = vmatpush1.bf16.msra.mxu0 %v829
      %852 = vmatprep.subr.bf16.mxu0 0
      %853 = vmatpush1.bf16.msra.mxu0 %v830
      %854 = vmatprep.subr.bf16.mxu0 0
      %855 = vmatpush1.bf16.msra.mxu0 %v831
      %856 = vmatprep.subr.bf16.mxu0 0
      %857 = vmatpush1.bf16.msra.mxu0 0
      %858 = vmatprep.subr.bf16.mxu0 0
      %859 = vmatpush1.bf16.msra.mxu0 0
      %860 = vmatprep.subr.bf16.mxu0 0
      %861 = vmatpush1.bf16.msra.mxu0 0
      %862 = vmatprep.subr.bf16.mxu0 0
      %863 = vmatpush1.bf16.msra.mxu0 0
      %864 = vmatprep.subr.bf16.mxu0 0
      %865 = vmatpush1.bf16.msra.mxu0 0
      %866 = vmatprep.subr.bf16.mxu0 0
      %867 = vmatpush1.bf16.msra.mxu0 0
      %868 = vmatprep.subr.bf16.mxu0 0
      %869 = vmatpush1.bf16.msra.mxu0 0
      %870 = vmatprep.subr.bf16.mxu0 0
      %871 = vmatpush1.bf16.msra.mxu0 0
      %872 = vmatprep.subr.bf16.mxu0 0
      %873 = vmatpush1.bf16.msra.mxu0 0
      %874 = vmatprep.subr.bf16.mxu0 0
      %875 = vmatpush1.bf16.msra.mxu0 0
      %876 = vmatprep.subr.bf16.mxu0 0
      %877 = vmatpush1.bf16.msra.mxu0 0
      %878 = vmatprep.subr.bf16.mxu0 0
      %879 = vmatpush1.bf16.msra.mxu0 0
      %880 = vmatprep.mubr.bf16.mxu0 0
      %881 = vmatmul.mubr.bf16.gmra.mrb[0].mxu0 %v837
      %v882 = vpop.f32.mrb[0].mxu0
      %v883 = vadd.f32 0.0, %v882
      %v884 = vpop.f32.mrb[0].mxu0
      %v885 = vpop.f32.mrb[0].mxu0
      %v886 = vadd.f32 0.0, %v885
      %v887 = vpop.f32.mrb[0].mxu0
      %888 = vmatprep.mubr.bf16.mxu0 0
      %889 = vmatmul.mubr.bf16.gmra.mrb[0].mxu0 %v840
      %v890 = vpop.f32.mrb[0].mxu0
      %v891 = vadd.f32 0.0, %v890
      %v892 = vpop.f32.mrb[0].mxu0
      %v893 = vpop.f32.mrb[0].mxu0
      %v894 = vadd.f32 0.0, %v893
      %v895 = vpop.f32.mrb[0].mxu0
      %896 = vmatprep.mubr.bf16.mxu0 0
      %897 = vmatmul.mubr.bf16.gmra.mrb[0].mxu0 %v843
      %v898 = vpop.f32.mrb[0].mxu0
      %v899 = vadd.f32 0.0, %v898
      %v900 = vpop.f32.mrb[0].mxu0
      %v901 = vpop.f32.mrb[0].mxu0
      %v902 = vadd.f32 0.0, %v901
      %v903 = vpop.f32.mrb[0].mxu0
      %904 = vmatprep.mubr.bf16.mxu0 0
      %905 = vmatmul.mubr.bf16.gmra.mrb[0].mxu0 %v846
      %v906 = vpop.f32.mrb[0].mxu0
      %v907 = vadd.f32 0.0, %v906
      %v908 = vpop.f32.mrb[0].mxu0
      %v909 = vpop.f32.mrb[0].mxu0
      %v910 = vadd.f32 0.0, %v909
      %v911 = vpop.f32.mrb[0].mxu0
      %912 = vdwg.mxu0
      %v913 = vadd.f32 %v763, %v883
      %v914 = vadd.f32 %v764, %v886
      %v915 = vadd.f32 %v765, %v891
      %v916 = vadd.f32 %v766, %v894
      %v917 = vadd.f32 %v767, %v899
      %v918 = vadd.f32 %v768, %v902
      %v919 = vadd.f32 %v769, %v907
      %v920 = vadd.f32 %v770, %v910
      %v921 = vld [vmem:[%s774] sm:$0xf]
      %v922 = vld [vmem:[%s774 + $0x4] sm:$0x1]
      %v923 = vld [vmem:[%s774 + $0x8] sm:$0xf]
      %v924 = vld [vmem:[%s774 + $0xc] sm:$0x1]
      %v925 = vld [vmem:[%s774 + $0x10] sm:$0xf]
      %v926 = vld [vmem:[%s774 + $0x14] sm:$0x1]
      %v927 = vld [vmem:[%s774 + $0x18] sm:$0xf]
      %v928 = vld [vmem:[%s774 + $0x1c] sm:$0x1]
      %v929 = vld [vmem:[%s774 + $0x20] sm:$0xf]
      %v930 = vld [vmem:[%s774 + $0x24] sm:$0x1]
      %v931 = vld [vmem:[%s774 + $0x28] sm:$0xf]
      %v932 = vld [vmem:[%s774 + $0x2c] sm:$0x1]
      %v933 = vld [vmem:[%s774 + $0x30] sm:$0xf]
      %v934 = vld [vmem:[%s774 + $0x34] sm:$0x1]
      %v935 = vld [vmem:[%s774 + $0x38] sm:$0xf]
      %v936 = vld [vmem:[%s774 + $0x3c] sm:$0x1]
      %v938 = vshrl.u32 %v921, 16
      %v940 = vrot.slane %v938, 4
      %v941 = vshll.u32 %v921, 16
      %v943 = vrot.slane %v941, 5
      %v944 = vor.u32 %v940, %v943
      %v945 = vrot.slane %v944, 4
      %v947 = vshll.u32 %v922, 16
      %v949 = vrot.slane %v947, 5
      %v950 = vsel %vm225, %v945, %v949
      %v952 = vshrl.u32 %v923, 16
      %v954 = vrot.slane %v952, 4
      %v955 = vshll.u32 %v923, 16
      %v957 = vrot.slane %v955, 5
      %v958 = vor.u32 %v954, %v957
      %v959 = vrot.slane %v958, 4
      %v961 = vshll.u32 %v924, 16
      %v963 = vrot.slane %v961, 5
      %v964 = vsel %vm225, %v959, %v963
      %v966 = vshrl.u32 %v925, 16
      %v968 = vrot.slane %v966, 4
      %v969 = vshll.u32 %v925, 16
      %v971 = vrot.slane %v969, 5
      %v972 = vor.u32 %v968, %v971
      %v973 = vrot.slane %v972, 4
      %v975 = vshll.u32 %v926, 16
      %v977 = vrot.slane %v975, 5
      %v978 = vsel %vm225, %v973, %v977
      %v980 = vshrl.u32 %v927, 16
      %v982 = vrot.slane %v980, 4
      %v983 = vshll.u32 %v927, 16
      %v985 = vrot.slane %v983, 5
      %v986 = vor.u32 %v982, %v985
      %v987 = vrot.slane %v986, 4
      %v989 = vshll.u32 %v928, 16
      %v991 = vrot.slane %v989, 5
      %v992 = vsel %vm225, %v987, %v991
      %v994 = vshrl.u32 %v929, 16
      %v996 = vrot.slane %v994, 4
      %v997 = vshll.u32 %v929, 16
      %v999 = vrot.slane %v997, 5
      %v1000 = vor.u32 %v996, %v999
      %v1001 = vrot.slane %v1000, 4
      %v1003 = vshll.u32 %v930, 16
      %v1005 = vrot.slane %v1003, 5
      %v1006 = vsel %vm225, %v1001, %v1005
      %v1008 = vshrl.u32 %v931, 16
      %v1010 = vrot.slane %v1008, 4
      %v1011 = vshll.u32 %v931, 16
      %v1013 = vrot.slane %v1011, 5
      %v1014 = vor.u32 %v1010, %v1013
      %v1015 = vrot.slane %v1014, 4
      %v1017 = vshll.u32 %v932, 16
      %v1019 = vrot.slane %v1017, 5
      %v1020 = vsel %vm225, %v1015, %v1019
      %v1022 = vshrl.u32 %v933, 16
      %v1024 = vrot.slane %v1022, 4
      %v1025 = vshll.u32 %v933, 16
      %v1027 = vrot.slane %v1025, 5
      %v1028 = vor.u32 %v1024, %v1027
      %v1029 = vrot.slane %v1028, 4
      %v1031 = vshll.u32 %v934, 16
      %v1033 = vrot.slane %v1031, 5
      %v1034 = vsel %vm225, %v1029, %v1033
      %v1036 = vshrl.u32 %v935, 16
      %v1038 = vrot.slane %v1036, 4
      %v1039 = vshll.u32 %v935, 16
      %v1041 = vrot.slane %v1039, 5
      %v1042 = vor.u32 %v1038, %v1041
      %v1043 = vrot.slane %v1042, 4
      %v1045 = vshll.u32 %v936, 16
      %v1047 = vrot.slane %v1045, 5
      %v1048 = vsel %vm225, %v1043, %v1047
      %s1049 = scalar_lea.vmem %s1, 128
      %v1050 = vld [vmem:[%s1049] sm:$0xf]
      %v1051 = vld [vmem:[%s1049 + $0x4] sm:$0xf]
      %v1052 = vld [vmem:[%s1049 + $0x8] sm:$0xf]
      %v1053 = vld [vmem:[%s1049 + $0xc] sm:$0xf]
      %v1054 = vld [vmem:[%s1049 + $0x10] sm:$0xf]
      %v1055 = vld [vmem:[%s1049 + $0x14] sm:$0xf]
      %v1056 = vld [vmem:[%s1049 + $0x18] sm:$0xf]
      %v1057 = vld [vmem:[%s1049 + $0x1c] sm:$0xf]
      %v1058 = vunpack.c.l.b16 %v950
      %v1059 = vunpack.c.l.b16 %v964
      %v1060 = vunpack.c.l.b16 %v978
      %v1061 = vunpack.c.l.b16 %v992
      %v1062 = vunpack.c.l.b16 %v1006
      %v1063 = vunpack.c.l.b16 %v1020
      %v1064 = vunpack.c.l.b16 %v1034
      %v1065 = vunpack.c.l.b16 %v1048
      %v1066 = vpack.c.b16 %v1059, %v1058
      %v1067 = vpack.c.b16 %v1061, %v1060
      %v1068 = vpack.c.b16 %v1063, %v1062
      %v1069 = vpack.c.b16 %v1065, %v1064
      %v1078 = vunpack.c.l.b16 %v1050
      %v1079 = vunpack.c.l.b16 %v1051
      %v1080 = vunpack.c.l.b16 %v1052
      %v1081 = vunpack.c.l.b16 %v1053
      %v1082 = vunpack.c.l.b16 %v1054
      %v1083 = vunpack.c.l.b16 %v1055
      %v1084 = vunpack.c.l.b16 %v1056
      %v1085 = vunpack.c.l.b16 %v1057
      %v1086 = vpack.c.b16 %v1079, %v1078
      %v1087 = vpack.c.b16 %v1081, %v1080
      %v1088 = vpack.c.b16 %v1083, %v1082
      %v1089 = vpack.c.b16 %v1085, %v1084
      %v1095 = vsel %vm383, %v1066, 0
      %v1098 = vsel %vm383, %v1067, 0
      %v1101 = vsel %vm383, %v1068, 0
      %v1104 = vsel %vm383, %v1069, 0
      %1106 = vmatprep.subr.bf16.mxu0 0
      %1107 = vmatpush1.bf16.msra.mxu0 %v1086
      %1108 = vmatprep.subr.bf16.mxu0 0
      %1109 = vmatpush1.bf16.msra.mxu0 %v1087
      %1110 = vmatprep.subr.bf16.mxu0 0
      %1111 = vmatpush1.bf16.msra.mxu0 %v1088
      %1112 = vmatprep.subr.bf16.mxu0 0
      %1113 = vmatpush1.bf16.msra.mxu0 %v1089
      %1114 = vmatprep.subr.bf16.mxu0 0
      %1115 = vmatpush1.bf16.msra.mxu0 0
      %1116 = vmatprep.subr.bf16.mxu0 0
      %1117 = vmatpush1.bf16.msra.mxu0 0
      %1118 = vmatprep.subr.bf16.mxu0 0
      %1119 = vmatpush1.bf16.msra.mxu0 0
      %1120 = vmatprep.subr.bf16.mxu0 0
      %1121 = vmatpush1.bf16.msra.mxu0 0
      %1122 = vmatprep.subr.bf16.mxu0 0
      %1123 = vmatpush1.bf16.msra.mxu0 0
      %1124 = vmatprep.subr.bf16.mxu0 0
      %1125 = vmatpush1.bf16.msra.mxu0 0
      %1126 = vmatprep.subr.bf16.mxu0 0
      %1127 = vmatpush1.bf16.msra.mxu0 0
      %1128 = vmatprep.subr.bf16.mxu0 0
      %1129 = vmatpush1.bf16.msra.mxu0 0
      %1130 = vmatprep.subr.bf16.mxu0 0
      %1131 = vmatpush1.bf16.msra.mxu0 0
      %1132 = vmatprep.subr.bf16.mxu0 0
      %1133 = vmatpush1.bf16.msra.mxu0 0
      %1134 = vmatprep.subr.bf16.mxu0 0
      %1135 = vmatpush1.bf16.msra.mxu0 0
      %1136 = vmatprep.subr.bf16.mxu0 0
      %1137 = vmatpush1.bf16.msra.mxu0 0
      %1138 = vmatprep.mubr.bf16.mxu0 0
      %1139 = vmatmul.mubr.bf16.gmra.mrb[0].mxu0 %v1095
      %v1140 = vpop.f32.mrb[0].mxu0
      %v1141 = vadd.f32 0.0, %v1140
      %v1142 = vpop.f32.mrb[0].mxu0
      %v1143 = vpop.f32.mrb[0].mxu0
      %v1144 = vadd.f32 0.0, %v1143
      %v1145 = vpop.f32.mrb[0].mxu0
      %1146 = vmatprep.mubr.bf16.mxu0 0
      %1147 = vmatmul.mubr.bf16.gmra.mrb[0].mxu0 %v1098
      %v1148 = vpop.f32.mrb[0].mxu0
      %v1149 = vadd.f32 0.0, %v1148
      %v1150 = vpop.f32.mrb[0].mxu0
      %v1151 = vpop.f32.mrb[0].mxu0
      %v1152 = vadd.f32 0.0, %v1151
      %v1153 = vpop.f32.mrb[0].mxu0
      %1154 = vmatprep.mubr.bf16.mxu0 0
      %1155 = vmatmul.mubr.bf16.gmra.mrb[0].mxu0 %v1101
      %v1156 = vpop.f32.mrb[0].mxu0
      %v1157 = vadd.f32 0.0, %v1156
      %v1158 = vpop.f32.mrb[0].mxu0
      %v1159 = vpop.f32.mrb[0].mxu0
      %v1160 = vadd.f32 0.0, %v1159
      %v1161 = vpop.f32.mrb[0].mxu0
      %1162 = vmatprep.mubr.bf16.mxu0 0
      %1163 = vmatmul.mubr.bf16.gmra.mrb[0].mxu0 %v1104
      %v1164 = vpop.f32.mrb[0].mxu0
      %v1165 = vadd.f32 0.0, %v1164
      %v1166 = vpop.f32.mrb[0].mxu0
      %v1167 = vpop.f32.mrb[0].mxu0
      %v1168 = vadd.f32 0.0, %v1167
      %v1169 = vpop.f32.mrb[0].mxu0
      %1170 = vdwg.mxu0
      %v1171 = vadd.f32 %v913, %v1141
      %v1172 = vadd.f32 %v914, %v1144
      %v1173 = vadd.f32 %v915, %v1149
      %v1174 = vadd.f32 %v916, %v1152
      %v1175 = vadd.f32 %v917, %v1157
      %v1176 = vadd.f32 %v918, %v1160
      %v1177 = vadd.f32 %v919, %v1165
      %v1178 = vadd.f32 %v920, %v1168
      %v1179 = vld [vmem:[%s774] sm:$0xe]
      %v1180 = vld [vmem:[%s774 + $0x8] sm:$0xe]
      %v1181 = vld [vmem:[%s774 + $0x10] sm:$0xe]
      %v1182 = vld [vmem:[%s774 + $0x18] sm:$0xe]
      %v1183 = vld [vmem:[%s774 + $0x20] sm:$0xe]
      %v1184 = vld [vmem:[%s774 + $0x28] sm:$0xe]
      %v1185 = vld [vmem:[%s774 + $0x30] sm:$0xe]
      %v1186 = vld [vmem:[%s774 + $0x38] sm:$0xe]
      %v1203 = vrot.slane %v1179, 5
      %v1204 = vrot.slane %v1203, 4
      %v1205 = vrot.slane %v922, 5
      %v1206 = vsel %vm608, %v1204, %v1205
      %v1207 = vrot.slane %v1180, 5
      %v1208 = vrot.slane %v1207, 4
      %v1209 = vrot.slane %v924, 5
      %v1210 = vsel %vm608, %v1208, %v1209
      %v1211 = vrot.slane %v1181, 5
      %v1212 = vrot.slane %v1211, 4
      %v1213 = vrot.slane %v926, 5
      %v1214 = vsel %vm608, %v1212, %v1213
      %v1215 = vrot.slane %v1182, 5
      %v1216 = vrot.slane %v1215, 4
      %v1217 = vrot.slane %v928, 5
      %v1218 = vsel %vm608, %v1216, %v1217
      %v1219 = vrot.slane %v1183, 5
      %v1220 = vrot.slane %v1219, 4
      %v1221 = vrot.slane %v930, 5
      %v1222 = vsel %vm608, %v1220, %v1221
      %v1223 = vrot.slane %v1184, 5
      %v1224 = vrot.slane %v1223, 4
      %v1225 = vrot.slane %v932, 5
      %v1226 = vsel %vm608, %v1224, %v1225
      %v1227 = vrot.slane %v1185, 5
      %v1228 = vrot.slane %v1227, 4
      %v1229 = vrot.slane %v934, 5
      %v1230 = vsel %vm608, %v1228, %v1229
      %v1231 = vrot.slane %v1186, 5
      %v1232 = vrot.slane %v1231, 4
      %v1233 = vrot.slane %v936, 5
      %v1234 = vsel %vm608, %v1232, %v1233
      %s1235 = scalar_lea.vmem %s1, 160
      %v1236 = vld [vmem:[%s1235] sm:$0xf]
      %v1237 = vld [vmem:[%s1235 + $0x4] sm:$0xf]
      %v1238 = vld [vmem:[%s1235 + $0x8] sm:$0xf]
      %v1239 = vld [vmem:[%s1235 + $0xc] sm:$0xf]
      %v1240 = vld [vmem:[%s1235 + $0x10] sm:$0xf]
      %v1241 = vld [vmem:[%s1235 + $0x14] sm:$0xf]
      %v1242 = vld [vmem:[%s1235 + $0x18] sm:$0xf]
      %v1243 = vld [vmem:[%s1235 + $0x1c] sm:$0xf]
      %v1244 = vunpack.c.l.b16 %v1206
      %v1245 = vunpack.c.l.b16 %v1210
      %v1246 = vunpack.c.l.b16 %v1214
      %v1247 = vunpack.c.l.b16 %v1218
      %v1248 = vunpack.c.l.b16 %v1222
      %v1249 = vunpack.c.l.b16 %v1226
      %v1250 = vunpack.c.l.b16 %v1230
      %v1251 = vunpack.c.l.b16 %v1234
      %v1252 = vpack.c.b16 %v1245, %v1244
      %v1253 = vpack.c.b16 %v1247, %v1246
      %v1254 = vpack.c.b16 %v1249, %v1248
      %v1255 = vpack.c.b16 %v1251, %v1250
      %v1264 = vunpack.c.l.b16 %v1236
      %v1265 = vunpack.c.l.b16 %v1237
      %v1266 = vunpack.c.l.b16 %v1238
      %v1267 = vunpack.c.l.b16 %v1239
      %v1268 = vunpack.c.l.b16 %v1240
      %v1269 = vunpack.c.l.b16 %v1241
      %v1270 = vunpack.c.l.b16 %v1242
      %v1271 = vunpack.c.l.b16 %v1243
      %v1272 = vpack.c.b16 %v1265, %v1264
      %v1273 = vpack.c.b16 %v1267, %v1266
      %v1274 = vpack.c.b16 %v1269, %v1268
      %v1275 = vpack.c.b16 %v1271, %v1270
      %v1281 = vsel %vm383, %v1252, 0
      %v1284 = vsel %vm383, %v1253, 0
      %v1287 = vsel %vm383, %v1254, 0
      %v1290 = vsel %vm383, %v1255, 0
      %1292 = vmatprep.subr.bf16.mxu0 0
      %1293 = vmatpush1.bf16.msra.mxu0 %v1272
      %1294 = vmatprep.subr.bf16.mxu0 0
      %1295 = vmatpush1.bf16.msra.mxu0 %v1273
      %1296 = vmatprep.subr.bf16.mxu0 0
      %1297 = vmatpush1.bf16.msra.mxu0 %v1274
      %1298 = vmatprep.subr.bf16.mxu0 0
      %1299 = vmatpush1.bf16.msra.mxu0 %v1275
      %1300 = vmatprep.subr.bf16.mxu0 0
      %1301 = vmatpush1.bf16.msra.mxu0 0
      %1302 = vmatprep.subr.bf16.mxu0 0
      %1303 = vmatpush1.bf16.msra.mxu0 0
      %1304 = vmatprep.subr.bf16.mxu0 0
      %1305 = vmatpush1.bf16.msra.mxu0 0
      %1306 = vmatprep.subr.bf16.mxu0 0
      %1307 = vmatpush1.bf16.msra.mxu0 0
      %1308 = vmatprep.subr.bf16.mxu0 0
      %1309 = vmatpush1.bf16.msra.mxu0 0
      %1310 = vmatprep.subr.bf16.mxu0 0
      %1311 = vmatpush1.bf16.msra.mxu0 0
      %1312 = vmatprep.subr.bf16.mxu0 0
      %1313 = vmatpush1.bf16.msra.mxu0 0
      %1314 = vmatprep.subr.bf16.mxu0 0
      %1315 = vmatpush1.bf16.msra.mxu0 0
      %1316 = vmatprep.subr.bf16.mxu0 0
      %1317 = vmatpush1.bf16.msra.mxu0 0
      %1318 = vmatprep.subr.bf16.mxu0 0
      %1319 = vmatpush1.bf16.msra.mxu0 0
      %1320 = vmatprep.subr.bf16.mxu0 0
      %1321 = vmatpush1.bf16.msra.mxu0 0
      %1322 = vmatprep.subr.bf16.mxu0 0
      %1323 = vmatpush1.bf16.msra.mxu0 0
      %1324 = vmatprep.mubr.bf16.mxu0 0
      %1325 = vmatmul.mubr.bf16.gmra.mrb[0].mxu0 %v1281
      %v1326 = vpop.f32.mrb[0].mxu0
      %v1327 = vadd.f32 0.0, %v1326
      %v1328 = vpop.f32.mrb[0].mxu0
      %v1329 = vpop.f32.mrb[0].mxu0
      %v1330 = vadd.f32 0.0, %v1329
      %v1331 = vpop.f32.mrb[0].mxu0
      %1332 = vmatprep.mubr.bf16.mxu0 0
      %1333 = vmatmul.mubr.bf16.gmra.mrb[0].mxu0 %v1284
      %v1334 = vpop.f32.mrb[0].mxu0
      %v1335 = vadd.f32 0.0, %v1334
      %v1336 = vpop.f32.mrb[0].mxu0
      %v1337 = vpop.f32.mrb[0].mxu0
      %v1338 = vadd.f32 0.0, %v1337
      %v1339 = vpop.f32.mrb[0].mxu0
      %1340 = vmatprep.mubr.bf16.mxu0 0
      %1341 = vmatmul.mubr.bf16.gmra.mrb[0].mxu0 %v1287
      %v1342 = vpop.f32.mrb[0].mxu0
      %v1343 = vadd.f32 0.0, %v1342
      %v1344 = vpop.f32.mrb[0].mxu0
      %v1345 = vpop.f32.mrb[0].mxu0
      %v1346 = vadd.f32 0.0, %v1345
      %v1347 = vpop.f32.mrb[0].mxu0
      %1348 = vmatprep.mubr.bf16.mxu0 0
      %1349 = vmatmul.mubr.bf16.gmra.mrb[0].mxu0 %v1290
      %v1350 = vpop.f32.mrb[0].mxu0
      %v1351 = vadd.f32 0.0, %v1350
      %v1352 = vpop.f32.mrb[0].mxu0
      %v1353 = vpop.f32.mrb[0].mxu0
      %v1354 = vadd.f32 0.0, %v1353
      %v1355 = vpop.f32.mrb[0].mxu0
      %1356 = vdwg.mxu0
      %v1357 = vadd.f32 %v1171, %v1327
      %v1358 = vadd.f32 %v1172, %v1330
      %v1359 = vadd.f32 %v1173, %v1335
      %v1360 = vadd.f32 %v1174, %v1338
      %v1361 = vadd.f32 %v1175, %v1343
      %v1362 = vadd.f32 %v1176, %v1346
      %v1363 = vadd.f32 %v1177, %v1351
      %v1364 = vadd.f32 %v1178, %v1354
      %s1365 = sadd.s32 %s195, 2
      %s1366 = smul.u32 %s1365, 2
      %s1367 = smul.addr %s1366, 4
      %s1368 = scalar_lea.vmem %s183, %s1367
      %v1369 = vld [vmem:[%s1368] sm:$0xf]
      %v1370 = vld [vmem:[%s1368 + $0x8] sm:$0xf]
      %v1371 = vld [vmem:[%s1368 + $0x10] sm:$0xf]
      %v1372 = vld [vmem:[%s1368 + $0x18] sm:$0xf]
      %v1373 = vld [vmem:[%s1368 + $0x20] sm:$0xf]
      %v1374 = vld [vmem:[%s1368 + $0x28] sm:$0xf]
      %v1375 = vld [vmem:[%s1368 + $0x30] sm:$0xf]
      %v1376 = vld [vmem:[%s1368 + $0x38] sm:$0xf]
      %s1377 = scalar_lea.vmem %s1, 192
      %v1378 = vld [vmem:[%s1377] sm:$0xf]
      %v1379 = vld [vmem:[%s1377 + $0x4] sm:$0xf]
      %v1380 = vld [vmem:[%s1377 + $0x8] sm:$0xf]
      %v1381 = vld [vmem:[%s1377 + $0xc] sm:$0xf]
      %v1382 = vld [vmem:[%s1377 + $0x10] sm:$0xf]
      %v1383 = vld [vmem:[%s1377 + $0x14] sm:$0xf]
      %v1384 = vld [vmem:[%s1377 + $0x18] sm:$0xf]
      %v1385 = vld [vmem:[%s1377 + $0x1c] sm:$0xf]
      %v1394 = vunpack.c.l.b16 %v1369
      %v1395 = vunpack.c.l.b16 %v1370
      %v1396 = vunpack.c.l.b16 %v1371
      %v1397 = vunpack.c.l.b16 %v1372
      %v1398 = vunpack.c.l.b16 %v1373
      %v1399 = vunpack.c.l.b16 %v1374
      %v1400 = vunpack.c.l.b16 %v1375
      %v1401 = vunpack.c.l.b16 %v1376
      %v1402 = vpack.c.b16 %v1395, %v1394
      %v1403 = vpack.c.b16 %v1397, %v1396
      %v1404 = vpack.c.b16 %v1399, %v1398
      %v1405 = vpack.c.b16 %v1401, %v1400
      %v1414 = vunpack.c.l.b16 %v1378
      %v1415 = vunpack.c.l.b16 %v1379
      %v1416 = vunpack.c.l.b16 %v1380
      %v1417 = vunpack.c.l.b16 %v1381
      %v1418 = vunpack.c.l.b16 %v1382
      %v1419 = vunpack.c.l.b16 %v1383
      %v1420 = vunpack.c.l.b16 %v1384
      %v1421 = vunpack.c.l.b16 %v1385
      %v1422 = vpack.c.b16 %v1415, %v1414
      %v1423 = vpack.c.b16 %v1417, %v1416
      %v1424 = vpack.c.b16 %v1419, %v1418
      %v1425 = vpack.c.b16 %v1421, %v1420
      %v1431 = vsel %vm383, %v1402, 0
      %v1434 = vsel %vm383, %v1403, 0
      %v1437 = vsel %vm383, %v1404, 0
      %v1440 = vsel %vm383, %v1405, 0
      %1442 = vmatprep.subr.bf16.mxu0 0
      %1443 = vmatpush1.bf16.msra.mxu0 %v1422
      %1444 = vmatprep.subr.bf16.mxu0 0
      %1445 = vmatpush1.bf16.msra.mxu0 %v1423
      %1446 = vmatprep.subr.bf16.mxu0 0
      %1447 = vmatpush1.bf16.msra.mxu0 %v1424
      %1448 = vmatprep.subr.bf16.mxu0 0
      %1449 = vmatpush1.bf16.msra.mxu0 %v1425
      %1450 = vmatprep.subr.bf16.mxu0 0
      %1451 = vmatpush1.bf16.msra.mxu0 0
      %1452 = vmatprep.subr.bf16.mxu0 0
      %1453 = vmatpush1.bf16.msra.mxu0 0
      %1454 = vmatprep.subr.bf16.mxu0 0
      %1455 = vmatpush1.bf16.msra.mxu0 0
      %1456 = vmatprep.subr.bf16.mxu0 0
      %1457 = vmatpush1.bf16.msra.mxu0 0
      %1458 = vmatprep.subr.bf16.mxu0 0
      %1459 = vmatpush1.bf16.msra.mxu0 0
      %1460 = vmatprep.subr.bf16.mxu0 0
      %1461 = vmatpush1.bf16.msra.mxu0 0
      %1462 = vmatprep.subr.bf16.mxu0 0
      %1463 = vmatpush1.bf16.msra.mxu0 0
      %1464 = vmatprep.subr.bf16.mxu0 0
      %1465 = vmatpush1.bf16.msra.mxu0 0
      %1466 = vmatprep.subr.bf16.mxu0 0
      %1467 = vmatpush1.bf16.msra.mxu0 0
      %1468 = vmatprep.subr.bf16.mxu0 0
      %1469 = vmatpush1.bf16.msra.mxu0 0
      %1470 = vmatprep.subr.bf16.mxu0 0
      %1471 = vmatpush1.bf16.msra.mxu0 0
      %1472 = vmatprep.subr.bf16.mxu0 0
      %1473 = vmatpush1.bf16.msra.mxu0 0
      %1474 = vmatprep.mubr.bf16.mxu0 0
      %1475 = vmatmul.mubr.bf16.gmra.mrb[0].mxu0 %v1431
      %v1476 = vpop.f32.mrb[0].mxu0
      %v1477 = vadd.f32 0.0, %v1476
      %v1478 = vpop.f32.mrb[0].mxu0
      %v1479 = vpop.f32.mrb[0].mxu0
      %v1480 = vadd.f32 0.0, %v1479
      %v1481 = vpop.f32.mrb[0].mxu0
      %1482 = vmatprep.mubr.bf16.mxu0 0
      %1483 = vmatmul.mubr.bf16.gmra.mrb[0].mxu0 %v1434
      %v1484 = vpop.f32.mrb[0].mxu0
      %v1485 = vadd.f32 0.0, %v1484
      %v1486 = vpop.f32.mrb[0].mxu0
      %v1487 = vpop.f32.mrb[0].mxu0
      %v1488 = vadd.f32 0.0, %v1487
      %v1489 = vpop.f32.mrb[0].mxu0
      %1490 = vmatprep.mubr.bf16.mxu0 0
      %1491 = vmatmul.mubr.bf16.gmra.mrb[0].mxu0 %v1437
      %v1492 = vpop.f32.mrb[0].mxu0
      %v1493 = vadd.f32 0.0, %v1492
      %v1494 = vpop.f32.mrb[0].mxu0
      %v1495 = vpop.f32.mrb[0].mxu0
      %v1496 = vadd.f32 0.0, %v1495
      %v1497 = vpop.f32.mrb[0].mxu0
      %1498 = vmatprep.mubr.bf16.mxu0 0
      %1499 = vmatmul.mubr.bf16.gmra.mrb[0].mxu0 %v1440
      %v1500 = vpop.f32.mrb[0].mxu0
      %v1501 = vadd.f32 0.0, %v1500
      %v1502 = vpop.f32.mrb[0].mxu0
      %v1503 = vpop.f32.mrb[0].mxu0
      %v1504 = vadd.f32 0.0, %v1503
      %v1505 = vpop.f32.mrb[0].mxu0
      %1506 = vdwg.mxu0
      %v1507 = vadd.f32 %v1357, %v1477
      %v1508 = vadd.f32 %v1358, %v1480
      %v1509 = vadd.f32 %v1359, %v1485
      %v1510 = vadd.f32 %v1360, %v1488
      %v1511 = vadd.f32 %v1361, %v1493
      %v1512 = vadd.f32 %v1362, %v1496
      %v1513 = vadd.f32 %v1363, %v1501
      %v1514 = vadd.f32 %v1364, %v1504
      %v1515 = vld [vmem:[%s1368] sm:$0xf]
      %v1516 = vld [vmem:[%s1368 + $0x4] sm:$0x1]
      %v1517 = vld [vmem:[%s1368 + $0x8] sm:$0xf]
      %v1518 = vld [vmem:[%s1368 + $0xc] sm:$0x1]
      %v1519 = vld [vmem:[%s1368 + $0x10] sm:$0xf]
      %v1520 = vld [vmem:[%s1368 + $0x14] sm:$0x1]
      %v1521 = vld [vmem:[%s1368 + $0x18] sm:$0xf]
      %v1522 = vld [vmem:[%s1368 + $0x1c] sm:$0x1]
      %v1523 = vld [vmem:[%s1368 + $0x20] sm:$0xf]
      %v1524 = vld [vmem:[%s1368 + $0x24] sm:$0x1]
      %v1525 = vld [vmem:[%s1368 + $0x28] sm:$0xf]
      %v1526 = vld [vmem:[%s1368 + $0x2c] sm:$0x1]
      %v1527 = vld [vmem:[%s1368 + $0x30] sm:$0xf]
      %v1528 = vld [vmem:[%s1368 + $0x34] sm:$0x1]
      %v1529 = vld [vmem:[%s1368 + $0x38] sm:$0xf]
      %v1530 = vld [vmem:[%s1368 + $0x3c] sm:$0x1]
      %v1532 = vshrl.u32 %v1515, 16
      %v1534 = vrot.slane %v1532, 4
      %v1535 = vshll.u32 %v1515, 16
      %v1537 = vrot.slane %v1535, 5
      %v1538 = vor.u32 %v1534, %v1537
      %v1539 = vrot.slane %v1538, 4
      %v1541 = vshll.u32 %v1516, 16
      %v1543 = vrot.slane %v1541, 5
      %v1544 = vsel %vm225, %v1539, %v1543
      %v1546 = vshrl.u32 %v1517, 16
      %v1548 = vrot.slane %v1546, 4
      %v1549 = vshll.u32 %v1517, 16
      %v1551 = vrot.slane %v1549, 5
      %v1552 = vor.u32 %v1548, %v1551
      %v1553 = vrot.slane %v1552, 4
      %v1555 = vshll.u32 %v1518, 16
      %v1557 = vrot.slane %v1555, 5
      %v1558 = vsel %vm225, %v1553, %v1557
      %v1560 = vshrl.u32 %v1519, 16
      %v1562 = vrot.slane %v1560, 4
      %v1563 = vshll.u32 %v1519, 16
      %v1565 = vrot.slane %v1563, 5
      %v1566 = vor.u32 %v1562, %v1565
      %v1567 = vrot.slane %v1566, 4
      %v1569 = vshll.u32 %v1520, 16
      %v1571 = vrot.slane %v1569, 5
      %v1572 = vsel %vm225, %v1567, %v1571
      %v1574 = vshrl.u32 %v1521, 16
      %v1576 = vrot.slane %v1574, 4
      %v1577 = vshll.u32 %v1521, 16
      %v1579 = vrot.slane %v1577, 5
      %v1580 = vor.u32 %v1576, %v1579
      %v1581 = vrot.slane %v1580, 4
      %v1583 = vshll.u32 %v1522, 16
      %v1585 = vrot.slane %v1583, 5
      %v1586 = vsel %vm225, %v1581, %v1585
      %v1588 = vshrl.u32 %v1523, 16
      %v1590 = vrot.slane %v1588, 4
      %v1591 = vshll.u32 %v1523, 16
      %v1593 = vrot.slane %v1591, 5
      %v1594 = vor.u32 %v1590, %v1593
      %v1595 = vrot.slane %v1594, 4
      %v1597 = vshll.u32 %v1524, 16
      %v1599 = vrot.slane %v1597, 5
      %v1600 = vsel %vm225, %v1595, %v1599
      %v1602 = vshrl.u32 %v1525, 16
      %v1604 = vrot.slane %v1602, 4
      %v1605 = vshll.u32 %v1525, 16
      %v1607 = vrot.slane %v1605, 5
      %v1608 = vor.u32 %v1604, %v1607
      %v1609 = vrot.slane %v1608, 4
      %v1611 = vshll.u32 %v1526, 16
      %v1613 = vrot.slane %v1611, 5
      %v1614 = vsel %vm225, %v1609, %v1613
      %v1616 = vshrl.u32 %v1527, 16
      %v1618 = vrot.slane %v1616, 4
      %v1619 = vshll.u32 %v1527, 16
      %v1621 = vrot.slane %v1619, 5
      %v1622 = vor.u32 %v1618, %v1621
      %v1623 = vrot.slane %v1622, 4
      %v1625 = vshll.u32 %v1528, 16
      %v1627 = vrot.slane %v1625, 5
      %v1628 = vsel %vm225, %v1623, %v1627
      %v1630 = vshrl.u32 %v1529, 16
      %v1632 = vrot.slane %v1630, 4
      %v1633 = vshll.u32 %v1529, 16
      %v1635 = vrot.slane %v1633, 5
      %v1636 = vor.u32 %v1632, %v1635
      %v1637 = vrot.slane %v1636, 4
      %v1639 = vshll.u32 %v1530, 16
      %v1641 = vrot.slane %v1639, 5
      %v1642 = vsel %vm225, %v1637, %v1641
      %s1643 = scalar_lea.vmem %s1, 224
      %v1644 = vld [vmem:[%s1643] sm:$0xf]
      %v1645 = vld [vmem:[%s1643 + $0x4] sm:$0xf]
      %v1646 = vld [vmem:[%s1643 + $0x8] sm:$0xf]
      %v1647 = vld [vmem:[%s1643 + $0xc] sm:$0xf]
      %v1648 = vld [vmem:[%s1643 + $0x10] sm:$0xf]
      %v1649 = vld [vmem:[%s1643 + $0x14] sm:$0xf]
      %v1650 = vld [vmem:[%s1643 + $0x18] sm:$0xf]
      %v1651 = vld [vmem:[%s1643 + $0x1c] sm:$0xf]
      %v1652 = vunpack.c.l.b16 %v1544
      %v1653 = vunpack.c.l.b16 %v1558
      %v1654 = vunpack.c.l.b16 %v1572
      %v1655 = vunpack.c.l.b16 %v1586
      %v1656 = vunpack.c.l.b16 %v1600
      %v1657 = vunpack.c.l.b16 %v1614
      %v1658 = vunpack.c.l.b16 %v1628
      %v1659 = vunpack.c.l.b16 %v1642
      %v1660 = vpack.c.b16 %v1653, %v1652
      %v1661 = vpack.c.b16 %v1655, %v1654
      %v1662 = vpack.c.b16 %v1657, %v1656
      %v1663 = vpack.c.b16 %v1659, %v1658
      %v1672 = vunpack.c.l.b16 %v1644
      %v1673 = vunpack.c.l.b16 %v1645
      %v1674 = vunpack.c.l.b16 %v1646
      %v1675 = vunpack.c.l.b16 %v1647
      %v1676 = vunpack.c.l.b16 %v1648
      %v1677 = vunpack.c.l.b16 %v1649
      %v1678 = vunpack.c.l.b16 %v1650
      %v1679 = vunpack.c.l.b16 %v1651
      %v1680 = vpack.c.b16 %v1673, %v1672
      %v1681 = vpack.c.b16 %v1675, %v1674
      %v1682 = vpack.c.b16 %v1677, %v1676
      %v1683 = vpack.c.b16 %v1679, %v1678
      %v1689 = vsel %vm383, %v1660, 0
      %v1692 = vsel %vm383, %v1661, 0
      %v1695 = vsel %vm383, %v1662, 0
      %v1698 = vsel %vm383, %v1663, 0
      %1700 = vmatprep.subr.bf16.mxu0 0
      %1701 = vmatpush1.bf16.msra.mxu0 %v1680
      %1702 = vmatprep.subr.bf16.mxu0 0
      %1703 = vmatpush1.bf16.msra.mxu0 %v1681
      %1704 = vmatprep.subr.bf16.mxu0 0
      %1705 = vmatpush1.bf16.msra.mxu0 %v1682
      %1706 = vmatprep.subr.bf16.mxu0 0
      %1707 = vmatpush1.bf16.msra.mxu0 %v1683
      %1708 = vmatprep.subr.bf16.mxu0 0
      %1709 = vmatpush1.bf16.msra.mxu0 0
      %1710 = vmatprep.subr.bf16.mxu0 0
      %1711 = vmatpush1.bf16.msra.mxu0 0
      %1712 = vmatprep.subr.bf16.mxu0 0
      %1713 = vmatpush1.bf16.msra.mxu0 0
      %1714 = vmatprep.subr.bf16.mxu0 0
      %1715 = vmatpush1.bf16.msra.mxu0 0
      %1716 = vmatprep.subr.bf16.mxu0 0
      %1717 = vmatpush1.bf16.msra.mxu0 0
      %1718 = vmatprep.subr.bf16.mxu0 0
      %1719 = vmatpush1.bf16.msra.mxu0 0
      %1720 = vmatprep.subr.bf16.mxu0 0
      %1721 = vmatpush1.bf16.msra.mxu0 0
      %1722 = vmatprep.subr.bf16.mxu0 0
      %1723 = vmatpush1.bf16.msra.mxu0 0
      %1724 = vmatprep.subr.bf16.mxu0 0
      %1725 = vmatpush1.bf16.msra.mxu0 0
      %1726 = vmatprep.subr.bf16.mxu0 0
      %1727 = vmatpush1.bf16.msra.mxu0 0
      %1728 = vmatprep.subr.bf16.mxu0 0
      %1729 = vmatpush1.bf16.msra.mxu0 0
      %1730 = vmatprep.subr.bf16.mxu0 0
      %1731 = vmatpush1.bf16.msra.mxu0 0
      %1732 = vmatprep.mubr.bf16.mxu0 0
      %1733 = vmatmul.mubr.bf16.gmra.mrb[0].mxu0 %v1689
      %v1734 = vpop.f32.mrb[0].mxu0
      %v1735 = vadd.f32 0.0, %v1734
      %v1736 = vpop.f32.mrb[0].mxu0
      %v1737 = vpop.f32.mrb[0].mxu0
      %v1738 = vadd.f32 0.0, %v1737
      %v1739 = vpop.f32.mrb[0].mxu0
      %1740 = vmatprep.mubr.bf16.mxu0 0
      %1741 = vmatmul.mubr.bf16.gmra.mrb[0].mxu0 %v1692
      %v1742 = vpop.f32.mrb[0].mxu0
      %v1743 = vadd.f32 0.0, %v1742
      %v1744 = vpop.f32.mrb[0].mxu0
      %v1745 = vpop.f32.mrb[0].mxu0
      %v1746 = vadd.f32 0.0, %v1745
      %v1747 = vpop.f32.mrb[0].mxu0
      %1748 = vmatprep.mubr.bf16.mxu0 0
      %1749 = vmatmul.mubr.bf16.gmra.mrb[0].mxu0 %v1695
      %v1750 = vpop.f32.mrb[0].mxu0
      %v1751 = vadd.f32 0.0, %v1750
      %v1752 = vpop.f32.mrb[0].mxu0
      %v1753 = vpop.f32.mrb[0].mxu0
      %v1754 = vadd.f32 0.0, %v1753
      %v1755 = vpop.f32.mrb[0].mxu0
      %1756 = vmatprep.mubr.bf16.mxu0 0
      %1757 = vmatmul.mubr.bf16.gmra.mrb[0].mxu0 %v1698
      %v1758 = vpop.f32.mrb[0].mxu0
      %v1759 = vadd.f32 0.0, %v1758
      %v1760 = vpop.f32.mrb[0].mxu0
      %v1761 = vpop.f32.mrb[0].mxu0
      %v1762 = vadd.f32 0.0, %v1761
      %v1763 = vpop.f32.mrb[0].mxu0
      %1764 = vdwg.mxu0
      %v1765 = vadd.f32 %v1507, %v1735
      %v1766 = vadd.f32 %v1508, %v1738
      %v1767 = vadd.f32 %v1509, %v1743
      %v1768 = vadd.f32 %v1510, %v1746
      %v1769 = vadd.f32 %v1511, %v1751
      %v1770 = vadd.f32 %v1512, %v1754
      %v1771 = vadd.f32 %v1513, %v1759
      %v1772 = vadd.f32 %v1514, %v1762
      %v1773 = vld [vmem:[%s1368] sm:$0xe]
      %v1774 = vld [vmem:[%s1368 + $0x8] sm:$0xe]
      %v1775 = vld [vmem:[%s1368 + $0x10] sm:$0xe]
      %v1776 = vld [vmem:[%s1368 + $0x18] sm:$0xe]
      %v1777 = vld [vmem:[%s1368 + $0x20] sm:$0xe]
      %v1778 = vld [vmem:[%s1368 + $0x28] sm:$0xe]
      %v1779 = vld [vmem:[%s1368 + $0x30] sm:$0xe]
      %v1780 = vld [vmem:[%s1368 + $0x38] sm:$0xe]
      %v1797 = vrot.slane %v1773, 5
      %v1798 = vrot.slane %v1797, 4
      %v1799 = vrot.slane %v1516, 5
      %v1800 = vsel %vm608, %v1798, %v1799
      %v1801 = vrot.slane %v1774, 5
      %v1802 = vrot.slane %v1801, 4
      %v1803 = vrot.slane %v1518, 5
      %v1804 = vsel %vm608, %v1802, %v1803
      %v1805 = vrot.slane %v1775, 5
      %v1806 = vrot.slane %v1805, 4
      %v1807 = vrot.slane %v1520, 5
      %v1808 = vsel %vm608, %v1806, %v1807
      %v1809 = vrot.slane %v1776, 5
      %v1810 = vrot.slane %v1809, 4
      %v1811 = vrot.slane %v1522, 5
      %v1812 = vsel %vm608, %v1810, %v1811
      %v1813 = vrot.slane %v1777, 5
      %v1814 = vrot.slane %v1813, 4
      %v1815 = vrot.slane %v1524, 5
      %v1816 = vsel %vm608, %v1814, %v1815
      %v1817 = vrot.slane %v1778, 5
      %v1818 = vrot.slane %v1817, 4
      %v1819 = vrot.slane %v1526, 5
      %v1820 = vsel %vm608, %v1818, %v1819
      %v1821 = vrot.slane %v1779, 5
      %v1822 = vrot.slane %v1821, 4
      %v1823 = vrot.slane %v1528, 5
      %v1824 = vsel %vm608, %v1822, %v1823
      %v1825 = vrot.slane %v1780, 5
      %v1826 = vrot.slane %v1825, 4
      %v1827 = vrot.slane %v1530, 5
      %v1828 = vsel %vm608, %v1826, %v1827
      %s1829 = scalar_lea.vmem %s1, 256
      %v1830 = vld [vmem:[%s1829] sm:$0xf]
      %v1831 = vld [vmem:[%s1829 + $0x4] sm:$0xf]
      %v1832 = vld [vmem:[%s1829 + $0x8] sm:$0xf]
      %v1833 = vld [vmem:[%s1829 + $0xc] sm:$0xf]
      %v1834 = vld [vmem:[%s1829 + $0x10] sm:$0xf]
      %v1835 = vld [vmem:[%s1829 + $0x14] sm:$0xf]
      %v1836 = vld [vmem:[%s1829 + $0x18] sm:$0xf]
      %v1837 = vld [vmem:[%s1829 + $0x1c] sm:$0xf]
      %v1838 = vunpack.c.l.b16 %v1800
      %v1839 = vunpack.c.l.b16 %v1804
      %v1840 = vunpack.c.l.b16 %v1808
      %v1841 = vunpack.c.l.b16 %v1812
      %v1842 = vunpack.c.l.b16 %v1816
      %v1843 = vunpack.c.l.b16 %v1820
      %v1844 = vunpack.c.l.b16 %v1824
      %v1845 = vunpack.c.l.b16 %v1828
      %v1846 = vpack.c.b16 %v1839, %v1838
      %v1847 = vpack.c.b16 %v1841, %v1840
      %v1848 = vpack.c.b16 %v1843, %v1842
      %v1849 = vpack.c.b16 %v1845, %v1844
      %v1858 = vunpack.c.l.b16 %v1830
      %v1859 = vunpack.c.l.b16 %v1831
      %v1860 = vunpack.c.l.b16 %v1832
      %v1861 = vunpack.c.l.b16 %v1833
      %v1862 = vunpack.c.l.b16 %v1834
      %v1863 = vunpack.c.l.b16 %v1835
      %v1864 = vunpack.c.l.b16 %v1836
      %v1865 = vunpack.c.l.b16 %v1837
      %v1866 = vpack.c.b16 %v1859, %v1858
      %v1867 = vpack.c.b16 %v1861, %v1860
      %v1868 = vpack.c.b16 %v1863, %v1862
      %v1869 = vpack.c.b16 %v1865, %v1864
      %v1875 = vsel %vm383, %v1846, 0
      %v1878 = vsel %vm383, %v1847, 0
      %v1881 = vsel %vm383, %v1848, 0
      %v1884 = vsel %vm383, %v1849, 0
      %1886 = vmatprep.subr.bf16.mxu0 0
      %1887 = vmatpush1.bf16.msra.mxu0 %v1866
      %1888 = vmatprep.subr.bf16.mxu0 0
      %1889 = vmatpush1.bf16.msra.mxu0 %v1867
      %1890 = vmatprep.subr.bf16.mxu0 0
      %1891 = vmatpush1.bf16.msra.mxu0 %v1868
      %1892 = vmatprep.subr.bf16.mxu0 0
      %1893 = vmatpush1.bf16.msra.mxu0 %v1869
      %1894 = vmatprep.subr.bf16.mxu0 0
      %1895 = vmatpush1.bf16.msra.mxu0 0
      %1896 = vmatprep.subr.bf16.mxu0 0
      %1897 = vmatpush1.bf16.msra.mxu0 0
      %1898 = vmatprep.subr.bf16.mxu0 0
      %1899 = vmatpush1.bf16.msra.mxu0 0
      %1900 = vmatprep.subr.bf16.mxu0 0
      %1901 = vmatpush1.bf16.msra.mxu0 0
      %1902 = vmatprep.subr.bf16.mxu0 0
      %1903 = vmatpush1.bf16.msra.mxu0 0
      %1904 = vmatprep.subr.bf16.mxu0 0
      %1905 = vmatpush1.bf16.msra.mxu0 0
      %1906 = vmatprep.subr.bf16.mxu0 0
      %1907 = vmatpush1.bf16.msra.mxu0 0
      %1908 = vmatprep.subr.bf16.mxu0 0
      %1909 = vmatpush1.bf16.msra.mxu0 0
      %1910 = vmatprep.subr.bf16.mxu0 0
      %1911 = vmatpush1.bf16.msra.mxu0 0
      %1912 = vmatprep.subr.bf16.mxu0 0
      %1913 = vmatpush1.bf16.msra.mxu0 0
      %1914 = vmatprep.subr.bf16.mxu0 0
      %1915 = vmatpush1.bf16.msra.mxu0 0
      %1916 = vmatprep.subr.bf16.mxu0 0
      %1917 = vmatpush1.bf16.msra.mxu0 0
      %1918 = vmatprep.mubr.bf16.mxu0 0
      %1919 = vmatmul.mubr.bf16.gmra.mrb[0].mxu0 %v1875
      %v1920 = vpop.f32.mrb[0].mxu0
      %v1921 = vadd.f32 0.0, %v1920
      %v1922 = vpop.f32.mrb[0].mxu0
      %v1923 = vpop.f32.mrb[0].mxu0
      %v1924 = vadd.f32 0.0, %v1923
      %v1925 = vpop.f32.mrb[0].mxu0
      %1926 = vmatprep.mubr.bf16.mxu0 0
      %1927 = vmatmul.mubr.bf16.gmra.mrb[0].mxu0 %v1878
      %v1928 = vpop.f32.mrb[0].mxu0
      %v1929 = vadd.f32 0.0, %v1928
      %v1930 = vpop.f32.mrb[0].mxu0
      %v1931 = vpop.f32.mrb[0].mxu0
      %v1932 = vadd.f32 0.0, %v1931
      %v1933 = vpop.f32.mrb[0].mxu0
      %1934 = vmatprep.mubr.bf16.mxu0 0
      %1935 = vmatmul.mubr.bf16.gmra.mrb[0].mxu0 %v1881
      %v1936 = vpop.f32.mrb[0].mxu0
      %v1937 = vadd.f32 0.0, %v1936
      %v1938 = vpop.f32.mrb[0].mxu0
      %v1939 = vpop.f32.mrb[0].mxu0
      %v1940 = vadd.f32 0.0, %v1939
      %v1941 = vpop.f32.mrb[0].mxu0
      %1942 = vmatprep.mubr.bf16.mxu0 0
      %1943 = vmatmul.mubr.bf16.gmra.mrb[0].mxu0 %v1884
      %v1944 = vpop.f32.mrb[0].mxu0
      %v1945 = vadd.f32 0.0, %v1944
      %v1946 = vpop.f32.mrb[0].mxu0
      %v1947 = vpop.f32.mrb[0].mxu0
      %v1948 = vadd.f32 0.0, %v1947
      %v1949 = vpop.f32.mrb[0].mxu0
      %1950 = vdwg.mxu0
      %v1951 = vadd.f32 %v1765, %v1921
      %v1952 = vadd.f32 %v1766, %v1924
      %v1953 = vadd.f32 %v1767, %v1929
      %v1954 = vadd.f32 %v1768, %v1932
      %v1955 = vadd.f32 %v1769, %v1937
      %v1956 = vadd.f32 %v1770, %v1940
      %v1957 = vadd.f32 %v1771, %v1945
      %v1958 = vadd.f32 %v1772, %v1948
      %v1959 = vld [vmem:[%s2] sm:$0x1]
      %v1961 = vlaneseq
      %v1962 = vshrl.u32 %v1961, 7
      %v1963 = vsub.s32 0, %v1962
      %v1964 = vrot.slane %v1959, %v1963
      %v1966 = vadd.f32 %v1951, %v1964
      %v1967 = vadd.f32 %v1952, %v1964
      %v1968 = vadd.f32 %v1953, %v1964
      %v1969 = vadd.f32 %v1954, %v1964
      %v1970 = vadd.f32 %v1955, %v1964
      %v1971 = vadd.f32 %v1956, %v1964
      %v1972 = vadd.f32 %v1957, %v1964
      %v1973 = vadd.f32 %v1958, %v1964
      %v1974 = vtanh.pop %v1966
      %v1975 = vtanh.pop %v1967
      %v1976 = vtanh.pop %v1968
      %v1977 = vtanh.pop %v1969
      %v1978 = vtanh.pop %v1970
      %v1979 = vtanh.pop %v1971
      %v1980 = vtanh.pop %v1972
      %v1981 = vtanh.pop %v1973
      %vm1982 = vcmask 97280
      %1983 = vst.msk [vmem:[%s192] sm:$0xff] %vm1982, %v1974
      %1984 = vst.msk [vmem:[%s192 + $0x8] sm:$0xff] %vm1982, %v1975
      %1985 = vst.msk [vmem:[%s192 + $0x10] sm:$0xff] %vm1982, %v1976
      %1986 = vst.msk [vmem:[%s192 + $0x18] sm:$0xff] %vm1982, %v1977
      %1987 = vst.msk [vmem:[%s192 + $0x20] sm:$0xff] %vm1982, %v1978
      %1988 = vst.msk [vmem:[%s192 + $0x28] sm:$0xff] %vm1982, %v1979
      %1989 = vst.msk [vmem:[%s192 + $0x30] sm:$0xff] %vm1982, %v1980
      %1990 = vst.msk [vmem:[%s192 + $0x38] sm:$0xff] %vm1982, %v1981
      %s1991 = smul.u32 8, %s19
      %p1992 = scmp.lt.s32.totalorder %s18, 1
      %s1993 = scalar_select %p1992, %s18, 1
      %p1994 = scmp.lt.s32.totalorder %s1991, 7
      %s1995 = scalar_select %p1994, %s1991, 7
      %s1996 = smul.addr %s1993, 8
      %s1997 = sadd.s32 %s1995, %s1996
      %s1998 = smul.addr %s1997, 8
      %s1999 = scalar_lea.vmem %s3, %s1998
      // Predicated region
      $region33: #{generator_forward.11} parent=31 // pred_check
        %p2000 = pneg %p114
      $region34: #{generator_forward.11} parent=31 // pred_check_branch
        %2002 = sbr.rel (%p2000) target = $region36
      $region35: #{generator_forward.11} parent=31 // pred_region
        %s2003 = smul.u32 8, %s19
      $region36: #{generator_forward.11} parent=31 // pred_fallthru
        _
    $region32: #{generator_forward.11} parent=5 // pred_fallthru
      _
    %p2004 = scmp.le.s32.totalorder 2, %s9
    // Predicated region
    $region37: #{generator_forward.11} parent=5 // pred_check
      %p2005 = pneg %p2004
    $region38: #{generator_forward.11} parent=5 // pred_check_branch
      %2007 = sbr.rel (%p2005) target = $region40
    $region39: #{generator_forward.11} parent=5 // pred_region
      %s2008 = ssub.s32 %s9, 2
      // Predicated region
      $region41: #{generator_forward.11} parent=39 // pred_check
        %p2009 = pneg %p120
      $region42: #{generator_forward.11} parent=39 // pred_check_branch
        %2011 = sbr.rel (%p2009) target = $region44
      $region43: #{generator_forward.11} parent=39 // pred_region
        %s2012 = smul.u32 8, %s21
        %p2013 = scmp.lt.s32.totalorder %s20, 1
        %s2014 = scalar_select %p2013, %s20, 1
        %p2015 = scmp.lt.s32.totalorder %s2012, 7
        %s2016 = scalar_select %p2015, %s2012, 7
        %s2017 = smul.addr %s2014, 8
        %s2018 = sadd.s32 %s2016, %s2017
        %s2019 = smul.addr %s2018, 8
        %s2020 = scalar_lea.vmem %s3, %s2019
      $region44: #{generator_forward.11} parent=39 // pred_fallthru
        _
    $region40: #{generator_forward.11} parent=5 // pred_fallthru
      _
  $region6: #{generator_forward.11} parent=0 // loop_footer
    %s13 = sadd.s32 1, %s9
  $region7: #{generator_forward.11} parent=0 // loop_footer_branch
    %8 = sbr.rel target = $region3
  $region8: #{generator_forward.11} parent=0 // loop_exit
    _

</llo_original>
